<compile_context>
chip_gen: v7x
topology: tpu7x:2x2x1
jax: 0.10.0
libtpu: 0.0.40
codegen_flags: <defaults>
</compile_context>

<pallas_src>
import functools
import math

import jax
import jax.numpy as jnp
from jax import lax
from jax.experimental import pallas as pl
from jax.experimental.pallas import tpu as pltpu

BN_EPS = 1e-5
LEAKY_SLOPE = 0.2
VMEM_LIMIT = 32 * 1024 * 1024


# ----------------------------------------------------------------------------
# Pallas kernels
# ----------------------------------------------------------------------------
def _conv3x3s2_bn_lrelu_kernel(x_ref, w_ref, scale_ref, shift_ref, o_ref, *,
                               ho, wo, cin, cout, trows):
    """Fused Conv2d(3x3, stride 2, pad 1) + BN(eval) + LeakyReLU for one image.

    x_ref : (2, 2, ho+1, wo+1, cin) f32  parity-split padded NHWC input,
            x_ref[p, q, a, b, :] == x_pad[2a + p, 2b + q, :]
    w_ref : (9, cin, cout) bf16          tap-major conv weights
    scale_ref / shift_ref : (1, cout) f32  folded BN (+ conv bias)
    o_ref : (ho*wo, cout) f32
    """
    scale = scale_ref[...]
    shift = shift_ref[...]
    nchunks = ho // trows
    chunk_rows = trows * wo

    def body(c, carry):
        row0 = c * trows
        acc = jnp.zeros((chunk_rows, cout), jnp.float32)
        for kh in range(3):
            for kw in range(3):
                tap = x_ref[kh % 2, kw % 2,
                            pl.ds(row0 + kh // 2, trows),
                            pl.ds(kw // 2, wo), :]
                lhs = tap.reshape(chunk_rows, cin).astype(jnp.bfloat16)
                acc = acc + jnp.dot(lhs, w_ref[3 * kh + kw],
                                    preferred_element_type=jnp.float32)
        y = acc * scale + shift
        y = jnp.where(y > 0.0, y, LEAKY_SLOPE * y)
        out0 = pl.multiple_of(c * chunk_rows, chunk_rows)
        o_ref[pl.ds(out0, chunk_rows), :] = y
        return carry

    lax.fori_loop(0, nchunks, body, 0)


def _matmul_bn_lrelu_kernel(x_ref, w_ref, scale_ref, shift_ref, o_ref, *, tm):
    """Fused im2col-matmul + BN(eval) + LeakyReLU (first block, tiny Cin).

    x_ref : (M, K) bf16  im2col patches (K = 9 * cin)
    w_ref : (K, cout) bf16
    o_ref : (M, cout) f32
    """
    w = w_ref[...]
    scale = scale_ref[...]
    shift = shift_ref[...]
    nchunks = x_ref.shape[0] // tm

    def body(c, carry):
        r0 = pl.multiple_of(c * tm, tm)
        acc = jnp.dot(x_ref[pl.ds(r0, tm), :], w,
                      preferred_element_type=jnp.float32)
        y = acc * scale + shift
        o_ref[pl.ds(r0, tm), :] = jnp.where(y > 0.0, y, LEAKY_SLOPE * y)
        return carry

    lax.fori_loop(0, nchunks, body, 0)


def _linear_kernel(x_ref, w_ref, b_ref, o_ref, *, kc):
    """out = x @ w.T + b, with w given as a (1, K) row; x: (N, K)."""
    n = x_ref.shape[0]
    nk = x_ref.shape[1] // kc

    def body(i, acc):
        k0 = pl.multiple_of(i * kc, kc)
        xb = x_ref[:, pl.ds(k0, kc)]
        wb = w_ref[:, pl.ds(k0, kc)]
        return acc + jnp.sum(xb * wb, axis=1, keepdims=True)

    acc = lax.fori_loop(0, nk, body, jnp.zeros((n, 1), jnp.float32))
    o_ref[...] = acc + b_ref[...]


# ----------------------------------------------------------------------------
# Layer wrappers
# ----------------------------------------------------------------------------
def _fold_bn(bias, gamma, beta, mean, var):
    scale = gamma / jnp.sqrt(var + BN_EPS)
    shift = beta + (bias - mean) * scale
    return (scale.reshape(1, -1).astype(jnp.float32),
            shift.reshape(1, -1).astype(jnp.float32))


def conv_block_first_pallas(x_nhwc, blk):
    """First ConvBlock (Cin is tiny): one K=9*Cin im2col matmul per image."""
    w, b = blk["w"], blk["b"]
    n, h, wdt, cin = x_nhwc.shape
    cout = w.shape[0]
    ho, wo = h // 2, wdt // 2
    m, k = ho * wo, 9 * cin

    xp = jnp.pad(x_nhwc, ((0, 0), (1, 1), (1, 1), (0, 0)))
    taps = [xp[:, kh:kh + 2 * ho:2, kw:kw + 2 * wo:2, :]
            for kh in range(3) for kw in range(3)]
    patch = jnp.concatenate(taps, axis=-1).reshape(n, m, k).astype(jnp.bfloat16)
    w2 = jnp.transpose(w, (2, 3, 1, 0)).reshape(k, cout).astype(jnp.bfloat16)
    scale, shift = _fold_bn(b, blk["gamma"], blk["beta"], blk["mean"], blk["var"])
    tm = math.gcd(m, 256)

    out = pl.pallas_call(
        functools.partial(_matmul_bn_lrelu_kernel, tm=tm),
        out_shape=jax.ShapeDtypeStruct((n, m, cout), jnp.float32),
        grid=(n,),
        in_specs=[
            pl.BlockSpec((None, m, k), lambda i: (i, 0, 0)),
            pl.BlockSpec((k, cout), lambda i: (0, 0)),
            pl.BlockSpec((1, cout), lambda i: (0, 0)),
            pl.BlockSpec((1, cout), lambda i: (0, 0)),
        ],
        out_specs=pl.BlockSpec((None, m, cout), lambda i: (i, 0, 0)),
        compiler_params=pltpu.CompilerParams(
            dimension_semantics=("parallel",),
            vmem_limit_bytes=VMEM_LIMIT),
    )(patch, w2, scale, shift)
    return out.reshape(n, ho, wo, cout)


def conv_block_pallas(x_nhwc, blk):
    """ConvBlock with the 9 taps sliced in-kernel from a parity-split input."""
    w, b = blk["w"], blk["b"]
    n, h, wdt, cin = x_nhwc.shape
    cout = w.shape[0]
    ho, wo = h // 2, wdt // 2

    xp = jnp.pad(x_nhwc, ((0, 0), (1, 1), (1, 1), (0, 0)))
    xp = xp.reshape(n, ho + 1, 2, wo + 1, 2, cin)
    xpar = jnp.transpose(xp, (0, 2, 4, 1, 3, 5))       # (n, 2, 2, ho+1, wo+1, cin)
    w9 = jnp.transpose(w, (2, 3, 1, 0)).reshape(9, cin, cout).astype(jnp.bfloat16)
    scale, shift = _fold_bn(b, blk["gamma"], blk["beta"], blk["mean"], blk["var"])
    trows = math.gcd(ho, max(1, 128 // wo))            # ~128-row MXU chunks

    out = pl.pallas_call(
        functools.partial(_conv3x3s2_bn_lrelu_kernel,
                          ho=ho, wo=wo, cin=cin, cout=cout, trows=trows),
        out_shape=jax.ShapeDtypeStruct((n, ho * wo, cout), jnp.float32),
        grid=(n,),
        in_specs=[
            pl.BlockSpec((None, 2, 2, ho + 1, wo + 1, cin),
                         lambda i: (i, 0, 0, 0, 0, 0)),
            pl.BlockSpec((9, cin, cout), lambda i: (0, 0, 0)),
            pl.BlockSpec((1, cout), lambda i: (0, 0)),
            pl.BlockSpec((1, cout), lambda i: (0, 0)),
        ],
        out_specs=pl.BlockSpec((None, ho * wo, cout), lambda i: (i, 0, 0)),
        compiler_params=pltpu.CompilerParams(
            dimension_semantics=("parallel",),
            vmem_limit_bytes=VMEM_LIMIT),
    )(xpar, w9, scale, shift)
    return out.reshape(n, ho, wo, cout)


def linear_pallas(x, w_row, bias):
    n, k = x.shape
    kc = math.gcd(k, 2048)
    b2 = bias.reshape(1, 1).astype(jnp.float32)
    return pl.pallas_call(
        functools.partial(_linear_kernel, kc=kc),
        out_shape=jax.ShapeDtypeStruct((n, 1), jnp.float32),
        grid=(1,),
        in_specs=[
            pl.BlockSpec((n, k), lambda i: (0, 0)),
            pl.BlockSpec((1, k), lambda i: (0, 0)),
            pl.BlockSpec((1, 1), lambda i: (0, 0)),
        ],
        out_specs=pl.BlockSpec((n, 1), lambda i: (0, 0)),
        compiler_params=pltpu.CompilerParams(
            dimension_semantics=("arbitrary",),
            vmem_limit_bytes=VMEM_LIMIT),
    )(x, w_row, b2)


# ----------------------------------------------------------------------------
# Model: forward (Pallas) and pure-JAX reference
# ----------------------------------------------------------------------------
def discriminator_pallas(x_nchw, params):
    x = jnp.transpose(x_nchw, (0, 2, 3, 1))            # NCHW -> NHWC
    for li, blk in enumerate(params["blocks"]):
        x = conv_block_first_pallas(x, blk) if li == 0 else conv_block_pallas(x, blk)
    trunk_nchw = jnp.transpose(x, (0, 3, 1, 2))        # torch flatten order
    feat = trunk_nchw.reshape(trunk_nchw.shape[0], -1)
    logit = linear_pallas(feat, params["clf_w"], params["clf_b"])
    return logit, trunk_nchw


def discriminator_reference(x_nchw, params):
    x = x_nchw
    for blk in params["blocks"]:
        x = lax.conv_general_dilated(
            x, blk["w"], (2, 2), [(1, 1), (1, 1)],
            dimension_numbers=("NCHW", "OIHW", "NCHW"))
        x = x + blk["b"][None, :, None, None]
        inv = blk["gamma"] / jnp.sqrt(blk["var"] + BN_EPS)
        x = (x - blk["mean"][None, :, None, None]) * inv[None, :, None, None] \
            + blk["beta"][None, :, None, None]
        x = jnp.where(x > 0.0, x, LEAKY_SLOPE * x)
    feat = x.reshape(x.shape[0], -1)
    logit = feat @ params["clf_w"].T + params["clf_b"][None, :]
    return logit, x


def init_params(key, in_channels):
    """Deterministic random parameters mirroring Discriminator.__init__."""
    conv_channels = [(in_channels, 32), (32, 64), (64, 96), (96, 128)]
    blocks = []
    for cin, cout in conv_channels:
        key, kw, kb, kg, kbe, km, kv = jax.random.split(key, 7)
        blocks.append(dict(
            w=jax.random.normal(kw, (cout, cin, 3, 3), jnp.float32)
              * (2.0 / (cin * 9)) ** 0.5,
            b=0.02 * jax.random.normal(kb, (cout,), jnp.float32),
            gamma=1.0 + 0.1 * jax.random.normal(kg, (cout,), jnp.float32),
            beta=0.05 * jax.random.normal(kbe, (cout,), jnp.float32),
            mean=0.05 * jax.random.normal(km, (cout,), jnp.float32),
            var=jax.random.uniform(kv, (cout,), jnp.float32, 0.5, 1.5),
        ))
    nb_time = nb_freq = 128                            # hardcoded in the module
    out_size = conv_channels[-1][1] * (nb_time // 16) * (nb_freq // 16)
    key, kcw, kcb = jax.random.split(key, 3)
    clf_w = jax.random.normal(kcw, (1, out_size), jnp.float32) * out_size ** -0.5
    clf_b = 0.01 * jax.random.normal(kcb, (1,), jnp.float32)
    return dict(blocks=blocks, clf_w=clf_w, clf_b=clf_b)


if __name__ == "__main__":
    key = jax.random.PRNGKey(0)
    kp, kx = jax.random.split(key)
    in_channels = 4
    params = init_params(kp, in_channels)

    # The module hardcodes nb_time = nb_freq = 128, so spatial must be 128x128
    # for the classifier in_features (128 * 8 * 8 = 8192) to line up.
    x = jax.random.normal(kx, (2, in_channels, 128, 128), jnp.float32)

    fwd = jax.jit(discriminator_pallas)
    logit, trunk = jax.block_until_ready(fwd(x, params))

    ref_logit, ref_trunk = jax.jit(discriminator_reference)(x, params)

    assert logit.shape == (2, 1), logit.shape
    assert trunk.shape == ref_trunk.shape, (trunk.shape, ref_trunk.shape)
    # bf16 MXU operands with f32 accumulation -> moderate tolerances.
    assert jnp.allclose(trunk, ref_trunk, rtol=1e-1, atol=1e-1), \
        float(jnp.max(jnp.abs(trunk - ref_trunk)))
    assert jnp.allclose(logit, ref_logit, rtol=5e-2, atol=5e-2), \
        float(jnp.max(jnp.abs(logit - ref_logit)))

    print("KERNEL_OK")
</pallas_src>

<mosaic_0001>
module attributes {stable_mosaic.version = 11 : i64} {
  func.func @_matmul_bn_lrelu_kernel(%arg0: i32, %arg1: memref<1x4096x36xbf16, #tpu.memory_space<vmem>>, %arg2: memref<36x32xbf16, #tpu.memory_space<vmem>>, %arg3: memref<1x32xf32, #tpu.memory_space<vmem>>, %arg4: memref<1x32xf32, #tpu.memory_space<vmem>>, %arg5: memref<1x4096x32xf32, #tpu.memory_space<vmem>>) attributes {dimension_semantics = [#tpu.dimension_semantics<parallel>], iteration_bounds = array<i64: 2>, scalar_prefetch = 0 : i64, scratch_operands = 0 : i64, tpu.core_type = #tpu.core_type<tc>, window_params = [{transform_indices = @transform_0, window_bounds = array<i64: 1, 4096, 36>}, {pipeline_mode = #tpu.pipeline_mode<synchronous>, transform_indices = @transform_1, window_bounds = array<i64: 36, 32>}, {pipeline_mode = #tpu.pipeline_mode<synchronous>, transform_indices = @transform_2, window_bounds = array<i64: 1, 32>}, {pipeline_mode = #tpu.pipeline_mode<synchronous>, transform_indices = @transform_3, window_bounds = array<i64: 1, 32>}, {transform_indices = @transform_4, window_bounds = array<i64: 1, 4096, 32>}]} {
    %c0 = arith.constant 0 : index
    %c0_0 = arith.constant 0 : index
    %0 = vector.load %arg2[%c0, %c0_0] : memref<36x32xbf16, #tpu.memory_space<vmem>>, vector<36x32xbf16>
    %c0_1 = arith.constant 0 : index
    %c0_2 = arith.constant 0 : index
    %1 = vector.load %arg3[%c0_1, %c0_2] : memref<1x32xf32, #tpu.memory_space<vmem>>, vector<1x32xf32>
    %c0_3 = arith.constant 0 : index
    %c0_4 = arith.constant 0 : index
    %2 = vector.load %arg4[%c0_3, %c0_4] : memref<1x32xf32, #tpu.memory_space<vmem>>, vector<1x32xf32>
    %c0_i32 = arith.constant 0 : i32
    %c16_i32 = arith.constant 16 : i32
    %3 = arith.addi %c0_i32, %c16_i32 : i32
    %c1_i32 = arith.constant 1 : i32
    scf.for %arg6 = %c0_i32 to %3 step %c1_i32  : i32 {
      %c256_i32 = arith.constant 256 : i32
      %4 = arith.muli %arg6, %c256_i32 : i32
      %5 = tpu.assume_multiple %4, 256 : i32
      %c0_6 = arith.constant 0 : index
      %6 = arith.index_cast %5 : i32 to index
      %c0_7 = arith.constant 0 : index
      %7 = vector.load %arg1[%c0_6, %6, %c0_7] : memref<1x4096x36xbf16, #tpu.memory_space<vmem>>, vector<1x256x36xbf16>
      %8 = vector.shape_cast %7 : vector<1x256x36xbf16> to vector<256x36xbf16>
      %cst = arith.constant dense<0.000000e+00> : vector<256x32xf32>
      %9 = tpu.matmul %8, %0, %cst {dimension_numbers = #tpu.dot_dimension_numbers<[1], [0], [0], [1], [0, 0, 1, 1], [], []>} : vector<256x36xbf16>, vector<36x32xbf16>, vector<256x32xf32> -> vector<256x32xf32>
      %10 = vector.broadcast %1 : vector<1x32xf32> to vector<256x32xf32>
      %11 = arith.mulf %9, %10 : vector<256x32xf32>
      %12 = vector.broadcast %2 : vector<1x32xf32> to vector<256x32xf32>
      %13 = arith.addf %11, %12 : vector<256x32xf32>
      %cst_8 = arith.constant 0.000000e+00 : f32
      %14 = vector.broadcast %cst_8 : f32 to vector<256x32xf32>
      %15 = arith.cmpf ogt, %13, %14 : vector<256x32xf32>
      %cst_9 = arith.constant 2.000000e-01 : f32
      %16 = vector.broadcast %cst_9 : f32 to vector<256x32xf32>
      %17 = arith.mulf %16, %13 : vector<256x32xf32>
      %18 = arith.select %15, %13, %17 : vector<256x32xi1>, vector<256x32xf32>
      %c0_10 = arith.constant 0 : index
      %19 = arith.index_cast %5 : i32 to index
      %c0_11 = arith.constant 0 : index
      %20 = vector.load %arg5[%c0_10, %19, %c0_11] : memref<1x4096x32xf32, #tpu.memory_space<vmem>>, vector<1x256x32xf32>
      %21 = vector.shape_cast %20 : vector<1x256x32xf32> to vector<256x32xf32>
      %22 = vector.shape_cast %18 : vector<256x32xf32> to vector<1x256x32xf32>
      tpu.vector_store %arg5[%c0_10, %19, %c0_11], %22 {strides = array<i32>} : memref<1x4096x32xf32, #tpu.memory_space<vmem>>, vector<1x256x32xf32>,
    }
    %c16_i32_5 = arith.constant 16 : i32
    return
  }
  func.func @transform_0(%arg0: i32) -> (i32, i32, i32) {
    %c0_i32 = arith.constant 0 : i32
    %c0_i32_0 = arith.constant 0 : i32
    %c0_i32_1 = arith.constant 0 : i32
    return %arg0, %c0_i32, %c0_i32_0 : i32, i32, i32
  }
  func.func @transform_1(%arg0: i32) -> (i32, i32) {
    %c0_i32 = arith.constant 0 : i32
    %c0_i32_0 = arith.constant 0 : i32
    %c0_i32_1 = arith.constant 0 : i32
    return %c0_i32, %c0_i32_0 : i32, i32
  }
  func.func @transform_2(%arg0: i32) -> (i32, i32) {
    %c0_i32 = arith.constant 0 : i32
    %c0_i32_0 = arith.constant 0 : i32
    %c0_i32_1 = arith.constant 0 : i32
    return %c0_i32, %c0_i32_0 : i32, i32
  }
  func.func @transform_3(%arg0: i32) -> (i32, i32) {
    %c0_i32 = arith.constant 0 : i32
    %c0_i32_0 = arith.constant 0 : i32
    %c0_i32_1 = arith.constant 0 : i32
    return %c0_i32, %c0_i32_0 : i32, i32
  }
  func.func @transform_4(%arg0: i32) -> (i32, i32, i32) {
    %c0_i32 = arith.constant 0 : i32
    %c0_i32_0 = arith.constant 0 : i32
    %c0_i32_1 = arith.constant 0 : i32
    return %arg0, %c0_i32, %c0_i32_0 : i32, i32, i32
  }
}

module attributes {stable_mosaic.version = 11 : i64} {
  func.func @_conv3x3s2_bn_lrelu_kernel(%arg0: i32, %arg1: memref<1x2x2x33x33x32xf32, #tpu.memory_space<vmem>>, %arg2: memref<9x32x64xbf16, #tpu.memory_space<vmem>>, %arg3: memref<1x64xf32, #tpu.memory_space<vmem>>, %arg4: memref<1x64xf32, #tpu.memory_space<vmem>>, %arg5: memref<1x1024x64xf32, #tpu.memory_space<vmem>>) attributes {dimension_semantics = [#tpu.dimension_semantics<parallel>], iteration_bounds = array<i64: 2>, scalar_prefetch = 0 : i64, scratch_operands = 0 : i64, tpu.core_type = #tpu.core_type<tc>, window_params = [{transform_indices = @transform_0, window_bounds = array<i64: 1, 2, 2, 33, 33, 32>}, {pipeline_mode = #tpu.pipeline_mode<synchronous>, transform_indices = @transform_1, window_bounds = array<i64: 9, 32, 64>}, {pipeline_mode = #tpu.pipeline_mode<synchronous>, transform_indices = @transform_2, window_bounds = array<i64: 1, 64>}, {pipeline_mode = #tpu.pipeline_mode<synchronous>, transform_indices = @transform_3, window_bounds = array<i64: 1, 64>}, {transform_indices = @transform_4, window_bounds = array<i64: 1, 1024, 64>}]} {
    %c0 = arith.constant 0 : index
    %c0_0 = arith.constant 0 : index
    %0 = vector.load %arg3[%c0, %c0_0] : memref<1x64xf32, #tpu.memory_space<vmem>>, vector<1x64xf32>
    %c0_1 = arith.constant 0 : index
    %c0_2 = arith.constant 0 : index
    %1 = vector.load %arg4[%c0_1, %c0_2] : memref<1x64xf32, #tpu.memory_space<vmem>>, vector<1x64xf32>
    %c0_i32 = arith.constant 0 : i32
    %c8_i32 = arith.constant 8 : i32
    %2 = arith.addi %c0_i32, %c8_i32 : i32
    %c1_i32 = arith.constant 1 : i32
    scf.for %arg6 = %c0_i32 to %2 step %c1_i32  : i32 {
      %c4_i32 = arith.constant 4 : i32
      %3 = arith.muli %arg6, %c4_i32 : i32
      %cst = arith.constant 0.000000e+00 : f32
      %4 = vector.broadcast %cst : f32 to vector<128x64xf32>
      %c0_i32_4 = arith.constant 0 : i32
      %5 = arith.addi %3, %c0_i32_4 : i32
      %c0_5 = arith.constant 0 : index
      %c0_6 = arith.constant 0 : index
      %c0_7 = arith.constant 0 : index
      %6 = arith.index_cast %5 : i32 to index
      %c0_8 = arith.constant 0 : index
      %c0_9 = arith.constant 0 : index
      %7 = vector.load %arg1[%c0_5, %c0_6, %c0_7, %6, %c0_8, %c0_9] : memref<1x2x2x33x33x32xf32, #tpu.memory_space<vmem>>, vector<1x1x1x4x32x32xf32>
      %8 = vector.shape_cast %7 : vector<1x1x1x4x32x32xf32> to vector<4x32x32xf32>
      %9 = vector.shape_cast %8 : vector<4x32x32xf32> to vector<128x32xf32>
      %10 = arith.truncf %9 : vector<128x32xf32> to vector<128x32xbf16>
      %c0_10 = arith.constant 0 : index
      %c0_11 = arith.constant 0 : index
      %c0_12 = arith.constant 0 : index
      %11 = vector.load %arg2[%c0_10, %c0_11, %c0_12] : memref<9x32x64xbf16, #tpu.memory_space<vmem>>, vector<1x32x64xbf16>
      %12 = vector.shape_cast %11 : vector<1x32x64xbf16> to vector<32x64xbf16>
      %cst_13 = arith.constant dense<0.000000e+00> : vector<128x64xf32>
      %13 = tpu.matmul %10, %12, %cst_13 {dimension_numbers = #tpu.dot_dimension_numbers<[1], [0], [0], [1], [0, 0, 1, 1], [], []>} : vector<128x32xbf16>, vector<32x64xbf16>, vector<128x64xf32> -> vector<128x64xf32>
      %14 = arith.addf %4, %13 : vector<128x64xf32>
      %c0_i32_14 = arith.constant 0 : i32
      %15 = arith.addi %3, %c0_i32_14 : i32
      %c0_15 = arith.constant 0 : index
      %c0_16 = arith.constant 0 : index
      %c1 = arith.constant 1 : index
      %16 = arith.index_cast %15 : i32 to index
      %c0_17 = arith.constant 0 : index
      %c0_18 = arith.constant 0 : index
      %17 = vector.load %arg1[%c0_15, %c0_16, %c1, %16, %c0_17, %c0_18] : memref<1x2x2x33x33x32xf32, #tpu.memory_space<vmem>>, vector<1x1x1x4x32x32xf32>
      %18 = vector.shape_cast %17 : vector<1x1x1x4x32x32xf32> to vector<4x32x32xf32>
      %19 = vector.shape_cast %18 : vector<4x32x32xf32> to vector<128x32xf32>
      %20 = arith.truncf %19 : vector<128x32xf32> to vector<128x32xbf16>
      %c1_19 = arith.constant 1 : index
      %c0_20 = arith.constant 0 : index
      %c0_21 = arith.constant 0 : index
      %21 = vector.load %arg2[%c1_19, %c0_20, %c0_21] : memref<9x32x64xbf16, #tpu.memory_space<vmem>>, vector<1x32x64xbf16>
      %22 = vector.shape_cast %21 : vector<1x32x64xbf16> to vector<32x64xbf16>
      %cst_22 = arith.constant dense<0.000000e+00> : vector<128x64xf32>
      %23 = tpu.matmul %20, %22, %cst_22 {dimension_numbers = #tpu.dot_dimension_numbers<[1], [0], [0], [1], [0, 0, 1, 1], [], []>} : vector<128x32xbf16>, vector<32x64xbf16>, vector<128x64xf32> -> vector<128x64xf32>
      %24 = arith.addf %14, %23 : vector<128x64xf32>
      %c0_i32_23 = arith.constant 0 : i32
      %25 = arith.addi %3, %c0_i32_23 : i32
      %c0_24 = arith.constant 0 : index
      %c0_25 = arith.constant 0 : index
      %c0_26 = arith.constant 0 : index
      %26 = arith.index_cast %25 : i32 to index
      %c1_27 = arith.constant 1 : index
      %c0_28 = arith.constant 0 : index
      %27 = vector.load %arg1[%c0_24, %c0_25, %c0_26, %26, %c1_27, %c0_28] : memref<1x2x2x33x33x32xf32, #tpu.memory_space<vmem>>, vector<1x1x1x4x32x32xf32>
      %28 = vector.shape_cast %27 : vector<1x1x1x4x32x32xf32> to vector<4x32x32xf32>
      %29 = vector.shape_cast %28 : vector<4x32x32xf32> to vector<128x32xf32>
      %30 = arith.truncf %29 : vector<128x32xf32> to vector<128x32xbf16>
      %c2 = arith.constant 2 : index
      %c0_29 = arith.constant 0 : index
      %c0_30 = arith.constant 0 : index
      %31 = vector.load %arg2[%c2, %c0_29, %c0_30] : memref<9x32x64xbf16, #tpu.memory_space<vmem>>, vector<1x32x64xbf16>
      %32 = vector.shape_cast %31 : vector<1x32x64xbf16> to vector<32x64xbf16>
      %cst_31 = arith.constant dense<0.000000e+00> : vector<128x64xf32>
      %33 = tpu.matmul %30, %32, %cst_31 {dimension_numbers = #tpu.dot_dimension_numbers<[1], [0], [0], [1], [0, 0, 1, 1], [], []>} : vector<128x32xbf16>, vector<32x64xbf16>, vector<128x64xf32> -> vector<128x64xf32>
      %34 = arith.addf %24, %33 : vector<128x64xf32>
      %c0_i32_32 = arith.constant 0 : i32
      %35 = arith.addi %3, %c0_i32_32 : i32
      %c0_33 = arith.constant 0 : index
      %c1_34 = arith.constant 1 : index
      %c0_35 = arith.constant 0 : index
      %36 = arith.index_cast %35 : i32 to index
      %c0_36 = arith.constant 0 : index
      %c0_37 = arith.constant 0 : index
      %37 = vector.load %arg1[%c0_33, %c1_34, %c0_35, %36, %c0_36, %c0_37] : memref<1x2x2x33x33x32xf32, #tpu.memory_space<vmem>>, vector<1x1x1x4x32x32xf32>
      %38 = vector.shape_cast %37 : vector<1x1x1x4x32x32xf32> to vector<4x32x32xf32>
      %39 = vector.shape_cast %38 : vector<4x32x32xf32> to vector<128x32xf32>
      %40 = arith.truncf %39 : vector<128x32xf32> to vector<128x32xbf16>
      %c3 = arith.constant 3 : index
      %c0_38 = arith.constant 0 : index
      %c0_39 = arith.constant 0 : index
      %41 = vector.load %arg2[%c3, %c0_38, %c0_39] : memref<9x32x64xbf16, #tpu.memory_space<vmem>>, vector<1x32x64xbf16>
      %42 = vector.shape_cast %41 : vector<1x32x64xbf16> to vector<32x64xbf16>
      %cst_40 = arith.constant dense<0.000000e+00> : vector<128x64xf32>
      %43 = tpu.matmul %40, %42, %cst_40 {dimension_numbers = #tpu.dot_dimension_numbers<[1], [0], [0], [1], [0, 0, 1, 1], [], []>} : vector<128x32xbf16>, vector<32x64xbf16>, vector<128x64xf32> -> vector<128x64xf32>
      %44 = arith.addf %34, %43 : vector<128x64xf32>
      %c0_i32_41 = arith.constant 0 : i32
      %45 = arith.addi %3, %c0_i32_41 : i32
      %c0_42 = arith.constant 0 : index
      %c1_43 = arith.constant 1 : index
      %c1_44 = arith.constant 1 : index
      %46 = arith.index_cast %45 : i32 to index
      %c0_45 = arith.constant 0 : index
      %c0_46 = arith.constant 0 : index
      %47 = vector.load %arg1[%c0_42, %c1_43, %c1_44, %46, %c0_45, %c0_46] : memref<1x2x2x33x33x32xf32, #tpu.memory_space<vmem>>, vector<1x1x1x4x32x32xf32>
      %48 = vector.shape_cast %47 : vector<1x1x1x4x32x32xf32> to vector<4x32x32xf32>
      %49 = vector.shape_cast %48 : vector<4x32x32xf32> to vector<128x32xf32>
      %50 = arith.truncf %49 : vector<128x32xf32> to vector<128x32xbf16>
      %c4 = arith.constant 4 : index
      %c0_47 = arith.constant 0 : index
      %c0_48 = arith.constant 0 : index
      %51 = vector.load %arg2[%c4, %c0_47, %c0_48] : memref<9x32x64xbf16, #tpu.memory_space<vmem>>, vector<1x32x64xbf16>
      %52 = vector.shape_cast %51 : vector<1x32x64xbf16> to vector<32x64xbf16>
      %cst_49 = arith.constant dense<0.000000e+00> : vector<128x64xf32>
      %53 = tpu.matmul %50, %52, %cst_49 {dimension_numbers = #tpu.dot_dimension_numbers<[1], [0], [0], [1], [0, 0, 1, 1], [], []>} : vector<128x32xbf16>, vector<32x64xbf16>, vector<128x64xf32> -> vector<128x64xf32>
      %54 = arith.addf %44, %53 : vector<128x64xf32>
      %c0_i32_50 = arith.constant 0 : i32
      %55 = arith.addi %3, %c0_i32_50 : i32
      %c0_51 = arith.constant 0 : index
      %c1_52 = arith.constant 1 : index
      %c0_53 = arith.constant 0 : index
      %56 = arith.index_cast %55 : i32 to index
      %c1_54 = arith.constant 1 : index
      %c0_55 = arith.constant 0 : index
      %57 = vector.load %arg1[%c0_51, %c1_52, %c0_53, %56, %c1_54, %c0_55] : memref<1x2x2x33x33x32xf32, #tpu.memory_space<vmem>>, vector<1x1x1x4x32x32xf32>
      %58 = vector.shape_cast %57 : vector<1x1x1x4x32x32xf32> to vector<4x32x32xf32>
      %59 = vector.shape_cast %58 : vector<4x32x32xf32> to vector<128x32xf32>
      %60 = arith.truncf %59 : vector<128x32xf32> to vector<128x32xbf16>
      %c5 = arith.constant 5 : index
      %c0_56 = arith.constant 0 : index
      %c0_57 = arith.constant 0 : index
      %61 = vector.load %arg2[%c5, %c0_56, %c0_57] : memref<9x32x64xbf16, #tpu.memory_space<vmem>>, vector<1x32x64xbf16>
      %62 = vector.shape_cast %61 : vector<1x32x64xbf16> to vector<32x64xbf16>
      %cst_58 = arith.constant dense<0.000000e+00> : vector<128x64xf32>
      %63 = tpu.matmul %60, %62, %cst_58 {dimension_numbers = #tpu.dot_dimension_numbers<[1], [0], [0], [1], [0, 0, 1, 1], [], []>} : vector<128x32xbf16>, vector<32x64xbf16>, vector<128x64xf32> -> vector<128x64xf32>
      %64 = arith.addf %54, %63 : vector<128x64xf32>
      %c1_i32_59 = arith.constant 1 : i32
      %65 = arith.addi %3, %c1_i32_59 : i32
      %c0_60 = arith.constant 0 : index
      %c0_61 = arith.constant 0 : index
      %c0_62 = arith.constant 0 : index
      %66 = arith.index_cast %65 : i32 to index
      %c0_63 = arith.constant 0 : index
      %c0_64 = arith.constant 0 : index
      %67 = vector.load %arg1[%c0_60, %c0_61, %c0_62, %66, %c0_63, %c0_64] : memref<1x2x2x33x33x32xf32, #tpu.memory_space<vmem>>, vector<1x1x1x4x32x32xf32>
      %68 = vector.shape_cast %67 : vector<1x1x1x4x32x32xf32> to vector<4x32x32xf32>
      %69 = vector.shape_cast %68 : vector<4x32x32xf32> to vector<128x32xf32>
      %70 = arith.truncf %69 : vector<128x32xf32> to vector<128x32xbf16>
      %c6 = arith.constant 6 : index
      %c0_65 = arith.constant 0 : index
      %c0_66 = arith.constant 0 : index
      %71 = vector.load %arg2[%c6, %c0_65, %c0_66] : memref<9x32x64xbf16, #tpu.memory_space<vmem>>, vector<1x32x64xbf16>
      %72 = vector.shape_cast %71 : vector<1x32x64xbf16> to vector<32x64xbf16>
      %cst_67 = arith.constant dense<0.000000e+00> : vector<128x64xf32>
      %73 = tpu.matmul %70, %72, %cst_67 {dimension_numbers = #tpu.dot_dimension_numbers<[1], [0], [0], [1], [0, 0, 1, 1], [], []>} : vector<128x32xbf16>, vector<32x64xbf16>, vector<128x64xf32> -> vector<128x64xf32>
      %74 = arith.addf %64, %73 : vector<128x64xf32>
      %c1_i32_68 = arith.constant 1 : i32
      %75 = arith.addi %3, %c1_i32_68 : i32
      %c0_69 = arith.constant 0 : index
      %c0_70 = arith.constant 0 : index
      %c1_71 = arith.constant 1 : index
      %76 = arith.index_cast %75 : i32 to index
      %c0_72 = arith.constant 0 : index
      %c0_73 = arith.constant 0 : index
      %77 = vector.load %arg1[%c0_69, %c0_70, %c1_71, %76, %c0_72, %c0_73] : memref<1x2x2x33x33x32xf32, #tpu.memory_space<vmem>>, vector<1x1x1x4x32x32xf32>
      %78 = vector.shape_cast %77 : vector<1x1x1x4x32x32xf32> to vector<4x32x32xf32>
      %79 = vector.shape_cast %78 : vector<4x32x32xf32> to vector<128x32xf32>
      %80 = arith.truncf %79 : vector<128x32xf32> to vector<128x32xbf16>
      %c7 = arith.constant 7 : index
      %c0_74 = arith.constant 0 : index
      %c0_75 = arith.constant 0 : index
      %81 = vector.load %arg2[%c7, %c0_74, %c0_75] : memref<9x32x64xbf16, #tpu.memory_space<vmem>>, vector<1x32x64xbf16>
      %82 = vector.shape_cast %81 : vector<1x32x64xbf16> to vector<32x64xbf16>
      %cst_76 = arith.constant dense<0.000000e+00> : vector<128x64xf32>
      %83 = tpu.matmul %80, %82, %cst_76 {dimension_numbers = #tpu.dot_dimension_numbers<[1], [0], [0], [1], [0, 0, 1, 1], [], []>} : vector<128x32xbf16>, vector<32x64xbf16>, vector<128x64xf32> -> vector<128x64xf32>
      %84 = arith.addf %74, %83 : vector<128x64xf32>
      %c1_i32_77 = arith.constant 1 : i32
      %85 = arith.addi %3, %c1_i32_77 : i32
      %c0_78 = arith.constant 0 : index
      %c0_79 = arith.constant 0 : index
      %c0_80 = arith.constant 0 : index
      %86 = arith.index_cast %85 : i32 to index
      %c1_81 = arith.constant 1 : index
      %c0_82 = arith.constant 0 : index
      %87 = vector.load %arg1[%c0_78, %c0_79, %c0_80, %86, %c1_81, %c0_82] : memref<1x2x2x33x33x32xf32, #tpu.memory_space<vmem>>, vector<1x1x1x4x32x32xf32>
      %88 = vector.shape_cast %87 : vector<1x1x1x4x32x32xf32> to vector<4x32x32xf32>
      %89 = vector.shape_cast %88 : vector<4x32x32xf32> to vector<128x32xf32>
      %90 = arith.truncf %89 : vector<128x32xf32> to vector<128x32xbf16>
      %c8 = arith.constant 8 : index
      %c0_83 = arith.constant 0 : index
      %c0_84 = arith.constant 0 : index
      %91 = vector.load %arg2[%c8, %c0_83, %c0_84] : memref<9x32x64xbf16, #tpu.memory_space<vmem>>, vector<1x32x64xbf16>
      %92 = vector.shape_cast %91 : vector<1x32x64xbf16> to vector<32x64xbf16>
      %cst_85 = arith.constant dense<0.000000e+00> : vector<128x64xf32>
      %93 = tpu.matmul %90, %92, %cst_85 {dimension_numbers = #tpu.dot_dimension_numbers<[1], [0], [0], [1], [0, 0, 1, 1], [], []>} : vector<128x32xbf16>, vector<32x64xbf16>, vector<128x64xf32> -> vector<128x64xf32>
      %94 = arith.addf %84, %93 : vector<128x64xf32>
      %95 = vector.broadcast %0 : vector<1x64xf32> to vector<128x64xf32>
      %96 = arith.mulf %94, %95 : vector<128x64xf32>
      %97 = vector.broadcast %1 : vector<1x64xf32> to vector<128x64xf32>
      %98 = arith.addf %96, %97 : vector<128x64xf32>
      %cst_86 = arith.constant 0.000000e+00 : f32
      %99 = vector.broadcast %cst_86 : f32 to vector<128x64xf32>
      %100 = arith.cmpf ogt, %98, %99 : vector<128x64xf32>
      %cst_87 = arith.constant 2.000000e-01 : f32
      %101 = vector.broadcast %cst_87 : f32 to vector<128x64xf32>
      %102 = arith.mulf %101, %98 : vector<128x64xf32>
      %103 = arith.select %100, %98, %102 : vector<128x64xi1>, vector<128x64xf32>
      %c128_i32 = arith.constant 128 : i32
      %104 = arith.muli %arg6, %c128_i32 : i32
      %105 = tpu.assume_multiple %104, 128 : i32
      %c0_88 = arith.constant 0 : index
      %106 = arith.index_cast %105 : i32 to index
      %c0_89 = arith.constant 0 : index
      %107 = vector.load %arg5[%c0_88, %106, %c0_89] : memref<1x1024x64xf32, #tpu.memory_space<vmem>>, vector<1x128x64xf32>
      %108 = vector.shape_cast %107 : vector<1x128x64xf32> to vector<128x64xf32>
      %109 = vector.shape_cast %103 : vector<128x64xf32> to vector<1x128x64xf32>
      tpu.vector_store %arg5[%c0_88, %106, %c0_89], %109 {strides = array<i32>} : memref<1x1024x64xf32, #tpu.memory_space<vmem>>, vector<1x128x64xf32>,
    }
    %c8_i32_3 = arith.constant 8 : i32
    return
  }
  func.func @transform_0(%arg0: i32) -> (i32, i32, i32, i32, i32, i32) {
    %c0_i32 = arith.constant 0 : i32
    %c0_i32_0 = arith.constant 0 : i32
    %c0_i32_1 = arith.constant 0 : i32
    %c0_i32_2 = arith.constant 0 : i32
    %c0_i32_3 = arith.constant 0 : i32
    %c0_i32_4 = arith.constant 0 : i32
    return %arg0, %c0_i32, %c0_i32_0, %c0_i32_1, %c0_i32_2, %c0_i32_3 : i32, i32, i32, i32, i32, i32
  }
  func.func @transform_1(%arg0: i32) -> (i32, i32, i32) {
    %c0_i32 = arith.constant 0 : i32
    %c0_i32_0 = arith.constant 0 : i32
    %c0_i32_1 = arith.constant 0 : i32
    %c0_i32_2 = arith.constant 0 : i32
    return %c0_i32, %c0_i32_0, %c0_i32_1 : i32, i32, i32
  }
  func.func @transform_2(%arg0: i32) -> (i32, i32) {
    %c0_i32 = arith.constant 0 : i32
    %c0_i32_0 = arith.constant 0 : i32
    %c0_i32_1 = arith.constant 0 : i32
    return %c0_i32, %c0_i32_0 : i32, i32
  }
  func.func @transform_3(%arg0: i32) -> (i32, i32) {
    %c0_i32 = arith.constant 0 : i32
    %c0_i32_0 = arith.constant 0 : i32
    %c0_i32_1 = arith.constant 0 : i32
    return %c0_i32, %c0_i32_0 : i32, i32
  }
  func.func @transform_4(%arg0: i32) -> (i32, i32, i32) {
    %c0_i32 = arith.constant 0 : i32
    %c0_i32_0 = arith.constant 0 : i32
    %c0_i32_1 = arith.constant 0 : i32
    return %arg0, %c0_i32, %c0_i32_0 : i32, i32, i32
  }
}

module attributes {stable_mosaic.version = 11 : i64} {
  func.func @_conv3x3s2_bn_lrelu_kernel(%arg0: i32, %arg1: memref<1x2x2x17x17x64xf32, #tpu.memory_space<vmem>>, %arg2: memref<9x64x96xbf16, #tpu.memory_space<vmem>>, %arg3: memref<1x96xf32, #tpu.memory_space<vmem>>, %arg4: memref<1x96xf32, #tpu.memory_space<vmem>>, %arg5: memref<1x256x96xf32, #tpu.memory_space<vmem>>) attributes {dimension_semantics = [#tpu.dimension_semantics<parallel>], iteration_bounds = array<i64: 2>, scalar_prefetch = 0 : i64, scratch_operands = 0 : i64, tpu.core_type = #tpu.core_type<tc>, window_params = [{transform_indices = @transform_0, window_bounds = array<i64: 1, 2, 2, 17, 17, 64>}, {pipeline_mode = #tpu.pipeline_mode<synchronous>, transform_indices = @transform_1, window_bounds = array<i64: 9, 64, 96>}, {pipeline_mode = #tpu.pipeline_mode<synchronous>, transform_indices = @transform_2, window_bounds = array<i64: 1, 96>}, {pipeline_mode = #tpu.pipeline_mode<synchronous>, transform_indices = @transform_3, window_bounds = array<i64: 1, 96>}, {transform_indices = @transform_4, window_bounds = array<i64: 1, 256, 96>}]} {
    %c0 = arith.constant 0 : index
    %c0_0 = arith.constant 0 : index
    %0 = vector.load %arg3[%c0, %c0_0] : memref<1x96xf32, #tpu.memory_space<vmem>>, vector<1x96xf32>
    %c0_1 = arith.constant 0 : index
    %c0_2 = arith.constant 0 : index
    %1 = vector.load %arg4[%c0_1, %c0_2] : memref<1x96xf32, #tpu.memory_space<vmem>>, vector<1x96xf32>
    %c0_i32 = arith.constant 0 : i32
    %c2_i32 = arith.constant 2 : i32
    %2 = arith.addi %c0_i32, %c2_i32 : i32
    %c1_i32 = arith.constant 1 : i32
    scf.for %arg6 = %c0_i32 to %2 step %c1_i32  : i32 {
      %c8_i32 = arith.constant 8 : i32
      %3 = arith.muli %arg6, %c8_i32 : i32
      %cst = arith.constant 0.000000e+00 : f32
      %4 = vector.broadcast %cst : f32 to vector<128x96xf32>
      %c0_i32_4 = arith.constant 0 : i32
      %5 = arith.addi %3, %c0_i32_4 : i32
      %c0_5 = arith.constant 0 : index
      %c0_6 = arith.constant 0 : index
      %c0_7 = arith.constant 0 : index
      %6 = arith.index_cast %5 : i32 to index
      %c0_8 = arith.constant 0 : index
      %c0_9 = arith.constant 0 : index
      %7 = vector.load %arg1[%c0_5, %c0_6, %c0_7, %6, %c0_8, %c0_9] : memref<1x2x2x17x17x64xf32, #tpu.memory_space<vmem>>, vector<1x1x1x8x16x64xf32>
      %8 = vector.shape_cast %7 : vector<1x1x1x8x16x64xf32> to vector<8x16x64xf32>
      %9 = vector.shape_cast %8 : vector<8x16x64xf32> to vector<128x64xf32>
      %10 = arith.truncf %9 : vector<128x64xf32> to vector<128x64xbf16>
      %c0_10 = arith.constant 0 : index
      %c0_11 = arith.constant 0 : index
      %c0_12 = arith.constant 0 : index
      %11 = vector.load %arg2[%c0_10, %c0_11, %c0_12] : memref<9x64x96xbf16, #tpu.memory_space<vmem>>, vector<1x64x96xbf16>
      %12 = vector.shape_cast %11 : vector<1x64x96xbf16> to vector<64x96xbf16>
      %cst_13 = arith.constant dense<0.000000e+00> : vector<128x96xf32>
      %13 = tpu.matmul %10, %12, %cst_13 {dimension_numbers = #tpu.dot_dimension_numbers<[1], [0], [0], [1], [0, 0, 1, 1], [], []>} : vector<128x64xbf16>, vector<64x96xbf16>, vector<128x96xf32> -> vector<128x96xf32>
      %14 = arith.addf %4, %13 : vector<128x96xf32>
      %c0_i32_14 = arith.constant 0 : i32
      %15 = arith.addi %3, %c0_i32_14 : i32
      %c0_15 = arith.constant 0 : index
      %c0_16 = arith.constant 0 : index
      %c1 = arith.constant 1 : index
      %16 = arith.index_cast %15 : i32 to index
      %c0_17 = arith.constant 0 : index
      %c0_18 = arith.constant 0 : index
      %17 = vector.load %arg1[%c0_15, %c0_16, %c1, %16, %c0_17, %c0_18] : memref<1x2x2x17x17x64xf32, #tpu.memory_space<vmem>>, vector<1x1x1x8x16x64xf32>
      %18 = vector.shape_cast %17 : vector<1x1x1x8x16x64xf32> to vector<8x16x64xf32>
      %19 = vector.shape_cast %18 : vector<8x16x64xf32> to vector<128x64xf32>
      %20 = arith.truncf %19 : vector<128x64xf32> to vector<128x64xbf16>
      %c1_19 = arith.constant 1 : index
      %c0_20 = arith.constant 0 : index
      %c0_21 = arith.constant 0 : index
      %21 = vector.load %arg2[%c1_19, %c0_20, %c0_21] : memref<9x64x96xbf16, #tpu.memory_space<vmem>>, vector<1x64x96xbf16>
      %22 = vector.shape_cast %21 : vector<1x64x96xbf16> to vector<64x96xbf16>
      %cst_22 = arith.constant dense<0.000000e+00> : vector<128x96xf32>
      %23 = tpu.matmul %20, %22, %cst_22 {dimension_numbers = #tpu.dot_dimension_numbers<[1], [0], [0], [1], [0, 0, 1, 1], [], []>} : vector<128x64xbf16>, vector<64x96xbf16>, vector<128x96xf32> -> vector<128x96xf32>
      %24 = arith.addf %14, %23 : vector<128x96xf32>
      %c0_i32_23 = arith.constant 0 : i32
      %25 = arith.addi %3, %c0_i32_23 : i32
      %c0_24 = arith.constant 0 : index
      %c0_25 = arith.constant 0 : index
      %c0_26 = arith.constant 0 : index
      %26 = arith.index_cast %25 : i32 to index
      %c1_27 = arith.constant 1 : index
      %c0_28 = arith.constant 0 : index
      %27 = vector.load %arg1[%c0_24, %c0_25, %c0_26, %26, %c1_27, %c0_28] : memref<1x2x2x17x17x64xf32, #tpu.memory_space<vmem>>, vector<1x1x1x8x16x64xf32>
      %28 = vector.shape_cast %27 : vector<1x1x1x8x16x64xf32> to vector<8x16x64xf32>
      %29 = vector.shape_cast %28 : vector<8x16x64xf32> to vector<128x64xf32>
      %30 = arith.truncf %29 : vector<128x64xf32> to vector<128x64xbf16>
      %c2 = arith.constant 2 : index
      %c0_29 = arith.constant 0 : index
      %c0_30 = arith.constant 0 : index
      %31 = vector.load %arg2[%c2, %c0_29, %c0_30] : memref<9x64x96xbf16, #tpu.memory_space<vmem>>, vector<1x64x96xbf16>
      %32 = vector.shape_cast %31 : vector<1x64x96xbf16> to vector<64x96xbf16>
      %cst_31 = arith.constant dense<0.000000e+00> : vector<128x96xf32>
      %33 = tpu.matmul %30, %32, %cst_31 {dimension_numbers = #tpu.dot_dimension_numbers<[1], [0], [0], [1], [0, 0, 1, 1], [], []>} : vector<128x64xbf16>, vector<64x96xbf16>, vector<128x96xf32> -> vector<128x96xf32>
      %34 = arith.addf %24, %33 : vector<128x96xf32>
      %c0_i32_32 = arith.constant 0 : i32
      %35 = arith.addi %3, %c0_i32_32 : i32
      %c0_33 = arith.constant 0 : index
      %c1_34 = arith.constant 1 : index
      %c0_35 = arith.constant 0 : index
      %36 = arith.index_cast %35 : i32 to index
      %c0_36 = arith.constant 0 : index
      %c0_37 = arith.constant 0 : index
      %37 = vector.load %arg1[%c0_33, %c1_34, %c0_35, %36, %c0_36, %c0_37] : memref<1x2x2x17x17x64xf32, #tpu.memory_space<vmem>>, vector<1x1x1x8x16x64xf32>
      %38 = vector.shape_cast %37 : vector<1x1x1x8x16x64xf32> to vector<8x16x64xf32>
      %39 = vector.shape_cast %38 : vector<8x16x64xf32> to vector<128x64xf32>
      %40 = arith.truncf %39 : vector<128x64xf32> to vector<128x64xbf16>
      %c3 = arith.constant 3 : index
      %c0_38 = arith.constant 0 : index
      %c0_39 = arith.constant 0 : index
      %41 = vector.load %arg2[%c3, %c0_38, %c0_39] : memref<9x64x96xbf16, #tpu.memory_space<vmem>>, vector<1x64x96xbf16>
      %42 = vector.shape_cast %41 : vector<1x64x96xbf16> to vector<64x96xbf16>
      %cst_40 = arith.constant dense<0.000000e+00> : vector<128x96xf32>
      %43 = tpu.matmul %40, %42, %cst_40 {dimension_numbers = #tpu.dot_dimension_numbers<[1], [0], [0], [1], [0, 0, 1, 1], [], []>} : vector<128x64xbf16>, vector<64x96xbf16>, vector<128x96xf32> -> vector<128x96xf32>
      %44 = arith.addf %34, %43 : vector<128x96xf32>
      %c0_i32_41 = arith.constant 0 : i32
      %45 = arith.addi %3, %c0_i32_41 : i32
      %c0_42 = arith.constant 0 : index
      %c1_43 = arith.constant 1 : index
      %c1_44 = arith.constant 1 : index
      %46 = arith.index_cast %45 : i32 to index
      %c0_45 = arith.constant 0 : index
      %c0_46 = arith.constant 0 : index
      %47 = vector.load %arg1[%c0_42, %c1_43, %c1_44, %46, %c0_45, %c0_46] : memref<1x2x2x17x17x64xf32, #tpu.memory_space<vmem>>, vector<1x1x1x8x16x64xf32>
      %48 = vector.shape_cast %47 : vector<1x1x1x8x16x64xf32> to vector<8x16x64xf32>
      %49 = vector.shape_cast %48 : vector<8x16x64xf32> to vector<128x64xf32>
      %50 = arith.truncf %49 : vector<128x64xf32> to vector<128x64xbf16>
      %c4 = arith.constant 4 : index
      %c0_47 = arith.constant 0 : index
      %c0_48 = arith.constant 0 : index
      %51 = vector.load %arg2[%c4, %c0_47, %c0_48] : memref<9x64x96xbf16, #tpu.memory_space<vmem>>, vector<1x64x96xbf16>
      %52 = vector.shape_cast %51 : vector<1x64x96xbf16> to vector<64x96xbf16>
      %cst_49 = arith.constant dense<0.000000e+00> : vector<128x96xf32>
      %53 = tpu.matmul %50, %52, %cst_49 {dimension_numbers = #tpu.dot_dimension_numbers<[1], [0], [0], [1], [0, 0, 1, 1], [], []>} : vector<128x64xbf16>, vector<64x96xbf16>, vector<128x96xf32> -> vector<128x96xf32>
      %54 = arith.addf %44, %53 : vector<128x96xf32>
      %c0_i32_50 = arith.constant 0 : i32
      %55 = arith.addi %3, %c0_i32_50 : i32
      %c0_51 = arith.constant 0 : index
      %c1_52 = arith.constant 1 : index
      %c0_53 = arith.constant 0 : index
      %56 = arith.index_cast %55 : i32 to index
      %c1_54 = arith.constant 1 : index
      %c0_55 = arith.constant 0 : index
      %57 = vector.load %arg1[%c0_51, %c1_52, %c0_53, %56, %c1_54, %c0_55] : memref<1x2x2x17x17x64xf32, #tpu.memory_space<vmem>>, vector<1x1x1x8x16x64xf32>
      %58 = vector.shape_cast %57 : vector<1x1x1x8x16x64xf32> to vector<8x16x64xf32>
      %59 = vector.shape_cast %58 : vector<8x16x64xf32> to vector<128x64xf32>
      %60 = arith.truncf %59 : vector<128x64xf32> to vector<128x64xbf16>
      %c5 = arith.constant 5 : index
      %c0_56 = arith.constant 0 : index
      %c0_57 = arith.constant 0 : index
      %61 = vector.load %arg2[%c5, %c0_56, %c0_57] : memref<9x64x96xbf16, #tpu.memory_space<vmem>>, vector<1x64x96xbf16>
      %62 = vector.shape_cast %61 : vector<1x64x96xbf16> to vector<64x96xbf16>
      %cst_58 = arith.constant dense<0.000000e+00> : vector<128x96xf32>
      %63 = tpu.matmul %60, %62, %cst_58 {dimension_numbers = #tpu.dot_dimension_numbers<[1], [0], [0], [1], [0, 0, 1, 1], [], []>} : vector<128x64xbf16>, vector<64x96xbf16>, vector<128x96xf32> -> vector<128x96xf32>
      %64 = arith.addf %54, %63 : vector<128x96xf32>
      %c1_i32_59 = arith.constant 1 : i32
      %65 = arith.addi %3, %c1_i32_59 : i32
      %c0_60 = arith.constant 0 : index
      %c0_61 = arith.constant 0 : index
      %c0_62 = arith.constant 0 : index
      %66 = arith.index_cast %65 : i32 to index
      %c0_63 = arith.constant 0 : index
      %c0_64 = arith.constant 0 : index
      %67 = vector.load %arg1[%c0_60, %c0_61, %c0_62, %66, %c0_63, %c0_64] : memref<1x2x2x17x17x64xf32, #tpu.memory_space<vmem>>, vector<1x1x1x8x16x64xf32>
      %68 = vector.shape_cast %67 : vector<1x1x1x8x16x64xf32> to vector<8x16x64xf32>
      %69 = vector.shape_cast %68 : vector<8x16x64xf32> to vector<128x64xf32>
      %70 = arith.truncf %69 : vector<128x64xf32> to vector<128x64xbf16>
      %c6 = arith.constant 6 : index
      %c0_65 = arith.constant 0 : index
      %c0_66 = arith.constant 0 : index
      %71 = vector.load %arg2[%c6, %c0_65, %c0_66] : memref<9x64x96xbf16, #tpu.memory_space<vmem>>, vector<1x64x96xbf16>
      %72 = vector.shape_cast %71 : vector<1x64x96xbf16> to vector<64x96xbf16>
      %cst_67 = arith.constant dense<0.000000e+00> : vector<128x96xf32>
      %73 = tpu.matmul %70, %72, %cst_67 {dimension_numbers = #tpu.dot_dimension_numbers<[1], [0], [0], [1], [0, 0, 1, 1], [], []>} : vector<128x64xbf16>, vector<64x96xbf16>, vector<128x96xf32> -> vector<128x96xf32>
      %74 = arith.addf %64, %73 : vector<128x96xf32>
      %c1_i32_68 = arith.constant 1 : i32
      %75 = arith.addi %3, %c1_i32_68 : i32
      %c0_69 = arith.constant 0 : index
      %c0_70 = arith.constant 0 : index
      %c1_71 = arith.constant 1 : index
      %76 = arith.index_cast %75 : i32 to index
      %c0_72 = arith.constant 0 : index
      %c0_73 = arith.constant 0 : index
      %77 = vector.load %arg1[%c0_69, %c0_70, %c1_71, %76, %c0_72, %c0_73] : memref<1x2x2x17x17x64xf32, #tpu.memory_space<vmem>>, vector<1x1x1x8x16x64xf32>
      %78 = vector.shape_cast %77 : vector<1x1x1x8x16x64xf32> to vector<8x16x64xf32>
      %79 = vector.shape_cast %78 : vector<8x16x64xf32> to vector<128x64xf32>
      %80 = arith.truncf %79 : vector<128x64xf32> to vector<128x64xbf16>
      %c7 = arith.constant 7 : index
      %c0_74 = arith.constant 0 : index
      %c0_75 = arith.constant 0 : index
      %81 = vector.load %arg2[%c7, %c0_74, %c0_75] : memref<9x64x96xbf16, #tpu.memory_space<vmem>>, vector<1x64x96xbf16>
      %82 = vector.shape_cast %81 : vector<1x64x96xbf16> to vector<64x96xbf16>
      %cst_76 = arith.constant dense<0.000000e+00> : vector<128x96xf32>
      %83 = tpu.matmul %80, %82, %cst_76 {dimension_numbers = #tpu.dot_dimension_numbers<[1], [0], [0], [1], [0, 0, 1, 1], [], []>} : vector<128x64xbf16>, vector<64x96xbf16>, vector<128x96xf32> -> vector<128x96xf32>
      %84 = arith.addf %74, %83 : vector<128x96xf32>
      %c1_i32_77 = arith.constant 1 : i32
      %85 = arith.addi %3, %c1_i32_77 : i32
      %c0_78 = arith.constant 0 : index
      %c0_79 = arith.constant 0 : index
      %c0_80 = arith.constant 0 : index
      %86 = arith.index_cast %85 : i32 to index
      %c1_81 = arith.constant 1 : index
      %c0_82 = arith.constant 0 : index
      %87 = vector.load %arg1[%c0_78, %c0_79, %c0_80, %86, %c1_81, %c0_82] : memref<1x2x2x17x17x64xf32, #tpu.memory_space<vmem>>, vector<1x1x1x8x16x64xf32>
      %88 = vector.shape_cast %87 : vector<1x1x1x8x16x64xf32> to vector<8x16x64xf32>
      %89 = vector.shape_cast %88 : vector<8x16x64xf32> to vector<128x64xf32>
      %90 = arith.truncf %89 : vector<128x64xf32> to vector<128x64xbf16>
      %c8 = arith.constant 8 : index
      %c0_83 = arith.constant 0 : index
      %c0_84 = arith.constant 0 : index
      %91 = vector.load %arg2[%c8, %c0_83, %c0_84] : memref<9x64x96xbf16, #tpu.memory_space<vmem>>, vector<1x64x96xbf16>
      %92 = vector.shape_cast %91 : vector<1x64x96xbf16> to vector<64x96xbf16>
      %cst_85 = arith.constant dense<0.000000e+00> : vector<128x96xf32>
      %93 = tpu.matmul %90, %92, %cst_85 {dimension_numbers = #tpu.dot_dimension_numbers<[1], [0], [0], [1], [0, 0, 1, 1], [], []>} : vector<128x64xbf16>, vector<64x96xbf16>, vector<128x96xf32> -> vector<128x96xf32>
      %94 = arith.addf %84, %93 : vector<128x96xf32>
      %95 = vector.broadcast %0 : vector<1x96xf32> to vector<128x96xf32>
      %96 = arith.mulf %94, %95 : vector<128x96xf32>
      %97 = vector.broadcast %1 : vector<1x96xf32> to vector<128x96xf32>
      %98 = arith.addf %96, %97 : vector<128x96xf32>
      %cst_86 = arith.constant 0.000000e+00 : f32
      %99 = vector.broadcast %cst_86 : f32 to vector<128x96xf32>
      %100 = arith.cmpf ogt, %98, %99 : vector<128x96xf32>
      %cst_87 = arith.constant 2.000000e-01 : f32
      %101 = vector.broadcast %cst_87 : f32 to vector<128x96xf32>
      %102 = arith.mulf %101, %98 : vector<128x96xf32>
      %103 = arith.select %100, %98, %102 : vector<128x96xi1>, vector<128x96xf32>
      %c128_i32 = arith.constant 128 : i32
      %104 = arith.muli %arg6, %c128_i32 : i32
      %105 = tpu.assume_multiple %104, 128 : i32
      %c0_88 = arith.constant 0 : index
      %106 = arith.index_cast %105 : i32 to index
      %c0_89 = arith.constant 0 : index
      %107 = vector.load %arg5[%c0_88, %106, %c0_89] : memref<1x256x96xf32, #tpu.memory_space<vmem>>, vector<1x128x96xf32>
      %108 = vector.shape_cast %107 : vector<1x128x96xf32> to vector<128x96xf32>
      %109 = vector.shape_cast %103 : vector<128x96xf32> to vector<1x128x96xf32>
      tpu.vector_store %arg5[%c0_88, %106, %c0_89], %109 {strides = array<i32>} : memref<1x256x96xf32, #tpu.memory_space<vmem>>, vector<1x128x96xf32>,
    }
    %c2_i32_3 = arith.constant 2 : i32
    return
  }
  func.func @transform_0(%arg0: i32) -> (i32, i32, i32, i32, i32, i32) {
    %c0_i32 = arith.constant 0 : i32
    %c0_i32_0 = arith.constant 0 : i32
    %c0_i32_1 = arith.constant 0 : i32
    %c0_i32_2 = arith.constant 0 : i32
    %c0_i32_3 = arith.constant 0 : i32
    %c0_i32_4 = arith.constant 0 : i32
    return %arg0, %c0_i32, %c0_i32_0, %c0_i32_1, %c0_i32_2, %c0_i32_3 : i32, i32, i32, i32, i32, i32
  }
  func.func @transform_1(%arg0: i32) -> (i32, i32, i32) {
    %c0_i32 = arith.constant 0 : i32
    %c0_i32_0 = arith.constant 0 : i32
    %c0_i32_1 = arith.constant 0 : i32
    %c0_i32_2 = arith.constant 0 : i32
    return %c0_i32, %c0_i32_0, %c0_i32_1 : i32, i32, i32
  }
  func.func @transform_2(%arg0: i32) -> (i32, i32) {
    %c0_i32 = arith.constant 0 : i32
    %c0_i32_0 = arith.constant 0 : i32
    %c0_i32_1 = arith.constant 0 : i32
    return %c0_i32, %c0_i32_0 : i32, i32
  }
  func.func @transform_3(%arg0: i32) -> (i32, i32) {
    %c0_i32 = arith.constant 0 : i32
    %c0_i32_0 = arith.constant 0 : i32
    %c0_i32_1 = arith.constant 0 : i32
    return %c0_i32, %c0_i32_0 : i32, i32
  }
  func.func @transform_4(%arg0: i32) -> (i32, i32, i32) {
    %c0_i32 = arith.constant 0 : i32
    %c0_i32_0 = arith.constant 0 : i32
    %c0_i32_1 = arith.constant 0 : i32
    return %arg0, %c0_i32, %c0_i32_0 : i32, i32, i32
  }
}

module attributes {stable_mosaic.version = 11 : i64} {
  func.func @_conv3x3s2_bn_lrelu_kernel(%arg0: i32, %arg1: memref<1x2x2x9x9x96xf32, #tpu.memory_space<vmem>>, %arg2: memref<9x96x128xbf16, #tpu.memory_space<vmem>>, %arg3: memref<1x128xf32, #tpu.memory_space<vmem>>, %arg4: memref<1x128xf32, #tpu.memory_space<vmem>>, %arg5: memref<1x64x128xf32, #tpu.memory_space<vmem>>) attributes {dimension_semantics = [#tpu.dimension_semantics<parallel>], iteration_bounds = array<i64: 2>, scalar_prefetch = 0 : i64, scratch_operands = 0 : i64, tpu.core_type = #tpu.core_type<tc>, window_params = [{transform_indices = @transform_0, window_bounds = array<i64: 1, 2, 2, 9, 9, 96>}, {pipeline_mode = #tpu.pipeline_mode<synchronous>, transform_indices = @transform_1, window_bounds = array<i64: 9, 96, 128>}, {pipeline_mode = #tpu.pipeline_mode<synchronous>, transform_indices = @transform_2, window_bounds = array<i64: 1, 128>}, {pipeline_mode = #tpu.pipeline_mode<synchronous>, transform_indices = @transform_3, window_bounds = array<i64: 1, 128>}, {transform_indices = @transform_4, window_bounds = array<i64: 1, 64, 128>}]} {
    %c0 = arith.constant 0 : index
    %c0_0 = arith.constant 0 : index
    %0 = vector.load %arg3[%c0, %c0_0] : memref<1x128xf32, #tpu.memory_space<vmem>>, vector<1x128xf32>
    %c0_1 = arith.constant 0 : index
    %c0_2 = arith.constant 0 : index
    %1 = vector.load %arg4[%c0_1, %c0_2] : memref<1x128xf32, #tpu.memory_space<vmem>>, vector<1x128xf32>
    %c0_i32 = arith.constant 0 : i32
    %c8_i32 = arith.constant 8 : i32
    %2 = arith.muli %c0_i32, %c8_i32 : i32
    %cst = arith.constant 0.000000e+00 : f32
    %3 = vector.broadcast %cst : f32 to vector<64x128xf32>
    %c0_i32_3 = arith.constant 0 : i32
    %4 = arith.addi %2, %c0_i32_3 : i32
    %c0_4 = arith.constant 0 : index
    %c0_5 = arith.constant 0 : index
    %c0_6 = arith.constant 0 : index
    %5 = arith.index_cast %4 : i32 to index
    %c0_7 = arith.constant 0 : index
    %c0_8 = arith.constant 0 : index
    %6 = vector.load %arg1[%c0_4, %c0_5, %c0_6, %5, %c0_7, %c0_8] : memref<1x2x2x9x9x96xf32, #tpu.memory_space<vmem>>, vector<1x1x1x8x8x96xf32>
    %7 = vector.shape_cast %6 : vector<1x1x1x8x8x96xf32> to vector<8x8x96xf32>
    %8 = vector.shape_cast %7 : vector<8x8x96xf32> to vector<64x96xf32>
    %9 = arith.truncf %8 : vector<64x96xf32> to vector<64x96xbf16>
    %c0_9 = arith.constant 0 : index
    %c0_10 = arith.constant 0 : index
    %c0_11 = arith.constant 0 : index
    %10 = vector.load %arg2[%c0_9, %c0_10, %c0_11] : memref<9x96x128xbf16, #tpu.memory_space<vmem>>, vector<1x96x128xbf16>
    %11 = vector.shape_cast %10 : vector<1x96x128xbf16> to vector<96x128xbf16>
    %cst_12 = arith.constant dense<0.000000e+00> : vector<64x128xf32>
    %12 = tpu.matmul %9, %11, %cst_12 {dimension_numbers = #tpu.dot_dimension_numbers<[1], [0], [0], [1], [0, 0, 1, 1], [], []>} : vector<64x96xbf16>, vector<96x128xbf16>, vector<64x128xf32> -> vector<64x128xf32>
    %13 = arith.addf %3, %12 : vector<64x128xf32>
    %c0_i32_13 = arith.constant 0 : i32
    %14 = arith.addi %2, %c0_i32_13 : i32
    %c0_14 = arith.constant 0 : index
    %c0_15 = arith.constant 0 : index
    %c1 = arith.constant 1 : index
    %15 = arith.index_cast %14 : i32 to index
    %c0_16 = arith.constant 0 : index
    %c0_17 = arith.constant 0 : index
    %16 = vector.load %arg1[%c0_14, %c0_15, %c1, %15, %c0_16, %c0_17] : memref<1x2x2x9x9x96xf32, #tpu.memory_space<vmem>>, vector<1x1x1x8x8x96xf32>
    %17 = vector.shape_cast %16 : vector<1x1x1x8x8x96xf32> to vector<8x8x96xf32>
    %18 = vector.shape_cast %17 : vector<8x8x96xf32> to vector<64x96xf32>
    %19 = arith.truncf %18 : vector<64x96xf32> to vector<64x96xbf16>
    %c1_18 = arith.constant 1 : index
    %c0_19 = arith.constant 0 : index
    %c0_20 = arith.constant 0 : index
    %20 = vector.load %arg2[%c1_18, %c0_19, %c0_20] : memref<9x96x128xbf16, #tpu.memory_space<vmem>>, vector<1x96x128xbf16>
    %21 = vector.shape_cast %20 : vector<1x96x128xbf16> to vector<96x128xbf16>
    %cst_21 = arith.constant dense<0.000000e+00> : vector<64x128xf32>
    %22 = tpu.matmul %19, %21, %cst_21 {dimension_numbers = #tpu.dot_dimension_numbers<[1], [0], [0], [1], [0, 0, 1, 1], [], []>} : vector<64x96xbf16>, vector<96x128xbf16>, vector<64x128xf32> -> vector<64x128xf32>
    %23 = arith.addf %13, %22 : vector<64x128xf32>
    %c0_i32_22 = arith.constant 0 : i32
    %24 = arith.addi %2, %c0_i32_22 : i32
    %c0_23 = arith.constant 0 : index
    %c0_24 = arith.constant 0 : index
    %c0_25 = arith.constant 0 : index
    %25 = arith.index_cast %24 : i32 to index
    %c1_26 = arith.constant 1 : index
    %c0_27 = arith.constant 0 : index
    %26 = vector.load %arg1[%c0_23, %c0_24, %c0_25, %25, %c1_26, %c0_27] : memref<1x2x2x9x9x96xf32, #tpu.memory_space<vmem>>, vector<1x1x1x8x8x96xf32>
    %27 = vector.shape_cast %26 : vector<1x1x1x8x8x96xf32> to vector<8x8x96xf32>
    %28 = vector.shape_cast %27 : vector<8x8x96xf32> to vector<64x96xf32>
    %29 = arith.truncf %28 : vector<64x96xf32> to vector<64x96xbf16>
    %c2 = arith.constant 2 : index
    %c0_28 = arith.constant 0 : index
    %c0_29 = arith.constant 0 : index
    %30 = vector.load %arg2[%c2, %c0_28, %c0_29] : memref<9x96x128xbf16, #tpu.memory_space<vmem>>, vector<1x96x128xbf16>
    %31 = vector.shape_cast %30 : vector<1x96x128xbf16> to vector<96x128xbf16>
    %cst_30 = arith.constant dense<0.000000e+00> : vector<64x128xf32>
    %32 = tpu.matmul %29, %31, %cst_30 {dimension_numbers = #tpu.dot_dimension_numbers<[1], [0], [0], [1], [0, 0, 1, 1], [], []>} : vector<64x96xbf16>, vector<96x128xbf16>, vector<64x128xf32> -> vector<64x128xf32>
    %33 = arith.addf %23, %32 : vector<64x128xf32>
    %c0_i32_31 = arith.constant 0 : i32
    %34 = arith.addi %2, %c0_i32_31 : i32
    %c0_32 = arith.constant 0 : index
    %c1_33 = arith.constant 1 : index
    %c0_34 = arith.constant 0 : index
    %35 = arith.index_cast %34 : i32 to index
    %c0_35 = arith.constant 0 : index
    %c0_36 = arith.constant 0 : index
    %36 = vector.load %arg1[%c0_32, %c1_33, %c0_34, %35, %c0_35, %c0_36] : memref<1x2x2x9x9x96xf32, #tpu.memory_space<vmem>>, vector<1x1x1x8x8x96xf32>
    %37 = vector.shape_cast %36 : vector<1x1x1x8x8x96xf32> to vector<8x8x96xf32>
    %38 = vector.shape_cast %37 : vector<8x8x96xf32> to vector<64x96xf32>
    %39 = arith.truncf %38 : vector<64x96xf32> to vector<64x96xbf16>
    %c3 = arith.constant 3 : index
    %c0_37 = arith.constant 0 : index
    %c0_38 = arith.constant 0 : index
    %40 = vector.load %arg2[%c3, %c0_37, %c0_38] : memref<9x96x128xbf16, #tpu.memory_space<vmem>>, vector<1x96x128xbf16>
    %41 = vector.shape_cast %40 : vector<1x96x128xbf16> to vector<96x128xbf16>
    %cst_39 = arith.constant dense<0.000000e+00> : vector<64x128xf32>
    %42 = tpu.matmul %39, %41, %cst_39 {dimension_numbers = #tpu.dot_dimension_numbers<[1], [0], [0], [1], [0, 0, 1, 1], [], []>} : vector<64x96xbf16>, vector<96x128xbf16>, vector<64x128xf32> -> vector<64x128xf32>
    %43 = arith.addf %33, %42 : vector<64x128xf32>
    %c0_i32_40 = arith.constant 0 : i32
    %44 = arith.addi %2, %c0_i32_40 : i32
    %c0_41 = arith.constant 0 : index
    %c1_42 = arith.constant 1 : index
    %c1_43 = arith.constant 1 : index
    %45 = arith.index_cast %44 : i32 to index
    %c0_44 = arith.constant 0 : index
    %c0_45 = arith.constant 0 : index
    %46 = vector.load %arg1[%c0_41, %c1_42, %c1_43, %45, %c0_44, %c0_45] : memref<1x2x2x9x9x96xf32, #tpu.memory_space<vmem>>, vector<1x1x1x8x8x96xf32>
    %47 = vector.shape_cast %46 : vector<1x1x1x8x8x96xf32> to vector<8x8x96xf32>
    %48 = vector.shape_cast %47 : vector<8x8x96xf32> to vector<64x96xf32>
    %49 = arith.truncf %48 : vector<64x96xf32> to vector<64x96xbf16>
    %c4 = arith.constant 4 : index
    %c0_46 = arith.constant 0 : index
    %c0_47 = arith.constant 0 : index
    %50 = vector.load %arg2[%c4, %c0_46, %c0_47] : memref<9x96x128xbf16, #tpu.memory_space<vmem>>, vector<1x96x128xbf16>
    %51 = vector.shape_cast %50 : vector<1x96x128xbf16> to vector<96x128xbf16>
    %cst_48 = arith.constant dense<0.000000e+00> : vector<64x128xf32>
    %52 = tpu.matmul %49, %51, %cst_48 {dimension_numbers = #tpu.dot_dimension_numbers<[1], [0], [0], [1], [0, 0, 1, 1], [], []>} : vector<64x96xbf16>, vector<96x128xbf16>, vector<64x128xf32> -> vector<64x128xf32>
    %53 = arith.addf %43, %52 : vector<64x128xf32>
    %c0_i32_49 = arith.constant 0 : i32
    %54 = arith.addi %2, %c0_i32_49 : i32
    %c0_50 = arith.constant 0 : index
    %c1_51 = arith.constant 1 : index
    %c0_52 = arith.constant 0 : index
    %55 = arith.index_cast %54 : i32 to index
    %c1_53 = arith.constant 1 : index
    %c0_54 = arith.constant 0 : index
    %56 = vector.load %arg1[%c0_50, %c1_51, %c0_52, %55, %c1_53, %c0_54] : memref<1x2x2x9x9x96xf32, #tpu.memory_space<vmem>>, vector<1x1x1x8x8x96xf32>
    %57 = vector.shape_cast %56 : vector<1x1x1x8x8x96xf32> to vector<8x8x96xf32>
    %58 = vector.shape_cast %57 : vector<8x8x96xf32> to vector<64x96xf32>
    %59 = arith.truncf %58 : vector<64x96xf32> to vector<64x96xbf16>
    %c5 = arith.constant 5 : index
    %c0_55 = arith.constant 0 : index
    %c0_56 = arith.constant 0 : index
    %60 = vector.load %arg2[%c5, %c0_55, %c0_56] : memref<9x96x128xbf16, #tpu.memory_space<vmem>>, vector<1x96x128xbf16>
    %61 = vector.shape_cast %60 : vector<1x96x128xbf16> to vector<96x128xbf16>
    %cst_57 = arith.constant dense<0.000000e+00> : vector<64x128xf32>
    %62 = tpu.matmul %59, %61, %cst_57 {dimension_numbers = #tpu.dot_dimension_numbers<[1], [0], [0], [1], [0, 0, 1, 1], [], []>} : vector<64x96xbf16>, vector<96x128xbf16>, vector<64x128xf32> -> vector<64x128xf32>
    %63 = arith.addf %53, %62 : vector<64x128xf32>
    %c1_i32 = arith.constant 1 : i32
    %64 = arith.addi %2, %c1_i32 : i32
    %c0_58 = arith.constant 0 : index
    %c0_59 = arith.constant 0 : index
    %c0_60 = arith.constant 0 : index
    %65 = arith.index_cast %64 : i32 to index
    %c0_61 = arith.constant 0 : index
    %c0_62 = arith.constant 0 : index
    %66 = vector.load %arg1[%c0_58, %c0_59, %c0_60, %65, %c0_61, %c0_62] : memref<1x2x2x9x9x96xf32, #tpu.memory_space<vmem>>, vector<1x1x1x8x8x96xf32>
    %67 = vector.shape_cast %66 : vector<1x1x1x8x8x96xf32> to vector<8x8x96xf32>
    %68 = vector.shape_cast %67 : vector<8x8x96xf32> to vector<64x96xf32>
    %69 = arith.truncf %68 : vector<64x96xf32> to vector<64x96xbf16>
    %c6 = arith.constant 6 : index
    %c0_63 = arith.constant 0 : index
    %c0_64 = arith.constant 0 : index
    %70 = vector.load %arg2[%c6, %c0_63, %c0_64] : memref<9x96x128xbf16, #tpu.memory_space<vmem>>, vector<1x96x128xbf16>
    %71 = vector.shape_cast %70 : vector<1x96x128xbf16> to vector<96x128xbf16>
    %cst_65 = arith.constant dense<0.000000e+00> : vector<64x128xf32>
    %72 = tpu.matmul %69, %71, %cst_65 {dimension_numbers = #tpu.dot_dimension_numbers<[1], [0], [0], [1], [0, 0, 1, 1], [], []>} : vector<64x96xbf16>, vector<96x128xbf16>, vector<64x128xf32> -> vector<64x128xf32>
    %73 = arith.addf %63, %72 : vector<64x128xf32>
    %c1_i32_66 = arith.constant 1 : i32
    %74 = arith.addi %2, %c1_i32_66 : i32
    %c0_67 = arith.constant 0 : index
    %c0_68 = arith.constant 0 : index
    %c1_69 = arith.constant 1 : index
    %75 = arith.index_cast %74 : i32 to index
    %c0_70 = arith.constant 0 : index
    %c0_71 = arith.constant 0 : index
    %76 = vector.load %arg1[%c0_67, %c0_68, %c1_69, %75, %c0_70, %c0_71] : memref<1x2x2x9x9x96xf32, #tpu.memory_space<vmem>>, vector<1x1x1x8x8x96xf32>
    %77 = vector.shape_cast %76 : vector<1x1x1x8x8x96xf32> to vector<8x8x96xf32>
    %78 = vector.shape_cast %77 : vector<8x8x96xf32> to vector<64x96xf32>
    %79 = arith.truncf %78 : vector<64x96xf32> to vector<64x96xbf16>
    %c7 = arith.constant 7 : index
    %c0_72 = arith.constant 0 : index
    %c0_73 = arith.constant 0 : index
    %80 = vector.load %arg2[%c7, %c0_72, %c0_73] : memref<9x96x128xbf16, #tpu.memory_space<vmem>>, vector<1x96x128xbf16>
    %81 = vector.shape_cast %80 : vector<1x96x128xbf16> to vector<96x128xbf16>
    %cst_74 = arith.constant dense<0.000000e+00> : vector<64x128xf32>
    %82 = tpu.matmul %79, %81, %cst_74 {dimension_numbers = #tpu.dot_dimension_numbers<[1], [0], [0], [1], [0, 0, 1, 1], [], []>} : vector<64x96xbf16>, vector<96x128xbf16>, vector<64x128xf32> -> vector<64x128xf32>
    %83 = arith.addf %73, %82 : vector<64x128xf32>
    %c1_i32_75 = arith.constant 1 : i32
    %84 = arith.addi %2, %c1_i32_75 : i32
    %c0_76 = arith.constant 0 : index
    %c0_77 = arith.constant 0 : index
    %c0_78 = arith.constant 0 : index
    %85 = arith.index_cast %84 : i32 to index
    %c1_79 = arith.constant 1 : index
    %c0_80 = arith.constant 0 : index
    %86 = vector.load %arg1[%c0_76, %c0_77, %c0_78, %85, %c1_79, %c0_80] : memref<1x2x2x9x9x96xf32, #tpu.memory_space<vmem>>, vector<1x1x1x8x8x96xf32>
    %87 = vector.shape_cast %86 : vector<1x1x1x8x8x96xf32> to vector<8x8x96xf32>
    %88 = vector.shape_cast %87 : vector<8x8x96xf32> to vector<64x96xf32>
    %89 = arith.truncf %88 : vector<64x96xf32> to vector<64x96xbf16>
    %c8 = arith.constant 8 : index
    %c0_81 = arith.constant 0 : index
    %c0_82 = arith.constant 0 : index
    %90 = vector.load %arg2[%c8, %c0_81, %c0_82] : memref<9x96x128xbf16, #tpu.memory_space<vmem>>, vector<1x96x128xbf16>
    %91 = vector.shape_cast %90 : vector<1x96x128xbf16> to vector<96x128xbf16>
    %cst_83 = arith.constant dense<0.000000e+00> : vector<64x128xf32>
    %92 = tpu.matmul %89, %91, %cst_83 {dimension_numbers = #tpu.dot_dimension_numbers<[1], [0], [0], [1], [0, 0, 1, 1], [], []>} : vector<64x96xbf16>, vector<96x128xbf16>, vector<64x128xf32> -> vector<64x128xf32>
    %93 = arith.addf %83, %92 : vector<64x128xf32>
    %94 = vector.broadcast %0 : vector<1x128xf32> to vector<64x128xf32>
    %95 = arith.mulf %93, %94 : vector<64x128xf32>
    %96 = vector.broadcast %1 : vector<1x128xf32> to vector<64x128xf32>
    %97 = arith.addf %95, %96 : vector<64x128xf32>
    %cst_84 = arith.constant 0.000000e+00 : f32
    %98 = vector.broadcast %cst_84 : f32 to vector<64x128xf32>
    %99 = arith.cmpf ogt, %97, %98 : vector<64x128xf32>
    %cst_85 = arith.constant 2.000000e-01 : f32
    %100 = vector.broadcast %cst_85 : f32 to vector<64x128xf32>
    %101 = arith.mulf %100, %97 : vector<64x128xf32>
    %102 = arith.select %99, %97, %101 : vector<64x128xi1>, vector<64x128xf32>
    %c64_i32 = arith.constant 64 : i32
    %103 = arith.muli %c0_i32, %c64_i32 : i32
    %104 = tpu.assume_multiple %103, 64 : i32
    %c0_86 = arith.constant 0 : index
    %105 = arith.index_cast %104 : i32 to index
    %c0_87 = arith.constant 0 : index
    %106 = vector.load %arg5[%c0_86, %105, %c0_87] : memref<1x64x128xf32, #tpu.memory_space<vmem>>, vector<1x64x128xf32>
    %107 = vector.shape_cast %106 : vector<1x64x128xf32> to vector<64x128xf32>
    %108 = vector.shape_cast %102 : vector<64x128xf32> to vector<1x64x128xf32>
    tpu.vector_store %arg5[%c0_86, %105, %c0_87], %108 {strides = array<i32>} : memref<1x64x128xf32, #tpu.memory_space<vmem>>, vector<1x64x128xf32>,
    %c1_i32_88 = arith.constant 1 : i32
    return
  }
  func.func @transform_0(%arg0: i32) -> (i32, i32, i32, i32, i32, i32) {
    %c0_i32 = arith.constant 0 : i32
    %c0_i32_0 = arith.constant 0 : i32
    %c0_i32_1 = arith.constant 0 : i32
    %c0_i32_2 = arith.constant 0 : i32
    %c0_i32_3 = arith.constant 0 : i32
    %c0_i32_4 = arith.constant 0 : i32
    return %arg0, %c0_i32, %c0_i32_0, %c0_i32_1, %c0_i32_2, %c0_i32_3 : i32, i32, i32, i32, i32, i32
  }
  func.func @transform_1(%arg0: i32) -> (i32, i32, i32) {
    %c0_i32 = arith.constant 0 : i32
    %c0_i32_0 = arith.constant 0 : i32
    %c0_i32_1 = arith.constant 0 : i32
    %c0_i32_2 = arith.constant 0 : i32
    return %c0_i32, %c0_i32_0, %c0_i32_1 : i32, i32, i32
  }
  func.func @transform_2(%arg0: i32) -> (i32, i32) {
    %c0_i32 = arith.constant 0 : i32
    %c0_i32_0 = arith.constant 0 : i32
    %c0_i32_1 = arith.constant 0 : i32
    return %c0_i32, %c0_i32_0 : i32, i32
  }
  func.func @transform_3(%arg0: i32) -> (i32, i32) {
    %c0_i32 = arith.constant 0 : i32
    %c0_i32_0 = arith.constant 0 : i32
    %c0_i32_1 = arith.constant 0 : i32
    return %c0_i32, %c0_i32_0 : i32, i32
  }
  func.func @transform_4(%arg0: i32) -> (i32, i32, i32) {
    %c0_i32 = arith.constant 0 : i32
    %c0_i32_0 = arith.constant 0 : i32
    %c0_i32_1 = arith.constant 0 : i32
    return %arg0, %c0_i32, %c0_i32_0 : i32, i32, i32
  }
}

module attributes {stable_mosaic.version = 11 : i64} {
  func.func @_linear_kernel(%arg0: i32, %arg1: memref<2x8192xf32, #tpu.memory_space<vmem>>, %arg2: memref<1x8192xf32, #tpu.memory_space<vmem>>, %arg3: memref<1x1xf32, #tpu.memory_space<vmem>>, %arg4: memref<2x1xf32, #tpu.memory_space<vmem>>) attributes {dimension_semantics = [#tpu.dimension_semantics<arbitrary>], iteration_bounds = array<i64: 1>, scalar_prefetch = 0 : i64, scratch_operands = 0 : i64, tpu.core_type = #tpu.core_type<tc>, window_params = [{pipeline_mode = #tpu.pipeline_mode<synchronous>, transform_indices = @transform_0, window_bounds = array<i64: 2, 8192>}, {pipeline_mode = #tpu.pipeline_mode<synchronous>, transform_indices = @transform_1, window_bounds = array<i64: 1, 8192>}, {pipeline_mode = #tpu.pipeline_mode<synchronous>, transform_indices = @transform_2, window_bounds = array<i64: 1, 1>}, {pipeline_mode = #tpu.pipeline_mode<synchronous>, transform_indices = @transform_3, window_bounds = array<i64: 2, 1>}]} {
    %cst = arith.constant 0.000000e+00 : f32
    %0 = vector.broadcast %cst : f32 to vector<2x1xf32>
    %c0_i32 = arith.constant 0 : i32
    %c4_i32 = arith.constant 4 : i32
    %1 = arith.addi %c0_i32, %c4_i32 : i32
    %c1_i32 = arith.constant 1 : i32
    %2 = scf.for %arg5 = %c0_i32 to %1 step %c1_i32 iter_args(%arg6 = %0) -> (vector<2x1xf32>)  : i32 {
      %c2048_i32 = arith.constant 2048 : i32
      %7 = arith.muli %arg5, %c2048_i32 : i32
      %8 = tpu.assume_multiple %7, 2048 : i32
      %c0_4 = arith.constant 0 : index
      %9 = arith.index_cast %8 : i32 to index
      %10 = vector.load %arg1[%c0_4, %9] : memref<2x8192xf32, #tpu.memory_space<vmem>>, vector<2x2048xf32>
      %c0_5 = arith.constant 0 : index
      %11 = arith.index_cast %8 : i32 to index
      %12 = vector.load %arg2[%c0_5, %11] : memref<1x8192xf32, #tpu.memory_space<vmem>>, vector<1x2048xf32>
      %13 = vector.broadcast %12 : vector<1x2048xf32> to vector<2x2048xf32>
      %14 = arith.mulf %10, %13 : vector<2x2048xf32>
      %cst_6 = arith.constant dense<0.000000e+00> : vector<2xf32>
      %15 = vector.multi_reduction <add>, %14, %cst_6 [1] : vector<2x2048xf32> to vector<2xf32>
      %16 = vector.shape_cast %15 : vector<2xf32> to vector<2x1xf32>
      %17 = arith.addf %arg6, %16 : vector<2x1xf32>
      scf.yield %17 : vector<2x1xf32>
    }
    %c4_i32_0 = arith.constant 4 : i32
    %c0 = arith.constant 0 : index
    %c0_1 = arith.constant 0 : index
    %3 = vector.load %arg3[%c0, %c0_1] : memref<1x1xf32, #tpu.memory_space<vmem>>, vector<1x1xf32>
    %4 = vector.broadcast %3 : vector<1x1xf32> to vector<2x1xf32>
    %5 = arith.addf %2, %4 : vector<2x1xf32>
    %c0_2 = arith.constant 0 : index
    %c0_3 = arith.constant 0 : index
    %6 = vector.load %arg4[%c0_2, %c0_3] : memref<2x1xf32, #tpu.memory_space<vmem>>, vector<2x1xf32>
    tpu.vector_store %arg4[%c0_2, %c0_3], %5 {strides = array<i32>} : memref<2x1xf32, #tpu.memory_space<vmem>>, vector<2x1xf32>,
    return
  }
  func.func @transform_0(%arg0: i32) -> (i32, i32) {
    %c0_i32 = arith.constant 0 : i32
    %c0_i32_0 = arith.constant 0 : i32
    %c0_i32_1 = arith.constant 0 : i32
    return %c0_i32, %c0_i32_0 : i32, i32
  }
  func.func @transform_1(%arg0: i32) -> (i32, i32) {
    %c0_i32 = arith.constant 0 : i32
    %c0_i32_0 = arith.constant 0 : i32
    %c0_i32_1 = arith.constant 0 : i32
    return %c0_i32, %c0_i32_0 : i32, i32
  }
  func.func @transform_2(%arg0: i32) -> (i32, i32) {
    %c0_i32 = arith.constant 0 : i32
    %c0_i32_0 = arith.constant 0 : i32
    %c0_i32_1 = arith.constant 0 : i32
    return %c0_i32, %c0_i32_0 : i32, i32
  }
  func.func @transform_3(%arg0: i32) -> (i32, i32) {
    %c0_i32 = arith.constant 0 : i32
    %c0_i32_0 = arith.constant 0 : i32
    %c0_i32_1 = arith.constant 0 : i32
    return %c0_i32, %c0_i32_0 : i32, i32
  }
}

</mosaic_0001>

<llo_original>
// kernel: discriminator_pallas.5
$region0: #{discriminator_pallas.5}
  #allocation0 [shape = 'u32[]', space=smem, size = 0x4, offset = 0x4, fixed_abs, tag = 'smem constant byte address 0x4 - core index']
  #allocation1 [shape = 'u32[144,128]{1,0:T(1,128)}', space=vmem, size = 0x12000, scoped, tag = 'internal scratch']
  %s0 = inlined_call_operand.vmem [shape: bf16[2,4096,36], index: 0, kind: input, shape index: {}]
  %s1 = inlined_call_operand.vmem [shape: bf16[36,32], index: 1, kind: input, shape index: {}]
  %s2 = inlined_call_operand.vmem [shape: f32[1,32], index: 2, kind: input, shape index: {}]
  %s3 = inlined_call_operand.vmem [shape: f32[1,32], index: 3, kind: input, shape index: {}]
  %s4 = inlined_call_operand.vmem [shape: f32[2,4096,32], index: 4, kind: output, shape index: {}]
  %s5 = sld [smem:[#allocation0]]
  $region56: #{discriminator_pallas.5} parent=0
    _
  %s7 = ssub.s32 1, %s5
  %s8 = scalar_select 0, %s7, %s5
  loop: start=0, step=1, limit=4
  $region2: #{discriminator_pallas.5} parent=0 // loop_pre_header
    _
  $region3: #{discriminator_pallas.5} parent=0 // loop_header
    %s10 = sphi 0, %s14
    %p11 = scmp.ge.s32.totalorder %s10, 4
    %s20 = sphi 0, %s22
    %s23 = sphi 0, %s20
    %s24 = sphi 0, %s23
    %s40 = sphi 0, %s24
    %s44 = sphi 0, %s44
    %s46 = sphi 0, %s44
    %s47 = sphi 0, %s46
    %s61 = sphi 0, %s47
    %s65 = sphi 0, %s65
    %s67 = sphi 0, %s65
    %s68 = sphi 0, %s67
    %s82 = sphi 0, %s68
    %s86 = sphi 0, %s86
    %s88 = sphi 0, %s86
    %s89 = sphi 0, %s88
    %s103 = sphi 0, %s89
    %s109 = sphi 0, %s111
    %s112 = sphi 0, %s109
    %s113 = sphi 0, %s112
    %s129 = sphi 0, %s113
  $region4: #{discriminator_pallas.5} parent=0 // loop_header_branch
    %13 = sbr.rel (%p11) target = $region8
  $region5: #{discriminator_pallas.5} parent=0 // loop_body
    %s15 = ssub.s32 %s10, 1
    %s16 = ssub.s32 %s10, 2
    %s17 = sadd.s32 %s10, 1
    %s18 = ssub.s32 %s10, %s17
    %p19 = scmp.eq.s32.totalorder %s18, 0
    %s21 = sadd.s32 %s20, 1
    %s22 = scalar_select %p19, %s20, %s21
    %p25 = pneg %p19
    %p26 = scmp.eq.s32.totalorder %s10, 1
    %p27 = por %p25, %p26
    %p28 = scmp.ne.s32.totalorder %s20, %s23
    %p29 = scmp.eq.s32.totalorder %s10, 0
    %p30 = por %p28, %p29
    %p31 = scmp.ne.s32.totalorder %s20, %s23
    %p32 = scmp.eq.s32.totalorder %s15, 1
    %p33 = por %p31, %p32
    %p34 = scmp.ne.s32.totalorder %s23, %s24
    %p35 = scmp.eq.s32.totalorder %s15, 0
    %p36 = por %p34, %p35
    %p37 = scmp.ne.s32.totalorder %s23, %s24
    %p38 = scmp.eq.s32.totalorder %s16, 1
    %p39 = por %p37, %p38
    %p41 = scmp.ne.s32.totalorder %s24, %s40
    %p42 = scmp.eq.s32.totalorder %s16, 0
    %p43 = por %p41, %p42
    %s45 = sadd.s32 %s44, 1
    %p48 = scmp.eq.s32.totalorder %s10, 1
    %p49 = scmp.ne.s32.totalorder %s44, %s46
    %p50 = scmp.eq.s32.totalorder %s10, 0
    %p51 = por %p49, %p50
    %p52 = scmp.ne.s32.totalorder %s44, %s46
    %p53 = scmp.eq.s32.totalorder %s15, 1
    %p54 = por %p52, %p53
    %p55 = scmp.ne.s32.totalorder %s46, %s47
    %p56 = scmp.eq.s32.totalorder %s15, 0
    %p57 = por %p55, %p56
    %p58 = scmp.ne.s32.totalorder %s46, %s47
    %p59 = scmp.eq.s32.totalorder %s16, 1
    %p60 = por %p58, %p59
    %p62 = scmp.ne.s32.totalorder %s47, %s61
    %p63 = scmp.eq.s32.totalorder %s16, 0
    %p64 = por %p62, %p63
    %s66 = sadd.s32 %s65, 1
    %p69 = scmp.eq.s32.totalorder %s10, 1
    %p70 = scmp.ne.s32.totalorder %s65, %s67
    %p71 = scmp.eq.s32.totalorder %s10, 0
    %p72 = por %p70, %p71
    %p73 = scmp.ne.s32.totalorder %s65, %s67
    %p74 = scmp.eq.s32.totalorder %s15, 1
    %p75 = por %p73, %p74
    %p76 = scmp.ne.s32.totalorder %s67, %s68
    %p77 = scmp.eq.s32.totalorder %s15, 0
    %p78 = por %p76, %p77
    %p79 = scmp.ne.s32.totalorder %s67, %s68
    %p80 = scmp.eq.s32.totalorder %s16, 1
    %p81 = por %p79, %p80
    %p83 = scmp.ne.s32.totalorder %s68, %s82
    %p84 = scmp.eq.s32.totalorder %s16, 0
    %p85 = por %p83, %p84
    %s87 = sadd.s32 %s86, 1
    %p90 = scmp.eq.s32.totalorder %s10, 1
    %p91 = scmp.ne.s32.totalorder %s86, %s88
    %p92 = scmp.eq.s32.totalorder %s10, 0
    %p93 = por %p91, %p92
    %p94 = scmp.ne.s32.totalorder %s86, %s88
    %p95 = scmp.eq.s32.totalorder %s15, 1
    %p96 = por %p94, %p95
    %p97 = scmp.ne.s32.totalorder %s88, %s89
    %p98 = scmp.eq.s32.totalorder %s15, 0
    %p99 = por %p97, %p98
    %p100 = scmp.ne.s32.totalorder %s88, %s89
    %p101 = scmp.eq.s32.totalorder %s16, 1
    %p102 = por %p100, %p101
    %p104 = scmp.ne.s32.totalorder %s89, %s103
    %p105 = scmp.eq.s32.totalorder %s16, 0
    %p106 = por %p104, %p105
    %s107 = ssub.s32 %s10, %s17
    %p108 = scmp.eq.s32.totalorder %s107, 0
    %s110 = sadd.s32 %s109, 1
    %s111 = scalar_select %p108, %s109, %s110
    %p114 = pneg %p108
    %p115 = scmp.eq.s32.totalorder %s10, 1
    %p116 = por %p114, %p115
    %p117 = scmp.ne.s32.totalorder %s109, %s112
    %p118 = scmp.eq.s32.totalorder %s10, 0
    %p119 = por %p117, %p118
    %p120 = scmp.ne.s32.totalorder %s109, %s112
    %p121 = scmp.eq.s32.totalorder %s15, 1
    %p122 = por %p120, %p121
    %p123 = scmp.ne.s32.totalorder %s112, %s113
    %p124 = scmp.eq.s32.totalorder %s15, 0
    %p125 = por %p123, %p124
    %p126 = scmp.ne.s32.totalorder %s112, %s113
    %p127 = scmp.eq.s32.totalorder %s16, 1
    %p128 = por %p126, %p127
    %p130 = scmp.ne.s32.totalorder %s113, %s129
    %p131 = scmp.eq.s32.totalorder %s16, 0
    %p132 = por %p130, %p131
    %p133 = scmp.le.s32.totalorder 1, %s10
    %p134 = scmp.lt.s32.totalorder %s10, 3
    %p135 = pnand %p133, %p134
    %p136 = pneg %p135
    // Predicated region
    $region9: #{discriminator_pallas.5} parent=5 // pred_check
      _
    $region10: #{discriminator_pallas.5} parent=5 // pred_check_branch
      %138 = sbr.rel (%p135) target = $region12
    $region11: #{discriminator_pallas.5} parent=5 // pred_region
      %s139 = ssub.s32 %s10, 1
      // Predicated region
      $region13: #{discriminator_pallas.5} parent=11 // pred_check
        %p140 = pneg %p57
      $region14: #{discriminator_pallas.5} parent=11 // pred_check_branch
        %142 = sbr.rel (%p140) target = $region16
      $region15: #{discriminator_pallas.5} parent=11 // pred_region
        _
      $region16: #{discriminator_pallas.5} parent=11 // pred_fallthru
        _
      // Predicated region
      $region17: #{discriminator_pallas.5} parent=11 // pred_check
        %p143 = pneg %p78
      $region18: #{discriminator_pallas.5} parent=11 // pred_check_branch
        %145 = sbr.rel (%p143) target = $region20
      $region19: #{discriminator_pallas.5} parent=11 // pred_region
        _
      $region20: #{discriminator_pallas.5} parent=11 // pred_fallthru
        _
      // Predicated region
      $region21: #{discriminator_pallas.5} parent=11 // pred_check
        %p146 = pneg %p99
      $region22: #{discriminator_pallas.5} parent=11 // pred_check_branch
        %148 = sbr.rel (%p146) target = $region24
      $region23: #{discriminator_pallas.5} parent=11 // pred_region
        _
      $region24: #{discriminator_pallas.5} parent=11 // pred_fallthru
        _
    $region12: #{discriminator_pallas.5} parent=5 // pred_fallthru
      _
    %p149 = scmp.lt.s32.totalorder %s10, 2
    // Predicated region
    $region25: #{discriminator_pallas.5} parent=5 // pred_check
      %p150 = pneg %p149
    $region26: #{discriminator_pallas.5} parent=5 // pred_check_branch
      %152 = sbr.rel (%p150) target = $region28
    $region27: #{discriminator_pallas.5} parent=5 // pred_region
      // Predicated region
      $region29: #{discriminator_pallas.5} parent=27 // pred_check
        %p153 = pneg %p30
      $region30: #{discriminator_pallas.5} parent=27 // pred_check_branch
        %155 = sbr.rel (%p153) target = $region32
      $region31: #{discriminator_pallas.5} parent=27 // pred_region
        %p156 = scmp.lt.s32.totalorder %s10, 1
        %s157 = scalar_select %p156, %s10, 1
        %s158 = smul.addr %s157, 512
        %s159 = smul.addr %s158, 4
        %s160 = scalar_lea.vmem %s0, %s159
      $region32: #{discriminator_pallas.5} parent=27 // pred_fallthru
        _
    $region28: #{discriminator_pallas.5} parent=5 // pred_fallthru
      _
    %p161 = scmp.le.s32.totalorder 1, %s10
    %p162 = scmp.lt.s32.totalorder %s10, 3
    %p163 = pnand %p161, %p162
    %p164 = pneg %p163
    // Predicated region
    $region33: #{discriminator_pallas.5} parent=5 // pred_check
      _
    $region34: #{discriminator_pallas.5} parent=5 // pred_check_branch
      %166 = sbr.rel (%p163) target = $region36
    $region35: #{discriminator_pallas.5} parent=5 // pred_region
      %s167 = ssub.s32 %s10, 1
      %p168 = scmp.lt.s32.totalorder %s15, 1
      %s169 = scalar_select %p168, %s15, 1
      %s170 = smul.addr %s169, 512
      %s171 = smul.addr %s170, 4
      %s172 = scalar_lea.vmem %s0, %s171
      %p173 = pneg %p36
      %p174 = pneg %p33
      %p175 = pneg %p57
      %p176 = pneg %p54
      %p177 = pneg %p78
      %p178 = pneg %p75
      %p179 = pneg %p99
      %p180 = pneg %p96
      %p181 = pneg %p125
      %p182 = pneg %p122
      %p183 = scmp.lt.s32.totalorder %s15, 1
      %s184 = scalar_select %p183, %s15, 1
      %s185 = smul.addr %s184, 512
      %s186 = smul.addr %s185, 8
      %s187 = scalar_lea.vmem %s4, %s186
      %p188 = scmp.lt.s32.totalorder %s15, 1
      %s189 = scalar_select %p188, %s15, 1
      %s190 = smul.addr %s189, 512
      %s191 = smul.addr %s190, 4
      %s192 = scalar_lea.vmem %s0, %s191
      %p193 = scmp.lt.s32.totalorder %s15, 1
      %s194 = scalar_select %p193, %s15, 1
      %s195 = smul.addr %s194, 512
      %s196 = smul.addr %s195, 8
      %s197 = scalar_lea.vmem %s4, %s196
      %v199 = vld [vmem:[%s1] sm:$0xf]
      %v200 = vld [vmem:[%s1 + $0x4] sm:$0xf]
      %v201 = vld [vmem:[%s1 + $0x8] sm:$0xf]
      %v202 = vld [vmem:[%s1 + $0xc] sm:$0xf]
      %v203 = vld [vmem:[%s1 + $0x10] sm:$0x3]
      %v204 = vld [vmem:[%s2] sm:$0x1]
      %v205 = vld [vmem:[%s3] sm:$0x1]
      loop: start=0, step=1, limit=16
      $region37: #{discriminator_pallas.5} parent=35 // loop_pre_header
        _
      $region38: #{discriminator_pallas.5} parent=35 // loop_header
        %s207 = sphi 0, %s211
        %p208 = scmp.ge.s32.totalorder %s207, 16
      $region39: #{discriminator_pallas.5} parent=35 // loop_header_branch
        %210 = sbr.rel (%p208) target = $region43
      $region40: #{discriminator_pallas.5} parent=35 // loop_body
        %s212 = smul.u32 %s207, 256
        %s213 = sshra.s32 %s212, 3
        %s214 = sand.u32 %s212, 7
        %s215 = smul.addr %s213, 4
        %s216 = scalar_lea.vmem %s192, %s215
        %v217 = vld [vmem:[%s216] sm:$0xf]
        %v218 = vld [vmem:[%s216 + $0x4] sm:$0xf]
        %v219 = vld [vmem:[%s216 + $0x8] sm:$0xf]
        %v220 = vld [vmem:[%s216 + $0xc] sm:$0xf]
        %v221 = vld [vmem:[%s216 + $0x10] sm:$0xf]
        %v222 = vld [vmem:[%s216 + $0x14] sm:$0xf]
        %v223 = vld [vmem:[%s216 + $0x18] sm:$0xf]
        %v224 = vld [vmem:[%s216 + $0x1c] sm:$0xf]
        %v225 = vld [vmem:[%s216 + $0x20] sm:$0xf]
        %v226 = vld [vmem:[%s216 + $0x24] sm:$0xf]
        %v227 = vld [vmem:[%s216 + $0x28] sm:$0xf]
        %v228 = vld [vmem:[%s216 + $0x2c] sm:$0xf]
        %v229 = vld [vmem:[%s216 + $0x30] sm:$0xf]
        %v230 = vld [vmem:[%s216 + $0x34] sm:$0xf]
        %v231 = vld [vmem:[%s216 + $0x38] sm:$0xf]
        %v232 = vld [vmem:[%s216 + $0x3c] sm:$0xf]
        %v233 = vld [vmem:[%s216 + $0x40] sm:$0xf]
        %v234 = vld [vmem:[%s216 + $0x44] sm:$0xf]
        %v235 = vld [vmem:[%s216 + $0x48] sm:$0xf]
        %v236 = vld [vmem:[%s216 + $0x4c] sm:$0xf]
        %v237 = vld [vmem:[%s216 + $0x50] sm:$0xf]
        %v238 = vld [vmem:[%s216 + $0x54] sm:$0xf]
        %v239 = vld [vmem:[%s216 + $0x58] sm:$0xf]
        %v240 = vld [vmem:[%s216 + $0x5c] sm:$0xf]
        %v241 = vld [vmem:[%s216 + $0x60] sm:$0xf]
        %v242 = vld [vmem:[%s216 + $0x64] sm:$0xf]
        %v243 = vld [vmem:[%s216 + $0x68] sm:$0xf]
        %v244 = vld [vmem:[%s216 + $0x6c] sm:$0xf]
        %v245 = vld [vmem:[%s216 + $0x70] sm:$0xf]
        %v246 = vld [vmem:[%s216 + $0x74] sm:$0xf]
        %v247 = vld [vmem:[%s216 + $0x78] sm:$0xf]
        %v248 = vld [vmem:[%s216 + $0x7c] sm:$0xf]
        %v281 = vunpack.c.l.b16 %v217
        %v282 = vunpack.c.l.b16 %v218
        %v283 = vunpack.c.l.b16 %v219
        %v284 = vunpack.c.l.b16 %v220
        %v285 = vunpack.c.l.b16 %v221
        %v286 = vunpack.c.l.b16 %v222
        %v287 = vunpack.c.l.b16 %v223
        %v288 = vunpack.c.l.b16 %v224
        %v289 = vunpack.c.l.b16 %v225
        %v290 = vunpack.c.l.b16 %v226
        %v291 = vunpack.c.l.b16 %v227
        %v292 = vunpack.c.l.b16 %v228
        %v293 = vunpack.c.l.b16 %v229
        %v294 = vunpack.c.l.b16 %v230
        %v295 = vunpack.c.l.b16 %v231
        %v296 = vunpack.c.l.b16 %v232
        %v297 = vunpack.c.l.b16 %v233
        %v298 = vunpack.c.l.b16 %v234
        %v299 = vunpack.c.l.b16 %v235
        %v300 = vunpack.c.l.b16 %v236
        %v301 = vunpack.c.l.b16 %v237
        %v302 = vunpack.c.l.b16 %v238
        %v303 = vunpack.c.l.b16 %v239
        %v304 = vunpack.c.l.b16 %v240
        %v305 = vunpack.c.l.b16 %v241
        %v306 = vunpack.c.l.b16 %v242
        %v307 = vunpack.c.l.b16 %v243
        %v308 = vunpack.c.l.b16 %v244
        %v309 = vunpack.c.l.b16 %v245
        %v310 = vunpack.c.l.b16 %v246
        %v311 = vunpack.c.l.b16 %v247
        %v312 = vunpack.c.l.b16 %v248
        %v313 = vpack.c.b16 %v282, %v281
        %v314 = vpack.c.b16 %v284, %v283
        %v315 = vpack.c.b16 %v286, %v285
        %v316 = vpack.c.b16 %v288, %v287
        %v317 = vpack.c.b16 %v290, %v289
        %v318 = vpack.c.b16 %v292, %v291
        %v319 = vpack.c.b16 %v294, %v293
        %v320 = vpack.c.b16 %v296, %v295
        %v321 = vpack.c.b16 %v298, %v297
        %v322 = vpack.c.b16 %v300, %v299
        %v323 = vpack.c.b16 %v302, %v301
        %v324 = vpack.c.b16 %v304, %v303
        %v325 = vpack.c.b16 %v306, %v305
        %v326 = vpack.c.b16 %v308, %v307
        %v327 = vpack.c.b16 %v310, %v309
        %v328 = vpack.c.b16 %v312, %v311
        %v334 = vunpack.c.l.b16 %v199
        %v335 = vunpack.c.l.b16 %v200
        %v336 = vunpack.c.l.b16 %v201
        %v337 = vunpack.c.l.b16 %v202
        %v338 = vunpack.c.l.b16 %v203
        %v339 = vpack.c.b16 %v335, %v334
        %v340 = vpack.c.b16 %v337, %v336
        %v341 = vpack.c.b16 %v338, %v338
        %vm344 = vcmask 293888
        %v346 = vsel %vm344, %v313, 0
        %v349 = vsel %vm344, %v314, 0
        %v352 = vsel %vm344, %v315, 0
        %v355 = vsel %vm344, %v316, 0
        %v358 = vsel %vm344, %v317, 0
        %v361 = vsel %vm344, %v318, 0
        %v364 = vsel %vm344, %v319, 0
        %v367 = vsel %vm344, %v320, 0
        %v370 = vsel %vm344, %v321, 0
        %v373 = vsel %vm344, %v322, 0
        %v376 = vsel %vm344, %v323, 0
        %v379 = vsel %vm344, %v324, 0
        %v382 = vsel %vm344, %v325, 0
        %v385 = vsel %vm344, %v326, 0
        %v388 = vsel %vm344, %v327, 0
        %v391 = vsel %vm344, %v328, 0
        %vm393 = vcmask 1041408
        %v395 = vsel %vm393, %v341, 0
        %397 = vmatprep.subr.bf16.mxu0 0
        %398 = vmatpush1.bf16.msra.mxu0 %v339
        %399 = vmatprep.subr.bf16.mxu0 0
        %400 = vmatpush1.bf16.msra.mxu0 %v340
        %401 = vmatprep.subr.bf16.mxu0 0
        %402 = vmatpush1.bf16.msra.mxu0 %v395
        %403 = vmatprep.subr.bf16.mxu0 0
        %404 = vmatpush1.bf16.msra.mxu0 0
        %405 = vmatprep.subr.bf16.mxu0 0
        %406 = vmatpush1.bf16.msra.mxu0 0
        %407 = vmatprep.subr.bf16.mxu0 0
        %408 = vmatpush1.bf16.msra.mxu0 0
        %409 = vmatprep.subr.bf16.mxu0 0
        %410 = vmatpush1.bf16.msra.mxu0 0
        %411 = vmatprep.subr.bf16.mxu0 0
        %412 = vmatpush1.bf16.msra.mxu0 0
        %413 = vmatprep.subr.bf16.mxu0 0
        %414 = vmatpush1.bf16.msra.mxu0 0
        %415 = vmatprep.subr.bf16.mxu0 0
        %416 = vmatpush1.bf16.msra.mxu0 0
        %417 = vmatprep.subr.bf16.mxu0 0
        %418 = vmatpush1.bf16.msra.mxu0 0
        %419 = vmatprep.subr.bf16.mxu0 0
        %420 = vmatpush1.bf16.msra.mxu0 0
        %421 = vmatprep.subr.bf16.mxu0 0
        %422 = vmatpush1.bf16.msra.mxu0 0
        %423 = vmatprep.subr.bf16.mxu0 0
        %424 = vmatpush1.bf16.msra.mxu0 0
        %425 = vmatprep.subr.bf16.mxu0 0
        %426 = vmatpush1.bf16.msra.mxu0 0
        %427 = vmatprep.subr.bf16.mxu0 0
        %428 = vmatpush1.bf16.msra.mxu0 0
        %429 = vmatprep.mubr.bf16.mxu0 0
        %430 = vmatmul.mubr.bf16.gmra.mrb[0].mxu0 %v346
        %v431 = vpop.f32.mrb[0].mxu0
        %v432 = vadd.f32 0.0, %v431
        %v433 = vpop.f32.mrb[0].mxu0
        %v434 = vpop.f32.mrb[0].mxu0
        %v435 = vadd.f32 0.0, %v434
        %v436 = vpop.f32.mrb[0].mxu0
        %437 = vmatprep.mubr.bf16.mxu0 0
        %438 = vmatmul.mubr.bf16.gmra.mrb[0].mxu0 %v349
        %v439 = vpop.f32.mrb[0].mxu0
        %v440 = vadd.f32 0.0, %v439
        %v441 = vpop.f32.mrb[0].mxu0
        %v442 = vpop.f32.mrb[0].mxu0
        %v443 = vadd.f32 0.0, %v442
        %v444 = vpop.f32.mrb[0].mxu0
        %445 = vmatprep.mubr.bf16.mxu0 0
        %446 = vmatmul.mubr.bf16.gmra.mrb[0].mxu0 %v352
        %v447 = vpop.f32.mrb[0].mxu0
        %v448 = vadd.f32 0.0, %v447
        %v449 = vpop.f32.mrb[0].mxu0
        %v450 = vpop.f32.mrb[0].mxu0
        %v451 = vadd.f32 0.0, %v450
        %v452 = vpop.f32.mrb[0].mxu0
        %453 = vmatprep.mubr.bf16.mxu0 0
        %454 = vmatmul.mubr.bf16.gmra.mrb[0].mxu0 %v355
        %v455 = vpop.f32.mrb[0].mxu0
        %v456 = vadd.f32 0.0, %v455
        %v457 = vpop.f32.mrb[0].mxu0
        %v458 = vpop.f32.mrb[0].mxu0
        %v459 = vadd.f32 0.0, %v458
        %v460 = vpop.f32.mrb[0].mxu0
        %461 = vmatprep.mubr.bf16.mxu0 0
        %462 = vmatmul.mubr.bf16.gmra.mrb[0].mxu0 %v358
        %v463 = vpop.f32.mrb[0].mxu0
        %v464 = vadd.f32 0.0, %v463
        %v465 = vpop.f32.mrb[0].mxu0
        %v466 = vpop.f32.mrb[0].mxu0
        %v467 = vadd.f32 0.0, %v466
        %v468 = vpop.f32.mrb[0].mxu0
        %469 = vmatprep.mubr.bf16.mxu0 0
        %470 = vmatmul.mubr.bf16.gmra.mrb[0].mxu0 %v361
        %v471 = vpop.f32.mrb[0].mxu0
        %v472 = vadd.f32 0.0, %v471
        %v473 = vpop.f32.mrb[0].mxu0
        %v474 = vpop.f32.mrb[0].mxu0
        %v475 = vadd.f32 0.0, %v474
        %v476 = vpop.f32.mrb[0].mxu0
        %477 = vmatprep.mubr.bf16.mxu0 0
        %478 = vmatmul.mubr.bf16.gmra.mrb[0].mxu0 %v364
        %v479 = vpop.f32.mrb[0].mxu0
        %v480 = vadd.f32 0.0, %v479
        %v481 = vpop.f32.mrb[0].mxu0
        %v482 = vpop.f32.mrb[0].mxu0
        %v483 = vadd.f32 0.0, %v482
        %v484 = vpop.f32.mrb[0].mxu0
        %485 = vmatprep.mubr.bf16.mxu0 0
        %486 = vmatmul.mubr.bf16.gmra.mrb[0].mxu0 %v367
        %v487 = vpop.f32.mrb[0].mxu0
        %v488 = vadd.f32 0.0, %v487
        %v489 = vpop.f32.mrb[0].mxu0
        %v490 = vpop.f32.mrb[0].mxu0
        %v491 = vadd.f32 0.0, %v490
        %v492 = vpop.f32.mrb[0].mxu0
        %493 = vmatprep.mubr.bf16.mxu0 0
        %494 = vmatmul.mubr.bf16.gmra.mrb[0].mxu0 %v370
        %v495 = vpop.f32.mrb[0].mxu0
        %v496 = vadd.f32 0.0, %v495
        %v497 = vpop.f32.mrb[0].mxu0
        %v498 = vpop.f32.mrb[0].mxu0
        %v499 = vadd.f32 0.0, %v498
        %v500 = vpop.f32.mrb[0].mxu0
        %501 = vmatprep.mubr.bf16.mxu0 0
        %502 = vmatmul.mubr.bf16.gmra.mrb[0].mxu0 %v373
        %v503 = vpop.f32.mrb[0].mxu0
        %v504 = vadd.f32 0.0, %v503
        %v505 = vpop.f32.mrb[0].mxu0
        %v506 = vpop.f32.mrb[0].mxu0
        %v507 = vadd.f32 0.0, %v506
        %v508 = vpop.f32.mrb[0].mxu0
        %509 = vmatprep.mubr.bf16.mxu0 0
        %510 = vmatmul.mubr.bf16.gmra.mrb[0].mxu0 %v376
        %v511 = vpop.f32.mrb[0].mxu0
        %v512 = vadd.f32 0.0, %v511
        %v513 = vpop.f32.mrb[0].mxu0
        %v514 = vpop.f32.mrb[0].mxu0
        %v515 = vadd.f32 0.0, %v514
        %v516 = vpop.f32.mrb[0].mxu0
        %517 = vmatprep.mubr.bf16.mxu0 0
        %518 = vmatmul.mubr.bf16.gmra.mrb[0].mxu0 %v379
        %v519 = vpop.f32.mrb[0].mxu0
        %v520 = vadd.f32 0.0, %v519
        %v521 = vpop.f32.mrb[0].mxu0
        %v522 = vpop.f32.mrb[0].mxu0
        %v523 = vadd.f32 0.0, %v522
        %v524 = vpop.f32.mrb[0].mxu0
        %525 = vmatprep.mubr.bf16.mxu0 0
        %526 = vmatmul.mubr.bf16.gmra.mrb[0].mxu0 %v382
        %v527 = vpop.f32.mrb[0].mxu0
        %v528 = vadd.f32 0.0, %v527
        %v529 = vpop.f32.mrb[0].mxu0
        %v530 = vpop.f32.mrb[0].mxu0
        %v531 = vadd.f32 0.0, %v530
        %v532 = vpop.f32.mrb[0].mxu0
        %533 = vmatprep.mubr.bf16.mxu0 0
        %534 = vmatmul.mubr.bf16.gmra.mrb[0].mxu0 %v385
        %v535 = vpop.f32.mrb[0].mxu0
        %v536 = vadd.f32 0.0, %v535
        %v537 = vpop.f32.mrb[0].mxu0
        %v538 = vpop.f32.mrb[0].mxu0
        %v539 = vadd.f32 0.0, %v538
        %v540 = vpop.f32.mrb[0].mxu0
        %541 = vmatprep.mubr.bf16.mxu0 0
        %542 = vmatmul.mubr.bf16.gmra.mrb[0].mxu0 %v388
        %v543 = vpop.f32.mrb[0].mxu0
        %v544 = vadd.f32 0.0, %v543
        %v545 = vpop.f32.mrb[0].mxu0
        %v546 = vpop.f32.mrb[0].mxu0
        %v547 = vadd.f32 0.0, %v546
        %v548 = vpop.f32.mrb[0].mxu0
        %549 = vmatprep.mubr.bf16.mxu0 0
        %550 = vmatmul.mubr.bf16.gmra.mrb[0].mxu0 %v391
        %v551 = vpop.f32.mrb[0].mxu0
        %v552 = vadd.f32 0.0, %v551
        %v553 = vpop.f32.mrb[0].mxu0
        %v554 = vpop.f32.mrb[0].mxu0
        %v555 = vadd.f32 0.0, %v554
        %v556 = vpop.f32.mrb[0].mxu0
        %557 = vdwg.mxu0
        %v559 = vlaneseq
        %v560 = vshrl.u32 %v559, 7
        %v561 = vsub.s32 0, %v560
        %v562 = vrot.slane %v204, %v561
        %v564 = vmul.f32 %v432, %v562
        %v565 = vmul.f32 %v435, %v562
        %v566 = vmul.f32 %v440, %v562
        %v567 = vmul.f32 %v443, %v562
        %v568 = vmul.f32 %v448, %v562
        %v569 = vmul.f32 %v451, %v562
        %v570 = vmul.f32 %v456, %v562
        %v571 = vmul.f32 %v459, %v562
        %v572 = vmul.f32 %v464, %v562
        %v573 = vmul.f32 %v467, %v562
        %v574 = vmul.f32 %v472, %v562
        %v575 = vmul.f32 %v475, %v562
        %v576 = vmul.f32 %v480, %v562
        %v577 = vmul.f32 %v483, %v562
        %v578 = vmul.f32 %v488, %v562
        %v579 = vmul.f32 %v491, %v562
        %v580 = vmul.f32 %v496, %v562
        %v581 = vmul.f32 %v499, %v562
        %v582 = vmul.f32 %v504, %v562
        %v583 = vmul.f32 %v507, %v562
        %v584 = vmul.f32 %v512, %v562
        %v585 = vmul.f32 %v515, %v562
        %v586 = vmul.f32 %v520, %v562
        %v587 = vmul.f32 %v523, %v562
        %v588 = vmul.f32 %v528, %v562
        %v589 = vmul.f32 %v531, %v562
        %v590 = vmul.f32 %v536, %v562
        %v591 = vmul.f32 %v539, %v562
        %v592 = vmul.f32 %v544, %v562
        %v593 = vmul.f32 %v547, %v562
        %v594 = vmul.f32 %v552, %v562
        %v595 = vmul.f32 %v555, %v562
        %v597 = vlaneseq
        %v598 = vshrl.u32 %v597, 7
        %v599 = vsub.s32 0, %v598
        %v600 = vrot.slane %v205, %v599
        %v602 = vadd.f32 %v564, %v600
        %v603 = vadd.f32 %v565, %v600
        %v604 = vadd.f32 %v566, %v600
        %v605 = vadd.f32 %v567, %v600
        %v606 = vadd.f32 %v568, %v600
        %v607 = vadd.f32 %v569, %v600
        %v608 = vadd.f32 %v570, %v600
        %v609 = vadd.f32 %v571, %v600
        %v610 = vadd.f32 %v572, %v600
        %v611 = vadd.f32 %v573, %v600
        %v612 = vadd.f32 %v574, %v600
        %v613 = vadd.f32 %v575, %v600
        %v614 = vadd.f32 %v576, %v600
        %v615 = vadd.f32 %v577, %v600
        %v616 = vadd.f32 %v578, %v600
        %v617 = vadd.f32 %v579, %v600
        %v618 = vadd.f32 %v580, %v600
        %v619 = vadd.f32 %v581, %v600
        %v620 = vadd.f32 %v582, %v600
        %v621 = vadd.f32 %v583, %v600
        %v622 = vadd.f32 %v584, %v600
        %v623 = vadd.f32 %v585, %v600
        %v624 = vadd.f32 %v586, %v600
        %v625 = vadd.f32 %v587, %v600
        %v626 = vadd.f32 %v588, %v600
        %v627 = vadd.f32 %v589, %v600
        %v628 = vadd.f32 %v590, %v600
        %v629 = vadd.f32 %v591, %v600
        %v630 = vadd.f32 %v592, %v600
        %v631 = vadd.f32 %v593, %v600
        %v632 = vadd.f32 %v594, %v600
        %v633 = vadd.f32 %v595, %v600
        %vm634 = vcmp.gt.f32.partialorder %v602, 0.0
        %vm635 = vcmp.gt.f32.partialorder %v603, 0.0
        %vm636 = vcmp.gt.f32.partialorder %v604, 0.0
        %vm637 = vcmp.gt.f32.partialorder %v605, 0.0
        %vm638 = vcmp.gt.f32.partialorder %v606, 0.0
        %vm639 = vcmp.gt.f32.partialorder %v607, 0.0
        %vm640 = vcmp.gt.f32.partialorder %v608, 0.0
        %vm641 = vcmp.gt.f32.partialorder %v609, 0.0
        %vm642 = vcmp.gt.f32.partialorder %v610, 0.0
        %vm643 = vcmp.gt.f32.partialorder %v611, 0.0
        %vm644 = vcmp.gt.f32.partialorder %v612, 0.0
        %vm645 = vcmp.gt.f32.partialorder %v613, 0.0
        %vm646 = vcmp.gt.f32.partialorder %v614, 0.0
        %vm647 = vcmp.gt.f32.partialorder %v615, 0.0
        %vm648 = vcmp.gt.f32.partialorder %v616, 0.0
        %vm649 = vcmp.gt.f32.partialorder %v617, 0.0
        %vm650 = vcmp.gt.f32.partialorder %v618, 0.0
        %vm651 = vcmp.gt.f32.partialorder %v619, 0.0
        %vm652 = vcmp.gt.f32.partialorder %v620, 0.0
        %vm653 = vcmp.gt.f32.partialorder %v621, 0.0
        %vm654 = vcmp.gt.f32.partialorder %v622, 0.0
        %vm655 = vcmp.gt.f32.partialorder %v623, 0.0
        %vm656 = vcmp.gt.f32.partialorder %v624, 0.0
        %vm657 = vcmp.gt.f32.partialorder %v625, 0.0
        %vm658 = vcmp.gt.f32.partialorder %v626, 0.0
        %vm659 = vcmp.gt.f32.partialorder %v627, 0.0
        %vm660 = vcmp.gt.f32.partialorder %v628, 0.0
        %vm661 = vcmp.gt.f32.partialorder %v629, 0.0
        %vm662 = vcmp.gt.f32.partialorder %v630, 0.0
        %vm663 = vcmp.gt.f32.partialorder %v631, 0.0
        %vm664 = vcmp.gt.f32.partialorder %v632, 0.0
        %vm665 = vcmp.gt.f32.partialorder %v633, 0.0
        %v666 = vmul.f32 %v602, 0.2
        %v667 = vmul.f32 %v603, 0.2
        %v668 = vmul.f32 %v604, 0.2
        %v669 = vmul.f32 %v605, 0.2
        %v670 = vmul.f32 %v606, 0.2
        %v671 = vmul.f32 %v607, 0.2
        %v672 = vmul.f32 %v608, 0.2
        %v673 = vmul.f32 %v609, 0.2
        %v674 = vmul.f32 %v610, 0.2
        %v675 = vmul.f32 %v611, 0.2
        %v676 = vmul.f32 %v612, 0.2
        %v677 = vmul.f32 %v613, 0.2
        %v678 = vmul.f32 %v614, 0.2
        %v679 = vmul.f32 %v615, 0.2
        %v680 = vmul.f32 %v616, 0.2
        %v681 = vmul.f32 %v617, 0.2
        %v682 = vmul.f32 %v618, 0.2
        %v683 = vmul.f32 %v619, 0.2
        %v684 = vmul.f32 %v620, 0.2
        %v685 = vmul.f32 %v621, 0.2
        %v686 = vmul.f32 %v622, 0.2
        %v687 = vmul.f32 %v623, 0.2
        %v688 = vmul.f32 %v624, 0.2
        %v689 = vmul.f32 %v625, 0.2
        %v690 = vmul.f32 %v626, 0.2
        %v691 = vmul.f32 %v627, 0.2
        %v692 = vmul.f32 %v628, 0.2
        %v693 = vmul.f32 %v629, 0.2
        %v694 = vmul.f32 %v630, 0.2
        %v695 = vmul.f32 %v631, 0.2
        %v696 = vmul.f32 %v632, 0.2
        %v697 = vmul.f32 %v633, 0.2
        %v698 = vsel %vm634, %v602, %v666
        %v699 = vsel %vm635, %v603, %v667
        %v700 = vsel %vm636, %v604, %v668
        %v701 = vsel %vm637, %v605, %v669
        %v702 = vsel %vm638, %v606, %v670
        %v703 = vsel %vm639, %v607, %v671
        %v704 = vsel %vm640, %v608, %v672
        %v705 = vsel %vm641, %v609, %v673
        %v706 = vsel %vm642, %v610, %v674
        %v707 = vsel %vm643, %v611, %v675
        %v708 = vsel %vm644, %v612, %v676
        %v709 = vsel %vm645, %v613, %v677
        %v710 = vsel %vm646, %v614, %v678
        %v711 = vsel %vm647, %v615, %v679
        %v712 = vsel %vm648, %v616, %v680
        %v713 = vsel %vm649, %v617, %v681
        %v714 = vsel %vm650, %v618, %v682
        %v715 = vsel %vm651, %v619, %v683
        %v716 = vsel %vm652, %v620, %v684
        %v717 = vsel %vm653, %v621, %v685
        %v718 = vsel %vm654, %v622, %v686
        %v719 = vsel %vm655, %v623, %v687
        %v720 = vsel %vm656, %v624, %v688
        %v721 = vsel %vm657, %v625, %v689
        %v722 = vsel %vm658, %v626, %v690
        %v723 = vsel %vm659, %v627, %v691
        %v724 = vsel %vm660, %v628, %v692
        %v725 = vsel %vm661, %v629, %v693
        %v726 = vsel %vm662, %v630, %v694
        %v727 = vsel %vm663, %v631, %v695
        %v728 = vsel %vm664, %v632, %v696
        %v729 = vsel %vm665, %v633, %v697
        %s730 = scalar_lea.vmem %s197, %s212
        %vm731 = vcmask 261120
        %732 = vst.msk [vmem:[%s730] sm:$0xff] %vm731, %v698
        %733 = vst.msk [vmem:[%s730 + $0x8] sm:$0xff] %vm731, %v699
        %734 = vst.msk [vmem:[%s730 + $0x10] sm:$0xff] %vm731, %v700
        %735 = vst.msk [vmem:[%s730 + $0x18] sm:$0xff] %vm731, %v701
        %736 = vst.msk [vmem:[%s730 + $0x20] sm:$0xff] %vm731, %v702
        %737 = vst.msk [vmem:[%s730 + $0x28] sm:$0xff] %vm731, %v703
        %738 = vst.msk [vmem:[%s730 + $0x30] sm:$0xff] %vm731, %v704
        %739 = vst.msk [vmem:[%s730 + $0x38] sm:$0xff] %vm731, %v705
        %740 = vst.msk [vmem:[%s730 + $0x40] sm:$0xff] %vm731, %v706
        %741 = vst.msk [vmem:[%s730 + $0x48] sm:$0xff] %vm731, %v707
        %742 = vst.msk [vmem:[%s730 + $0x50] sm:$0xff] %vm731, %v708
        %743 = vst.msk [vmem:[%s730 + $0x58] sm:$0xff] %vm731, %v709
        %744 = vst.msk [vmem:[%s730 + $0x60] sm:$0xff] %vm731, %v710
        %745 = vst.msk [vmem:[%s730 + $0x68] sm:$0xff] %vm731, %v711
        %746 = vst.msk [vmem:[%s730 + $0x70] sm:$0xff] %vm731, %v712
        %747 = vst.msk [vmem:[%s730 + $0x78] sm:$0xff] %vm731, %v713
        %748 = vst.msk [vmem:[%s730 + $0x80] sm:$0xff] %vm731, %v714
        %749 = vst.msk [vmem:[%s730 + $0x88] sm:$0xff] %vm731, %v715
        %750 = vst.msk [vmem:[%s730 + $0x90] sm:$0xff] %vm731, %v716
        %751 = vst.msk [vmem:[%s730 + $0x98] sm:$0xff] %vm731, %v717
        %752 = vst.msk [vmem:[%s730 + $0xa0] sm:$0xff] %vm731, %v718
        %753 = vst.msk [vmem:[%s730 + $0xa8] sm:$0xff] %vm731, %v719
        %754 = vst.msk [vmem:[%s730 + $0xb0] sm:$0xff] %vm731, %v720
        %755 = vst.msk [vmem:[%s730 + $0xb8] sm:$0xff] %vm731, %v721
        %756 = vst.msk [vmem:[%s730 + $0xc0] sm:$0xff] %vm731, %v722
        %757 = vst.msk [vmem:[%s730 + $0xc8] sm:$0xff] %vm731, %v723
        %758 = vst.msk [vmem:[%s730 + $0xd0] sm:$0xff] %vm731, %v724
        %759 = vst.msk [vmem:[%s730 + $0xd8] sm:$0xff] %vm731, %v725
        %760 = vst.msk [vmem:[%s730 + $0xe0] sm:$0xff] %vm731, %v726
        %761 = vst.msk [vmem:[%s730 + $0xe8] sm:$0xff] %vm731, %v727
        %762 = vst.msk [vmem:[%s730 + $0xf0] sm:$0xff] %vm731, %v728
        %763 = vst.msk [vmem:[%s730 + $0xf8] sm:$0xff] %vm731, %v729
      $region41: #{discriminator_pallas.5} parent=35 // loop_footer
        %s211 = sadd.s32 1, %s207
      $region42: #{discriminator_pallas.5} parent=35 // loop_footer_branch
        %206 = sbr.rel target = $region38
      $region43: #{discriminator_pallas.5} parent=35 // loop_exit
        _
      %p764 = scmp.lt.s32.totalorder %s15, 1
      %s765 = scalar_select %p764, %s15, 1
      %s766 = smul.addr %s765, 512
      %s767 = smul.addr %s766, 8
      %s768 = scalar_lea.vmem %s4, %s767
      // Predicated region
      $region44: #{discriminator_pallas.5} parent=35 // pred_check
        %p769 = pneg %p122
      $region45: #{discriminator_pallas.5} parent=35 // pred_check_branch
        %771 = sbr.rel (%p769) target = $region47
      $region46: #{discriminator_pallas.5} parent=35 // pred_region
        _
      $region47: #{discriminator_pallas.5} parent=35 // pred_fallthru
        _
    $region36: #{discriminator_pallas.5} parent=5 // pred_fallthru
      _
    %p772 = scmp.le.s32.totalorder 2, %s10
    // Predicated region
    $region48: #{discriminator_pallas.5} parent=5 // pred_check
      %p773 = pneg %p772
    $region49: #{discriminator_pallas.5} parent=5 // pred_check_branch
      %775 = sbr.rel (%p773) target = $region51
    $region50: #{discriminator_pallas.5} parent=5 // pred_region
      %s776 = ssub.s32 %s10, 2
      // Predicated region
      $region52: #{discriminator_pallas.5} parent=50 // pred_check
        %p777 = pneg %p128
      $region53: #{discriminator_pallas.5} parent=50 // pred_check_branch
        %779 = sbr.rel (%p777) target = $region55
      $region54: #{discriminator_pallas.5} parent=50 // pred_region
        %p780 = scmp.lt.s32.totalorder %s16, 1
        %s781 = scalar_select %p780, %s16, 1
        %s782 = smul.addr %s781, 512
        %s783 = smul.addr %s782, 8
        %s784 = scalar_lea.vmem %s4, %s783
      $region55: #{discriminator_pallas.5} parent=50 // pred_fallthru
        _
    $region51: #{discriminator_pallas.5} parent=5 // pred_fallthru
      _
  $region6: #{discriminator_pallas.5} parent=0 // loop_footer
    %s14 = sadd.s32 1, %s10
  $region7: #{discriminator_pallas.5} parent=0 // loop_footer_branch
    %9 = sbr.rel target = $region3
  $region8: #{discriminator_pallas.5} parent=0 // loop_exit
    _

// kernel: discriminator_pallas.6
$region0: #{discriminator_pallas.6}
  #allocation0 [shape = 'u32[]', space=smem, size = 0x4, offset = 0x4, fixed_abs, tag = 'smem constant byte address 0x4 - core index']
  #allocation1 [shape = 'u32[144,128]{1,0:T(1,128)}', space=vmem, size = 0x12000, scoped, tag = 'internal scratch']
  %s0 = inlined_call_operand.vmem [shape: f32[2,2,2,33,33,32], index: 0, kind: input, shape index: {}]
  %s1 = inlined_call_operand.vmem [shape: bf16[9,32,64], index: 1, kind: input, shape index: {}]
  %s2 = inlined_call_operand.vmem [shape: f32[1,64], index: 2, kind: input, shape index: {}]
  %s3 = inlined_call_operand.vmem [shape: f32[1,64], index: 3, kind: input, shape index: {}]
  %s4 = inlined_call_operand.vmem [shape: f32[2,1024,64], index: 4, kind: output, shape index: {}]
  %s5 = sld [smem:[#allocation0]]
  $region56: #{discriminator_pallas.6} parent=0
    _
  %s7 = ssub.s32 1, %s5
  %s8 = scalar_select 0, %s7, %s5
  loop: start=0, step=1, limit=4
  $region2: #{discriminator_pallas.6} parent=0 // loop_pre_header
    _
  $region3: #{discriminator_pallas.6} parent=0 // loop_header
    %s10 = sphi 0, %s14
    %p11 = scmp.ge.s32.totalorder %s10, 4
    %s20 = sphi 0, %s22
    %s23 = sphi 0, %s20
    %s24 = sphi 0, %s23
    %s40 = sphi 0, %s24
    %s44 = sphi 0, %s44
    %s46 = sphi 0, %s44
    %s47 = sphi 0, %s46
    %s61 = sphi 0, %s47
    %s65 = sphi 0, %s65
    %s67 = sphi 0, %s65
    %s68 = sphi 0, %s67
    %s82 = sphi 0, %s68
    %s86 = sphi 0, %s86
    %s88 = sphi 0, %s86
    %s89 = sphi 0, %s88
    %s103 = sphi 0, %s89
    %s109 = sphi 0, %s111
    %s112 = sphi 0, %s109
    %s113 = sphi 0, %s112
    %s129 = sphi 0, %s113
  $region4: #{discriminator_pallas.6} parent=0 // loop_header_branch
    %13 = sbr.rel (%p11) target = $region8
  $region5: #{discriminator_pallas.6} parent=0 // loop_body
    %s15 = ssub.s32 %s10, 1
    %s16 = ssub.s32 %s10, 2
    %s17 = sadd.s32 %s10, 1
    %s18 = ssub.s32 %s10, %s17
    %p19 = scmp.eq.s32.totalorder %s18, 0
    %s21 = sadd.s32 %s20, 1
    %s22 = scalar_select %p19, %s20, %s21
    %p25 = pneg %p19
    %p26 = scmp.eq.s32.totalorder %s10, 1
    %p27 = por %p25, %p26
    %p28 = scmp.ne.s32.totalorder %s20, %s23
    %p29 = scmp.eq.s32.totalorder %s10, 0
    %p30 = por %p28, %p29
    %p31 = scmp.ne.s32.totalorder %s20, %s23
    %p32 = scmp.eq.s32.totalorder %s15, 1
    %p33 = por %p31, %p32
    %p34 = scmp.ne.s32.totalorder %s23, %s24
    %p35 = scmp.eq.s32.totalorder %s15, 0
    %p36 = por %p34, %p35
    %p37 = scmp.ne.s32.totalorder %s23, %s24
    %p38 = scmp.eq.s32.totalorder %s16, 1
    %p39 = por %p37, %p38
    %p41 = scmp.ne.s32.totalorder %s24, %s40
    %p42 = scmp.eq.s32.totalorder %s16, 0
    %p43 = por %p41, %p42
    %s45 = sadd.s32 %s44, 1
    %p48 = scmp.eq.s32.totalorder %s10, 1
    %p49 = scmp.ne.s32.totalorder %s44, %s46
    %p50 = scmp.eq.s32.totalorder %s10, 0
    %p51 = por %p49, %p50
    %p52 = scmp.ne.s32.totalorder %s44, %s46
    %p53 = scmp.eq.s32.totalorder %s15, 1
    %p54 = por %p52, %p53
    %p55 = scmp.ne.s32.totalorder %s46, %s47
    %p56 = scmp.eq.s32.totalorder %s15, 0
    %p57 = por %p55, %p56
    %p58 = scmp.ne.s32.totalorder %s46, %s47
    %p59 = scmp.eq.s32.totalorder %s16, 1
    %p60 = por %p58, %p59
    %p62 = scmp.ne.s32.totalorder %s47, %s61
    %p63 = scmp.eq.s32.totalorder %s16, 0
    %p64 = por %p62, %p63
    %s66 = sadd.s32 %s65, 1
    %p69 = scmp.eq.s32.totalorder %s10, 1
    %p70 = scmp.ne.s32.totalorder %s65, %s67
    %p71 = scmp.eq.s32.totalorder %s10, 0
    %p72 = por %p70, %p71
    %p73 = scmp.ne.s32.totalorder %s65, %s67
    %p74 = scmp.eq.s32.totalorder %s15, 1
    %p75 = por %p73, %p74
    %p76 = scmp.ne.s32.totalorder %s67, %s68
    %p77 = scmp.eq.s32.totalorder %s15, 0
    %p78 = por %p76, %p77
    %p79 = scmp.ne.s32.totalorder %s67, %s68
    %p80 = scmp.eq.s32.totalorder %s16, 1
    %p81 = por %p79, %p80
    %p83 = scmp.ne.s32.totalorder %s68, %s82
    %p84 = scmp.eq.s32.totalorder %s16, 0
    %p85 = por %p83, %p84
    %s87 = sadd.s32 %s86, 1
    %p90 = scmp.eq.s32.totalorder %s10, 1
    %p91 = scmp.ne.s32.totalorder %s86, %s88
    %p92 = scmp.eq.s32.totalorder %s10, 0
    %p93 = por %p91, %p92
    %p94 = scmp.ne.s32.totalorder %s86, %s88
    %p95 = scmp.eq.s32.totalorder %s15, 1
    %p96 = por %p94, %p95
    %p97 = scmp.ne.s32.totalorder %s88, %s89
    %p98 = scmp.eq.s32.totalorder %s15, 0
    %p99 = por %p97, %p98
    %p100 = scmp.ne.s32.totalorder %s88, %s89
    %p101 = scmp.eq.s32.totalorder %s16, 1
    %p102 = por %p100, %p101
    %p104 = scmp.ne.s32.totalorder %s89, %s103
    %p105 = scmp.eq.s32.totalorder %s16, 0
    %p106 = por %p104, %p105
    %s107 = ssub.s32 %s10, %s17
    %p108 = scmp.eq.s32.totalorder %s107, 0
    %s110 = sadd.s32 %s109, 1
    %s111 = scalar_select %p108, %s109, %s110
    %p114 = pneg %p108
    %p115 = scmp.eq.s32.totalorder %s10, 1
    %p116 = por %p114, %p115
    %p117 = scmp.ne.s32.totalorder %s109, %s112
    %p118 = scmp.eq.s32.totalorder %s10, 0
    %p119 = por %p117, %p118
    %p120 = scmp.ne.s32.totalorder %s109, %s112
    %p121 = scmp.eq.s32.totalorder %s15, 1
    %p122 = por %p120, %p121
    %p123 = scmp.ne.s32.totalorder %s112, %s113
    %p124 = scmp.eq.s32.totalorder %s15, 0
    %p125 = por %p123, %p124
    %p126 = scmp.ne.s32.totalorder %s112, %s113
    %p127 = scmp.eq.s32.totalorder %s16, 1
    %p128 = por %p126, %p127
    %p130 = scmp.ne.s32.totalorder %s113, %s129
    %p131 = scmp.eq.s32.totalorder %s16, 0
    %p132 = por %p130, %p131
    %p133 = scmp.le.s32.totalorder 1, %s10
    %p134 = scmp.lt.s32.totalorder %s10, 3
    %p135 = pnand %p133, %p134
    %p136 = pneg %p135
    // Predicated region
    $region9: #{discriminator_pallas.6} parent=5 // pred_check
      _
    $region10: #{discriminator_pallas.6} parent=5 // pred_check_branch
      %138 = sbr.rel (%p135) target = $region12
    $region11: #{discriminator_pallas.6} parent=5 // pred_region
      %s139 = ssub.s32 %s10, 1
      // Predicated region
      $region13: #{discriminator_pallas.6} parent=11 // pred_check
        %p140 = pneg %p57
      $region14: #{discriminator_pallas.6} parent=11 // pred_check_branch
        %142 = sbr.rel (%p140) target = $region16
      $region15: #{discriminator_pallas.6} parent=11 // pred_region
        _
      $region16: #{discriminator_pallas.6} parent=11 // pred_fallthru
        _
      // Predicated region
      $region17: #{discriminator_pallas.6} parent=11 // pred_check
        %p143 = pneg %p78
      $region18: #{discriminator_pallas.6} parent=11 // pred_check_branch
        %145 = sbr.rel (%p143) target = $region20
      $region19: #{discriminator_pallas.6} parent=11 // pred_region
        _
      $region20: #{discriminator_pallas.6} parent=11 // pred_fallthru
        _
      // Predicated region
      $region21: #{discriminator_pallas.6} parent=11 // pred_check
        %p146 = pneg %p99
      $region22: #{discriminator_pallas.6} parent=11 // pred_check_branch
        %148 = sbr.rel (%p146) target = $region24
      $region23: #{discriminator_pallas.6} parent=11 // pred_region
        _
      $region24: #{discriminator_pallas.6} parent=11 // pred_fallthru
        _
    $region12: #{discriminator_pallas.6} parent=5 // pred_fallthru
      _
    %p149 = scmp.lt.s32.totalorder %s10, 2
    // Predicated region
    $region25: #{discriminator_pallas.6} parent=5 // pred_check
      %p150 = pneg %p149
    $region26: #{discriminator_pallas.6} parent=5 // pred_check_branch
      %152 = sbr.rel (%p150) target = $region28
    $region27: #{discriminator_pallas.6} parent=5 // pred_region
      // Predicated region
      $region29: #{discriminator_pallas.6} parent=27 // pred_check
        %p153 = pneg %p30
      $region30: #{discriminator_pallas.6} parent=27 // pred_check_branch
        %155 = sbr.rel (%p153) target = $region32
      $region31: #{discriminator_pallas.6} parent=27 // pred_region
        %p156 = scmp.lt.s32.totalorder %s10, 1
        %s157 = scalar_select %p156, %s10, 1
        %s158 = smul.addr %s157, 660
        %s159 = smul.addr %s158, 8
        %s160 = scalar_lea.vmem %s0, %s159
      $region32: #{discriminator_pallas.6} parent=27 // pred_fallthru
        _
    $region28: #{discriminator_pallas.6} parent=5 // pred_fallthru
      _
    %p161 = scmp.le.s32.totalorder 1, %s10
    %p162 = scmp.lt.s32.totalorder %s10, 3
    %p163 = pnand %p161, %p162
    %p164 = pneg %p163
    // Predicated region
    $region33: #{discriminator_pallas.6} parent=5 // pred_check
      _
    $region34: #{discriminator_pallas.6} parent=5 // pred_check_branch
      %166 = sbr.rel (%p163) target = $region36
    $region35: #{discriminator_pallas.6} parent=5 // pred_region
      %s167 = ssub.s32 %s10, 1
      %p168 = scmp.lt.s32.totalorder %s15, 1
      %s169 = scalar_select %p168, %s15, 1
      %s170 = smul.addr %s169, 660
      %s171 = smul.addr %s170, 8
      %s172 = scalar_lea.vmem %s0, %s171
      %p173 = pneg %p36
      %p174 = pneg %p33
      %p175 = pneg %p57
      %p176 = pneg %p54
      %p177 = pneg %p78
      %p178 = pneg %p75
      %p179 = pneg %p99
      %p180 = pneg %p96
      %p181 = pneg %p125
      %p182 = pneg %p122
      %p183 = scmp.lt.s32.totalorder %s15, 1
      %s184 = scalar_select %p183, %s15, 1
      %s185 = smul.addr %s184, 128
      %s186 = smul.addr %s185, 8
      %s187 = scalar_lea.vmem %s4, %s186
      %p188 = scmp.lt.s32.totalorder %s15, 1
      %s189 = scalar_select %p188, %s15, 1
      %s190 = smul.addr %s189, 660
      %s191 = smul.addr %s190, 8
      %s192 = scalar_lea.vmem %s0, %s191
      %p193 = scmp.lt.s32.totalorder %s15, 1
      %s194 = scalar_select %p193, %s15, 1
      %s195 = smul.addr %s194, 128
      %s196 = smul.addr %s195, 8
      %s197 = scalar_lea.vmem %s4, %s196
      %v199 = vld [vmem:[%s2] sm:$0x1]
      %v200 = vld [vmem:[%s3] sm:$0x1]
      loop: start=0, step=1, limit=8
      $region37: #{discriminator_pallas.6} parent=35 // loop_pre_header
        _
      $region38: #{discriminator_pallas.6} parent=35 // loop_header
        %s202 = sphi 0, %s206
        %p203 = scmp.ge.s32.totalorder %s202, 8
      $region39: #{discriminator_pallas.6} parent=35 // loop_header_branch
        %205 = sbr.rel (%p203) target = $region43
      $region40: #{discriminator_pallas.6} parent=35 // loop_body
        %s207 = smul.u32 %s202, 4
        %s208 = smul.u32 %s207, 40
        %s209 = scalar_lea.vmem %s192, %s208
        %v210 = vld [vmem:[%s209] sm:$0xff]
        %v211 = vld [vmem:[%s209 + $0x8] sm:$0xff]
        %v212 = vld [vmem:[%s209 + $0x10] sm:$0xff]
        %v213 = vld [vmem:[%s209 + $0x18] sm:$0xff]
        %v214 = vld [vmem:[%s209 + $0x28] sm:$0xff]
        %v215 = vld [vmem:[%s209 + $0x30] sm:$0xff]
        %v216 = vld [vmem:[%s209 + $0x38] sm:$0xff]
        %v217 = vld [vmem:[%s209 + $0x40] sm:$0xff]
        %v218 = vld [vmem:[%s209 + $0x50] sm:$0xff]
        %v219 = vld [vmem:[%s209 + $0x58] sm:$0xff]
        %v220 = vld [vmem:[%s209 + $0x60] sm:$0xff]
        %v221 = vld [vmem:[%s209 + $0x68] sm:$0xff]
        %v222 = vld [vmem:[%s209 + $0x78] sm:$0xff]
        %v223 = vld [vmem:[%s209 + $0x80] sm:$0xff]
        %v224 = vld [vmem:[%s209 + $0x88] sm:$0xff]
        %v225 = vld [vmem:[%s209 + $0x90] sm:$0xff]
        %v226 = vpack.c.bf16 %v211, %v210
        %v227 = vpack.c.bf16 %v213, %v212
        %v228 = vpack.c.bf16 %v215, %v214
        %v229 = vpack.c.bf16 %v217, %v216
        %v230 = vpack.c.bf16 %v219, %v218
        %v231 = vpack.c.bf16 %v221, %v220
        %v232 = vpack.c.bf16 %v223, %v222
        %v233 = vpack.c.bf16 %v225, %v224
        %v234 = vld [vmem:[%s1] sm:$0xf]
        %v235 = vld [vmem:[%s1 + $0x4] sm:$0xf]
        %v236 = vld [vmem:[%s1 + $0x8] sm:$0xf]
        %v237 = vld [vmem:[%s1 + $0xc] sm:$0xf]
        %s238 = sadd.s32 %s208, 1320
        %s239 = scalar_lea.vmem %s192, %s238
        %v240 = vld [vmem:[%s239] sm:$0xff]
        %v241 = vld [vmem:[%s239 + $0x8] sm:$0xff]
        %v242 = vld [vmem:[%s239 + $0x10] sm:$0xff]
        %v243 = vld [vmem:[%s239 + $0x18] sm:$0xff]
        %v244 = vld [vmem:[%s239 + $0x28] sm:$0xff]
        %v245 = vld [vmem:[%s239 + $0x30] sm:$0xff]
        %v246 = vld [vmem:[%s239 + $0x38] sm:$0xff]
        %v247 = vld [vmem:[%s239 + $0x40] sm:$0xff]
        %v248 = vld [vmem:[%s239 + $0x50] sm:$0xff]
        %v249 = vld [vmem:[%s239 + $0x58] sm:$0xff]
        %v250 = vld [vmem:[%s239 + $0x60] sm:$0xff]
        %v251 = vld [vmem:[%s239 + $0x68] sm:$0xff]
        %v252 = vld [vmem:[%s239 + $0x78] sm:$0xff]
        %v253 = vld [vmem:[%s239 + $0x80] sm:$0xff]
        %v254 = vld [vmem:[%s239 + $0x88] sm:$0xff]
        %v255 = vld [vmem:[%s239 + $0x90] sm:$0xff]
        %v256 = vpack.c.bf16 %v241, %v240
        %v257 = vpack.c.bf16 %v243, %v242
        %v258 = vpack.c.bf16 %v245, %v244
        %v259 = vpack.c.bf16 %v247, %v246
        %v260 = vpack.c.bf16 %v249, %v248
        %v261 = vpack.c.bf16 %v251, %v250
        %v262 = vpack.c.bf16 %v253, %v252
        %v263 = vpack.c.bf16 %v255, %v254
        %s264 = scalar_lea.vmem %s1, 16
        %v265 = vld [vmem:[%s264] sm:$0xf]
        %v266 = vld [vmem:[%s264 + $0x4] sm:$0xf]
        %v267 = vld [vmem:[%s264 + $0x8] sm:$0xf]
        %v268 = vld [vmem:[%s264 + $0xc] sm:$0xf]
        %v273 = vunpack.c.l.b16 %v265
        %v274 = vunpack.c.l.b16 %v266
        %v275 = vunpack.c.l.b16 %v267
        %v276 = vunpack.c.l.b16 %v268
        %v277 = vpack.c.b16 %v274, %v273
        %v278 = vpack.c.b16 %v276, %v275
        %vm281 = vcmask 261120
        %v283 = vsel %vm281, %v256, 0
        %v286 = vsel %vm281, %v257, 0
        %v289 = vsel %vm281, %v258, 0
        %v292 = vsel %vm281, %v259, 0
        %v295 = vsel %vm281, %v260, 0
        %v298 = vsel %vm281, %v261, 0
        %v301 = vsel %vm281, %v262, 0
        %v304 = vsel %vm281, %v263, 0
        %306 = vmatprep.subr.bf16.mxu0 0
        %307 = vmatpush1.bf16.msra.mxu0 %v277
        %308 = vmatprep.subr.bf16.mxu0 0
        %309 = vmatpush1.bf16.msra.mxu0 %v278
        %310 = vmatprep.subr.bf16.mxu0 0
        %311 = vmatpush1.bf16.msra.mxu0 0
        %312 = vmatprep.subr.bf16.mxu0 0
        %313 = vmatpush1.bf16.msra.mxu0 0
        %314 = vmatprep.subr.bf16.mxu0 0
        %315 = vmatpush1.bf16.msra.mxu0 0
        %316 = vmatprep.subr.bf16.mxu0 0
        %317 = vmatpush1.bf16.msra.mxu0 0
        %318 = vmatprep.subr.bf16.mxu0 0
        %319 = vmatpush1.bf16.msra.mxu0 0
        %320 = vmatprep.subr.bf16.mxu0 0
        %321 = vmatpush1.bf16.msra.mxu0 0
        %322 = vmatprep.subr.bf16.mxu0 0
        %323 = vmatpush1.bf16.msra.mxu0 0
        %324 = vmatprep.subr.bf16.mxu0 0
        %325 = vmatpush1.bf16.msra.mxu0 0
        %326 = vmatprep.subr.bf16.mxu0 0
        %327 = vmatpush1.bf16.msra.mxu0 0
        %328 = vmatprep.subr.bf16.mxu0 0
        %329 = vmatpush1.bf16.msra.mxu0 0
        %330 = vmatprep.subr.bf16.mxu0 0
        %331 = vmatpush1.bf16.msra.mxu0 0
        %332 = vmatprep.subr.bf16.mxu0 0
        %333 = vmatpush1.bf16.msra.mxu0 0
        %334 = vmatprep.subr.bf16.mxu0 0
        %335 = vmatpush1.bf16.msra.mxu0 0
        %336 = vmatprep.subr.bf16.mxu0 0
        %337 = vmatpush1.bf16.msra.mxu0 0
        %338 = vmatprep.mubr.bf16.mxu0 0
        %339 = vmatmul.mubr.bf16.gmra.mrb[0].mxu0 %v283
        %v340 = vpop.f32.mrb[0].mxu0
        %v341 = vadd.f32 0.0, %v340
        %v342 = vpop.f32.mrb[0].mxu0
        %v343 = vpop.f32.mrb[0].mxu0
        %v344 = vadd.f32 0.0, %v343
        %v345 = vpop.f32.mrb[0].mxu0
        %346 = vmatprep.mubr.bf16.mxu0 0
        %347 = vmatmul.mubr.bf16.gmra.mrb[0].mxu0 %v286
        %v348 = vpop.f32.mrb[0].mxu0
        %v349 = vadd.f32 0.0, %v348
        %v350 = vpop.f32.mrb[0].mxu0
        %v351 = vpop.f32.mrb[0].mxu0
        %v352 = vadd.f32 0.0, %v351
        %v353 = vpop.f32.mrb[0].mxu0
        %354 = vmatprep.mubr.bf16.mxu0 0
        %355 = vmatmul.mubr.bf16.gmra.mrb[0].mxu0 %v289
        %v356 = vpop.f32.mrb[0].mxu0
        %v357 = vadd.f32 0.0, %v356
        %v358 = vpop.f32.mrb[0].mxu0
        %v359 = vpop.f32.mrb[0].mxu0
        %v360 = vadd.f32 0.0, %v359
        %v361 = vpop.f32.mrb[0].mxu0
        %362 = vmatprep.mubr.bf16.mxu0 0
        %363 = vmatmul.mubr.bf16.gmra.mrb[0].mxu0 %v292
        %v364 = vpop.f32.mrb[0].mxu0
        %v365 = vadd.f32 0.0, %v364
        %v366 = vpop.f32.mrb[0].mxu0
        %v367 = vpop.f32.mrb[0].mxu0
        %v368 = vadd.f32 0.0, %v367
        %v369 = vpop.f32.mrb[0].mxu0
        %370 = vmatprep.mubr.bf16.mxu0 0
        %371 = vmatmul.mubr.bf16.gmra.mrb[0].mxu0 %v295
        %v372 = vpop.f32.mrb[0].mxu0
        %v373 = vadd.f32 0.0, %v372
        %v374 = vpop.f32.mrb[0].mxu0
        %v375 = vpop.f32.mrb[0].mxu0
        %v376 = vadd.f32 0.0, %v375
        %v377 = vpop.f32.mrb[0].mxu0
        %378 = vmatprep.mubr.bf16.mxu0 0
        %379 = vmatmul.mubr.bf16.gmra.mrb[0].mxu0 %v298
        %v380 = vpop.f32.mrb[0].mxu0
        %v381 = vadd.f32 0.0, %v380
        %v382 = vpop.f32.mrb[0].mxu0
        %v383 = vpop.f32.mrb[0].mxu0
        %v384 = vadd.f32 0.0, %v383
        %v385 = vpop.f32.mrb[0].mxu0
        %386 = vmatprep.mubr.bf16.mxu0 0
        %387 = vmatmul.mubr.bf16.gmra.mrb[0].mxu0 %v301
        %v388 = vpop.f32.mrb[0].mxu0
        %v389 = vadd.f32 0.0, %v388
        %v390 = vpop.f32.mrb[0].mxu0
        %v391 = vpop.f32.mrb[0].mxu0
        %v392 = vadd.f32 0.0, %v391
        %v393 = vpop.f32.mrb[0].mxu0
        %394 = vmatprep.mubr.bf16.mxu0 0
        %395 = vmatmul.mubr.bf16.gmra.mrb[0].mxu0 %v304
        %v396 = vpop.f32.mrb[0].mxu0
        %v397 = vadd.f32 0.0, %v396
        %v398 = vpop.f32.mrb[0].mxu0
        %v399 = vpop.f32.mrb[0].mxu0
        %v400 = vadd.f32 0.0, %v399
        %v401 = vpop.f32.mrb[0].mxu0
        %402 = vdwg.mxu0
        %v407 = vunpack.c.l.b16 %v234
        %v408 = vunpack.c.l.b16 %v235
        %v409 = vunpack.c.l.b16 %v236
        %v410 = vunpack.c.l.b16 %v237
        %v411 = vpack.c.b16 %v408, %v407
        %v412 = vpack.c.b16 %v410, %v409
        %v416 = vsel %vm281, %v226, 0
        %v419 = vsel %vm281, %v227, 0
        %v422 = vsel %vm281, %v228, 0
        %v425 = vsel %vm281, %v229, 0
        %v428 = vsel %vm281, %v230, 0
        %v431 = vsel %vm281, %v231, 0
        %v434 = vsel %vm281, %v232, 0
        %v437 = vsel %vm281, %v233, 0
        %439 = vmatprep.subr.bf16.mxu0 0
        %440 = vmatpush1.bf16.msra.mxu0 %v411
        %441 = vmatprep.subr.bf16.mxu0 0
        %442 = vmatpush1.bf16.msra.mxu0 %v412
        %443 = vmatprep.subr.bf16.mxu0 0
        %444 = vmatpush1.bf16.msra.mxu0 0
        %445 = vmatprep.subr.bf16.mxu0 0
        %446 = vmatpush1.bf16.msra.mxu0 0
        %447 = vmatprep.subr.bf16.mxu0 0
        %448 = vmatpush1.bf16.msra.mxu0 0
        %449 = vmatprep.subr.bf16.mxu0 0
        %450 = vmatpush1.bf16.msra.mxu0 0
        %451 = vmatprep.subr.bf16.mxu0 0
        %452 = vmatpush1.bf16.msra.mxu0 0
        %453 = vmatprep.subr.bf16.mxu0 0
        %454 = vmatpush1.bf16.msra.mxu0 0
        %455 = vmatprep.subr.bf16.mxu0 0
        %456 = vmatpush1.bf16.msra.mxu0 0
        %457 = vmatprep.subr.bf16.mxu0 0
        %458 = vmatpush1.bf16.msra.mxu0 0
        %459 = vmatprep.subr.bf16.mxu0 0
        %460 = vmatpush1.bf16.msra.mxu0 0
        %461 = vmatprep.subr.bf16.mxu0 0
        %462 = vmatpush1.bf16.msra.mxu0 0
        %463 = vmatprep.subr.bf16.mxu0 0
        %464 = vmatpush1.bf16.msra.mxu0 0
        %465 = vmatprep.subr.bf16.mxu0 0
        %466 = vmatpush1.bf16.msra.mxu0 0
        %467 = vmatprep.subr.bf16.mxu0 0
        %468 = vmatpush1.bf16.msra.mxu0 0
        %469 = vmatprep.subr.bf16.mxu0 0
        %470 = vmatpush1.bf16.msra.mxu0 0
        %471 = vmatprep.mubr.bf16.mxu0 0
        %472 = vmatmul.mubr.bf16.gmra.mrb[0].mxu0 %v416
        %v473 = vpop.f32.mrb[0].mxu0
        %v474 = vadd.f32 %v341, %v473
        %v475 = vpop.f32.mrb[0].mxu0
        %v476 = vpop.f32.mrb[0].mxu0
        %v477 = vadd.f32 %v344, %v476
        %v478 = vpop.f32.mrb[0].mxu0
        %479 = vmatprep.mubr.bf16.mxu0 0
        %480 = vmatmul.mubr.bf16.gmra.mrb[0].mxu0 %v419
        %v481 = vpop.f32.mrb[0].mxu0
        %v482 = vadd.f32 %v349, %v481
        %v483 = vpop.f32.mrb[0].mxu0
        %v484 = vpop.f32.mrb[0].mxu0
        %v485 = vadd.f32 %v352, %v484
        %v486 = vpop.f32.mrb[0].mxu0
        %487 = vmatprep.mubr.bf16.mxu0 0
        %488 = vmatmul.mubr.bf16.gmra.mrb[0].mxu0 %v422
        %v489 = vpop.f32.mrb[0].mxu0
        %v490 = vadd.f32 %v357, %v489
        %v491 = vpop.f32.mrb[0].mxu0
        %v492 = vpop.f32.mrb[0].mxu0
        %v493 = vadd.f32 %v360, %v492
        %v494 = vpop.f32.mrb[0].mxu0
        %495 = vmatprep.mubr.bf16.mxu0 0
        %496 = vmatmul.mubr.bf16.gmra.mrb[0].mxu0 %v425
        %v497 = vpop.f32.mrb[0].mxu0
        %v498 = vadd.f32 %v365, %v497
        %v499 = vpop.f32.mrb[0].mxu0
        %v500 = vpop.f32.mrb[0].mxu0
        %v501 = vadd.f32 %v368, %v500
        %v502 = vpop.f32.mrb[0].mxu0
        %503 = vmatprep.mubr.bf16.mxu0 0
        %504 = vmatmul.mubr.bf16.gmra.mrb[0].mxu0 %v428
        %v505 = vpop.f32.mrb[0].mxu0
        %v506 = vadd.f32 %v373, %v505
        %v507 = vpop.f32.mrb[0].mxu0
        %v508 = vpop.f32.mrb[0].mxu0
        %v509 = vadd.f32 %v376, %v508
        %v510 = vpop.f32.mrb[0].mxu0
        %511 = vmatprep.mubr.bf16.mxu0 0
        %512 = vmatmul.mubr.bf16.gmra.mrb[0].mxu0 %v431
        %v513 = vpop.f32.mrb[0].mxu0
        %v514 = vadd.f32 %v381, %v513
        %v515 = vpop.f32.mrb[0].mxu0
        %v516 = vpop.f32.mrb[0].mxu0
        %v517 = vadd.f32 %v384, %v516
        %v518 = vpop.f32.mrb[0].mxu0
        %519 = vmatprep.mubr.bf16.mxu0 0
        %520 = vmatmul.mubr.bf16.gmra.mrb[0].mxu0 %v434
        %v521 = vpop.f32.mrb[0].mxu0
        %v522 = vadd.f32 %v389, %v521
        %v523 = vpop.f32.mrb[0].mxu0
        %v524 = vpop.f32.mrb[0].mxu0
        %v525 = vadd.f32 %v392, %v524
        %v526 = vpop.f32.mrb[0].mxu0
        %527 = vmatprep.mubr.bf16.mxu0 0
        %528 = vmatmul.mubr.bf16.gmra.mrb[0].mxu0 %v437
        %v529 = vpop.f32.mrb[0].mxu0
        %v530 = vadd.f32 %v397, %v529
        %v531 = vpop.f32.mrb[0].mxu0
        %v532 = vpop.f32.mrb[0].mxu0
        %v533 = vadd.f32 %v400, %v532
        %v534 = vpop.f32.mrb[0].mxu0
        %535 = vdwg.mxu0
        %v536 = vld [vmem:[%s209 + $0x1] sm:$0xff]
        %v537 = vld [vmem:[%s209 + $0x9] sm:$0xff]
        %v538 = vld [vmem:[%s209 + $0x11] sm:$0xff]
        %v539 = vld [vmem:[%s209 + $0x19] sm:$0xff]
        %v540 = vld [vmem:[%s209 + $0x29] sm:$0xff]
        %v541 = vld [vmem:[%s209 + $0x31] sm:$0xff]
        %v542 = vld [vmem:[%s209 + $0x39] sm:$0xff]
        %v543 = vld [vmem:[%s209 + $0x41] sm:$0xff]
        %v544 = vld [vmem:[%s209 + $0x51] sm:$0xff]
        %v545 = vld [vmem:[%s209 + $0x59] sm:$0xff]
        %v546 = vld [vmem:[%s209 + $0x61] sm:$0xff]
        %v547 = vld [vmem:[%s209 + $0x69] sm:$0xff]
        %v548 = vld [vmem:[%s209 + $0x79] sm:$0xff]
        %v549 = vld [vmem:[%s209 + $0x81] sm:$0xff]
        %v550 = vld [vmem:[%s209 + $0x89] sm:$0xff]
        %v551 = vld [vmem:[%s209 + $0x91] sm:$0xff]
        %v552 = vpack.c.bf16 %v537, %v536
        %v553 = vpack.c.bf16 %v539, %v538
        %v554 = vpack.c.bf16 %v541, %v540
        %v555 = vpack.c.bf16 %v543, %v542
        %v556 = vpack.c.bf16 %v545, %v544
        %v557 = vpack.c.bf16 %v547, %v546
        %v558 = vpack.c.bf16 %v549, %v548
        %v559 = vpack.c.bf16 %v551, %v550
        %s560 = scalar_lea.vmem %s1, 32
        %v561 = vld [vmem:[%s560] sm:$0xf]
        %v562 = vld [vmem:[%s560 + $0x4] sm:$0xf]
        %v563 = vld [vmem:[%s560 + $0x8] sm:$0xf]
        %v564 = vld [vmem:[%s560 + $0xc] sm:$0xf]
        %v569 = vunpack.c.l.b16 %v561
        %v570 = vunpack.c.l.b16 %v562
        %v571 = vunpack.c.l.b16 %v563
        %v572 = vunpack.c.l.b16 %v564
        %v573 = vpack.c.b16 %v570, %v569
        %v574 = vpack.c.b16 %v572, %v571
        %v578 = vsel %vm281, %v552, 0
        %v581 = vsel %vm281, %v553, 0
        %v584 = vsel %vm281, %v554, 0
        %v587 = vsel %vm281, %v555, 0
        %v590 = vsel %vm281, %v556, 0
        %v593 = vsel %vm281, %v557, 0
        %v596 = vsel %vm281, %v558, 0
        %v599 = vsel %vm281, %v559, 0
        %601 = vmatprep.subr.bf16.mxu0 0
        %602 = vmatpush1.bf16.msra.mxu0 %v573
        %603 = vmatprep.subr.bf16.mxu0 0
        %604 = vmatpush1.bf16.msra.mxu0 %v574
        %605 = vmatprep.subr.bf16.mxu0 0
        %606 = vmatpush1.bf16.msra.mxu0 0
        %607 = vmatprep.subr.bf16.mxu0 0
        %608 = vmatpush1.bf16.msra.mxu0 0
        %609 = vmatprep.subr.bf16.mxu0 0
        %610 = vmatpush1.bf16.msra.mxu0 0
        %611 = vmatprep.subr.bf16.mxu0 0
        %612 = vmatpush1.bf16.msra.mxu0 0
        %613 = vmatprep.subr.bf16.mxu0 0
        %614 = vmatpush1.bf16.msra.mxu0 0
        %615 = vmatprep.subr.bf16.mxu0 0
        %616 = vmatpush1.bf16.msra.mxu0 0
        %617 = vmatprep.subr.bf16.mxu0 0
        %618 = vmatpush1.bf16.msra.mxu0 0
        %619 = vmatprep.subr.bf16.mxu0 0
        %620 = vmatpush1.bf16.msra.mxu0 0
        %621 = vmatprep.subr.bf16.mxu0 0
        %622 = vmatpush1.bf16.msra.mxu0 0
        %623 = vmatprep.subr.bf16.mxu0 0
        %624 = vmatpush1.bf16.msra.mxu0 0
        %625 = vmatprep.subr.bf16.mxu0 0
        %626 = vmatpush1.bf16.msra.mxu0 0
        %627 = vmatprep.subr.bf16.mxu0 0
        %628 = vmatpush1.bf16.msra.mxu0 0
        %629 = vmatprep.subr.bf16.mxu0 0
        %630 = vmatpush1.bf16.msra.mxu0 0
        %631 = vmatprep.subr.bf16.mxu0 0
        %632 = vmatpush1.bf16.msra.mxu0 0
        %633 = vmatprep.mubr.bf16.mxu0 0
        %634 = vmatmul.mubr.bf16.gmra.mrb[0].mxu0 %v578
        %v635 = vpop.f32.mrb[0].mxu0
        %v636 = vadd.f32 0.0, %v635
        %v637 = vpop.f32.mrb[0].mxu0
        %v638 = vpop.f32.mrb[0].mxu0
        %v639 = vadd.f32 0.0, %v638
        %v640 = vpop.f32.mrb[0].mxu0
        %641 = vmatprep.mubr.bf16.mxu0 0
        %642 = vmatmul.mubr.bf16.gmra.mrb[0].mxu0 %v581
        %v643 = vpop.f32.mrb[0].mxu0
        %v644 = vadd.f32 0.0, %v643
        %v645 = vpop.f32.mrb[0].mxu0
        %v646 = vpop.f32.mrb[0].mxu0
        %v647 = vadd.f32 0.0, %v646
        %v648 = vpop.f32.mrb[0].mxu0
        %649 = vmatprep.mubr.bf16.mxu0 0
        %650 = vmatmul.mubr.bf16.gmra.mrb[0].mxu0 %v584
        %v651 = vpop.f32.mrb[0].mxu0
        %v652 = vadd.f32 0.0, %v651
        %v653 = vpop.f32.mrb[0].mxu0
        %v654 = vpop.f32.mrb[0].mxu0
        %v655 = vadd.f32 0.0, %v654
        %v656 = vpop.f32.mrb[0].mxu0
        %657 = vmatprep.mubr.bf16.mxu0 0
        %658 = vmatmul.mubr.bf16.gmra.mrb[0].mxu0 %v587
        %v659 = vpop.f32.mrb[0].mxu0
        %v660 = vadd.f32 0.0, %v659
        %v661 = vpop.f32.mrb[0].mxu0
        %v662 = vpop.f32.mrb[0].mxu0
        %v663 = vadd.f32 0.0, %v662
        %v664 = vpop.f32.mrb[0].mxu0
        %665 = vmatprep.mubr.bf16.mxu0 0
        %666 = vmatmul.mubr.bf16.gmra.mrb[0].mxu0 %v590
        %v667 = vpop.f32.mrb[0].mxu0
        %v668 = vadd.f32 0.0, %v667
        %v669 = vpop.f32.mrb[0].mxu0
        %v670 = vpop.f32.mrb[0].mxu0
        %v671 = vadd.f32 0.0, %v670
        %v672 = vpop.f32.mrb[0].mxu0
        %673 = vmatprep.mubr.bf16.mxu0 0
        %674 = vmatmul.mubr.bf16.gmra.mrb[0].mxu0 %v593
        %v675 = vpop.f32.mrb[0].mxu0
        %v676 = vadd.f32 0.0, %v675
        %v677 = vpop.f32.mrb[0].mxu0
        %v678 = vpop.f32.mrb[0].mxu0
        %v679 = vadd.f32 0.0, %v678
        %v680 = vpop.f32.mrb[0].mxu0
        %681 = vmatprep.mubr.bf16.mxu0 0
        %682 = vmatmul.mubr.bf16.gmra.mrb[0].mxu0 %v596
        %v683 = vpop.f32.mrb[0].mxu0
        %v684 = vadd.f32 0.0, %v683
        %v685 = vpop.f32.mrb[0].mxu0
        %v686 = vpop.f32.mrb[0].mxu0
        %v687 = vadd.f32 0.0, %v686
        %v688 = vpop.f32.mrb[0].mxu0
        %689 = vmatprep.mubr.bf16.mxu0 0
        %690 = vmatmul.mubr.bf16.gmra.mrb[0].mxu0 %v599
        %v691 = vpop.f32.mrb[0].mxu0
        %v692 = vadd.f32 0.0, %v691
        %v693 = vpop.f32.mrb[0].mxu0
        %v694 = vpop.f32.mrb[0].mxu0
        %v695 = vadd.f32 0.0, %v694
        %v696 = vpop.f32.mrb[0].mxu0
        %697 = vdwg.mxu0
        %v698 = vadd.f32 %v474, %v636
        %v699 = vadd.f32 %v477, %v639
        %v700 = vadd.f32 %v482, %v644
        %v701 = vadd.f32 %v485, %v647
        %v702 = vadd.f32 %v490, %v652
        %v703 = vadd.f32 %v493, %v655
        %v704 = vadd.f32 %v498, %v660
        %v705 = vadd.f32 %v501, %v663
        %v706 = vadd.f32 %v506, %v668
        %v707 = vadd.f32 %v509, %v671
        %v708 = vadd.f32 %v514, %v676
        %v709 = vadd.f32 %v517, %v679
        %v710 = vadd.f32 %v522, %v684
        %v711 = vadd.f32 %v525, %v687
        %v712 = vadd.f32 %v530, %v692
        %v713 = vadd.f32 %v533, %v695
        %s714 = sadd.s32 %s208, 2640
        %s715 = scalar_lea.vmem %s192, %s714
        %v716 = vld [vmem:[%s715] sm:$0xff]
        %v717 = vld [vmem:[%s715 + $0x8] sm:$0xff]
        %v718 = vld [vmem:[%s715 + $0x10] sm:$0xff]
        %v719 = vld [vmem:[%s715 + $0x18] sm:$0xff]
        %v720 = vld [vmem:[%s715 + $0x28] sm:$0xff]
        %v721 = vld [vmem:[%s715 + $0x30] sm:$0xff]
        %v722 = vld [vmem:[%s715 + $0x38] sm:$0xff]
        %v723 = vld [vmem:[%s715 + $0x40] sm:$0xff]
        %v724 = vld [vmem:[%s715 + $0x50] sm:$0xff]
        %v725 = vld [vmem:[%s715 + $0x58] sm:$0xff]
        %v726 = vld [vmem:[%s715 + $0x60] sm:$0xff]
        %v727 = vld [vmem:[%s715 + $0x68] sm:$0xff]
        %v728 = vld [vmem:[%s715 + $0x78] sm:$0xff]
        %v729 = vld [vmem:[%s715 + $0x80] sm:$0xff]
        %v730 = vld [vmem:[%s715 + $0x88] sm:$0xff]
        %v731 = vld [vmem:[%s715 + $0x90] sm:$0xff]
        %v732 = vpack.c.bf16 %v717, %v716
        %v733 = vpack.c.bf16 %v719, %v718
        %v734 = vpack.c.bf16 %v721, %v720
        %v735 = vpack.c.bf16 %v723, %v722
        %v736 = vpack.c.bf16 %v725, %v724
        %v737 = vpack.c.bf16 %v727, %v726
        %v738 = vpack.c.bf16 %v729, %v728
        %v739 = vpack.c.bf16 %v731, %v730
        %s740 = scalar_lea.vmem %s1, 48
        %v741 = vld [vmem:[%s740] sm:$0xf]
        %v742 = vld [vmem:[%s740 + $0x4] sm:$0xf]
        %v743 = vld [vmem:[%s740 + $0x8] sm:$0xf]
        %v744 = vld [vmem:[%s740 + $0xc] sm:$0xf]
        %v749 = vunpack.c.l.b16 %v741
        %v750 = vunpack.c.l.b16 %v742
        %v751 = vunpack.c.l.b16 %v743
        %v752 = vunpack.c.l.b16 %v744
        %v753 = vpack.c.b16 %v750, %v749
        %v754 = vpack.c.b16 %v752, %v751
        %v758 = vsel %vm281, %v732, 0
        %v761 = vsel %vm281, %v733, 0
        %v764 = vsel %vm281, %v734, 0
        %v767 = vsel %vm281, %v735, 0
        %v770 = vsel %vm281, %v736, 0
        %v773 = vsel %vm281, %v737, 0
        %v776 = vsel %vm281, %v738, 0
        %v779 = vsel %vm281, %v739, 0
        %781 = vmatprep.subr.bf16.mxu0 0
        %782 = vmatpush1.bf16.msra.mxu0 %v753
        %783 = vmatprep.subr.bf16.mxu0 0
        %784 = vmatpush1.bf16.msra.mxu0 %v754
        %785 = vmatprep.subr.bf16.mxu0 0
        %786 = vmatpush1.bf16.msra.mxu0 0
        %787 = vmatprep.subr.bf16.mxu0 0
        %788 = vmatpush1.bf16.msra.mxu0 0
        %789 = vmatprep.subr.bf16.mxu0 0
        %790 = vmatpush1.bf16.msra.mxu0 0
        %791 = vmatprep.subr.bf16.mxu0 0
        %792 = vmatpush1.bf16.msra.mxu0 0
        %793 = vmatprep.subr.bf16.mxu0 0
        %794 = vmatpush1.bf16.msra.mxu0 0
        %795 = vmatprep.subr.bf16.mxu0 0
        %796 = vmatpush1.bf16.msra.mxu0 0
        %797 = vmatprep.subr.bf16.mxu0 0
        %798 = vmatpush1.bf16.msra.mxu0 0
        %799 = vmatprep.subr.bf16.mxu0 0
        %800 = vmatpush1.bf16.msra.mxu0 0
        %801 = vmatprep.subr.bf16.mxu0 0
        %802 = vmatpush1.bf16.msra.mxu0 0
        %803 = vmatprep.subr.bf16.mxu0 0
        %804 = vmatpush1.bf16.msra.mxu0 0
        %805 = vmatprep.subr.bf16.mxu0 0
        %806 = vmatpush1.bf16.msra.mxu0 0
        %807 = vmatprep.subr.bf16.mxu0 0
        %808 = vmatpush1.bf16.msra.mxu0 0
        %809 = vmatprep.subr.bf16.mxu0 0
        %810 = vmatpush1.bf16.msra.mxu0 0
        %811 = vmatprep.subr.bf16.mxu0 0
        %812 = vmatpush1.bf16.msra.mxu0 0
        %813 = vmatprep.mubr.bf16.mxu0 0
        %814 = vmatmul.mubr.bf16.gmra.mrb[0].mxu0 %v758
        %v815 = vpop.f32.mrb[0].mxu0
        %v816 = vadd.f32 0.0, %v815
        %v817 = vpop.f32.mrb[0].mxu0
        %v818 = vpop.f32.mrb[0].mxu0
        %v819 = vadd.f32 0.0, %v818
        %v820 = vpop.f32.mrb[0].mxu0
        %821 = vmatprep.mubr.bf16.mxu0 0
        %822 = vmatmul.mubr.bf16.gmra.mrb[0].mxu0 %v761
        %v823 = vpop.f32.mrb[0].mxu0
        %v824 = vadd.f32 0.0, %v823
        %v825 = vpop.f32.mrb[0].mxu0
        %v826 = vpop.f32.mrb[0].mxu0
        %v827 = vadd.f32 0.0, %v826
        %v828 = vpop.f32.mrb[0].mxu0
        %829 = vmatprep.mubr.bf16.mxu0 0
        %830 = vmatmul.mubr.bf16.gmra.mrb[0].mxu0 %v764
        %v831 = vpop.f32.mrb[0].mxu0
        %v832 = vadd.f32 0.0, %v831
        %v833 = vpop.f32.mrb[0].mxu0
        %v834 = vpop.f32.mrb[0].mxu0
        %v835 = vadd.f32 0.0, %v834
        %v836 = vpop.f32.mrb[0].mxu0
        %837 = vmatprep.mubr.bf16.mxu0 0
        %838 = vmatmul.mubr.bf16.gmra.mrb[0].mxu0 %v767
        %v839 = vpop.f32.mrb[0].mxu0
        %v840 = vadd.f32 0.0, %v839
        %v841 = vpop.f32.mrb[0].mxu0
        %v842 = vpop.f32.mrb[0].mxu0
        %v843 = vadd.f32 0.0, %v842
        %v844 = vpop.f32.mrb[0].mxu0
        %845 = vmatprep.mubr.bf16.mxu0 0
        %846 = vmatmul.mubr.bf16.gmra.mrb[0].mxu0 %v770
        %v847 = vpop.f32.mrb[0].mxu0
        %v848 = vadd.f32 0.0, %v847
        %v849 = vpop.f32.mrb[0].mxu0
        %v850 = vpop.f32.mrb[0].mxu0
        %v851 = vadd.f32 0.0, %v850
        %v852 = vpop.f32.mrb[0].mxu0
        %853 = vmatprep.mubr.bf16.mxu0 0
        %854 = vmatmul.mubr.bf16.gmra.mrb[0].mxu0 %v773
        %v855 = vpop.f32.mrb[0].mxu0
        %v856 = vadd.f32 0.0, %v855
        %v857 = vpop.f32.mrb[0].mxu0
        %v858 = vpop.f32.mrb[0].mxu0
        %v859 = vadd.f32 0.0, %v858
        %v860 = vpop.f32.mrb[0].mxu0
        %861 = vmatprep.mubr.bf16.mxu0 0
        %862 = vmatmul.mubr.bf16.gmra.mrb[0].mxu0 %v776
        %v863 = vpop.f32.mrb[0].mxu0
        %v864 = vadd.f32 0.0, %v863
        %v865 = vpop.f32.mrb[0].mxu0
        %v866 = vpop.f32.mrb[0].mxu0
        %v867 = vadd.f32 0.0, %v866
        %v868 = vpop.f32.mrb[0].mxu0
        %869 = vmatprep.mubr.bf16.mxu0 0
        %870 = vmatmul.mubr.bf16.gmra.mrb[0].mxu0 %v779
        %v871 = vpop.f32.mrb[0].mxu0
        %v872 = vadd.f32 0.0, %v871
        %v873 = vpop.f32.mrb[0].mxu0
        %v874 = vpop.f32.mrb[0].mxu0
        %v875 = vadd.f32 0.0, %v874
        %v876 = vpop.f32.mrb[0].mxu0
        %877 = vdwg.mxu0
        %v878 = vadd.f32 %v698, %v816
        %v879 = vadd.f32 %v699, %v819
        %v880 = vadd.f32 %v700, %v824
        %v881 = vadd.f32 %v701, %v827
        %v882 = vadd.f32 %v702, %v832
        %v883 = vadd.f32 %v703, %v835
        %v884 = vadd.f32 %v704, %v840
        %v885 = vadd.f32 %v705, %v843
        %v886 = vadd.f32 %v706, %v848
        %v887 = vadd.f32 %v707, %v851
        %v888 = vadd.f32 %v708, %v856
        %v889 = vadd.f32 %v709, %v859
        %v890 = vadd.f32 %v710, %v864
        %v891 = vadd.f32 %v711, %v867
        %v892 = vadd.f32 %v712, %v872
        %v893 = vadd.f32 %v713, %v875
        %s894 = sadd.s32 %s238, 2640
        %s895 = scalar_lea.vmem %s192, %s894
        %v896 = vld [vmem:[%s895] sm:$0xff]
        %v897 = vld [vmem:[%s895 + $0x8] sm:$0xff]
        %v898 = vld [vmem:[%s895 + $0x10] sm:$0xff]
        %v899 = vld [vmem:[%s895 + $0x18] sm:$0xff]
        %v900 = vld [vmem:[%s895 + $0x28] sm:$0xff]
        %v901 = vld [vmem:[%s895 + $0x30] sm:$0xff]
        %v902 = vld [vmem:[%s895 + $0x38] sm:$0xff]
        %v903 = vld [vmem:[%s895 + $0x40] sm:$0xff]
        %v904 = vld [vmem:[%s895 + $0x50] sm:$0xff]
        %v905 = vld [vmem:[%s895 + $0x58] sm:$0xff]
        %v906 = vld [vmem:[%s895 + $0x60] sm:$0xff]
        %v907 = vld [vmem:[%s895 + $0x68] sm:$0xff]
        %v908 = vld [vmem:[%s895 + $0x78] sm:$0xff]
        %v909 = vld [vmem:[%s895 + $0x80] sm:$0xff]
        %v910 = vld [vmem:[%s895 + $0x88] sm:$0xff]
        %v911 = vld [vmem:[%s895 + $0x90] sm:$0xff]
        %v912 = vpack.c.bf16 %v897, %v896
        %v913 = vpack.c.bf16 %v899, %v898
        %v914 = vpack.c.bf16 %v901, %v900
        %v915 = vpack.c.bf16 %v903, %v902
        %v916 = vpack.c.bf16 %v905, %v904
        %v917 = vpack.c.bf16 %v907, %v906
        %v918 = vpack.c.bf16 %v909, %v908
        %v919 = vpack.c.bf16 %v911, %v910
        %s920 = scalar_lea.vmem %s1, 64
        %v921 = vld [vmem:[%s920] sm:$0xf]
        %v922 = vld [vmem:[%s920 + $0x4] sm:$0xf]
        %v923 = vld [vmem:[%s920 + $0x8] sm:$0xf]
        %v924 = vld [vmem:[%s920 + $0xc] sm:$0xf]
        %v929 = vunpack.c.l.b16 %v921
        %v930 = vunpack.c.l.b16 %v922
        %v931 = vunpack.c.l.b16 %v923
        %v932 = vunpack.c.l.b16 %v924
        %v933 = vpack.c.b16 %v930, %v929
        %v934 = vpack.c.b16 %v932, %v931
        %v938 = vsel %vm281, %v912, 0
        %v941 = vsel %vm281, %v913, 0
        %v944 = vsel %vm281, %v914, 0
        %v947 = vsel %vm281, %v915, 0
        %v950 = vsel %vm281, %v916, 0
        %v953 = vsel %vm281, %v917, 0
        %v956 = vsel %vm281, %v918, 0
        %v959 = vsel %vm281, %v919, 0
        %961 = vmatprep.subr.bf16.mxu0 0
        %962 = vmatpush1.bf16.msra.mxu0 %v933
        %963 = vmatprep.subr.bf16.mxu0 0
        %964 = vmatpush1.bf16.msra.mxu0 %v934
        %965 = vmatprep.subr.bf16.mxu0 0
        %966 = vmatpush1.bf16.msra.mxu0 0
        %967 = vmatprep.subr.bf16.mxu0 0
        %968 = vmatpush1.bf16.msra.mxu0 0
        %969 = vmatprep.subr.bf16.mxu0 0
        %970 = vmatpush1.bf16.msra.mxu0 0
        %971 = vmatprep.subr.bf16.mxu0 0
        %972 = vmatpush1.bf16.msra.mxu0 0
        %973 = vmatprep.subr.bf16.mxu0 0
        %974 = vmatpush1.bf16.msra.mxu0 0
        %975 = vmatprep.subr.bf16.mxu0 0
        %976 = vmatpush1.bf16.msra.mxu0 0
        %977 = vmatprep.subr.bf16.mxu0 0
        %978 = vmatpush1.bf16.msra.mxu0 0
        %979 = vmatprep.subr.bf16.mxu0 0
        %980 = vmatpush1.bf16.msra.mxu0 0
        %981 = vmatprep.subr.bf16.mxu0 0
        %982 = vmatpush1.bf16.msra.mxu0 0
        %983 = vmatprep.subr.bf16.mxu0 0
        %984 = vmatpush1.bf16.msra.mxu0 0
        %985 = vmatprep.subr.bf16.mxu0 0
        %986 = vmatpush1.bf16.msra.mxu0 0
        %987 = vmatprep.subr.bf16.mxu0 0
        %988 = vmatpush1.bf16.msra.mxu0 0
        %989 = vmatprep.subr.bf16.mxu0 0
        %990 = vmatpush1.bf16.msra.mxu0 0
        %991 = vmatprep.subr.bf16.mxu0 0
        %992 = vmatpush1.bf16.msra.mxu0 0
        %993 = vmatprep.mubr.bf16.mxu0 0
        %994 = vmatmul.mubr.bf16.gmra.mrb[0].mxu0 %v938
        %v995 = vpop.f32.mrb[0].mxu0
        %v996 = vadd.f32 0.0, %v995
        %v997 = vpop.f32.mrb[0].mxu0
        %v998 = vpop.f32.mrb[0].mxu0
        %v999 = vadd.f32 0.0, %v998
        %v1000 = vpop.f32.mrb[0].mxu0
        %1001 = vmatprep.mubr.bf16.mxu0 0
        %1002 = vmatmul.mubr.bf16.gmra.mrb[0].mxu0 %v941
        %v1003 = vpop.f32.mrb[0].mxu0
        %v1004 = vadd.f32 0.0, %v1003
        %v1005 = vpop.f32.mrb[0].mxu0
        %v1006 = vpop.f32.mrb[0].mxu0
        %v1007 = vadd.f32 0.0, %v1006
        %v1008 = vpop.f32.mrb[0].mxu0
        %1009 = vmatprep.mubr.bf16.mxu0 0
        %1010 = vmatmul.mubr.bf16.gmra.mrb[0].mxu0 %v944
        %v1011 = vpop.f32.mrb[0].mxu0
        %v1012 = vadd.f32 0.0, %v1011
        %v1013 = vpop.f32.mrb[0].mxu0
        %v1014 = vpop.f32.mrb[0].mxu0
        %v1015 = vadd.f32 0.0, %v1014
        %v1016 = vpop.f32.mrb[0].mxu0
        %1017 = vmatprep.mubr.bf16.mxu0 0
        %1018 = vmatmul.mubr.bf16.gmra.mrb[0].mxu0 %v947
        %v1019 = vpop.f32.mrb[0].mxu0
        %v1020 = vadd.f32 0.0, %v1019
        %v1021 = vpop.f32.mrb[0].mxu0
        %v1022 = vpop.f32.mrb[0].mxu0
        %v1023 = vadd.f32 0.0, %v1022
        %v1024 = vpop.f32.mrb[0].mxu0
        %1025 = vmatprep.mubr.bf16.mxu0 0
        %1026 = vmatmul.mubr.bf16.gmra.mrb[0].mxu0 %v950
        %v1027 = vpop.f32.mrb[0].mxu0
        %v1028 = vadd.f32 0.0, %v1027
        %v1029 = vpop.f32.mrb[0].mxu0
        %v1030 = vpop.f32.mrb[0].mxu0
        %v1031 = vadd.f32 0.0, %v1030
        %v1032 = vpop.f32.mrb[0].mxu0
        %1033 = vmatprep.mubr.bf16.mxu0 0
        %1034 = vmatmul.mubr.bf16.gmra.mrb[0].mxu0 %v953
        %v1035 = vpop.f32.mrb[0].mxu0
        %v1036 = vadd.f32 0.0, %v1035
        %v1037 = vpop.f32.mrb[0].mxu0
        %v1038 = vpop.f32.mrb[0].mxu0
        %v1039 = vadd.f32 0.0, %v1038
        %v1040 = vpop.f32.mrb[0].mxu0
        %1041 = vmatprep.mubr.bf16.mxu0 0
        %1042 = vmatmul.mubr.bf16.gmra.mrb[0].mxu0 %v956
        %v1043 = vpop.f32.mrb[0].mxu0
        %v1044 = vadd.f32 0.0, %v1043
        %v1045 = vpop.f32.mrb[0].mxu0
        %v1046 = vpop.f32.mrb[0].mxu0
        %v1047 = vadd.f32 0.0, %v1046
        %v1048 = vpop.f32.mrb[0].mxu0
        %1049 = vmatprep.mubr.bf16.mxu0 0
        %1050 = vmatmul.mubr.bf16.gmra.mrb[0].mxu0 %v959
        %v1051 = vpop.f32.mrb[0].mxu0
        %v1052 = vadd.f32 0.0, %v1051
        %v1053 = vpop.f32.mrb[0].mxu0
        %v1054 = vpop.f32.mrb[0].mxu0
        %v1055 = vadd.f32 0.0, %v1054
        %v1056 = vpop.f32.mrb[0].mxu0
        %1057 = vdwg.mxu0
        %v1058 = vadd.f32 %v878, %v996
        %v1059 = vadd.f32 %v879, %v999
        %v1060 = vadd.f32 %v880, %v1004
        %v1061 = vadd.f32 %v881, %v1007
        %v1062 = vadd.f32 %v882, %v1012
        %v1063 = vadd.f32 %v883, %v1015
        %v1064 = vadd.f32 %v884, %v1020
        %v1065 = vadd.f32 %v885, %v1023
        %v1066 = vadd.f32 %v886, %v1028
        %v1067 = vadd.f32 %v887, %v1031
        %v1068 = vadd.f32 %v888, %v1036
        %v1069 = vadd.f32 %v889, %v1039
        %v1070 = vadd.f32 %v890, %v1044
        %v1071 = vadd.f32 %v891, %v1047
        %v1072 = vadd.f32 %v892, %v1052
        %v1073 = vadd.f32 %v893, %v1055
        %v1074 = vld [vmem:[%s715 + $0x1] sm:$0xff]
        %v1075 = vld [vmem:[%s715 + $0x9] sm:$0xff]
        %v1076 = vld [vmem:[%s715 + $0x11] sm:$0xff]
        %v1077 = vld [vmem:[%s715 + $0x19] sm:$0xff]
        %v1078 = vld [vmem:[%s715 + $0x29] sm:$0xff]
        %v1079 = vld [vmem:[%s715 + $0x31] sm:$0xff]
        %v1080 = vld [vmem:[%s715 + $0x39] sm:$0xff]
        %v1081 = vld [vmem:[%s715 + $0x41] sm:$0xff]
        %v1082 = vld [vmem:[%s715 + $0x51] sm:$0xff]
        %v1083 = vld [vmem:[%s715 + $0x59] sm:$0xff]
        %v1084 = vld [vmem:[%s715 + $0x61] sm:$0xff]
        %v1085 = vld [vmem:[%s715 + $0x69] sm:$0xff]
        %v1086 = vld [vmem:[%s715 + $0x79] sm:$0xff]
        %v1087 = vld [vmem:[%s715 + $0x81] sm:$0xff]
        %v1088 = vld [vmem:[%s715 + $0x89] sm:$0xff]
        %v1089 = vld [vmem:[%s715 + $0x91] sm:$0xff]
        %v1090 = vpack.c.bf16 %v1075, %v1074
        %v1091 = vpack.c.bf16 %v1077, %v1076
        %v1092 = vpack.c.bf16 %v1079, %v1078
        %v1093 = vpack.c.bf16 %v1081, %v1080
        %v1094 = vpack.c.bf16 %v1083, %v1082
        %v1095 = vpack.c.bf16 %v1085, %v1084
        %v1096 = vpack.c.bf16 %v1087, %v1086
        %v1097 = vpack.c.bf16 %v1089, %v1088
        %s1098 = scalar_lea.vmem %s1, 80
        %v1099 = vld [vmem:[%s1098] sm:$0xf]
        %v1100 = vld [vmem:[%s1098 + $0x4] sm:$0xf]
        %v1101 = vld [vmem:[%s1098 + $0x8] sm:$0xf]
        %v1102 = vld [vmem:[%s1098 + $0xc] sm:$0xf]
        %v1107 = vunpack.c.l.b16 %v1099
        %v1108 = vunpack.c.l.b16 %v1100
        %v1109 = vunpack.c.l.b16 %v1101
        %v1110 = vunpack.c.l.b16 %v1102
        %v1111 = vpack.c.b16 %v1108, %v1107
        %v1112 = vpack.c.b16 %v1110, %v1109
        %v1116 = vsel %vm281, %v1090, 0
        %v1119 = vsel %vm281, %v1091, 0
        %v1122 = vsel %vm281, %v1092, 0
        %v1125 = vsel %vm281, %v1093, 0
        %v1128 = vsel %vm281, %v1094, 0
        %v1131 = vsel %vm281, %v1095, 0
        %v1134 = vsel %vm281, %v1096, 0
        %v1137 = vsel %vm281, %v1097, 0
        %1139 = vmatprep.subr.bf16.mxu0 0
        %1140 = vmatpush1.bf16.msra.mxu0 %v1111
        %1141 = vmatprep.subr.bf16.mxu0 0
        %1142 = vmatpush1.bf16.msra.mxu0 %v1112
        %1143 = vmatprep.subr.bf16.mxu0 0
        %1144 = vmatpush1.bf16.msra.mxu0 0
        %1145 = vmatprep.subr.bf16.mxu0 0
        %1146 = vmatpush1.bf16.msra.mxu0 0
        %1147 = vmatprep.subr.bf16.mxu0 0
        %1148 = vmatpush1.bf16.msra.mxu0 0
        %1149 = vmatprep.subr.bf16.mxu0 0
        %1150 = vmatpush1.bf16.msra.mxu0 0
        %1151 = vmatprep.subr.bf16.mxu0 0
        %1152 = vmatpush1.bf16.msra.mxu0 0
        %1153 = vmatprep.subr.bf16.mxu0 0
        %1154 = vmatpush1.bf16.msra.mxu0 0
        %1155 = vmatprep.subr.bf16.mxu0 0
        %1156 = vmatpush1.bf16.msra.mxu0 0
        %1157 = vmatprep.subr.bf16.mxu0 0
        %1158 = vmatpush1.bf16.msra.mxu0 0
        %1159 = vmatprep.subr.bf16.mxu0 0
        %1160 = vmatpush1.bf16.msra.mxu0 0
        %1161 = vmatprep.subr.bf16.mxu0 0
        %1162 = vmatpush1.bf16.msra.mxu0 0
        %1163 = vmatprep.subr.bf16.mxu0 0
        %1164 = vmatpush1.bf16.msra.mxu0 0
        %1165 = vmatprep.subr.bf16.mxu0 0
        %1166 = vmatpush1.bf16.msra.mxu0 0
        %1167 = vmatprep.subr.bf16.mxu0 0
        %1168 = vmatpush1.bf16.msra.mxu0 0
        %1169 = vmatprep.subr.bf16.mxu0 0
        %1170 = vmatpush1.bf16.msra.mxu0 0
        %1171 = vmatprep.mubr.bf16.mxu0 0
        %1172 = vmatmul.mubr.bf16.gmra.mrb[0].mxu0 %v1116
        %v1173 = vpop.f32.mrb[0].mxu0
        %v1174 = vadd.f32 0.0, %v1173
        %v1175 = vpop.f32.mrb[0].mxu0
        %v1176 = vpop.f32.mrb[0].mxu0
        %v1177 = vadd.f32 0.0, %v1176
        %v1178 = vpop.f32.mrb[0].mxu0
        %1179 = vmatprep.mubr.bf16.mxu0 0
        %1180 = vmatmul.mubr.bf16.gmra.mrb[0].mxu0 %v1119
        %v1181 = vpop.f32.mrb[0].mxu0
        %v1182 = vadd.f32 0.0, %v1181
        %v1183 = vpop.f32.mrb[0].mxu0
        %v1184 = vpop.f32.mrb[0].mxu0
        %v1185 = vadd.f32 0.0, %v1184
        %v1186 = vpop.f32.mrb[0].mxu0
        %1187 = vmatprep.mubr.bf16.mxu0 0
        %1188 = vmatmul.mubr.bf16.gmra.mrb[0].mxu0 %v1122
        %v1189 = vpop.f32.mrb[0].mxu0
        %v1190 = vadd.f32 0.0, %v1189
        %v1191 = vpop.f32.mrb[0].mxu0
        %v1192 = vpop.f32.mrb[0].mxu0
        %v1193 = vadd.f32 0.0, %v1192
        %v1194 = vpop.f32.mrb[0].mxu0
        %1195 = vmatprep.mubr.bf16.mxu0 0
        %1196 = vmatmul.mubr.bf16.gmra.mrb[0].mxu0 %v1125
        %v1197 = vpop.f32.mrb[0].mxu0
        %v1198 = vadd.f32 0.0, %v1197
        %v1199 = vpop.f32.mrb[0].mxu0
        %v1200 = vpop.f32.mrb[0].mxu0
        %v1201 = vadd.f32 0.0, %v1200
        %v1202 = vpop.f32.mrb[0].mxu0
        %1203 = vmatprep.mubr.bf16.mxu0 0
        %1204 = vmatmul.mubr.bf16.gmra.mrb[0].mxu0 %v1128
        %v1205 = vpop.f32.mrb[0].mxu0
        %v1206 = vadd.f32 0.0, %v1205
        %v1207 = vpop.f32.mrb[0].mxu0
        %v1208 = vpop.f32.mrb[0].mxu0
        %v1209 = vadd.f32 0.0, %v1208
        %v1210 = vpop.f32.mrb[0].mxu0
        %1211 = vmatprep.mubr.bf16.mxu0 0
        %1212 = vmatmul.mubr.bf16.gmra.mrb[0].mxu0 %v1131
        %v1213 = vpop.f32.mrb[0].mxu0
        %v1214 = vadd.f32 0.0, %v1213
        %v1215 = vpop.f32.mrb[0].mxu0
        %v1216 = vpop.f32.mrb[0].mxu0
        %v1217 = vadd.f32 0.0, %v1216
        %v1218 = vpop.f32.mrb[0].mxu0
        %1219 = vmatprep.mubr.bf16.mxu0 0
        %1220 = vmatmul.mubr.bf16.gmra.mrb[0].mxu0 %v1134
        %v1221 = vpop.f32.mrb[0].mxu0
        %v1222 = vadd.f32 0.0, %v1221
        %v1223 = vpop.f32.mrb[0].mxu0
        %v1224 = vpop.f32.mrb[0].mxu0
        %v1225 = vadd.f32 0.0, %v1224
        %v1226 = vpop.f32.mrb[0].mxu0
        %1227 = vmatprep.mubr.bf16.mxu0 0
        %1228 = vmatmul.mubr.bf16.gmra.mrb[0].mxu0 %v1137
        %v1229 = vpop.f32.mrb[0].mxu0
        %v1230 = vadd.f32 0.0, %v1229
        %v1231 = vpop.f32.mrb[0].mxu0
        %v1232 = vpop.f32.mrb[0].mxu0
        %v1233 = vadd.f32 0.0, %v1232
        %v1234 = vpop.f32.mrb[0].mxu0
        %1235 = vdwg.mxu0
        %v1236 = vadd.f32 %v1058, %v1174
        %v1237 = vadd.f32 %v1059, %v1177
        %v1238 = vadd.f32 %v1060, %v1182
        %v1239 = vadd.f32 %v1061, %v1185
        %v1240 = vadd.f32 %v1062, %v1190
        %v1241 = vadd.f32 %v1063, %v1193
        %v1242 = vadd.f32 %v1064, %v1198
        %v1243 = vadd.f32 %v1065, %v1201
        %v1244 = vadd.f32 %v1066, %v1206
        %v1245 = vadd.f32 %v1067, %v1209
        %v1246 = vadd.f32 %v1068, %v1214
        %v1247 = vadd.f32 %v1069, %v1217
        %v1248 = vadd.f32 %v1070, %v1222
        %v1249 = vadd.f32 %v1071, %v1225
        %v1250 = vadd.f32 %v1072, %v1230
        %v1251 = vadd.f32 %v1073, %v1233
        %s1252 = sadd.s32 %s207, 1
        %s1253 = smul.u32 %s1252, 40
        %s1254 = scalar_lea.vmem %s192, %s1253
        %v1255 = vld [vmem:[%s1254] sm:$0xff]
        %v1256 = vld [vmem:[%s1254 + $0x8] sm:$0xff]
        %v1257 = vld [vmem:[%s1254 + $0x10] sm:$0xff]
        %v1258 = vld [vmem:[%s1254 + $0x18] sm:$0xff]
        %v1259 = vld [vmem:[%s1254 + $0x28] sm:$0xff]
        %v1260 = vld [vmem:[%s1254 + $0x30] sm:$0xff]
        %v1261 = vld [vmem:[%s1254 + $0x38] sm:$0xff]
        %v1262 = vld [vmem:[%s1254 + $0x40] sm:$0xff]
        %v1263 = vld [vmem:[%s1254 + $0x50] sm:$0xff]
        %v1264 = vld [vmem:[%s1254 + $0x58] sm:$0xff]
        %v1265 = vld [vmem:[%s1254 + $0x60] sm:$0xff]
        %v1266 = vld [vmem:[%s1254 + $0x68] sm:$0xff]
        %v1267 = vld [vmem:[%s1254 + $0x78] sm:$0xff]
        %v1268 = vld [vmem:[%s1254 + $0x80] sm:$0xff]
        %v1269 = vld [vmem:[%s1254 + $0x88] sm:$0xff]
        %v1270 = vld [vmem:[%s1254 + $0x90] sm:$0xff]
        %v1271 = vpack.c.bf16 %v1256, %v1255
        %v1272 = vpack.c.bf16 %v1258, %v1257
        %v1273 = vpack.c.bf16 %v1260, %v1259
        %v1274 = vpack.c.bf16 %v1262, %v1261
        %v1275 = vpack.c.bf16 %v1264, %v1263
        %v1276 = vpack.c.bf16 %v1266, %v1265
        %v1277 = vpack.c.bf16 %v1268, %v1267
        %v1278 = vpack.c.bf16 %v1270, %v1269
        %s1279 = scalar_lea.vmem %s1, 96
        %v1280 = vld [vmem:[%s1279] sm:$0xf]
        %v1281 = vld [vmem:[%s1279 + $0x4] sm:$0xf]
        %v1282 = vld [vmem:[%s1279 + $0x8] sm:$0xf]
        %v1283 = vld [vmem:[%s1279 + $0xc] sm:$0xf]
        %v1288 = vunpack.c.l.b16 %v1280
        %v1289 = vunpack.c.l.b16 %v1281
        %v1290 = vunpack.c.l.b16 %v1282
        %v1291 = vunpack.c.l.b16 %v1283
        %v1292 = vpack.c.b16 %v1289, %v1288
        %v1293 = vpack.c.b16 %v1291, %v1290
        %v1297 = vsel %vm281, %v1271, 0
        %v1300 = vsel %vm281, %v1272, 0
        %v1303 = vsel %vm281, %v1273, 0
        %v1306 = vsel %vm281, %v1274, 0
        %v1309 = vsel %vm281, %v1275, 0
        %v1312 = vsel %vm281, %v1276, 0
        %v1315 = vsel %vm281, %v1277, 0
        %v1318 = vsel %vm281, %v1278, 0
        %1320 = vmatprep.subr.bf16.mxu0 0
        %1321 = vmatpush1.bf16.msra.mxu0 %v1292
        %1322 = vmatprep.subr.bf16.mxu0 0
        %1323 = vmatpush1.bf16.msra.mxu0 %v1293
        %1324 = vmatprep.subr.bf16.mxu0 0
        %1325 = vmatpush1.bf16.msra.mxu0 0
        %1326 = vmatprep.subr.bf16.mxu0 0
        %1327 = vmatpush1.bf16.msra.mxu0 0
        %1328 = vmatprep.subr.bf16.mxu0 0
        %1329 = vmatpush1.bf16.msra.mxu0 0
        %1330 = vmatprep.subr.bf16.mxu0 0
        %1331 = vmatpush1.bf16.msra.mxu0 0
        %1332 = vmatprep.subr.bf16.mxu0 0
        %1333 = vmatpush1.bf16.msra.mxu0 0
        %1334 = vmatprep.subr.bf16.mxu0 0
        %1335 = vmatpush1.bf16.msra.mxu0 0
        %1336 = vmatprep.subr.bf16.mxu0 0
        %1337 = vmatpush1.bf16.msra.mxu0 0
        %1338 = vmatprep.subr.bf16.mxu0 0
        %1339 = vmatpush1.bf16.msra.mxu0 0
        %1340 = vmatprep.subr.bf16.mxu0 0
        %1341 = vmatpush1.bf16.msra.mxu0 0
        %1342 = vmatprep.subr.bf16.mxu0 0
        %1343 = vmatpush1.bf16.msra.mxu0 0
        %1344 = vmatprep.subr.bf16.mxu0 0
        %1345 = vmatpush1.bf16.msra.mxu0 0
        %1346 = vmatprep.subr.bf16.mxu0 0
        %1347 = vmatpush1.bf16.msra.mxu0 0
        %1348 = vmatprep.subr.bf16.mxu0 0
        %1349 = vmatpush1.bf16.msra.mxu0 0
        %1350 = vmatprep.subr.bf16.mxu0 0
        %1351 = vmatpush1.bf16.msra.mxu0 0
        %1352 = vmatprep.mubr.bf16.mxu0 0
        %1353 = vmatmul.mubr.bf16.gmra.mrb[0].mxu0 %v1297
        %v1354 = vpop.f32.mrb[0].mxu0
        %v1355 = vadd.f32 0.0, %v1354
        %v1356 = vpop.f32.mrb[0].mxu0
        %v1357 = vpop.f32.mrb[0].mxu0
        %v1358 = vadd.f32 0.0, %v1357
        %v1359 = vpop.f32.mrb[0].mxu0
        %1360 = vmatprep.mubr.bf16.mxu0 0
        %1361 = vmatmul.mubr.bf16.gmra.mrb[0].mxu0 %v1300
        %v1362 = vpop.f32.mrb[0].mxu0
        %v1363 = vadd.f32 0.0, %v1362
        %v1364 = vpop.f32.mrb[0].mxu0
        %v1365 = vpop.f32.mrb[0].mxu0
        %v1366 = vadd.f32 0.0, %v1365
        %v1367 = vpop.f32.mrb[0].mxu0
        %1368 = vmatprep.mubr.bf16.mxu0 0
        %1369 = vmatmul.mubr.bf16.gmra.mrb[0].mxu0 %v1303
        %v1370 = vpop.f32.mrb[0].mxu0
        %v1371 = vadd.f32 0.0, %v1370
        %v1372 = vpop.f32.mrb[0].mxu0
        %v1373 = vpop.f32.mrb[0].mxu0
        %v1374 = vadd.f32 0.0, %v1373
        %v1375 = vpop.f32.mrb[0].mxu0
        %1376 = vmatprep.mubr.bf16.mxu0 0
        %1377 = vmatmul.mubr.bf16.gmra.mrb[0].mxu0 %v1306
        %v1378 = vpop.f32.mrb[0].mxu0
        %v1379 = vadd.f32 0.0, %v1378
        %v1380 = vpop.f32.mrb[0].mxu0
        %v1381 = vpop.f32.mrb[0].mxu0
        %v1382 = vadd.f32 0.0, %v1381
        %v1383 = vpop.f32.mrb[0].mxu0
        %1384 = vmatprep.mubr.bf16.mxu0 0
        %1385 = vmatmul.mubr.bf16.gmra.mrb[0].mxu0 %v1309
        %v1386 = vpop.f32.mrb[0].mxu0
        %v1387 = vadd.f32 0.0, %v1386
        %v1388 = vpop.f32.mrb[0].mxu0
        %v1389 = vpop.f32.mrb[0].mxu0
        %v1390 = vadd.f32 0.0, %v1389
        %v1391 = vpop.f32.mrb[0].mxu0
        %1392 = vmatprep.mubr.bf16.mxu0 0
        %1393 = vmatmul.mubr.bf16.gmra.mrb[0].mxu0 %v1312
        %v1394 = vpop.f32.mrb[0].mxu0
        %v1395 = vadd.f32 0.0, %v1394
        %v1396 = vpop.f32.mrb[0].mxu0
        %v1397 = vpop.f32.mrb[0].mxu0
        %v1398 = vadd.f32 0.0, %v1397
        %v1399 = vpop.f32.mrb[0].mxu0
        %1400 = vmatprep.mubr.bf16.mxu0 0
        %1401 = vmatmul.mubr.bf16.gmra.mrb[0].mxu0 %v1315
        %v1402 = vpop.f32.mrb[0].mxu0
        %v1403 = vadd.f32 0.0, %v1402
        %v1404 = vpop.f32.mrb[0].mxu0
        %v1405 = vpop.f32.mrb[0].mxu0
        %v1406 = vadd.f32 0.0, %v1405
        %v1407 = vpop.f32.mrb[0].mxu0
        %1408 = vmatprep.mubr.bf16.mxu0 0
        %1409 = vmatmul.mubr.bf16.gmra.mrb[0].mxu0 %v1318
        %v1410 = vpop.f32.mrb[0].mxu0
        %v1411 = vadd.f32 0.0, %v1410
        %v1412 = vpop.f32.mrb[0].mxu0
        %v1413 = vpop.f32.mrb[0].mxu0
        %v1414 = vadd.f32 0.0, %v1413
        %v1415 = vpop.f32.mrb[0].mxu0
        %1416 = vdwg.mxu0
        %v1417 = vadd.f32 %v1236, %v1355
        %v1418 = vadd.f32 %v1237, %v1358
        %v1419 = vadd.f32 %v1238, %v1363
        %v1420 = vadd.f32 %v1239, %v1366
        %v1421 = vadd.f32 %v1240, %v1371
        %v1422 = vadd.f32 %v1241, %v1374
        %v1423 = vadd.f32 %v1242, %v1379
        %v1424 = vadd.f32 %v1243, %v1382
        %v1425 = vadd.f32 %v1244, %v1387
        %v1426 = vadd.f32 %v1245, %v1390
        %v1427 = vadd.f32 %v1246, %v1395
        %v1428 = vadd.f32 %v1247, %v1398
        %v1429 = vadd.f32 %v1248, %v1403
        %v1430 = vadd.f32 %v1249, %v1406
        %v1431 = vadd.f32 %v1250, %v1411
        %v1432 = vadd.f32 %v1251, %v1414
        %s1433 = sadd.s32 %s1253, 1320
        %s1434 = scalar_lea.vmem %s192, %s1433
        %v1435 = vld [vmem:[%s1434] sm:$0xff]
        %v1436 = vld [vmem:[%s1434 + $0x8] sm:$0xff]
        %v1437 = vld [vmem:[%s1434 + $0x10] sm:$0xff]
        %v1438 = vld [vmem:[%s1434 + $0x18] sm:$0xff]
        %v1439 = vld [vmem:[%s1434 + $0x28] sm:$0xff]
        %v1440 = vld [vmem:[%s1434 + $0x30] sm:$0xff]
        %v1441 = vld [vmem:[%s1434 + $0x38] sm:$0xff]
        %v1442 = vld [vmem:[%s1434 + $0x40] sm:$0xff]
        %v1443 = vld [vmem:[%s1434 + $0x50] sm:$0xff]
        %v1444 = vld [vmem:[%s1434 + $0x58] sm:$0xff]
        %v1445 = vld [vmem:[%s1434 + $0x60] sm:$0xff]
        %v1446 = vld [vmem:[%s1434 + $0x68] sm:$0xff]
        %v1447 = vld [vmem:[%s1434 + $0x78] sm:$0xff]
        %v1448 = vld [vmem:[%s1434 + $0x80] sm:$0xff]
        %v1449 = vld [vmem:[%s1434 + $0x88] sm:$0xff]
        %v1450 = vld [vmem:[%s1434 + $0x90] sm:$0xff]
        %v1451 = vpack.c.bf16 %v1436, %v1435
        %v1452 = vpack.c.bf16 %v1438, %v1437
        %v1453 = vpack.c.bf16 %v1440, %v1439
        %v1454 = vpack.c.bf16 %v1442, %v1441
        %v1455 = vpack.c.bf16 %v1444, %v1443
        %v1456 = vpack.c.bf16 %v1446, %v1445
        %v1457 = vpack.c.bf16 %v1448, %v1447
        %v1458 = vpack.c.bf16 %v1450, %v1449
        %s1459 = scalar_lea.vmem %s1, 112
        %v1460 = vld [vmem:[%s1459] sm:$0xf]
        %v1461 = vld [vmem:[%s1459 + $0x4] sm:$0xf]
        %v1462 = vld [vmem:[%s1459 + $0x8] sm:$0xf]
        %v1463 = vld [vmem:[%s1459 + $0xc] sm:$0xf]
        %v1468 = vunpack.c.l.b16 %v1460
        %v1469 = vunpack.c.l.b16 %v1461
        %v1470 = vunpack.c.l.b16 %v1462
        %v1471 = vunpack.c.l.b16 %v1463
        %v1472 = vpack.c.b16 %v1469, %v1468
        %v1473 = vpack.c.b16 %v1471, %v1470
        %v1477 = vsel %vm281, %v1451, 0
        %v1480 = vsel %vm281, %v1452, 0
        %v1483 = vsel %vm281, %v1453, 0
        %v1486 = vsel %vm281, %v1454, 0
        %v1489 = vsel %vm281, %v1455, 0
        %v1492 = vsel %vm281, %v1456, 0
        %v1495 = vsel %vm281, %v1457, 0
        %v1498 = vsel %vm281, %v1458, 0
        %1500 = vmatprep.subr.bf16.mxu0 0
        %1501 = vmatpush1.bf16.msra.mxu0 %v1472
        %1502 = vmatprep.subr.bf16.mxu0 0
        %1503 = vmatpush1.bf16.msra.mxu0 %v1473
        %1504 = vmatprep.subr.bf16.mxu0 0
        %1505 = vmatpush1.bf16.msra.mxu0 0
        %1506 = vmatprep.subr.bf16.mxu0 0
        %1507 = vmatpush1.bf16.msra.mxu0 0
        %1508 = vmatprep.subr.bf16.mxu0 0
        %1509 = vmatpush1.bf16.msra.mxu0 0
        %1510 = vmatprep.subr.bf16.mxu0 0
        %1511 = vmatpush1.bf16.msra.mxu0 0
        %1512 = vmatprep.subr.bf16.mxu0 0
        %1513 = vmatpush1.bf16.msra.mxu0 0
        %1514 = vmatprep.subr.bf16.mxu0 0
        %1515 = vmatpush1.bf16.msra.mxu0 0
        %1516 = vmatprep.subr.bf16.mxu0 0
        %1517 = vmatpush1.bf16.msra.mxu0 0
        %1518 = vmatprep.subr.bf16.mxu0 0
        %1519 = vmatpush1.bf16.msra.mxu0 0
        %1520 = vmatprep.subr.bf16.mxu0 0
        %1521 = vmatpush1.bf16.msra.mxu0 0
        %1522 = vmatprep.subr.bf16.mxu0 0
        %1523 = vmatpush1.bf16.msra.mxu0 0
        %1524 = vmatprep.subr.bf16.mxu0 0
        %1525 = vmatpush1.bf16.msra.mxu0 0
        %1526 = vmatprep.subr.bf16.mxu0 0
        %1527 = vmatpush1.bf16.msra.mxu0 0
        %1528 = vmatprep.subr.bf16.mxu0 0
        %1529 = vmatpush1.bf16.msra.mxu0 0
        %1530 = vmatprep.subr.bf16.mxu0 0
        %1531 = vmatpush1.bf16.msra.mxu0 0
        %1532 = vmatprep.mubr.bf16.mxu0 0
        %1533 = vmatmul.mubr.bf16.gmra.mrb[0].mxu0 %v1477
        %v1534 = vpop.f32.mrb[0].mxu0
        %v1535 = vadd.f32 0.0, %v1534
        %v1536 = vpop.f32.mrb[0].mxu0
        %v1537 = vpop.f32.mrb[0].mxu0
        %v1538 = vadd.f32 0.0, %v1537
        %v1539 = vpop.f32.mrb[0].mxu0
        %1540 = vmatprep.mubr.bf16.mxu0 0
        %1541 = vmatmul.mubr.bf16.gmra.mrb[0].mxu0 %v1480
        %v1542 = vpop.f32.mrb[0].mxu0
        %v1543 = vadd.f32 0.0, %v1542
        %v1544 = vpop.f32.mrb[0].mxu0
        %v1545 = vpop.f32.mrb[0].mxu0
        %v1546 = vadd.f32 0.0, %v1545
        %v1547 = vpop.f32.mrb[0].mxu0
        %1548 = vmatprep.mubr.bf16.mxu0 0
        %1549 = vmatmul.mubr.bf16.gmra.mrb[0].mxu0 %v1483
        %v1550 = vpop.f32.mrb[0].mxu0
        %v1551 = vadd.f32 0.0, %v1550
        %v1552 = vpop.f32.mrb[0].mxu0
        %v1553 = vpop.f32.mrb[0].mxu0
        %v1554 = vadd.f32 0.0, %v1553
        %v1555 = vpop.f32.mrb[0].mxu0
        %1556 = vmatprep.mubr.bf16.mxu0 0
        %1557 = vmatmul.mubr.bf16.gmra.mrb[0].mxu0 %v1486
        %v1558 = vpop.f32.mrb[0].mxu0
        %v1559 = vadd.f32 0.0, %v1558
        %v1560 = vpop.f32.mrb[0].mxu0
        %v1561 = vpop.f32.mrb[0].mxu0
        %v1562 = vadd.f32 0.0, %v1561
        %v1563 = vpop.f32.mrb[0].mxu0
        %1564 = vmatprep.mubr.bf16.mxu0 0
        %1565 = vmatmul.mubr.bf16.gmra.mrb[0].mxu0 %v1489
        %v1566 = vpop.f32.mrb[0].mxu0
        %v1567 = vadd.f32 0.0, %v1566
        %v1568 = vpop.f32.mrb[0].mxu0
        %v1569 = vpop.f32.mrb[0].mxu0
        %v1570 = vadd.f32 0.0, %v1569
        %v1571 = vpop.f32.mrb[0].mxu0
        %1572 = vmatprep.mubr.bf16.mxu0 0
        %1573 = vmatmul.mubr.bf16.gmra.mrb[0].mxu0 %v1492
        %v1574 = vpop.f32.mrb[0].mxu0
        %v1575 = vadd.f32 0.0, %v1574
        %v1576 = vpop.f32.mrb[0].mxu0
        %v1577 = vpop.f32.mrb[0].mxu0
        %v1578 = vadd.f32 0.0, %v1577
        %v1579 = vpop.f32.mrb[0].mxu0
        %1580 = vmatprep.mubr.bf16.mxu0 0
        %1581 = vmatmul.mubr.bf16.gmra.mrb[0].mxu0 %v1495
        %v1582 = vpop.f32.mrb[0].mxu0
        %v1583 = vadd.f32 0.0, %v1582
        %v1584 = vpop.f32.mrb[0].mxu0
        %v1585 = vpop.f32.mrb[0].mxu0
        %v1586 = vadd.f32 0.0, %v1585
        %v1587 = vpop.f32.mrb[0].mxu0
        %1588 = vmatprep.mubr.bf16.mxu0 0
        %1589 = vmatmul.mubr.bf16.gmra.mrb[0].mxu0 %v1498
        %v1590 = vpop.f32.mrb[0].mxu0
        %v1591 = vadd.f32 0.0, %v1590
        %v1592 = vpop.f32.mrb[0].mxu0
        %v1593 = vpop.f32.mrb[0].mxu0
        %v1594 = vadd.f32 0.0, %v1593
        %v1595 = vpop.f32.mrb[0].mxu0
        %1596 = vdwg.mxu0
        %v1597 = vadd.f32 %v1417, %v1535
        %v1598 = vadd.f32 %v1418, %v1538
        %v1599 = vadd.f32 %v1419, %v1543
        %v1600 = vadd.f32 %v1420, %v1546
        %v1601 = vadd.f32 %v1421, %v1551
        %v1602 = vadd.f32 %v1422, %v1554
        %v1603 = vadd.f32 %v1423, %v1559
        %v1604 = vadd.f32 %v1424, %v1562
        %v1605 = vadd.f32 %v1425, %v1567
        %v1606 = vadd.f32 %v1426, %v1570
        %v1607 = vadd.f32 %v1427, %v1575
        %v1608 = vadd.f32 %v1428, %v1578
        %v1609 = vadd.f32 %v1429, %v1583
        %v1610 = vadd.f32 %v1430, %v1586
        %v1611 = vadd.f32 %v1431, %v1591
        %v1612 = vadd.f32 %v1432, %v1594
        %v1613 = vld [vmem:[%s1254 + $0x1] sm:$0xff]
        %v1614 = vld [vmem:[%s1254 + $0x9] sm:$0xff]
        %v1615 = vld [vmem:[%s1254 + $0x11] sm:$0xff]
        %v1616 = vld [vmem:[%s1254 + $0x19] sm:$0xff]
        %v1617 = vld [vmem:[%s1254 + $0x29] sm:$0xff]
        %v1618 = vld [vmem:[%s1254 + $0x31] sm:$0xff]
        %v1619 = vld [vmem:[%s1254 + $0x39] sm:$0xff]
        %v1620 = vld [vmem:[%s1254 + $0x41] sm:$0xff]
        %v1621 = vld [vmem:[%s1254 + $0x51] sm:$0xff]
        %v1622 = vld [vmem:[%s1254 + $0x59] sm:$0xff]
        %v1623 = vld [vmem:[%s1254 + $0x61] sm:$0xff]
        %v1624 = vld [vmem:[%s1254 + $0x69] sm:$0xff]
        %v1625 = vld [vmem:[%s1254 + $0x79] sm:$0xff]
        %v1626 = vld [vmem:[%s1254 + $0x81] sm:$0xff]
        %v1627 = vld [vmem:[%s1254 + $0x89] sm:$0xff]
        %v1628 = vld [vmem:[%s1254 + $0x91] sm:$0xff]
        %v1629 = vpack.c.bf16 %v1614, %v1613
        %v1630 = vpack.c.bf16 %v1616, %v1615
        %v1631 = vpack.c.bf16 %v1618, %v1617
        %v1632 = vpack.c.bf16 %v1620, %v1619
        %v1633 = vpack.c.bf16 %v1622, %v1621
        %v1634 = vpack.c.bf16 %v1624, %v1623
        %v1635 = vpack.c.bf16 %v1626, %v1625
        %v1636 = vpack.c.bf16 %v1628, %v1627
        %s1637 = scalar_lea.vmem %s1, 128
        %v1638 = vld [vmem:[%s1637] sm:$0xf]
        %v1639 = vld [vmem:[%s1637 + $0x4] sm:$0xf]
        %v1640 = vld [vmem:[%s1637 + $0x8] sm:$0xf]
        %v1641 = vld [vmem:[%s1637 + $0xc] sm:$0xf]
        %v1646 = vunpack.c.l.b16 %v1638
        %v1647 = vunpack.c.l.b16 %v1639
        %v1648 = vunpack.c.l.b16 %v1640
        %v1649 = vunpack.c.l.b16 %v1641
        %v1650 = vpack.c.b16 %v1647, %v1646
        %v1651 = vpack.c.b16 %v1649, %v1648
        %v1655 = vsel %vm281, %v1629, 0
        %v1658 = vsel %vm281, %v1630, 0
        %v1661 = vsel %vm281, %v1631, 0
        %v1664 = vsel %vm281, %v1632, 0
        %v1667 = vsel %vm281, %v1633, 0
        %v1670 = vsel %vm281, %v1634, 0
        %v1673 = vsel %vm281, %v1635, 0
        %v1676 = vsel %vm281, %v1636, 0
        %1678 = vmatprep.subr.bf16.mxu0 0
        %1679 = vmatpush1.bf16.msra.mxu0 %v1650
        %1680 = vmatprep.subr.bf16.mxu0 0
        %1681 = vmatpush1.bf16.msra.mxu0 %v1651
        %1682 = vmatprep.subr.bf16.mxu0 0
        %1683 = vmatpush1.bf16.msra.mxu0 0
        %1684 = vmatprep.subr.bf16.mxu0 0
        %1685 = vmatpush1.bf16.msra.mxu0 0
        %1686 = vmatprep.subr.bf16.mxu0 0
        %1687 = vmatpush1.bf16.msra.mxu0 0
        %1688 = vmatprep.subr.bf16.mxu0 0
        %1689 = vmatpush1.bf16.msra.mxu0 0
        %1690 = vmatprep.subr.bf16.mxu0 0
        %1691 = vmatpush1.bf16.msra.mxu0 0
        %1692 = vmatprep.subr.bf16.mxu0 0
        %1693 = vmatpush1.bf16.msra.mxu0 0
        %1694 = vmatprep.subr.bf16.mxu0 0
        %1695 = vmatpush1.bf16.msra.mxu0 0
        %1696 = vmatprep.subr.bf16.mxu0 0
        %1697 = vmatpush1.bf16.msra.mxu0 0
        %1698 = vmatprep.subr.bf16.mxu0 0
        %1699 = vmatpush1.bf16.msra.mxu0 0
        %1700 = vmatprep.subr.bf16.mxu0 0
        %1701 = vmatpush1.bf16.msra.mxu0 0
        %1702 = vmatprep.subr.bf16.mxu0 0
        %1703 = vmatpush1.bf16.msra.mxu0 0
        %1704 = vmatprep.subr.bf16.mxu0 0
        %1705 = vmatpush1.bf16.msra.mxu0 0
        %1706 = vmatprep.subr.bf16.mxu0 0
        %1707 = vmatpush1.bf16.msra.mxu0 0
        %1708 = vmatprep.subr.bf16.mxu0 0
        %1709 = vmatpush1.bf16.msra.mxu0 0
        %1710 = vmatprep.mubr.bf16.mxu0 0
        %1711 = vmatmul.mubr.bf16.gmra.mrb[0].mxu0 %v1655
        %v1712 = vpop.f32.mrb[0].mxu0
        %v1713 = vadd.f32 0.0, %v1712
        %v1714 = vpop.f32.mrb[0].mxu0
        %v1715 = vpop.f32.mrb[0].mxu0
        %v1716 = vadd.f32 0.0, %v1715
        %v1717 = vpop.f32.mrb[0].mxu0
        %1718 = vmatprep.mubr.bf16.mxu0 0
        %1719 = vmatmul.mubr.bf16.gmra.mrb[0].mxu0 %v1658
        %v1720 = vpop.f32.mrb[0].mxu0
        %v1721 = vadd.f32 0.0, %v1720
        %v1722 = vpop.f32.mrb[0].mxu0
        %v1723 = vpop.f32.mrb[0].mxu0
        %v1724 = vadd.f32 0.0, %v1723
        %v1725 = vpop.f32.mrb[0].mxu0
        %1726 = vmatprep.mubr.bf16.mxu0 0
        %1727 = vmatmul.mubr.bf16.gmra.mrb[0].mxu0 %v1661
        %v1728 = vpop.f32.mrb[0].mxu0
        %v1729 = vadd.f32 0.0, %v1728
        %v1730 = vpop.f32.mrb[0].mxu0
        %v1731 = vpop.f32.mrb[0].mxu0
        %v1732 = vadd.f32 0.0, %v1731
        %v1733 = vpop.f32.mrb[0].mxu0
        %1734 = vmatprep.mubr.bf16.mxu0 0
        %1735 = vmatmul.mubr.bf16.gmra.mrb[0].mxu0 %v1664
        %v1736 = vpop.f32.mrb[0].mxu0
        %v1737 = vadd.f32 0.0, %v1736
        %v1738 = vpop.f32.mrb[0].mxu0
        %v1739 = vpop.f32.mrb[0].mxu0
        %v1740 = vadd.f32 0.0, %v1739
        %v1741 = vpop.f32.mrb[0].mxu0
        %1742 = vmatprep.mubr.bf16.mxu0 0
        %1743 = vmatmul.mubr.bf16.gmra.mrb[0].mxu0 %v1667
        %v1744 = vpop.f32.mrb[0].mxu0
        %v1745 = vadd.f32 0.0, %v1744
        %v1746 = vpop.f32.mrb[0].mxu0
        %v1747 = vpop.f32.mrb[0].mxu0
        %v1748 = vadd.f32 0.0, %v1747
        %v1749 = vpop.f32.mrb[0].mxu0
        %1750 = vmatprep.mubr.bf16.mxu0 0
        %1751 = vmatmul.mubr.bf16.gmra.mrb[0].mxu0 %v1670
        %v1752 = vpop.f32.mrb[0].mxu0
        %v1753 = vadd.f32 0.0, %v1752
        %v1754 = vpop.f32.mrb[0].mxu0
        %v1755 = vpop.f32.mrb[0].mxu0
        %v1756 = vadd.f32 0.0, %v1755
        %v1757 = vpop.f32.mrb[0].mxu0
        %1758 = vmatprep.mubr.bf16.mxu0 0
        %1759 = vmatmul.mubr.bf16.gmra.mrb[0].mxu0 %v1673
        %v1760 = vpop.f32.mrb[0].mxu0
        %v1761 = vadd.f32 0.0, %v1760
        %v1762 = vpop.f32.mrb[0].mxu0
        %v1763 = vpop.f32.mrb[0].mxu0
        %v1764 = vadd.f32 0.0, %v1763
        %v1765 = vpop.f32.mrb[0].mxu0
        %1766 = vmatprep.mubr.bf16.mxu0 0
        %1767 = vmatmul.mubr.bf16.gmra.mrb[0].mxu0 %v1676
        %v1768 = vpop.f32.mrb[0].mxu0
        %v1769 = vadd.f32 0.0, %v1768
        %v1770 = vpop.f32.mrb[0].mxu0
        %v1771 = vpop.f32.mrb[0].mxu0
        %v1772 = vadd.f32 0.0, %v1771
        %v1773 = vpop.f32.mrb[0].mxu0
        %1774 = vdwg.mxu0
        %v1775 = vadd.f32 %v1597, %v1713
        %v1776 = vadd.f32 %v1598, %v1716
        %v1777 = vadd.f32 %v1599, %v1721
        %v1778 = vadd.f32 %v1600, %v1724
        %v1779 = vadd.f32 %v1601, %v1729
        %v1780 = vadd.f32 %v1602, %v1732
        %v1781 = vadd.f32 %v1603, %v1737
        %v1782 = vadd.f32 %v1604, %v1740
        %v1783 = vadd.f32 %v1605, %v1745
        %v1784 = vadd.f32 %v1606, %v1748
        %v1785 = vadd.f32 %v1607, %v1753
        %v1786 = vadd.f32 %v1608, %v1756
        %v1787 = vadd.f32 %v1609, %v1761
        %v1788 = vadd.f32 %v1610, %v1764
        %v1789 = vadd.f32 %v1611, %v1769
        %v1790 = vadd.f32 %v1612, %v1772
        %v1792 = vlaneseq
        %v1793 = vshrl.u32 %v1792, 7
        %v1794 = vsub.s32 0, %v1793
        %v1795 = vrot.slane %v199, %v1794
        %v1797 = vmul.f32 %v1775, %v1795
        %v1798 = vmul.f32 %v1776, %v1795
        %v1799 = vmul.f32 %v1777, %v1795
        %v1800 = vmul.f32 %v1778, %v1795
        %v1801 = vmul.f32 %v1779, %v1795
        %v1802 = vmul.f32 %v1780, %v1795
        %v1803 = vmul.f32 %v1781, %v1795
        %v1804 = vmul.f32 %v1782, %v1795
        %v1805 = vmul.f32 %v1783, %v1795
        %v1806 = vmul.f32 %v1784, %v1795
        %v1807 = vmul.f32 %v1785, %v1795
        %v1808 = vmul.f32 %v1786, %v1795
        %v1809 = vmul.f32 %v1787, %v1795
        %v1810 = vmul.f32 %v1788, %v1795
        %v1811 = vmul.f32 %v1789, %v1795
        %v1812 = vmul.f32 %v1790, %v1795
        %v1814 = vlaneseq
        %v1815 = vshrl.u32 %v1814, 7
        %v1816 = vsub.s32 0, %v1815
        %v1817 = vrot.slane %v200, %v1816
        %v1819 = vadd.f32 %v1797, %v1817
        %v1820 = vadd.f32 %v1798, %v1817
        %v1821 = vadd.f32 %v1799, %v1817
        %v1822 = vadd.f32 %v1800, %v1817
        %v1823 = vadd.f32 %v1801, %v1817
        %v1824 = vadd.f32 %v1802, %v1817
        %v1825 = vadd.f32 %v1803, %v1817
        %v1826 = vadd.f32 %v1804, %v1817
        %v1827 = vadd.f32 %v1805, %v1817
        %v1828 = vadd.f32 %v1806, %v1817
        %v1829 = vadd.f32 %v1807, %v1817
        %v1830 = vadd.f32 %v1808, %v1817
        %v1831 = vadd.f32 %v1809, %v1817
        %v1832 = vadd.f32 %v1810, %v1817
        %v1833 = vadd.f32 %v1811, %v1817
        %v1834 = vadd.f32 %v1812, %v1817
        %vm1835 = vcmp.gt.f32.partialorder %v1819, 0.0
        %vm1836 = vcmp.gt.f32.partialorder %v1820, 0.0
        %vm1837 = vcmp.gt.f32.partialorder %v1821, 0.0
        %vm1838 = vcmp.gt.f32.partialorder %v1822, 0.0
        %vm1839 = vcmp.gt.f32.partialorder %v1823, 0.0
        %vm1840 = vcmp.gt.f32.partialorder %v1824, 0.0
        %vm1841 = vcmp.gt.f32.partialorder %v1825, 0.0
        %vm1842 = vcmp.gt.f32.partialorder %v1826, 0.0
        %vm1843 = vcmp.gt.f32.partialorder %v1827, 0.0
        %vm1844 = vcmp.gt.f32.partialorder %v1828, 0.0
        %vm1845 = vcmp.gt.f32.partialorder %v1829, 0.0
        %vm1846 = vcmp.gt.f32.partialorder %v1830, 0.0
        %vm1847 = vcmp.gt.f32.partialorder %v1831, 0.0
        %vm1848 = vcmp.gt.f32.partialorder %v1832, 0.0
        %vm1849 = vcmp.gt.f32.partialorder %v1833, 0.0
        %vm1850 = vcmp.gt.f32.partialorder %v1834, 0.0
        %v1851 = vmul.f32 %v1819, 0.2
        %v1852 = vmul.f32 %v1820, 0.2
        %v1853 = vmul.f32 %v1821, 0.2
        %v1854 = vmul.f32 %v1822, 0.2
        %v1855 = vmul.f32 %v1823, 0.2
        %v1856 = vmul.f32 %v1824, 0.2
        %v1857 = vmul.f32 %v1825, 0.2
        %v1858 = vmul.f32 %v1826, 0.2
        %v1859 = vmul.f32 %v1827, 0.2
        %v1860 = vmul.f32 %v1828, 0.2
        %v1861 = vmul.f32 %v1829, 0.2
        %v1862 = vmul.f32 %v1830, 0.2
        %v1863 = vmul.f32 %v1831, 0.2
        %v1864 = vmul.f32 %v1832, 0.2
        %v1865 = vmul.f32 %v1833, 0.2
        %v1866 = vmul.f32 %v1834, 0.2
        %v1867 = vsel %vm1835, %v1819, %v1851
        %v1868 = vsel %vm1836, %v1820, %v1852
        %v1869 = vsel %vm1837, %v1821, %v1853
        %v1870 = vsel %vm1838, %v1822, %v1854
        %v1871 = vsel %vm1839, %v1823, %v1855
        %v1872 = vsel %vm1840, %v1824, %v1856
        %v1873 = vsel %vm1841, %v1825, %v1857
        %v1874 = vsel %vm1842, %v1826, %v1858
        %v1875 = vsel %vm1843, %v1827, %v1859
        %v1876 = vsel %vm1844, %v1828, %v1860
        %v1877 = vsel %vm1845, %v1829, %v1861
        %v1878 = vsel %vm1846, %v1830, %v1862
        %v1879 = vsel %vm1847, %v1831, %v1863
        %v1880 = vsel %vm1848, %v1832, %v1864
        %v1881 = vsel %vm1849, %v1833, %v1865
        %v1882 = vsel %vm1850, %v1834, %v1866
        %s1883 = smul.u32 %s202, 128
        %s1884 = scalar_lea.vmem %s197, %s1883
        %vm1885 = vcmask 523264
        %1886 = vst.msk [vmem:[%s1884] sm:$0xff] %vm1885, %v1867
        %1887 = vst.msk [vmem:[%s1884 + $0x8] sm:$0xff] %vm1885, %v1868
        %1888 = vst.msk [vmem:[%s1884 + $0x10] sm:$0xff] %vm1885, %v1869
        %1889 = vst.msk [vmem:[%s1884 + $0x18] sm:$0xff] %vm1885, %v1870
        %1890 = vst.msk [vmem:[%s1884 + $0x20] sm:$0xff] %vm1885, %v1871
        %1891 = vst.msk [vmem:[%s1884 + $0x28] sm:$0xff] %vm1885, %v1872
        %1892 = vst.msk [vmem:[%s1884 + $0x30] sm:$0xff] %vm1885, %v1873
        %1893 = vst.msk [vmem:[%s1884 + $0x38] sm:$0xff] %vm1885, %v1874
        %1894 = vst.msk [vmem:[%s1884 + $0x40] sm:$0xff] %vm1885, %v1875
        %1895 = vst.msk [vmem:[%s1884 + $0x48] sm:$0xff] %vm1885, %v1876
        %1896 = vst.msk [vmem:[%s1884 + $0x50] sm:$0xff] %vm1885, %v1877
        %1897 = vst.msk [vmem:[%s1884 + $0x58] sm:$0xff] %vm1885, %v1878
        %1898 = vst.msk [vmem:[%s1884 + $0x60] sm:$0xff] %vm1885, %v1879
        %1899 = vst.msk [vmem:[%s1884 + $0x68] sm:$0xff] %vm1885, %v1880
        %1900 = vst.msk [vmem:[%s1884 + $0x70] sm:$0xff] %vm1885, %v1881
        %1901 = vst.msk [vmem:[%s1884 + $0x78] sm:$0xff] %vm1885, %v1882
      $region41: #{discriminator_pallas.6} parent=35 // loop_footer
        %s206 = sadd.s32 1, %s202
      $region42: #{discriminator_pallas.6} parent=35 // loop_footer_branch
        %201 = sbr.rel target = $region38
      $region43: #{discriminator_pallas.6} parent=35 // loop_exit
        _
      %p1902 = scmp.lt.s32.totalorder %s15, 1
      %s1903 = scalar_select %p1902, %s15, 1
      %s1904 = smul.addr %s1903, 128
      %s1905 = smul.addr %s1904, 8
      %s1906 = scalar_lea.vmem %s4, %s1905
      // Predicated region
      $region44: #{discriminator_pallas.6} parent=35 // pred_check
        %p1907 = pneg %p122
      $region45: #{discriminator_pallas.6} parent=35 // pred_check_branch
        %1909 = sbr.rel (%p1907) target = $region47
      $region46: #{discriminator_pallas.6} parent=35 // pred_region
        _
      $region47: #{discriminator_pallas.6} parent=35 // pred_fallthru
        _
    $region36: #{discriminator_pallas.6} parent=5 // pred_fallthru
      _
    %p1910 = scmp.le.s32.totalorder 2, %s10
    // Predicated region
    $region48: #{discriminator_pallas.6} parent=5 // pred_check
      %p1911 = pneg %p1910
    $region49: #{discriminator_pallas.6} parent=5 // pred_check_branch
      %1913 = sbr.rel (%p1911) target = $region51
    $region50: #{discriminator_pallas.6} parent=5 // pred_region
      %s1914 = ssub.s32 %s10, 2
      // Predicated region
      $region52: #{discriminator_pallas.6} parent=50 // pred_check
        %p1915 = pneg %p128
      $region53: #{discriminator_pallas.6} parent=50 // pred_check_branch
        %1917 = sbr.rel (%p1915) target = $region55
      $region54: #{discriminator_pallas.6} parent=50 // pred_region
        %p1918 = scmp.lt.s32.totalorder %s16, 1
        %s1919 = scalar_select %p1918, %s16, 1
        %s1920 = smul.addr %s1919, 128
        %s1921 = smul.addr %s1920, 8
        %s1922 = scalar_lea.vmem %s4, %s1921
      $region55: #{discriminator_pallas.6} parent=50 // pred_fallthru
        _
    $region51: #{discriminator_pallas.6} parent=5 // pred_fallthru
      _
  $region6: #{discriminator_pallas.6} parent=0 // loop_footer
    %s14 = sadd.s32 1, %s10
  $region7: #{discriminator_pallas.6} parent=0 // loop_footer_branch
    %9 = sbr.rel target = $region3
  $region8: #{discriminator_pallas.6} parent=0 // loop_exit
    _

// kernel: discriminator_pallas.7
$region0: #{discriminator_pallas.7}
  #allocation0 [shape = 'u32[]', space=smem, size = 0x4, offset = 0x4, fixed_abs, tag = 'smem constant byte address 0x4 - core index']
  #allocation1 [shape = 'u32[144,128]{1,0:T(1,128)}', space=vmem, size = 0x12000, scoped, tag = 'internal scratch']
  %s0 = inlined_call_operand.vmem [shape: f32[2,2,2,17,17,64], index: 0, kind: input, shape index: {}]
  %s1 = inlined_call_operand.vmem [shape: bf16[9,64,96], index: 1, kind: input, shape index: {}]
  %s2 = inlined_call_operand.vmem [shape: f32[1,96], index: 2, kind: input, shape index: {}]
  %s3 = inlined_call_operand.vmem [shape: f32[1,96], index: 3, kind: input, shape index: {}]
  %s4 = inlined_call_operand.vmem [shape: f32[2,256,96], index: 4, kind: output, shape index: {}]
  %s5 = sld [smem:[#allocation0]]
  $region56: #{discriminator_pallas.7} parent=0
    _
  %s7 = ssub.s32 1, %s5
  %s8 = scalar_select 0, %s7, %s5
  loop: start=0, step=1, limit=4
  $region2: #{discriminator_pallas.7} parent=0 // loop_pre_header
    _
  $region3: #{discriminator_pallas.7} parent=0 // loop_header
    %s10 = sphi 0, %s14
    %p11 = scmp.ge.s32.totalorder %s10, 4
    %s20 = sphi 0, %s22
    %s23 = sphi 0, %s20
    %s24 = sphi 0, %s23
    %s40 = sphi 0, %s24
    %s44 = sphi 0, %s44
    %s46 = sphi 0, %s44
    %s47 = sphi 0, %s46
    %s61 = sphi 0, %s47
    %s65 = sphi 0, %s65
    %s67 = sphi 0, %s65
    %s68 = sphi 0, %s67
    %s82 = sphi 0, %s68
    %s86 = sphi 0, %s86
    %s88 = sphi 0, %s86
    %s89 = sphi 0, %s88
    %s103 = sphi 0, %s89
    %s109 = sphi 0, %s111
    %s112 = sphi 0, %s109
    %s113 = sphi 0, %s112
    %s129 = sphi 0, %s113
  $region4: #{discriminator_pallas.7} parent=0 // loop_header_branch
    %13 = sbr.rel (%p11) target = $region8
  $region5: #{discriminator_pallas.7} parent=0 // loop_body
    %s15 = ssub.s32 %s10, 1
    %s16 = ssub.s32 %s10, 2
    %s17 = sadd.s32 %s10, 1
    %s18 = ssub.s32 %s10, %s17
    %p19 = scmp.eq.s32.totalorder %s18, 0
    %s21 = sadd.s32 %s20, 1
    %s22 = scalar_select %p19, %s20, %s21
    %p25 = pneg %p19
    %p26 = scmp.eq.s32.totalorder %s10, 1
    %p27 = por %p25, %p26
    %p28 = scmp.ne.s32.totalorder %s20, %s23
    %p29 = scmp.eq.s32.totalorder %s10, 0
    %p30 = por %p28, %p29
    %p31 = scmp.ne.s32.totalorder %s20, %s23
    %p32 = scmp.eq.s32.totalorder %s15, 1
    %p33 = por %p31, %p32
    %p34 = scmp.ne.s32.totalorder %s23, %s24
    %p35 = scmp.eq.s32.totalorder %s15, 0
    %p36 = por %p34, %p35
    %p37 = scmp.ne.s32.totalorder %s23, %s24
    %p38 = scmp.eq.s32.totalorder %s16, 1
    %p39 = por %p37, %p38
    %p41 = scmp.ne.s32.totalorder %s24, %s40
    %p42 = scmp.eq.s32.totalorder %s16, 0
    %p43 = por %p41, %p42
    %s45 = sadd.s32 %s44, 1
    %p48 = scmp.eq.s32.totalorder %s10, 1
    %p49 = scmp.ne.s32.totalorder %s44, %s46
    %p50 = scmp.eq.s32.totalorder %s10, 0
    %p51 = por %p49, %p50
    %p52 = scmp.ne.s32.totalorder %s44, %s46
    %p53 = scmp.eq.s32.totalorder %s15, 1
    %p54 = por %p52, %p53
    %p55 = scmp.ne.s32.totalorder %s46, %s47
    %p56 = scmp.eq.s32.totalorder %s15, 0
    %p57 = por %p55, %p56
    %p58 = scmp.ne.s32.totalorder %s46, %s47
    %p59 = scmp.eq.s32.totalorder %s16, 1
    %p60 = por %p58, %p59
    %p62 = scmp.ne.s32.totalorder %s47, %s61
    %p63 = scmp.eq.s32.totalorder %s16, 0
    %p64 = por %p62, %p63
    %s66 = sadd.s32 %s65, 1
    %p69 = scmp.eq.s32.totalorder %s10, 1
    %p70 = scmp.ne.s32.totalorder %s65, %s67
    %p71 = scmp.eq.s32.totalorder %s10, 0
    %p72 = por %p70, %p71
    %p73 = scmp.ne.s32.totalorder %s65, %s67
    %p74 = scmp.eq.s32.totalorder %s15, 1
    %p75 = por %p73, %p74
    %p76 = scmp.ne.s32.totalorder %s67, %s68
    %p77 = scmp.eq.s32.totalorder %s15, 0
    %p78 = por %p76, %p77
    %p79 = scmp.ne.s32.totalorder %s67, %s68
    %p80 = scmp.eq.s32.totalorder %s16, 1
    %p81 = por %p79, %p80
    %p83 = scmp.ne.s32.totalorder %s68, %s82
    %p84 = scmp.eq.s32.totalorder %s16, 0
    %p85 = por %p83, %p84
    %s87 = sadd.s32 %s86, 1
    %p90 = scmp.eq.s32.totalorder %s10, 1
    %p91 = scmp.ne.s32.totalorder %s86, %s88
    %p92 = scmp.eq.s32.totalorder %s10, 0
    %p93 = por %p91, %p92
    %p94 = scmp.ne.s32.totalorder %s86, %s88
    %p95 = scmp.eq.s32.totalorder %s15, 1
    %p96 = por %p94, %p95
    %p97 = scmp.ne.s32.totalorder %s88, %s89
    %p98 = scmp.eq.s32.totalorder %s15, 0
    %p99 = por %p97, %p98
    %p100 = scmp.ne.s32.totalorder %s88, %s89
    %p101 = scmp.eq.s32.totalorder %s16, 1
    %p102 = por %p100, %p101
    %p104 = scmp.ne.s32.totalorder %s89, %s103
    %p105 = scmp.eq.s32.totalorder %s16, 0
    %p106 = por %p104, %p105
    %s107 = ssub.s32 %s10, %s17
    %p108 = scmp.eq.s32.totalorder %s107, 0
    %s110 = sadd.s32 %s109, 1
    %s111 = scalar_select %p108, %s109, %s110
    %p114 = pneg %p108
    %p115 = scmp.eq.s32.totalorder %s10, 1
    %p116 = por %p114, %p115
    %p117 = scmp.ne.s32.totalorder %s109, %s112
    %p118 = scmp.eq.s32.totalorder %s10, 0
    %p119 = por %p117, %p118
    %p120 = scmp.ne.s32.totalorder %s109, %s112
    %p121 = scmp.eq.s32.totalorder %s15, 1
    %p122 = por %p120, %p121
    %p123 = scmp.ne.s32.totalorder %s112, %s113
    %p124 = scmp.eq.s32.totalorder %s15, 0
    %p125 = por %p123, %p124
    %p126 = scmp.ne.s32.totalorder %s112, %s113
    %p127 = scmp.eq.s32.totalorder %s16, 1
    %p128 = por %p126, %p127
    %p130 = scmp.ne.s32.totalorder %s113, %s129
    %p131 = scmp.eq.s32.totalorder %s16, 0
    %p132 = por %p130, %p131
    %p133 = scmp.le.s32.totalorder 1, %s10
    %p134 = scmp.lt.s32.totalorder %s10, 3
    %p135 = pnand %p133, %p134
    %p136 = pneg %p135
    // Predicated region
    $region9: #{discriminator_pallas.7} parent=5 // pred_check
      _
    $region10: #{discriminator_pallas.7} parent=5 // pred_check_branch
      %138 = sbr.rel (%p135) target = $region12
    $region11: #{discriminator_pallas.7} parent=5 // pred_region
      %s139 = ssub.s32 %s10, 1
      // Predicated region
      $region13: #{discriminator_pallas.7} parent=11 // pred_check
        %p140 = pneg %p57
      $region14: #{discriminator_pallas.7} parent=11 // pred_check_branch
        %142 = sbr.rel (%p140) target = $region16
      $region15: #{discriminator_pallas.7} parent=11 // pred_region
        _
      $region16: #{discriminator_pallas.7} parent=11 // pred_fallthru
        _
      // Predicated region
      $region17: #{discriminator_pallas.7} parent=11 // pred_check
        %p143 = pneg %p78
      $region18: #{discriminator_pallas.7} parent=11 // pred_check_branch
        %145 = sbr.rel (%p143) target = $region20
      $region19: #{discriminator_pallas.7} parent=11 // pred_region
        _
      $region20: #{discriminator_pallas.7} parent=11 // pred_fallthru
        _
      // Predicated region
      $region21: #{discriminator_pallas.7} parent=11 // pred_check
        %p146 = pneg %p99
      $region22: #{discriminator_pallas.7} parent=11 // pred_check_branch
        %148 = sbr.rel (%p146) target = $region24
      $region23: #{discriminator_pallas.7} parent=11 // pred_region
        _
      $region24: #{discriminator_pallas.7} parent=11 // pred_fallthru
        _
    $region12: #{discriminator_pallas.7} parent=5 // pred_fallthru
      _
    %p149 = scmp.lt.s32.totalorder %s10, 2
    // Predicated region
    $region25: #{discriminator_pallas.7} parent=5 // pred_check
      %p150 = pneg %p149
    $region26: #{discriminator_pallas.7} parent=5 // pred_check_branch
      %152 = sbr.rel (%p150) target = $region28
    $region27: #{discriminator_pallas.7} parent=5 // pred_region
      // Predicated region
      $region29: #{discriminator_pallas.7} parent=27 // pred_check
        %p153 = pneg %p30
      $region30: #{discriminator_pallas.7} parent=27 // pred_check_branch
        %155 = sbr.rel (%p153) target = $region32
      $region31: #{discriminator_pallas.7} parent=27 // pred_region
        %p156 = scmp.lt.s32.totalorder %s10, 1
        %s157 = scalar_select %p156, %s10, 1
        %s158 = smul.addr %s157, 204
        %s159 = smul.addr %s158, 8
        %s160 = scalar_lea.vmem %s0, %s159
      $region32: #{discriminator_pallas.7} parent=27 // pred_fallthru
        _
    $region28: #{discriminator_pallas.7} parent=5 // pred_fallthru
      _
    %p161 = scmp.le.s32.totalorder 1, %s10
    %p162 = scmp.lt.s32.totalorder %s10, 3
    %p163 = pnand %p161, %p162
    %p164 = pneg %p163
    // Predicated region
    $region33: #{discriminator_pallas.7} parent=5 // pred_check
      _
    $region34: #{discriminator_pallas.7} parent=5 // pred_check_branch
      %166 = sbr.rel (%p163) target = $region36
    $region35: #{discriminator_pallas.7} parent=5 // pred_region
      %s167 = ssub.s32 %s10, 1
      %p168 = scmp.lt.s32.totalorder %s15, 1
      %s169 = scalar_select %p168, %s15, 1
      %s170 = smul.addr %s169, 204
      %s171 = smul.addr %s170, 8
      %s172 = scalar_lea.vmem %s0, %s171
      %p173 = pneg %p36
      %p174 = pneg %p33
      %p175 = pneg %p57
      %p176 = pneg %p54
      %p177 = pneg %p78
      %p178 = pneg %p75
      %p179 = pneg %p99
      %p180 = pneg %p96
      %p181 = pneg %p125
      %p182 = pneg %p122
      %p183 = scmp.lt.s32.totalorder %s15, 1
      %s184 = scalar_select %p183, %s15, 1
      %s185 = smul.addr %s184, 32
      %s186 = smul.addr %s185, 8
      %s187 = scalar_lea.vmem %s4, %s186
      %p188 = scmp.lt.s32.totalorder %s15, 1
      %s189 = scalar_select %p188, %s15, 1
      %s190 = smul.addr %s189, 204
      %s191 = smul.addr %s190, 8
      %s192 = scalar_lea.vmem %s0, %s191
      %p193 = scmp.lt.s32.totalorder %s15, 1
      %s194 = scalar_select %p193, %s15, 1
      %s195 = smul.addr %s194, 32
      %s196 = smul.addr %s195, 8
      %s197 = scalar_lea.vmem %s4, %s196
      %v199 = vld [vmem:[%s2] sm:$0x1]
      %v200 = vld [vmem:[%s3] sm:$0x1]
      loop: start=0, step=1, limit=2
      $region37: #{discriminator_pallas.7} parent=35 // loop_pre_header
        _
      $region38: #{discriminator_pallas.7} parent=35 // loop_header
        %s202 = sphi 0, %s206
        %p203 = scmp.ge.s32.totalorder %s202, 2
      $region39: #{discriminator_pallas.7} parent=35 // loop_header_branch
        %205 = sbr.rel (%p203) target = $region43
      $region40: #{discriminator_pallas.7} parent=35 // loop_body
        %s207 = smul.u32 %s202, 8
        %s208 = smul.u32 %s207, 24
        %s209 = scalar_lea.vmem %s192, %s208
        %v210 = vld [vmem:[%s209] sm:$0xff]
        %v211 = vld [vmem:[%s209 + $0x8] sm:$0xff]
        %v212 = vld [vmem:[%s209 + $0x18] sm:$0xff]
        %v213 = vld [vmem:[%s209 + $0x20] sm:$0xff]
        %v214 = vld [vmem:[%s209 + $0x30] sm:$0xff]
        %v215 = vld [vmem:[%s209 + $0x38] sm:$0xff]
        %v216 = vld [vmem:[%s209 + $0x48] sm:$0xff]
        %v217 = vld [vmem:[%s209 + $0x50] sm:$0xff]
        %v218 = vld [vmem:[%s209 + $0x60] sm:$0xff]
        %v219 = vld [vmem:[%s209 + $0x68] sm:$0xff]
        %v220 = vld [vmem:[%s209 + $0x78] sm:$0xff]
        %v221 = vld [vmem:[%s209 + $0x80] sm:$0xff]
        %v222 = vld [vmem:[%s209 + $0x90] sm:$0xff]
        %v223 = vld [vmem:[%s209 + $0x98] sm:$0xff]
        %v224 = vld [vmem:[%s209 + $0xa8] sm:$0xff]
        %v225 = vld [vmem:[%s209 + $0xb0] sm:$0xff]
        %v226 = vpack.c.bf16 %v211, %v210
        %v227 = vpack.c.bf16 %v213, %v212
        %v228 = vpack.c.bf16 %v215, %v214
        %v229 = vpack.c.bf16 %v217, %v216
        %v230 = vpack.c.bf16 %v219, %v218
        %v231 = vpack.c.bf16 %v221, %v220
        %v232 = vpack.c.bf16 %v223, %v222
        %v233 = vpack.c.bf16 %v225, %v224
        %v234 = vld [vmem:[%s1] sm:$0xf]
        %v235 = vld [vmem:[%s1 + $0x4] sm:$0xf]
        %v236 = vld [vmem:[%s1 + $0x8] sm:$0xf]
        %v237 = vld [vmem:[%s1 + $0xc] sm:$0xf]
        %v238 = vld [vmem:[%s1 + $0x10] sm:$0xf]
        %v239 = vld [vmem:[%s1 + $0x14] sm:$0xf]
        %v240 = vld [vmem:[%s1 + $0x18] sm:$0xf]
        %v241 = vld [vmem:[%s1 + $0x1c] sm:$0xf]
        %s242 = sadd.s32 %s208, 408
        %s243 = scalar_lea.vmem %s192, %s242
        %v244 = vld [vmem:[%s243] sm:$0xff]
        %v245 = vld [vmem:[%s243 + $0x8] sm:$0xff]
        %v246 = vld [vmem:[%s243 + $0x18] sm:$0xff]
        %v247 = vld [vmem:[%s243 + $0x20] sm:$0xff]
        %v248 = vld [vmem:[%s243 + $0x30] sm:$0xff]
        %v249 = vld [vmem:[%s243 + $0x38] sm:$0xff]
        %v250 = vld [vmem:[%s243 + $0x48] sm:$0xff]
        %v251 = vld [vmem:[%s243 + $0x50] sm:$0xff]
        %v252 = vld [vmem:[%s243 + $0x60] sm:$0xff]
        %v253 = vld [vmem:[%s243 + $0x68] sm:$0xff]
        %v254 = vld [vmem:[%s243 + $0x78] sm:$0xff]
        %v255 = vld [vmem:[%s243 + $0x80] sm:$0xff]
        %v256 = vld [vmem:[%s243 + $0x90] sm:$0xff]
        %v257 = vld [vmem:[%s243 + $0x98] sm:$0xff]
        %v258 = vld [vmem:[%s243 + $0xa8] sm:$0xff]
        %v259 = vld [vmem:[%s243 + $0xb0] sm:$0xff]
        %v260 = vpack.c.bf16 %v245, %v244
        %v261 = vpack.c.bf16 %v247, %v246
        %v262 = vpack.c.bf16 %v249, %v248
        %v263 = vpack.c.bf16 %v251, %v250
        %v264 = vpack.c.bf16 %v253, %v252
        %v265 = vpack.c.bf16 %v255, %v254
        %v266 = vpack.c.bf16 %v257, %v256
        %v267 = vpack.c.bf16 %v259, %v258
        %s268 = scalar_lea.vmem %s1, 32
        %v269 = vld [vmem:[%s268] sm:$0xf]
        %v270 = vld [vmem:[%s268 + $0x4] sm:$0xf]
        %v271 = vld [vmem:[%s268 + $0x8] sm:$0xf]
        %v272 = vld [vmem:[%s268 + $0xc] sm:$0xf]
        %v273 = vld [vmem:[%s268 + $0x10] sm:$0xf]
        %v274 = vld [vmem:[%s268 + $0x14] sm:$0xf]
        %v275 = vld [vmem:[%s268 + $0x18] sm:$0xf]
        %v276 = vld [vmem:[%s268 + $0x1c] sm:$0xf]
        %v285 = vunpack.c.l.b16 %v269
        %v286 = vunpack.c.l.b16 %v270
        %v287 = vunpack.c.l.b16 %v271
        %v288 = vunpack.c.l.b16 %v272
        %v289 = vunpack.c.l.b16 %v273
        %v290 = vunpack.c.l.b16 %v274
        %v291 = vunpack.c.l.b16 %v275
        %v292 = vunpack.c.l.b16 %v276
        %v293 = vpack.c.b16 %v286, %v285
        %v294 = vpack.c.b16 %v288, %v287
        %v295 = vpack.c.b16 %v290, %v289
        %v296 = vpack.c.b16 %v292, %v291
        %vm301 = vcmask 523264
        %v303 = vsel %vm301, %v260, 0
        %v306 = vsel %vm301, %v261, 0
        %v309 = vsel %vm301, %v262, 0
        %v312 = vsel %vm301, %v263, 0
        %v315 = vsel %vm301, %v264, 0
        %v318 = vsel %vm301, %v265, 0
        %v321 = vsel %vm301, %v266, 0
        %v324 = vsel %vm301, %v267, 0
        %326 = vmatprep.subr.bf16.mxu0 0
        %327 = vmatpush1.bf16.msra.mxu0 %v293
        %328 = vmatprep.subr.bf16.mxu0 0
        %329 = vmatpush1.bf16.msra.mxu0 %v294
        %330 = vmatprep.subr.bf16.mxu0 0
        %331 = vmatpush1.bf16.msra.mxu0 %v295
        %332 = vmatprep.subr.bf16.mxu0 0
        %333 = vmatpush1.bf16.msra.mxu0 %v296
        %334 = vmatprep.subr.bf16.mxu0 0
        %335 = vmatpush1.bf16.msra.mxu0 0
        %336 = vmatprep.subr.bf16.mxu0 0
        %337 = vmatpush1.bf16.msra.mxu0 0
        %338 = vmatprep.subr.bf16.mxu0 0
        %339 = vmatpush1.bf16.msra.mxu0 0
        %340 = vmatprep.subr.bf16.mxu0 0
        %341 = vmatpush1.bf16.msra.mxu0 0
        %342 = vmatprep.subr.bf16.mxu0 0
        %343 = vmatpush1.bf16.msra.mxu0 0
        %344 = vmatprep.subr.bf16.mxu0 0
        %345 = vmatpush1.bf16.msra.mxu0 0
        %346 = vmatprep.subr.bf16.mxu0 0
        %347 = vmatpush1.bf16.msra.mxu0 0
        %348 = vmatprep.subr.bf16.mxu0 0
        %349 = vmatpush1.bf16.msra.mxu0 0
        %350 = vmatprep.subr.bf16.mxu0 0
        %351 = vmatpush1.bf16.msra.mxu0 0
        %352 = vmatprep.subr.bf16.mxu0 0
        %353 = vmatpush1.bf16.msra.mxu0 0
        %354 = vmatprep.subr.bf16.mxu0 0
        %355 = vmatpush1.bf16.msra.mxu0 0
        %356 = vmatprep.subr.bf16.mxu0 0
        %357 = vmatpush1.bf16.msra.mxu0 0
        %358 = vmatprep.mubr.bf16.mxu0 0
        %359 = vmatmul.mubr.bf16.gmra.mrb[0].mxu0 %v303
        %v360 = vpop.f32.mrb[0].mxu0
        %v361 = vadd.f32 0.0, %v360
        %v362 = vpop.f32.mrb[0].mxu0
        %v363 = vpop.f32.mrb[0].mxu0
        %v364 = vadd.f32 0.0, %v363
        %v365 = vpop.f32.mrb[0].mxu0
        %366 = vmatprep.mubr.bf16.mxu0 0
        %367 = vmatmul.mubr.bf16.gmra.mrb[0].mxu0 %v306
        %v368 = vpop.f32.mrb[0].mxu0
        %v369 = vadd.f32 0.0, %v368
        %v370 = vpop.f32.mrb[0].mxu0
        %v371 = vpop.f32.mrb[0].mxu0
        %v372 = vadd.f32 0.0, %v371
        %v373 = vpop.f32.mrb[0].mxu0
        %374 = vmatprep.mubr.bf16.mxu0 0
        %375 = vmatmul.mubr.bf16.gmra.mrb[0].mxu0 %v309
        %v376 = vpop.f32.mrb[0].mxu0
        %v377 = vadd.f32 0.0, %v376
        %v378 = vpop.f32.mrb[0].mxu0
        %v379 = vpop.f32.mrb[0].mxu0
        %v380 = vadd.f32 0.0, %v379
        %v381 = vpop.f32.mrb[0].mxu0
        %382 = vmatprep.mubr.bf16.mxu0 0
        %383 = vmatmul.mubr.bf16.gmra.mrb[0].mxu0 %v312
        %v384 = vpop.f32.mrb[0].mxu0
        %v385 = vadd.f32 0.0, %v384
        %v386 = vpop.f32.mrb[0].mxu0
        %v387 = vpop.f32.mrb[0].mxu0
        %v388 = vadd.f32 0.0, %v387
        %v389 = vpop.f32.mrb[0].mxu0
        %390 = vmatprep.mubr.bf16.mxu0 0
        %391 = vmatmul.mubr.bf16.gmra.mrb[0].mxu0 %v315
        %v392 = vpop.f32.mrb[0].mxu0
        %v393 = vadd.f32 0.0, %v392
        %v394 = vpop.f32.mrb[0].mxu0
        %v395 = vpop.f32.mrb[0].mxu0
        %v396 = vadd.f32 0.0, %v395
        %v397 = vpop.f32.mrb[0].mxu0
        %398 = vmatprep.mubr.bf16.mxu0 0
        %399 = vmatmul.mubr.bf16.gmra.mrb[0].mxu0 %v318
        %v400 = vpop.f32.mrb[0].mxu0
        %v401 = vadd.f32 0.0, %v400
        %v402 = vpop.f32.mrb[0].mxu0
        %v403 = vpop.f32.mrb[0].mxu0
        %v404 = vadd.f32 0.0, %v403
        %v405 = vpop.f32.mrb[0].mxu0
        %406 = vmatprep.mubr.bf16.mxu0 0
        %407 = vmatmul.mubr.bf16.gmra.mrb[0].mxu0 %v321
        %v408 = vpop.f32.mrb[0].mxu0
        %v409 = vadd.f32 0.0, %v408
        %v410 = vpop.f32.mrb[0].mxu0
        %v411 = vpop.f32.mrb[0].mxu0
        %v412 = vadd.f32 0.0, %v411
        %v413 = vpop.f32.mrb[0].mxu0
        %414 = vmatprep.mubr.bf16.mxu0 0
        %415 = vmatmul.mubr.bf16.gmra.mrb[0].mxu0 %v324
        %v416 = vpop.f32.mrb[0].mxu0
        %v417 = vadd.f32 0.0, %v416
        %v418 = vpop.f32.mrb[0].mxu0
        %v419 = vpop.f32.mrb[0].mxu0
        %v420 = vadd.f32 0.0, %v419
        %v421 = vpop.f32.mrb[0].mxu0
        %422 = vdwg.mxu0
        %v431 = vunpack.c.l.b16 %v234
        %v432 = vunpack.c.l.b16 %v235
        %v433 = vunpack.c.l.b16 %v236
        %v434 = vunpack.c.l.b16 %v237
        %v435 = vunpack.c.l.b16 %v238
        %v436 = vunpack.c.l.b16 %v239
        %v437 = vunpack.c.l.b16 %v240
        %v438 = vunpack.c.l.b16 %v241
        %v439 = vpack.c.b16 %v432, %v431
        %v440 = vpack.c.b16 %v434, %v433
        %v441 = vpack.c.b16 %v436, %v435
        %v442 = vpack.c.b16 %v438, %v437
        %v448 = vsel %vm301, %v226, 0
        %v451 = vsel %vm301, %v227, 0
        %v454 = vsel %vm301, %v228, 0
        %v457 = vsel %vm301, %v229, 0
        %v460 = vsel %vm301, %v230, 0
        %v463 = vsel %vm301, %v231, 0
        %v466 = vsel %vm301, %v232, 0
        %v469 = vsel %vm301, %v233, 0
        %471 = vmatprep.subr.bf16.mxu0 0
        %472 = vmatpush1.bf16.msra.mxu0 %v439
        %473 = vmatprep.subr.bf16.mxu0 0
        %474 = vmatpush1.bf16.msra.mxu0 %v440
        %475 = vmatprep.subr.bf16.mxu0 0
        %476 = vmatpush1.bf16.msra.mxu0 %v441
        %477 = vmatprep.subr.bf16.mxu0 0
        %478 = vmatpush1.bf16.msra.mxu0 %v442
        %479 = vmatprep.subr.bf16.mxu0 0
        %480 = vmatpush1.bf16.msra.mxu0 0
        %481 = vmatprep.subr.bf16.mxu0 0
        %482 = vmatpush1.bf16.msra.mxu0 0
        %483 = vmatprep.subr.bf16.mxu0 0
        %484 = vmatpush1.bf16.msra.mxu0 0
        %485 = vmatprep.subr.bf16.mxu0 0
        %486 = vmatpush1.bf16.msra.mxu0 0
        %487 = vmatprep.subr.bf16.mxu0 0
        %488 = vmatpush1.bf16.msra.mxu0 0
        %489 = vmatprep.subr.bf16.mxu0 0
        %490 = vmatpush1.bf16.msra.mxu0 0
        %491 = vmatprep.subr.bf16.mxu0 0
        %492 = vmatpush1.bf16.msra.mxu0 0
        %493 = vmatprep.subr.bf16.mxu0 0
        %494 = vmatpush1.bf16.msra.mxu0 0
        %495 = vmatprep.subr.bf16.mxu0 0
        %496 = vmatpush1.bf16.msra.mxu0 0
        %497 = vmatprep.subr.bf16.mxu0 0
        %498 = vmatpush1.bf16.msra.mxu0 0
        %499 = vmatprep.subr.bf16.mxu0 0
        %500 = vmatpush1.bf16.msra.mxu0 0
        %501 = vmatprep.subr.bf16.mxu0 0
        %502 = vmatpush1.bf16.msra.mxu0 0
        %503 = vmatprep.mubr.bf16.mxu0 0
        %504 = vmatmul.mubr.bf16.gmra.mrb[0].mxu0 %v448
        %v505 = vpop.f32.mrb[0].mxu0
        %v506 = vadd.f32 %v361, %v505
        %v507 = vpop.f32.mrb[0].mxu0
        %v508 = vpop.f32.mrb[0].mxu0
        %v509 = vadd.f32 %v364, %v508
        %v510 = vpop.f32.mrb[0].mxu0
        %511 = vmatprep.mubr.bf16.mxu0 0
        %512 = vmatmul.mubr.bf16.gmra.mrb[0].mxu0 %v451
        %v513 = vpop.f32.mrb[0].mxu0
        %v514 = vadd.f32 %v369, %v513
        %v515 = vpop.f32.mrb[0].mxu0
        %v516 = vpop.f32.mrb[0].mxu0
        %v517 = vadd.f32 %v372, %v516
        %v518 = vpop.f32.mrb[0].mxu0
        %519 = vmatprep.mubr.bf16.mxu0 0
        %520 = vmatmul.mubr.bf16.gmra.mrb[0].mxu0 %v454
        %v521 = vpop.f32.mrb[0].mxu0
        %v522 = vadd.f32 %v377, %v521
        %v523 = vpop.f32.mrb[0].mxu0
        %v524 = vpop.f32.mrb[0].mxu0
        %v525 = vadd.f32 %v380, %v524
        %v526 = vpop.f32.mrb[0].mxu0
        %527 = vmatprep.mubr.bf16.mxu0 0
        %528 = vmatmul.mubr.bf16.gmra.mrb[0].mxu0 %v457
        %v529 = vpop.f32.mrb[0].mxu0
        %v530 = vadd.f32 %v385, %v529
        %v531 = vpop.f32.mrb[0].mxu0
        %v532 = vpop.f32.mrb[0].mxu0
        %v533 = vadd.f32 %v388, %v532
        %v534 = vpop.f32.mrb[0].mxu0
        %535 = vmatprep.mubr.bf16.mxu0 0
        %536 = vmatmul.mubr.bf16.gmra.mrb[0].mxu0 %v460
        %v537 = vpop.f32.mrb[0].mxu0
        %v538 = vadd.f32 %v393, %v537
        %v539 = vpop.f32.mrb[0].mxu0
        %v540 = vpop.f32.mrb[0].mxu0
        %v541 = vadd.f32 %v396, %v540
        %v542 = vpop.f32.mrb[0].mxu0
        %543 = vmatprep.mubr.bf16.mxu0 0
        %544 = vmatmul.mubr.bf16.gmra.mrb[0].mxu0 %v463
        %v545 = vpop.f32.mrb[0].mxu0
        %v546 = vadd.f32 %v401, %v545
        %v547 = vpop.f32.mrb[0].mxu0
        %v548 = vpop.f32.mrb[0].mxu0
        %v549 = vadd.f32 %v404, %v548
        %v550 = vpop.f32.mrb[0].mxu0
        %551 = vmatprep.mubr.bf16.mxu0 0
        %552 = vmatmul.mubr.bf16.gmra.mrb[0].mxu0 %v466
        %v553 = vpop.f32.mrb[0].mxu0
        %v554 = vadd.f32 %v409, %v553
        %v555 = vpop.f32.mrb[0].mxu0
        %v556 = vpop.f32.mrb[0].mxu0
        %v557 = vadd.f32 %v412, %v556
        %v558 = vpop.f32.mrb[0].mxu0
        %559 = vmatprep.mubr.bf16.mxu0 0
        %560 = vmatmul.mubr.bf16.gmra.mrb[0].mxu0 %v469
        %v561 = vpop.f32.mrb[0].mxu0
        %v562 = vadd.f32 %v417, %v561
        %v563 = vpop.f32.mrb[0].mxu0
        %v564 = vpop.f32.mrb[0].mxu0
        %v565 = vadd.f32 %v420, %v564
        %v566 = vpop.f32.mrb[0].mxu0
        %567 = vdwg.mxu0
        %v568 = vld [vmem:[%s209 + $0x1] sm:$0xff]
        %v569 = vld [vmem:[%s209 + $0x9] sm:$0xff]
        %v570 = vld [vmem:[%s209 + $0x19] sm:$0xff]
        %v571 = vld [vmem:[%s209 + $0x21] sm:$0xff]
        %v572 = vld [vmem:[%s209 + $0x31] sm:$0xff]
        %v573 = vld [vmem:[%s209 + $0x39] sm:$0xff]
        %v574 = vld [vmem:[%s209 + $0x49] sm:$0xff]
        %v575 = vld [vmem:[%s209 + $0x51] sm:$0xff]
        %v576 = vld [vmem:[%s209 + $0x61] sm:$0xff]
        %v577 = vld [vmem:[%s209 + $0x69] sm:$0xff]
        %v578 = vld [vmem:[%s209 + $0x79] sm:$0xff]
        %v579 = vld [vmem:[%s209 + $0x81] sm:$0xff]
        %v580 = vld [vmem:[%s209 + $0x91] sm:$0xff]
        %v581 = vld [vmem:[%s209 + $0x99] sm:$0xff]
        %v582 = vld [vmem:[%s209 + $0xa9] sm:$0xff]
        %v583 = vld [vmem:[%s209 + $0xb1] sm:$0xff]
        %v584 = vpack.c.bf16 %v569, %v568
        %v585 = vpack.c.bf16 %v571, %v570
        %v586 = vpack.c.bf16 %v573, %v572
        %v587 = vpack.c.bf16 %v575, %v574
        %v588 = vpack.c.bf16 %v577, %v576
        %v589 = vpack.c.bf16 %v579, %v578
        %v590 = vpack.c.bf16 %v581, %v580
        %v591 = vpack.c.bf16 %v583, %v582
        %s592 = scalar_lea.vmem %s1, 64
        %v593 = vld [vmem:[%s592] sm:$0xf]
        %v594 = vld [vmem:[%s592 + $0x4] sm:$0xf]
        %v595 = vld [vmem:[%s592 + $0x8] sm:$0xf]
        %v596 = vld [vmem:[%s592 + $0xc] sm:$0xf]
        %v597 = vld [vmem:[%s592 + $0x10] sm:$0xf]
        %v598 = vld [vmem:[%s592 + $0x14] sm:$0xf]
        %v599 = vld [vmem:[%s592 + $0x18] sm:$0xf]
        %v600 = vld [vmem:[%s592 + $0x1c] sm:$0xf]
        %v609 = vunpack.c.l.b16 %v593
        %v610 = vunpack.c.l.b16 %v594
        %v611 = vunpack.c.l.b16 %v595
        %v612 = vunpack.c.l.b16 %v596
        %v613 = vunpack.c.l.b16 %v597
        %v614 = vunpack.c.l.b16 %v598
        %v615 = vunpack.c.l.b16 %v599
        %v616 = vunpack.c.l.b16 %v600
        %v617 = vpack.c.b16 %v610, %v609
        %v618 = vpack.c.b16 %v612, %v611
        %v619 = vpack.c.b16 %v614, %v613
        %v620 = vpack.c.b16 %v616, %v615
        %v626 = vsel %vm301, %v584, 0
        %v629 = vsel %vm301, %v585, 0
        %v632 = vsel %vm301, %v586, 0
        %v635 = vsel %vm301, %v587, 0
        %v638 = vsel %vm301, %v588, 0
        %v641 = vsel %vm301, %v589, 0
        %v644 = vsel %vm301, %v590, 0
        %v647 = vsel %vm301, %v591, 0
        %649 = vmatprep.subr.bf16.mxu0 0
        %650 = vmatpush1.bf16.msra.mxu0 %v617
        %651 = vmatprep.subr.bf16.mxu0 0
        %652 = vmatpush1.bf16.msra.mxu0 %v618
        %653 = vmatprep.subr.bf16.mxu0 0
        %654 = vmatpush1.bf16.msra.mxu0 %v619
        %655 = vmatprep.subr.bf16.mxu0 0
        %656 = vmatpush1.bf16.msra.mxu0 %v620
        %657 = vmatprep.subr.bf16.mxu0 0
        %658 = vmatpush1.bf16.msra.mxu0 0
        %659 = vmatprep.subr.bf16.mxu0 0
        %660 = vmatpush1.bf16.msra.mxu0 0
        %661 = vmatprep.subr.bf16.mxu0 0
        %662 = vmatpush1.bf16.msra.mxu0 0
        %663 = vmatprep.subr.bf16.mxu0 0
        %664 = vmatpush1.bf16.msra.mxu0 0
        %665 = vmatprep.subr.bf16.mxu0 0
        %666 = vmatpush1.bf16.msra.mxu0 0
        %667 = vmatprep.subr.bf16.mxu0 0
        %668 = vmatpush1.bf16.msra.mxu0 0
        %669 = vmatprep.subr.bf16.mxu0 0
        %670 = vmatpush1.bf16.msra.mxu0 0
        %671 = vmatprep.subr.bf16.mxu0 0
        %672 = vmatpush1.bf16.msra.mxu0 0
        %673 = vmatprep.subr.bf16.mxu0 0
        %674 = vmatpush1.bf16.msra.mxu0 0
        %675 = vmatprep.subr.bf16.mxu0 0
        %676 = vmatpush1.bf16.msra.mxu0 0
        %677 = vmatprep.subr.bf16.mxu0 0
        %678 = vmatpush1.bf16.msra.mxu0 0
        %679 = vmatprep.subr.bf16.mxu0 0
        %680 = vmatpush1.bf16.msra.mxu0 0
        %681 = vmatprep.mubr.bf16.mxu0 0
        %682 = vmatmul.mubr.bf16.gmra.mrb[0].mxu0 %v626
        %v683 = vpop.f32.mrb[0].mxu0
        %v684 = vadd.f32 0.0, %v683
        %v685 = vpop.f32.mrb[0].mxu0
        %v686 = vpop.f32.mrb[0].mxu0
        %v687 = vadd.f32 0.0, %v686
        %v688 = vpop.f32.mrb[0].mxu0
        %689 = vmatprep.mubr.bf16.mxu0 0
        %690 = vmatmul.mubr.bf16.gmra.mrb[0].mxu0 %v629
        %v691 = vpop.f32.mrb[0].mxu0
        %v692 = vadd.f32 0.0, %v691
        %v693 = vpop.f32.mrb[0].mxu0
        %v694 = vpop.f32.mrb[0].mxu0
        %v695 = vadd.f32 0.0, %v694
        %v696 = vpop.f32.mrb[0].mxu0
        %697 = vmatprep.mubr.bf16.mxu0 0
        %698 = vmatmul.mubr.bf16.gmra.mrb[0].mxu0 %v632
        %v699 = vpop.f32.mrb[0].mxu0
        %v700 = vadd.f32 0.0, %v699
        %v701 = vpop.f32.mrb[0].mxu0
        %v702 = vpop.f32.mrb[0].mxu0
        %v703 = vadd.f32 0.0, %v702
        %v704 = vpop.f32.mrb[0].mxu0
        %705 = vmatprep.mubr.bf16.mxu0 0
        %706 = vmatmul.mubr.bf16.gmra.mrb[0].mxu0 %v635
        %v707 = vpop.f32.mrb[0].mxu0
        %v708 = vadd.f32 0.0, %v707
        %v709 = vpop.f32.mrb[0].mxu0
        %v710 = vpop.f32.mrb[0].mxu0
        %v711 = vadd.f32 0.0, %v710
        %v712 = vpop.f32.mrb[0].mxu0
        %713 = vmatprep.mubr.bf16.mxu0 0
        %714 = vmatmul.mubr.bf16.gmra.mrb[0].mxu0 %v638
        %v715 = vpop.f32.mrb[0].mxu0
        %v716 = vadd.f32 0.0, %v715
        %v717 = vpop.f32.mrb[0].mxu0
        %v718 = vpop.f32.mrb[0].mxu0
        %v719 = vadd.f32 0.0, %v718
        %v720 = vpop.f32.mrb[0].mxu0
        %721 = vmatprep.mubr.bf16.mxu0 0
        %722 = vmatmul.mubr.bf16.gmra.mrb[0].mxu0 %v641
        %v723 = vpop.f32.mrb[0].mxu0
        %v724 = vadd.f32 0.0, %v723
        %v725 = vpop.f32.mrb[0].mxu0
        %v726 = vpop.f32.mrb[0].mxu0
        %v727 = vadd.f32 0.0, %v726
        %v728 = vpop.f32.mrb[0].mxu0
        %729 = vmatprep.mubr.bf16.mxu0 0
        %730 = vmatmul.mubr.bf16.gmra.mrb[0].mxu0 %v644
        %v731 = vpop.f32.mrb[0].mxu0
        %v732 = vadd.f32 0.0, %v731
        %v733 = vpop.f32.mrb[0].mxu0
        %v734 = vpop.f32.mrb[0].mxu0
        %v735 = vadd.f32 0.0, %v734
        %v736 = vpop.f32.mrb[0].mxu0
        %737 = vmatprep.mubr.bf16.mxu0 0
        %738 = vmatmul.mubr.bf16.gmra.mrb[0].mxu0 %v647
        %v739 = vpop.f32.mrb[0].mxu0
        %v740 = vadd.f32 0.0, %v739
        %v741 = vpop.f32.mrb[0].mxu0
        %v742 = vpop.f32.mrb[0].mxu0
        %v743 = vadd.f32 0.0, %v742
        %v744 = vpop.f32.mrb[0].mxu0
        %745 = vdwg.mxu0
        %v746 = vadd.f32 %v506, %v684
        %v747 = vadd.f32 %v509, %v687
        %v748 = vadd.f32 %v514, %v692
        %v749 = vadd.f32 %v517, %v695
        %v750 = vadd.f32 %v522, %v700
        %v751 = vadd.f32 %v525, %v703
        %v752 = vadd.f32 %v530, %v708
        %v753 = vadd.f32 %v533, %v711
        %v754 = vadd.f32 %v538, %v716
        %v755 = vadd.f32 %v541, %v719
        %v756 = vadd.f32 %v546, %v724
        %v757 = vadd.f32 %v549, %v727
        %v758 = vadd.f32 %v554, %v732
        %v759 = vadd.f32 %v557, %v735
        %v760 = vadd.f32 %v562, %v740
        %v761 = vadd.f32 %v565, %v743
        %s762 = sadd.s32 %s208, 816
        %s763 = scalar_lea.vmem %s192, %s762
        %v764 = vld [vmem:[%s763] sm:$0xff]
        %v765 = vld [vmem:[%s763 + $0x8] sm:$0xff]
        %v766 = vld [vmem:[%s763 + $0x18] sm:$0xff]
        %v767 = vld [vmem:[%s763 + $0x20] sm:$0xff]
        %v768 = vld [vmem:[%s763 + $0x30] sm:$0xff]
        %v769 = vld [vmem:[%s763 + $0x38] sm:$0xff]
        %v770 = vld [vmem:[%s763 + $0x48] sm:$0xff]
        %v771 = vld [vmem:[%s763 + $0x50] sm:$0xff]
        %v772 = vld [vmem:[%s763 + $0x60] sm:$0xff]
        %v773 = vld [vmem:[%s763 + $0x68] sm:$0xff]
        %v774 = vld [vmem:[%s763 + $0x78] sm:$0xff]
        %v775 = vld [vmem:[%s763 + $0x80] sm:$0xff]
        %v776 = vld [vmem:[%s763 + $0x90] sm:$0xff]
        %v777 = vld [vmem:[%s763 + $0x98] sm:$0xff]
        %v778 = vld [vmem:[%s763 + $0xa8] sm:$0xff]
        %v779 = vld [vmem:[%s763 + $0xb0] sm:$0xff]
        %v780 = vpack.c.bf16 %v765, %v764
        %v781 = vpack.c.bf16 %v767, %v766
        %v782 = vpack.c.bf16 %v769, %v768
        %v783 = vpack.c.bf16 %v771, %v770
        %v784 = vpack.c.bf16 %v773, %v772
        %v785 = vpack.c.bf16 %v775, %v774
        %v786 = vpack.c.bf16 %v777, %v776
        %v787 = vpack.c.bf16 %v779, %v778
        %s788 = scalar_lea.vmem %s1, 96
        %v789 = vld [vmem:[%s788] sm:$0xf]
        %v790 = vld [vmem:[%s788 + $0x4] sm:$0xf]
        %v791 = vld [vmem:[%s788 + $0x8] sm:$0xf]
        %v792 = vld [vmem:[%s788 + $0xc] sm:$0xf]
        %v793 = vld [vmem:[%s788 + $0x10] sm:$0xf]
        %v794 = vld [vmem:[%s788 + $0x14] sm:$0xf]
        %v795 = vld [vmem:[%s788 + $0x18] sm:$0xf]
        %v796 = vld [vmem:[%s788 + $0x1c] sm:$0xf]
        %v805 = vunpack.c.l.b16 %v789
        %v806 = vunpack.c.l.b16 %v790
        %v807 = vunpack.c.l.b16 %v791
        %v808 = vunpack.c.l.b16 %v792
        %v809 = vunpack.c.l.b16 %v793
        %v810 = vunpack.c.l.b16 %v794
        %v811 = vunpack.c.l.b16 %v795
        %v812 = vunpack.c.l.b16 %v796
        %v813 = vpack.c.b16 %v806, %v805
        %v814 = vpack.c.b16 %v808, %v807
        %v815 = vpack.c.b16 %v810, %v809
        %v816 = vpack.c.b16 %v812, %v811
        %v822 = vsel %vm301, %v780, 0
        %v825 = vsel %vm301, %v781, 0
        %v828 = vsel %vm301, %v782, 0
        %v831 = vsel %vm301, %v783, 0
        %v834 = vsel %vm301, %v784, 0
        %v837 = vsel %vm301, %v785, 0
        %v840 = vsel %vm301, %v786, 0
        %v843 = vsel %vm301, %v787, 0
        %845 = vmatprep.subr.bf16.mxu0 0
        %846 = vmatpush1.bf16.msra.mxu0 %v813
        %847 = vmatprep.subr.bf16.mxu0 0
        %848 = vmatpush1.bf16.msra.mxu0 %v814
        %849 = vmatprep.subr.bf16.mxu0 0
        %850 = vmatpush1.bf16.msra.mxu0 %v815
        %851 = vmatprep.subr.bf16.mxu0 0
        %852 = vmatpush1.bf16.msra.mxu0 %v816
        %853 = vmatprep.subr.bf16.mxu0 0
        %854 = vmatpush1.bf16.msra.mxu0 0
        %855 = vmatprep.subr.bf16.mxu0 0
        %856 = vmatpush1.bf16.msra.mxu0 0
        %857 = vmatprep.subr.bf16.mxu0 0
        %858 = vmatpush1.bf16.msra.mxu0 0
        %859 = vmatprep.subr.bf16.mxu0 0
        %860 = vmatpush1.bf16.msra.mxu0 0
        %861 = vmatprep.subr.bf16.mxu0 0
        %862 = vmatpush1.bf16.msra.mxu0 0
        %863 = vmatprep.subr.bf16.mxu0 0
        %864 = vmatpush1.bf16.msra.mxu0 0
        %865 = vmatprep.subr.bf16.mxu0 0
        %866 = vmatpush1.bf16.msra.mxu0 0
        %867 = vmatprep.subr.bf16.mxu0 0
        %868 = vmatpush1.bf16.msra.mxu0 0
        %869 = vmatprep.subr.bf16.mxu0 0
        %870 = vmatpush1.bf16.msra.mxu0 0
        %871 = vmatprep.subr.bf16.mxu0 0
        %872 = vmatpush1.bf16.msra.mxu0 0
        %873 = vmatprep.subr.bf16.mxu0 0
        %874 = vmatpush1.bf16.msra.mxu0 0
        %875 = vmatprep.subr.bf16.mxu0 0
        %876 = vmatpush1.bf16.msra.mxu0 0
        %877 = vmatprep.mubr.bf16.mxu0 0
        %878 = vmatmul.mubr.bf16.gmra.mrb[0].mxu0 %v822
        %v879 = vpop.f32.mrb[0].mxu0
        %v880 = vadd.f32 0.0, %v879
        %v881 = vpop.f32.mrb[0].mxu0
        %v882 = vpop.f32.mrb[0].mxu0
        %v883 = vadd.f32 0.0, %v882
        %v884 = vpop.f32.mrb[0].mxu0
        %885 = vmatprep.mubr.bf16.mxu0 0
        %886 = vmatmul.mubr.bf16.gmra.mrb[0].mxu0 %v825
        %v887 = vpop.f32.mrb[0].mxu0
        %v888 = vadd.f32 0.0, %v887
        %v889 = vpop.f32.mrb[0].mxu0
        %v890 = vpop.f32.mrb[0].mxu0
        %v891 = vadd.f32 0.0, %v890
        %v892 = vpop.f32.mrb[0].mxu0
        %893 = vmatprep.mubr.bf16.mxu0 0
        %894 = vmatmul.mubr.bf16.gmra.mrb[0].mxu0 %v828
        %v895 = vpop.f32.mrb[0].mxu0
        %v896 = vadd.f32 0.0, %v895
        %v897 = vpop.f32.mrb[0].mxu0
        %v898 = vpop.f32.mrb[0].mxu0
        %v899 = vadd.f32 0.0, %v898
        %v900 = vpop.f32.mrb[0].mxu0
        %901 = vmatprep.mubr.bf16.mxu0 0
        %902 = vmatmul.mubr.bf16.gmra.mrb[0].mxu0 %v831
        %v903 = vpop.f32.mrb[0].mxu0
        %v904 = vadd.f32 0.0, %v903
        %v905 = vpop.f32.mrb[0].mxu0
        %v906 = vpop.f32.mrb[0].mxu0
        %v907 = vadd.f32 0.0, %v906
        %v908 = vpop.f32.mrb[0].mxu0
        %909 = vmatprep.mubr.bf16.mxu0 0
        %910 = vmatmul.mubr.bf16.gmra.mrb[0].mxu0 %v834
        %v911 = vpop.f32.mrb[0].mxu0
        %v912 = vadd.f32 0.0, %v911
        %v913 = vpop.f32.mrb[0].mxu0
        %v914 = vpop.f32.mrb[0].mxu0
        %v915 = vadd.f32 0.0, %v914
        %v916 = vpop.f32.mrb[0].mxu0
        %917 = vmatprep.mubr.bf16.mxu0 0
        %918 = vmatmul.mubr.bf16.gmra.mrb[0].mxu0 %v837
        %v919 = vpop.f32.mrb[0].mxu0
        %v920 = vadd.f32 0.0, %v919
        %v921 = vpop.f32.mrb[0].mxu0
        %v922 = vpop.f32.mrb[0].mxu0
        %v923 = vadd.f32 0.0, %v922
        %v924 = vpop.f32.mrb[0].mxu0
        %925 = vmatprep.mubr.bf16.mxu0 0
        %926 = vmatmul.mubr.bf16.gmra.mrb[0].mxu0 %v840
        %v927 = vpop.f32.mrb[0].mxu0
        %v928 = vadd.f32 0.0, %v927
        %v929 = vpop.f32.mrb[0].mxu0
        %v930 = vpop.f32.mrb[0].mxu0
        %v931 = vadd.f32 0.0, %v930
        %v932 = vpop.f32.mrb[0].mxu0
        %933 = vmatprep.mubr.bf16.mxu0 0
        %934 = vmatmul.mubr.bf16.gmra.mrb[0].mxu0 %v843
        %v935 = vpop.f32.mrb[0].mxu0
        %v936 = vadd.f32 0.0, %v935
        %v937 = vpop.f32.mrb[0].mxu0
        %v938 = vpop.f32.mrb[0].mxu0
        %v939 = vadd.f32 0.0, %v938
        %v940 = vpop.f32.mrb[0].mxu0
        %941 = vdwg.mxu0
        %v942 = vadd.f32 %v746, %v880
        %v943 = vadd.f32 %v747, %v883
        %v944 = vadd.f32 %v748, %v888
        %v945 = vadd.f32 %v749, %v891
        %v946 = vadd.f32 %v750, %v896
        %v947 = vadd.f32 %v751, %v899
        %v948 = vadd.f32 %v752, %v904
        %v949 = vadd.f32 %v753, %v907
        %v950 = vadd.f32 %v754, %v912
        %v951 = vadd.f32 %v755, %v915
        %v952 = vadd.f32 %v756, %v920
        %v953 = vadd.f32 %v757, %v923
        %v954 = vadd.f32 %v758, %v928
        %v955 = vadd.f32 %v759, %v931
        %v956 = vadd.f32 %v760, %v936
        %v957 = vadd.f32 %v761, %v939
        %s958 = sadd.s32 %s242, 816
        %s959 = scalar_lea.vmem %s192, %s958
        %v960 = vld [vmem:[%s959] sm:$0xff]
        %v961 = vld [vmem:[%s959 + $0x8] sm:$0xff]
        %v962 = vld [vmem:[%s959 + $0x18] sm:$0xff]
        %v963 = vld [vmem:[%s959 + $0x20] sm:$0xff]
        %v964 = vld [vmem:[%s959 + $0x30] sm:$0xff]
        %v965 = vld [vmem:[%s959 + $0x38] sm:$0xff]
        %v966 = vld [vmem:[%s959 + $0x48] sm:$0xff]
        %v967 = vld [vmem:[%s959 + $0x50] sm:$0xff]
        %v968 = vld [vmem:[%s959 + $0x60] sm:$0xff]
        %v969 = vld [vmem:[%s959 + $0x68] sm:$0xff]
        %v970 = vld [vmem:[%s959 + $0x78] sm:$0xff]
        %v971 = vld [vmem:[%s959 + $0x80] sm:$0xff]
        %v972 = vld [vmem:[%s959 + $0x90] sm:$0xff]
        %v973 = vld [vmem:[%s959 + $0x98] sm:$0xff]
        %v974 = vld [vmem:[%s959 + $0xa8] sm:$0xff]
        %v975 = vld [vmem:[%s959 + $0xb0] sm:$0xff]
        %v976 = vpack.c.bf16 %v961, %v960
        %v977 = vpack.c.bf16 %v963, %v962
        %v978 = vpack.c.bf16 %v965, %v964
        %v979 = vpack.c.bf16 %v967, %v966
        %v980 = vpack.c.bf16 %v969, %v968
        %v981 = vpack.c.bf16 %v971, %v970
        %v982 = vpack.c.bf16 %v973, %v972
        %v983 = vpack.c.bf16 %v975, %v974
        %s984 = scalar_lea.vmem %s1, 128
        %v985 = vld [vmem:[%s984] sm:$0xf]
        %v986 = vld [vmem:[%s984 + $0x4] sm:$0xf]
        %v987 = vld [vmem:[%s984 + $0x8] sm:$0xf]
        %v988 = vld [vmem:[%s984 + $0xc] sm:$0xf]
        %v989 = vld [vmem:[%s984 + $0x10] sm:$0xf]
        %v990 = vld [vmem:[%s984 + $0x14] sm:$0xf]
        %v991 = vld [vmem:[%s984 + $0x18] sm:$0xf]
        %v992 = vld [vmem:[%s984 + $0x1c] sm:$0xf]
        %v1001 = vunpack.c.l.b16 %v985
        %v1002 = vunpack.c.l.b16 %v986
        %v1003 = vunpack.c.l.b16 %v987
        %v1004 = vunpack.c.l.b16 %v988
        %v1005 = vunpack.c.l.b16 %v989
        %v1006 = vunpack.c.l.b16 %v990
        %v1007 = vunpack.c.l.b16 %v991
        %v1008 = vunpack.c.l.b16 %v992
        %v1009 = vpack.c.b16 %v1002, %v1001
        %v1010 = vpack.c.b16 %v1004, %v1003
        %v1011 = vpack.c.b16 %v1006, %v1005
        %v1012 = vpack.c.b16 %v1008, %v1007
        %v1018 = vsel %vm301, %v976, 0
        %v1021 = vsel %vm301, %v977, 0
        %v1024 = vsel %vm301, %v978, 0
        %v1027 = vsel %vm301, %v979, 0
        %v1030 = vsel %vm301, %v980, 0
        %v1033 = vsel %vm301, %v981, 0
        %v1036 = vsel %vm301, %v982, 0
        %v1039 = vsel %vm301, %v983, 0
        %1041 = vmatprep.subr.bf16.mxu0 0
        %1042 = vmatpush1.bf16.msra.mxu0 %v1009
        %1043 = vmatprep.subr.bf16.mxu0 0
        %1044 = vmatpush1.bf16.msra.mxu0 %v1010
        %1045 = vmatprep.subr.bf16.mxu0 0
        %1046 = vmatpush1.bf16.msra.mxu0 %v1011
        %1047 = vmatprep.subr.bf16.mxu0 0
        %1048 = vmatpush1.bf16.msra.mxu0 %v1012
        %1049 = vmatprep.subr.bf16.mxu0 0
        %1050 = vmatpush1.bf16.msra.mxu0 0
        %1051 = vmatprep.subr.bf16.mxu0 0
        %1052 = vmatpush1.bf16.msra.mxu0 0
        %1053 = vmatprep.subr.bf16.mxu0 0
        %1054 = vmatpush1.bf16.msra.mxu0 0
        %1055 = vmatprep.subr.bf16.mxu0 0
        %1056 = vmatpush1.bf16.msra.mxu0 0
        %1057 = vmatprep.subr.bf16.mxu0 0
        %1058 = vmatpush1.bf16.msra.mxu0 0
        %1059 = vmatprep.subr.bf16.mxu0 0
        %1060 = vmatpush1.bf16.msra.mxu0 0
        %1061 = vmatprep.subr.bf16.mxu0 0
        %1062 = vmatpush1.bf16.msra.mxu0 0
        %1063 = vmatprep.subr.bf16.mxu0 0
        %1064 = vmatpush1.bf16.msra.mxu0 0
        %1065 = vmatprep.subr.bf16.mxu0 0
        %1066 = vmatpush1.bf16.msra.mxu0 0
        %1067 = vmatprep.subr.bf16.mxu0 0
        %1068 = vmatpush1.bf16.msra.mxu0 0
        %1069 = vmatprep.subr.bf16.mxu0 0
        %1070 = vmatpush1.bf16.msra.mxu0 0
        %1071 = vmatprep.subr.bf16.mxu0 0
        %1072 = vmatpush1.bf16.msra.mxu0 0
        %1073 = vmatprep.mubr.bf16.mxu0 0
        %1074 = vmatmul.mubr.bf16.gmra.mrb[0].mxu0 %v1018
        %v1075 = vpop.f32.mrb[0].mxu0
        %v1076 = vadd.f32 0.0, %v1075
        %v1077 = vpop.f32.mrb[0].mxu0
        %v1078 = vpop.f32.mrb[0].mxu0
        %v1079 = vadd.f32 0.0, %v1078
        %v1080 = vpop.f32.mrb[0].mxu0
        %1081 = vmatprep.mubr.bf16.mxu0 0
        %1082 = vmatmul.mubr.bf16.gmra.mrb[0].mxu0 %v1021
        %v1083 = vpop.f32.mrb[0].mxu0
        %v1084 = vadd.f32 0.0, %v1083
        %v1085 = vpop.f32.mrb[0].mxu0
        %v1086 = vpop.f32.mrb[0].mxu0
        %v1087 = vadd.f32 0.0, %v1086
        %v1088 = vpop.f32.mrb[0].mxu0
        %1089 = vmatprep.mubr.bf16.mxu0 0
        %1090 = vmatmul.mubr.bf16.gmra.mrb[0].mxu0 %v1024
        %v1091 = vpop.f32.mrb[0].mxu0
        %v1092 = vadd.f32 0.0, %v1091
        %v1093 = vpop.f32.mrb[0].mxu0
        %v1094 = vpop.f32.mrb[0].mxu0
        %v1095 = vadd.f32 0.0, %v1094
        %v1096 = vpop.f32.mrb[0].mxu0
        %1097 = vmatprep.mubr.bf16.mxu0 0
        %1098 = vmatmul.mubr.bf16.gmra.mrb[0].mxu0 %v1027
        %v1099 = vpop.f32.mrb[0].mxu0
        %v1100 = vadd.f32 0.0, %v1099
        %v1101 = vpop.f32.mrb[0].mxu0
        %v1102 = vpop.f32.mrb[0].mxu0
        %v1103 = vadd.f32 0.0, %v1102
        %v1104 = vpop.f32.mrb[0].mxu0
        %1105 = vmatprep.mubr.bf16.mxu0 0
        %1106 = vmatmul.mubr.bf16.gmra.mrb[0].mxu0 %v1030
        %v1107 = vpop.f32.mrb[0].mxu0
        %v1108 = vadd.f32 0.0, %v1107
        %v1109 = vpop.f32.mrb[0].mxu0
        %v1110 = vpop.f32.mrb[0].mxu0
        %v1111 = vadd.f32 0.0, %v1110
        %v1112 = vpop.f32.mrb[0].mxu0
        %1113 = vmatprep.mubr.bf16.mxu0 0
        %1114 = vmatmul.mubr.bf16.gmra.mrb[0].mxu0 %v1033
        %v1115 = vpop.f32.mrb[0].mxu0
        %v1116 = vadd.f32 0.0, %v1115
        %v1117 = vpop.f32.mrb[0].mxu0
        %v1118 = vpop.f32.mrb[0].mxu0
        %v1119 = vadd.f32 0.0, %v1118
        %v1120 = vpop.f32.mrb[0].mxu0
        %1121 = vmatprep.mubr.bf16.mxu0 0
        %1122 = vmatmul.mubr.bf16.gmra.mrb[0].mxu0 %v1036
        %v1123 = vpop.f32.mrb[0].mxu0
        %v1124 = vadd.f32 0.0, %v1123
        %v1125 = vpop.f32.mrb[0].mxu0
        %v1126 = vpop.f32.mrb[0].mxu0
        %v1127 = vadd.f32 0.0, %v1126
        %v1128 = vpop.f32.mrb[0].mxu0
        %1129 = vmatprep.mubr.bf16.mxu0 0
        %1130 = vmatmul.mubr.bf16.gmra.mrb[0].mxu0 %v1039
        %v1131 = vpop.f32.mrb[0].mxu0
        %v1132 = vadd.f32 0.0, %v1131
        %v1133 = vpop.f32.mrb[0].mxu0
        %v1134 = vpop.f32.mrb[0].mxu0
        %v1135 = vadd.f32 0.0, %v1134
        %v1136 = vpop.f32.mrb[0].mxu0
        %1137 = vdwg.mxu0
        %v1138 = vadd.f32 %v942, %v1076
        %v1139 = vadd.f32 %v943, %v1079
        %v1140 = vadd.f32 %v944, %v1084
        %v1141 = vadd.f32 %v945, %v1087
        %v1142 = vadd.f32 %v946, %v1092
        %v1143 = vadd.f32 %v947, %v1095
        %v1144 = vadd.f32 %v948, %v1100
        %v1145 = vadd.f32 %v949, %v1103
        %v1146 = vadd.f32 %v950, %v1108
        %v1147 = vadd.f32 %v951, %v1111
        %v1148 = vadd.f32 %v952, %v1116
        %v1149 = vadd.f32 %v953, %v1119
        %v1150 = vadd.f32 %v954, %v1124
        %v1151 = vadd.f32 %v955, %v1127
        %v1152 = vadd.f32 %v956, %v1132
        %v1153 = vadd.f32 %v957, %v1135
        %v1154 = vld [vmem:[%s763 + $0x1] sm:$0xff]
        %v1155 = vld [vmem:[%s763 + $0x9] sm:$0xff]
        %v1156 = vld [vmem:[%s763 + $0x19] sm:$0xff]
        %v1157 = vld [vmem:[%s763 + $0x21] sm:$0xff]
        %v1158 = vld [vmem:[%s763 + $0x31] sm:$0xff]
        %v1159 = vld [vmem:[%s763 + $0x39] sm:$0xff]
        %v1160 = vld [vmem:[%s763 + $0x49] sm:$0xff]
        %v1161 = vld [vmem:[%s763 + $0x51] sm:$0xff]
        %v1162 = vld [vmem:[%s763 + $0x61] sm:$0xff]
        %v1163 = vld [vmem:[%s763 + $0x69] sm:$0xff]
        %v1164 = vld [vmem:[%s763 + $0x79] sm:$0xff]
        %v1165 = vld [vmem:[%s763 + $0x81] sm:$0xff]
        %v1166 = vld [vmem:[%s763 + $0x91] sm:$0xff]
        %v1167 = vld [vmem:[%s763 + $0x99] sm:$0xff]
        %v1168 = vld [vmem:[%s763 + $0xa9] sm:$0xff]
        %v1169 = vld [vmem:[%s763 + $0xb1] sm:$0xff]
        %v1170 = vpack.c.bf16 %v1155, %v1154
        %v1171 = vpack.c.bf16 %v1157, %v1156
        %v1172 = vpack.c.bf16 %v1159, %v1158
        %v1173 = vpack.c.bf16 %v1161, %v1160
        %v1174 = vpack.c.bf16 %v1163, %v1162
        %v1175 = vpack.c.bf16 %v1165, %v1164
        %v1176 = vpack.c.bf16 %v1167, %v1166
        %v1177 = vpack.c.bf16 %v1169, %v1168
        %s1178 = scalar_lea.vmem %s1, 160
        %v1179 = vld [vmem:[%s1178] sm:$0xf]
        %v1180 = vld [vmem:[%s1178 + $0x4] sm:$0xf]
        %v1181 = vld [vmem:[%s1178 + $0x8] sm:$0xf]
        %v1182 = vld [vmem:[%s1178 + $0xc] sm:$0xf]
        %v1183 = vld [vmem:[%s1178 + $0x10] sm:$0xf]
        %v1184 = vld [vmem:[%s1178 + $0x14] sm:$0xf]
        %v1185 = vld [vmem:[%s1178 + $0x18] sm:$0xf]
        %v1186 = vld [vmem:[%s1178 + $0x1c] sm:$0xf]
        %v1195 = vunpack.c.l.b16 %v1179
        %v1196 = vunpack.c.l.b16 %v1180
        %v1197 = vunpack.c.l.b16 %v1181
        %v1198 = vunpack.c.l.b16 %v1182
        %v1199 = vunpack.c.l.b16 %v1183
        %v1200 = vunpack.c.l.b16 %v1184
        %v1201 = vunpack.c.l.b16 %v1185
        %v1202 = vunpack.c.l.b16 %v1186
        %v1203 = vpack.c.b16 %v1196, %v1195
        %v1204 = vpack.c.b16 %v1198, %v1197
        %v1205 = vpack.c.b16 %v1200, %v1199
        %v1206 = vpack.c.b16 %v1202, %v1201
        %v1212 = vsel %vm301, %v1170, 0
        %v1215 = vsel %vm301, %v1171, 0
        %v1218 = vsel %vm301, %v1172, 0
        %v1221 = vsel %vm301, %v1173, 0
        %v1224 = vsel %vm301, %v1174, 0
        %v1227 = vsel %vm301, %v1175, 0
        %v1230 = vsel %vm301, %v1176, 0
        %v1233 = vsel %vm301, %v1177, 0
        %1235 = vmatprep.subr.bf16.mxu0 0
        %1236 = vmatpush1.bf16.msra.mxu0 %v1203
        %1237 = vmatprep.subr.bf16.mxu0 0
        %1238 = vmatpush1.bf16.msra.mxu0 %v1204
        %1239 = vmatprep.subr.bf16.mxu0 0
        %1240 = vmatpush1.bf16.msra.mxu0 %v1205
        %1241 = vmatprep.subr.bf16.mxu0 0
        %1242 = vmatpush1.bf16.msra.mxu0 %v1206
        %1243 = vmatprep.subr.bf16.mxu0 0
        %1244 = vmatpush1.bf16.msra.mxu0 0
        %1245 = vmatprep.subr.bf16.mxu0 0
        %1246 = vmatpush1.bf16.msra.mxu0 0
        %1247 = vmatprep.subr.bf16.mxu0 0
        %1248 = vmatpush1.bf16.msra.mxu0 0
        %1249 = vmatprep.subr.bf16.mxu0 0
        %1250 = vmatpush1.bf16.msra.mxu0 0
        %1251 = vmatprep.subr.bf16.mxu0 0
        %1252 = vmatpush1.bf16.msra.mxu0 0
        %1253 = vmatprep.subr.bf16.mxu0 0
        %1254 = vmatpush1.bf16.msra.mxu0 0
        %1255 = vmatprep.subr.bf16.mxu0 0
        %1256 = vmatpush1.bf16.msra.mxu0 0
        %1257 = vmatprep.subr.bf16.mxu0 0
        %1258 = vmatpush1.bf16.msra.mxu0 0
        %1259 = vmatprep.subr.bf16.mxu0 0
        %1260 = vmatpush1.bf16.msra.mxu0 0
        %1261 = vmatprep.subr.bf16.mxu0 0
        %1262 = vmatpush1.bf16.msra.mxu0 0
        %1263 = vmatprep.subr.bf16.mxu0 0
        %1264 = vmatpush1.bf16.msra.mxu0 0
        %1265 = vmatprep.subr.bf16.mxu0 0
        %1266 = vmatpush1.bf16.msra.mxu0 0
        %1267 = vmatprep.mubr.bf16.mxu0 0
        %1268 = vmatmul.mubr.bf16.gmra.mrb[0].mxu0 %v1212
        %v1269 = vpop.f32.mrb[0].mxu0
        %v1270 = vadd.f32 0.0, %v1269
        %v1271 = vpop.f32.mrb[0].mxu0
        %v1272 = vpop.f32.mrb[0].mxu0
        %v1273 = vadd.f32 0.0, %v1272
        %v1274 = vpop.f32.mrb[0].mxu0
        %1275 = vmatprep.mubr.bf16.mxu0 0
        %1276 = vmatmul.mubr.bf16.gmra.mrb[0].mxu0 %v1215
        %v1277 = vpop.f32.mrb[0].mxu0
        %v1278 = vadd.f32 0.0, %v1277
        %v1279 = vpop.f32.mrb[0].mxu0
        %v1280 = vpop.f32.mrb[0].mxu0
        %v1281 = vadd.f32 0.0, %v1280
        %v1282 = vpop.f32.mrb[0].mxu0
        %1283 = vmatprep.mubr.bf16.mxu0 0
        %1284 = vmatmul.mubr.bf16.gmra.mrb[0].mxu0 %v1218
        %v1285 = vpop.f32.mrb[0].mxu0
        %v1286 = vadd.f32 0.0, %v1285
        %v1287 = vpop.f32.mrb[0].mxu0
        %v1288 = vpop.f32.mrb[0].mxu0
        %v1289 = vadd.f32 0.0, %v1288
        %v1290 = vpop.f32.mrb[0].mxu0
        %1291 = vmatprep.mubr.bf16.mxu0 0
        %1292 = vmatmul.mubr.bf16.gmra.mrb[0].mxu0 %v1221
        %v1293 = vpop.f32.mrb[0].mxu0
        %v1294 = vadd.f32 0.0, %v1293
        %v1295 = vpop.f32.mrb[0].mxu0
        %v1296 = vpop.f32.mrb[0].mxu0
        %v1297 = vadd.f32 0.0, %v1296
        %v1298 = vpop.f32.mrb[0].mxu0
        %1299 = vmatprep.mubr.bf16.mxu0 0
        %1300 = vmatmul.mubr.bf16.gmra.mrb[0].mxu0 %v1224
        %v1301 = vpop.f32.mrb[0].mxu0
        %v1302 = vadd.f32 0.0, %v1301
        %v1303 = vpop.f32.mrb[0].mxu0
        %v1304 = vpop.f32.mrb[0].mxu0
        %v1305 = vadd.f32 0.0, %v1304
        %v1306 = vpop.f32.mrb[0].mxu0
        %1307 = vmatprep.mubr.bf16.mxu0 0
        %1308 = vmatmul.mubr.bf16.gmra.mrb[0].mxu0 %v1227
        %v1309 = vpop.f32.mrb[0].mxu0
        %v1310 = vadd.f32 0.0, %v1309
        %v1311 = vpop.f32.mrb[0].mxu0
        %v1312 = vpop.f32.mrb[0].mxu0
        %v1313 = vadd.f32 0.0, %v1312
        %v1314 = vpop.f32.mrb[0].mxu0
        %1315 = vmatprep.mubr.bf16.mxu0 0
        %1316 = vmatmul.mubr.bf16.gmra.mrb[0].mxu0 %v1230
        %v1317 = vpop.f32.mrb[0].mxu0
        %v1318 = vadd.f32 0.0, %v1317
        %v1319 = vpop.f32.mrb[0].mxu0
        %v1320 = vpop.f32.mrb[0].mxu0
        %v1321 = vadd.f32 0.0, %v1320
        %v1322 = vpop.f32.mrb[0].mxu0
        %1323 = vmatprep.mubr.bf16.mxu0 0
        %1324 = vmatmul.mubr.bf16.gmra.mrb[0].mxu0 %v1233
        %v1325 = vpop.f32.mrb[0].mxu0
        %v1326 = vadd.f32 0.0, %v1325
        %v1327 = vpop.f32.mrb[0].mxu0
        %v1328 = vpop.f32.mrb[0].mxu0
        %v1329 = vadd.f32 0.0, %v1328
        %v1330 = vpop.f32.mrb[0].mxu0
        %1331 = vdwg.mxu0
        %v1332 = vadd.f32 %v1138, %v1270
        %v1333 = vadd.f32 %v1139, %v1273
        %v1334 = vadd.f32 %v1140, %v1278
        %v1335 = vadd.f32 %v1141, %v1281
        %v1336 = vadd.f32 %v1142, %v1286
        %v1337 = vadd.f32 %v1143, %v1289
        %v1338 = vadd.f32 %v1144, %v1294
        %v1339 = vadd.f32 %v1145, %v1297
        %v1340 = vadd.f32 %v1146, %v1302
        %v1341 = vadd.f32 %v1147, %v1305
        %v1342 = vadd.f32 %v1148, %v1310
        %v1343 = vadd.f32 %v1149, %v1313
        %v1344 = vadd.f32 %v1150, %v1318
        %v1345 = vadd.f32 %v1151, %v1321
        %v1346 = vadd.f32 %v1152, %v1326
        %v1347 = vadd.f32 %v1153, %v1329
        %s1348 = sadd.s32 %s207, 1
        %s1349 = smul.u32 %s1348, 24
        %s1350 = scalar_lea.vmem %s192, %s1349
        %v1351 = vld [vmem:[%s1350] sm:$0xff]
        %v1352 = vld [vmem:[%s1350 + $0x8] sm:$0xff]
        %v1353 = vld [vmem:[%s1350 + $0x18] sm:$0xff]
        %v1354 = vld [vmem:[%s1350 + $0x20] sm:$0xff]
        %v1355 = vld [vmem:[%s1350 + $0x30] sm:$0xff]
        %v1356 = vld [vmem:[%s1350 + $0x38] sm:$0xff]
        %v1357 = vld [vmem:[%s1350 + $0x48] sm:$0xff]
        %v1358 = vld [vmem:[%s1350 + $0x50] sm:$0xff]
        %v1359 = vld [vmem:[%s1350 + $0x60] sm:$0xff]
        %v1360 = vld [vmem:[%s1350 + $0x68] sm:$0xff]
        %v1361 = vld [vmem:[%s1350 + $0x78] sm:$0xff]
        %v1362 = vld [vmem:[%s1350 + $0x80] sm:$0xff]
        %v1363 = vld [vmem:[%s1350 + $0x90] sm:$0xff]
        %v1364 = vld [vmem:[%s1350 + $0x98] sm:$0xff]
        %v1365 = vld [vmem:[%s1350 + $0xa8] sm:$0xff]
        %v1366 = vld [vmem:[%s1350 + $0xb0] sm:$0xff]
        %v1367 = vpack.c.bf16 %v1352, %v1351
        %v1368 = vpack.c.bf16 %v1354, %v1353
        %v1369 = vpack.c.bf16 %v1356, %v1355
        %v1370 = vpack.c.bf16 %v1358, %v1357
        %v1371 = vpack.c.bf16 %v1360, %v1359
        %v1372 = vpack.c.bf16 %v1362, %v1361
        %v1373 = vpack.c.bf16 %v1364, %v1363
        %v1374 = vpack.c.bf16 %v1366, %v1365
        %s1375 = scalar_lea.vmem %s1, 192
        %v1376 = vld [vmem:[%s1375] sm:$0xf]
        %v1377 = vld [vmem:[%s1375 + $0x4] sm:$0xf]
        %v1378 = vld [vmem:[%s1375 + $0x8] sm:$0xf]
        %v1379 = vld [vmem:[%s1375 + $0xc] sm:$0xf]
        %v1380 = vld [vmem:[%s1375 + $0x10] sm:$0xf]
        %v1381 = vld [vmem:[%s1375 + $0x14] sm:$0xf]
        %v1382 = vld [vmem:[%s1375 + $0x18] sm:$0xf]
        %v1383 = vld [vmem:[%s1375 + $0x1c] sm:$0xf]
        %v1392 = vunpack.c.l.b16 %v1376
        %v1393 = vunpack.c.l.b16 %v1377
        %v1394 = vunpack.c.l.b16 %v1378
        %v1395 = vunpack.c.l.b16 %v1379
        %v1396 = vunpack.c.l.b16 %v1380
        %v1397 = vunpack.c.l.b16 %v1381
        %v1398 = vunpack.c.l.b16 %v1382
        %v1399 = vunpack.c.l.b16 %v1383
        %v1400 = vpack.c.b16 %v1393, %v1392
        %v1401 = vpack.c.b16 %v1395, %v1394
        %v1402 = vpack.c.b16 %v1397, %v1396
        %v1403 = vpack.c.b16 %v1399, %v1398
        %v1409 = vsel %vm301, %v1367, 0
        %v1412 = vsel %vm301, %v1368, 0
        %v1415 = vsel %vm301, %v1369, 0
        %v1418 = vsel %vm301, %v1370, 0
        %v1421 = vsel %vm301, %v1371, 0
        %v1424 = vsel %vm301, %v1372, 0
        %v1427 = vsel %vm301, %v1373, 0
        %v1430 = vsel %vm301, %v1374, 0
        %1432 = vmatprep.subr.bf16.mxu0 0
        %1433 = vmatpush1.bf16.msra.mxu0 %v1400
        %1434 = vmatprep.subr.bf16.mxu0 0
        %1435 = vmatpush1.bf16.msra.mxu0 %v1401
        %1436 = vmatprep.subr.bf16.mxu0 0
        %1437 = vmatpush1.bf16.msra.mxu0 %v1402
        %1438 = vmatprep.subr.bf16.mxu0 0
        %1439 = vmatpush1.bf16.msra.mxu0 %v1403
        %1440 = vmatprep.subr.bf16.mxu0 0
        %1441 = vmatpush1.bf16.msra.mxu0 0
        %1442 = vmatprep.subr.bf16.mxu0 0
        %1443 = vmatpush1.bf16.msra.mxu0 0
        %1444 = vmatprep.subr.bf16.mxu0 0
        %1445 = vmatpush1.bf16.msra.mxu0 0
        %1446 = vmatprep.subr.bf16.mxu0 0
        %1447 = vmatpush1.bf16.msra.mxu0 0
        %1448 = vmatprep.subr.bf16.mxu0 0
        %1449 = vmatpush1.bf16.msra.mxu0 0
        %1450 = vmatprep.subr.bf16.mxu0 0
        %1451 = vmatpush1.bf16.msra.mxu0 0
        %1452 = vmatprep.subr.bf16.mxu0 0
        %1453 = vmatpush1.bf16.msra.mxu0 0
        %1454 = vmatprep.subr.bf16.mxu0 0
        %1455 = vmatpush1.bf16.msra.mxu0 0
        %1456 = vmatprep.subr.bf16.mxu0 0
        %1457 = vmatpush1.bf16.msra.mxu0 0
        %1458 = vmatprep.subr.bf16.mxu0 0
        %1459 = vmatpush1.bf16.msra.mxu0 0
        %1460 = vmatprep.subr.bf16.mxu0 0
        %1461 = vmatpush1.bf16.msra.mxu0 0
        %1462 = vmatprep.subr.bf16.mxu0 0
        %1463 = vmatpush1.bf16.msra.mxu0 0
        %1464 = vmatprep.mubr.bf16.mxu0 0
        %1465 = vmatmul.mubr.bf16.gmra.mrb[0].mxu0 %v1409
        %v1466 = vpop.f32.mrb[0].mxu0
        %v1467 = vadd.f32 0.0, %v1466
        %v1468 = vpop.f32.mrb[0].mxu0
        %v1469 = vpop.f32.mrb[0].mxu0
        %v1470 = vadd.f32 0.0, %v1469
        %v1471 = vpop.f32.mrb[0].mxu0
        %1472 = vmatprep.mubr.bf16.mxu0 0
        %1473 = vmatmul.mubr.bf16.gmra.mrb[0].mxu0 %v1412
        %v1474 = vpop.f32.mrb[0].mxu0
        %v1475 = vadd.f32 0.0, %v1474
        %v1476 = vpop.f32.mrb[0].mxu0
        %v1477 = vpop.f32.mrb[0].mxu0
        %v1478 = vadd.f32 0.0, %v1477
        %v1479 = vpop.f32.mrb[0].mxu0
        %1480 = vmatprep.mubr.bf16.mxu0 0
        %1481 = vmatmul.mubr.bf16.gmra.mrb[0].mxu0 %v1415
        %v1482 = vpop.f32.mrb[0].mxu0
        %v1483 = vadd.f32 0.0, %v1482
        %v1484 = vpop.f32.mrb[0].mxu0
        %v1485 = vpop.f32.mrb[0].mxu0
        %v1486 = vadd.f32 0.0, %v1485
        %v1487 = vpop.f32.mrb[0].mxu0
        %1488 = vmatprep.mubr.bf16.mxu0 0
        %1489 = vmatmul.mubr.bf16.gmra.mrb[0].mxu0 %v1418
        %v1490 = vpop.f32.mrb[0].mxu0
        %v1491 = vadd.f32 0.0, %v1490
        %v1492 = vpop.f32.mrb[0].mxu0
        %v1493 = vpop.f32.mrb[0].mxu0
        %v1494 = vadd.f32 0.0, %v1493
        %v1495 = vpop.f32.mrb[0].mxu0
        %1496 = vmatprep.mubr.bf16.mxu0 0
        %1497 = vmatmul.mubr.bf16.gmra.mrb[0].mxu0 %v1421
        %v1498 = vpop.f32.mrb[0].mxu0
        %v1499 = vadd.f32 0.0, %v1498
        %v1500 = vpop.f32.mrb[0].mxu0
        %v1501 = vpop.f32.mrb[0].mxu0
        %v1502 = vadd.f32 0.0, %v1501
        %v1503 = vpop.f32.mrb[0].mxu0
        %1504 = vmatprep.mubr.bf16.mxu0 0
        %1505 = vmatmul.mubr.bf16.gmra.mrb[0].mxu0 %v1424
        %v1506 = vpop.f32.mrb[0].mxu0
        %v1507 = vadd.f32 0.0, %v1506
        %v1508 = vpop.f32.mrb[0].mxu0
        %v1509 = vpop.f32.mrb[0].mxu0
        %v1510 = vadd.f32 0.0, %v1509
        %v1511 = vpop.f32.mrb[0].mxu0
        %1512 = vmatprep.mubr.bf16.mxu0 0
        %1513 = vmatmul.mubr.bf16.gmra.mrb[0].mxu0 %v1427
        %v1514 = vpop.f32.mrb[0].mxu0
        %v1515 = vadd.f32 0.0, %v1514
        %v1516 = vpop.f32.mrb[0].mxu0
        %v1517 = vpop.f32.mrb[0].mxu0
        %v1518 = vadd.f32 0.0, %v1517
        %v1519 = vpop.f32.mrb[0].mxu0
        %1520 = vmatprep.mubr.bf16.mxu0 0
        %1521 = vmatmul.mubr.bf16.gmra.mrb[0].mxu0 %v1430
        %v1522 = vpop.f32.mrb[0].mxu0
        %v1523 = vadd.f32 0.0, %v1522
        %v1524 = vpop.f32.mrb[0].mxu0
        %v1525 = vpop.f32.mrb[0].mxu0
        %v1526 = vadd.f32 0.0, %v1525
        %v1527 = vpop.f32.mrb[0].mxu0
        %1528 = vdwg.mxu0
        %v1529 = vadd.f32 %v1332, %v1467
        %v1530 = vadd.f32 %v1333, %v1470
        %v1531 = vadd.f32 %v1334, %v1475
        %v1532 = vadd.f32 %v1335, %v1478
        %v1533 = vadd.f32 %v1336, %v1483
        %v1534 = vadd.f32 %v1337, %v1486
        %v1535 = vadd.f32 %v1338, %v1491
        %v1536 = vadd.f32 %v1339, %v1494
        %v1537 = vadd.f32 %v1340, %v1499
        %v1538 = vadd.f32 %v1341, %v1502
        %v1539 = vadd.f32 %v1342, %v1507
        %v1540 = vadd.f32 %v1343, %v1510
        %v1541 = vadd.f32 %v1344, %v1515
        %v1542 = vadd.f32 %v1345, %v1518
        %v1543 = vadd.f32 %v1346, %v1523
        %v1544 = vadd.f32 %v1347, %v1526
        %s1545 = sadd.s32 %s1349, 408
        %s1546 = scalar_lea.vmem %s192, %s1545
        %v1547 = vld [vmem:[%s1546] sm:$0xff]
        %v1548 = vld [vmem:[%s1546 + $0x8] sm:$0xff]
        %v1549 = vld [vmem:[%s1546 + $0x18] sm:$0xff]
        %v1550 = vld [vmem:[%s1546 + $0x20] sm:$0xff]
        %v1551 = vld [vmem:[%s1546 + $0x30] sm:$0xff]
        %v1552 = vld [vmem:[%s1546 + $0x38] sm:$0xff]
        %v1553 = vld [vmem:[%s1546 + $0x48] sm:$0xff]
        %v1554 = vld [vmem:[%s1546 + $0x50] sm:$0xff]
        %v1555 = vld [vmem:[%s1546 + $0x60] sm:$0xff]
        %v1556 = vld [vmem:[%s1546 + $0x68] sm:$0xff]
        %v1557 = vld [vmem:[%s1546 + $0x78] sm:$0xff]
        %v1558 = vld [vmem:[%s1546 + $0x80] sm:$0xff]
        %v1559 = vld [vmem:[%s1546 + $0x90] sm:$0xff]
        %v1560 = vld [vmem:[%s1546 + $0x98] sm:$0xff]
        %v1561 = vld [vmem:[%s1546 + $0xa8] sm:$0xff]
        %v1562 = vld [vmem:[%s1546 + $0xb0] sm:$0xff]
        %v1563 = vpack.c.bf16 %v1548, %v1547
        %v1564 = vpack.c.bf16 %v1550, %v1549
        %v1565 = vpack.c.bf16 %v1552, %v1551
        %v1566 = vpack.c.bf16 %v1554, %v1553
        %v1567 = vpack.c.bf16 %v1556, %v1555
        %v1568 = vpack.c.bf16 %v1558, %v1557
        %v1569 = vpack.c.bf16 %v1560, %v1559
        %v1570 = vpack.c.bf16 %v1562, %v1561
        %s1571 = scalar_lea.vmem %s1, 224
        %v1572 = vld [vmem:[%s1571] sm:$0xf]
        %v1573 = vld [vmem:[%s1571 + $0x4] sm:$0xf]
        %v1574 = vld [vmem:[%s1571 + $0x8] sm:$0xf]
        %v1575 = vld [vmem:[%s1571 + $0xc] sm:$0xf]
        %v1576 = vld [vmem:[%s1571 + $0x10] sm:$0xf]
        %v1577 = vld [vmem:[%s1571 + $0x14] sm:$0xf]
        %v1578 = vld [vmem:[%s1571 + $0x18] sm:$0xf]
        %v1579 = vld [vmem:[%s1571 + $0x1c] sm:$0xf]
        %v1588 = vunpack.c.l.b16 %v1572
        %v1589 = vunpack.c.l.b16 %v1573
        %v1590 = vunpack.c.l.b16 %v1574
        %v1591 = vunpack.c.l.b16 %v1575
        %v1592 = vunpack.c.l.b16 %v1576
        %v1593 = vunpack.c.l.b16 %v1577
        %v1594 = vunpack.c.l.b16 %v1578
        %v1595 = vunpack.c.l.b16 %v1579
        %v1596 = vpack.c.b16 %v1589, %v1588
        %v1597 = vpack.c.b16 %v1591, %v1590
        %v1598 = vpack.c.b16 %v1593, %v1592
        %v1599 = vpack.c.b16 %v1595, %v1594
        %v1605 = vsel %vm301, %v1563, 0
        %v1608 = vsel %vm301, %v1564, 0
        %v1611 = vsel %vm301, %v1565, 0
        %v1614 = vsel %vm301, %v1566, 0
        %v1617 = vsel %vm301, %v1567, 0
        %v1620 = vsel %vm301, %v1568, 0
        %v1623 = vsel %vm301, %v1569, 0
        %v1626 = vsel %vm301, %v1570, 0
        %1628 = vmatprep.subr.bf16.mxu0 0
        %1629 = vmatpush1.bf16.msra.mxu0 %v1596
        %1630 = vmatprep.subr.bf16.mxu0 0
        %1631 = vmatpush1.bf16.msra.mxu0 %v1597
        %1632 = vmatprep.subr.bf16.mxu0 0
        %1633 = vmatpush1.bf16.msra.mxu0 %v1598
        %1634 = vmatprep.subr.bf16.mxu0 0
        %1635 = vmatpush1.bf16.msra.mxu0 %v1599
        %1636 = vmatprep.subr.bf16.mxu0 0
        %1637 = vmatpush1.bf16.msra.mxu0 0
        %1638 = vmatprep.subr.bf16.mxu0 0
        %1639 = vmatpush1.bf16.msra.mxu0 0
        %1640 = vmatprep.subr.bf16.mxu0 0
        %1641 = vmatpush1.bf16.msra.mxu0 0
        %1642 = vmatprep.subr.bf16.mxu0 0
        %1643 = vmatpush1.bf16.msra.mxu0 0
        %1644 = vmatprep.subr.bf16.mxu0 0
        %1645 = vmatpush1.bf16.msra.mxu0 0
        %1646 = vmatprep.subr.bf16.mxu0 0
        %1647 = vmatpush1.bf16.msra.mxu0 0
        %1648 = vmatprep.subr.bf16.mxu0 0
        %1649 = vmatpush1.bf16.msra.mxu0 0
        %1650 = vmatprep.subr.bf16.mxu0 0
        %1651 = vmatpush1.bf16.msra.mxu0 0
        %1652 = vmatprep.subr.bf16.mxu0 0
        %1653 = vmatpush1.bf16.msra.mxu0 0
        %1654 = vmatprep.subr.bf16.mxu0 0
        %1655 = vmatpush1.bf16.msra.mxu0 0
        %1656 = vmatprep.subr.bf16.mxu0 0
        %1657 = vmatpush1.bf16.msra.mxu0 0
        %1658 = vmatprep.subr.bf16.mxu0 0
        %1659 = vmatpush1.bf16.msra.mxu0 0
        %1660 = vmatprep.mubr.bf16.mxu0 0
        %1661 = vmatmul.mubr.bf16.gmra.mrb[0].mxu0 %v1605
        %v1662 = vpop.f32.mrb[0].mxu0
        %v1663 = vadd.f32 0.0, %v1662
        %v1664 = vpop.f32.mrb[0].mxu0
        %v1665 = vpop.f32.mrb[0].mxu0
        %v1666 = vadd.f32 0.0, %v1665
        %v1667 = vpop.f32.mrb[0].mxu0
        %1668 = vmatprep.mubr.bf16.mxu0 0
        %1669 = vmatmul.mubr.bf16.gmra.mrb[0].mxu0 %v1608
        %v1670 = vpop.f32.mrb[0].mxu0
        %v1671 = vadd.f32 0.0, %v1670
        %v1672 = vpop.f32.mrb[0].mxu0
        %v1673 = vpop.f32.mrb[0].mxu0
        %v1674 = vadd.f32 0.0, %v1673
        %v1675 = vpop.f32.mrb[0].mxu0
        %1676 = vmatprep.mubr.bf16.mxu0 0
        %1677 = vmatmul.mubr.bf16.gmra.mrb[0].mxu0 %v1611
        %v1678 = vpop.f32.mrb[0].mxu0
        %v1679 = vadd.f32 0.0, %v1678
        %v1680 = vpop.f32.mrb[0].mxu0
        %v1681 = vpop.f32.mrb[0].mxu0
        %v1682 = vadd.f32 0.0, %v1681
        %v1683 = vpop.f32.mrb[0].mxu0
        %1684 = vmatprep.mubr.bf16.mxu0 0
        %1685 = vmatmul.mubr.bf16.gmra.mrb[0].mxu0 %v1614
        %v1686 = vpop.f32.mrb[0].mxu0
        %v1687 = vadd.f32 0.0, %v1686
        %v1688 = vpop.f32.mrb[0].mxu0
        %v1689 = vpop.f32.mrb[0].mxu0
        %v1690 = vadd.f32 0.0, %v1689
        %v1691 = vpop.f32.mrb[0].mxu0
        %1692 = vmatprep.mubr.bf16.mxu0 0
        %1693 = vmatmul.mubr.bf16.gmra.mrb[0].mxu0 %v1617
        %v1694 = vpop.f32.mrb[0].mxu0
        %v1695 = vadd.f32 0.0, %v1694
        %v1696 = vpop.f32.mrb[0].mxu0
        %v1697 = vpop.f32.mrb[0].mxu0
        %v1698 = vadd.f32 0.0, %v1697
        %v1699 = vpop.f32.mrb[0].mxu0
        %1700 = vmatprep.mubr.bf16.mxu0 0
        %1701 = vmatmul.mubr.bf16.gmra.mrb[0].mxu0 %v1620
        %v1702 = vpop.f32.mrb[0].mxu0
        %v1703 = vadd.f32 0.0, %v1702
        %v1704 = vpop.f32.mrb[0].mxu0
        %v1705 = vpop.f32.mrb[0].mxu0
        %v1706 = vadd.f32 0.0, %v1705
        %v1707 = vpop.f32.mrb[0].mxu0
        %1708 = vmatprep.mubr.bf16.mxu0 0
        %1709 = vmatmul.mubr.bf16.gmra.mrb[0].mxu0 %v1623
        %v1710 = vpop.f32.mrb[0].mxu0
        %v1711 = vadd.f32 0.0, %v1710
        %v1712 = vpop.f32.mrb[0].mxu0
        %v1713 = vpop.f32.mrb[0].mxu0
        %v1714 = vadd.f32 0.0, %v1713
        %v1715 = vpop.f32.mrb[0].mxu0
        %1716 = vmatprep.mubr.bf16.mxu0 0
        %1717 = vmatmul.mubr.bf16.gmra.mrb[0].mxu0 %v1626
        %v1718 = vpop.f32.mrb[0].mxu0
        %v1719 = vadd.f32 0.0, %v1718
        %v1720 = vpop.f32.mrb[0].mxu0
        %v1721 = vpop.f32.mrb[0].mxu0
        %v1722 = vadd.f32 0.0, %v1721
        %v1723 = vpop.f32.mrb[0].mxu0
        %1724 = vdwg.mxu0
        %v1725 = vadd.f32 %v1529, %v1663
        %v1726 = vadd.f32 %v1530, %v1666
        %v1727 = vadd.f32 %v1531, %v1671
        %v1728 = vadd.f32 %v1532, %v1674
        %v1729 = vadd.f32 %v1533, %v1679
        %v1730 = vadd.f32 %v1534, %v1682
        %v1731 = vadd.f32 %v1535, %v1687
        %v1732 = vadd.f32 %v1536, %v1690
        %v1733 = vadd.f32 %v1537, %v1695
        %v1734 = vadd.f32 %v1538, %v1698
        %v1735 = vadd.f32 %v1539, %v1703
        %v1736 = vadd.f32 %v1540, %v1706
        %v1737 = vadd.f32 %v1541, %v1711
        %v1738 = vadd.f32 %v1542, %v1714
        %v1739 = vadd.f32 %v1543, %v1719
        %v1740 = vadd.f32 %v1544, %v1722
        %v1741 = vld [vmem:[%s1350 + $0x1] sm:$0xff]
        %v1742 = vld [vmem:[%s1350 + $0x9] sm:$0xff]
        %v1743 = vld [vmem:[%s1350 + $0x19] sm:$0xff]
        %v1744 = vld [vmem:[%s1350 + $0x21] sm:$0xff]
        %v1745 = vld [vmem:[%s1350 + $0x31] sm:$0xff]
        %v1746 = vld [vmem:[%s1350 + $0x39] sm:$0xff]
        %v1747 = vld [vmem:[%s1350 + $0x49] sm:$0xff]
        %v1748 = vld [vmem:[%s1350 + $0x51] sm:$0xff]
        %v1749 = vld [vmem:[%s1350 + $0x61] sm:$0xff]
        %v1750 = vld [vmem:[%s1350 + $0x69] sm:$0xff]
        %v1751 = vld [vmem:[%s1350 + $0x79] sm:$0xff]
        %v1752 = vld [vmem:[%s1350 + $0x81] sm:$0xff]
        %v1753 = vld [vmem:[%s1350 + $0x91] sm:$0xff]
        %v1754 = vld [vmem:[%s1350 + $0x99] sm:$0xff]
        %v1755 = vld [vmem:[%s1350 + $0xa9] sm:$0xff]
        %v1756 = vld [vmem:[%s1350 + $0xb1] sm:$0xff]
        %v1757 = vpack.c.bf16 %v1742, %v1741
        %v1758 = vpack.c.bf16 %v1744, %v1743
        %v1759 = vpack.c.bf16 %v1746, %v1745
        %v1760 = vpack.c.bf16 %v1748, %v1747
        %v1761 = vpack.c.bf16 %v1750, %v1749
        %v1762 = vpack.c.bf16 %v1752, %v1751
        %v1763 = vpack.c.bf16 %v1754, %v1753
        %v1764 = vpack.c.bf16 %v1756, %v1755
        %s1765 = scalar_lea.vmem %s1, 256
        %v1766 = vld [vmem:[%s1765] sm:$0xf]
        %v1767 = vld [vmem:[%s1765 + $0x4] sm:$0xf]
        %v1768 = vld [vmem:[%s1765 + $0x8] sm:$0xf]
        %v1769 = vld [vmem:[%s1765 + $0xc] sm:$0xf]
        %v1770 = vld [vmem:[%s1765 + $0x10] sm:$0xf]
        %v1771 = vld [vmem:[%s1765 + $0x14] sm:$0xf]
        %v1772 = vld [vmem:[%s1765 + $0x18] sm:$0xf]
        %v1773 = vld [vmem:[%s1765 + $0x1c] sm:$0xf]
        %v1782 = vunpack.c.l.b16 %v1766
        %v1783 = vunpack.c.l.b16 %v1767
        %v1784 = vunpack.c.l.b16 %v1768
        %v1785 = vunpack.c.l.b16 %v1769
        %v1786 = vunpack.c.l.b16 %v1770
        %v1787 = vunpack.c.l.b16 %v1771
        %v1788 = vunpack.c.l.b16 %v1772
        %v1789 = vunpack.c.l.b16 %v1773
        %v1790 = vpack.c.b16 %v1783, %v1782
        %v1791 = vpack.c.b16 %v1785, %v1784
        %v1792 = vpack.c.b16 %v1787, %v1786
        %v1793 = vpack.c.b16 %v1789, %v1788
        %v1799 = vsel %vm301, %v1757, 0
        %v1802 = vsel %vm301, %v1758, 0
        %v1805 = vsel %vm301, %v1759, 0
        %v1808 = vsel %vm301, %v1760, 0
        %v1811 = vsel %vm301, %v1761, 0
        %v1814 = vsel %vm301, %v1762, 0
        %v1817 = vsel %vm301, %v1763, 0
        %v1820 = vsel %vm301, %v1764, 0
        %1822 = vmatprep.subr.bf16.mxu0 0
        %1823 = vmatpush1.bf16.msra.mxu0 %v1790
        %1824 = vmatprep.subr.bf16.mxu0 0
        %1825 = vmatpush1.bf16.msra.mxu0 %v1791
        %1826 = vmatprep.subr.bf16.mxu0 0
        %1827 = vmatpush1.bf16.msra.mxu0 %v1792
        %1828 = vmatprep.subr.bf16.mxu0 0
        %1829 = vmatpush1.bf16.msra.mxu0 %v1793
        %1830 = vmatprep.subr.bf16.mxu0 0
        %1831 = vmatpush1.bf16.msra.mxu0 0
        %1832 = vmatprep.subr.bf16.mxu0 0
        %1833 = vmatpush1.bf16.msra.mxu0 0
        %1834 = vmatprep.subr.bf16.mxu0 0
        %1835 = vmatpush1.bf16.msra.mxu0 0
        %1836 = vmatprep.subr.bf16.mxu0 0
        %1837 = vmatpush1.bf16.msra.mxu0 0
        %1838 = vmatprep.subr.bf16.mxu0 0
        %1839 = vmatpush1.bf16.msra.mxu0 0
        %1840 = vmatprep.subr.bf16.mxu0 0
        %1841 = vmatpush1.bf16.msra.mxu0 0
        %1842 = vmatprep.subr.bf16.mxu0 0
        %1843 = vmatpush1.bf16.msra.mxu0 0
        %1844 = vmatprep.subr.bf16.mxu0 0
        %1845 = vmatpush1.bf16.msra.mxu0 0
        %1846 = vmatprep.subr.bf16.mxu0 0
        %1847 = vmatpush1.bf16.msra.mxu0 0
        %1848 = vmatprep.subr.bf16.mxu0 0
        %1849 = vmatpush1.bf16.msra.mxu0 0
        %1850 = vmatprep.subr.bf16.mxu0 0
        %1851 = vmatpush1.bf16.msra.mxu0 0
        %1852 = vmatprep.subr.bf16.mxu0 0
        %1853 = vmatpush1.bf16.msra.mxu0 0
        %1854 = vmatprep.mubr.bf16.mxu0 0
        %1855 = vmatmul.mubr.bf16.gmra.mrb[0].mxu0 %v1799
        %v1856 = vpop.f32.mrb[0].mxu0
        %v1857 = vadd.f32 0.0, %v1856
        %v1858 = vpop.f32.mrb[0].mxu0
        %v1859 = vpop.f32.mrb[0].mxu0
        %v1860 = vadd.f32 0.0, %v1859
        %v1861 = vpop.f32.mrb[0].mxu0
        %1862 = vmatprep.mubr.bf16.mxu0 0
        %1863 = vmatmul.mubr.bf16.gmra.mrb[0].mxu0 %v1802
        %v1864 = vpop.f32.mrb[0].mxu0
        %v1865 = vadd.f32 0.0, %v1864
        %v1866 = vpop.f32.mrb[0].mxu0
        %v1867 = vpop.f32.mrb[0].mxu0
        %v1868 = vadd.f32 0.0, %v1867
        %v1869 = vpop.f32.mrb[0].mxu0
        %1870 = vmatprep.mubr.bf16.mxu0 0
        %1871 = vmatmul.mubr.bf16.gmra.mrb[0].mxu0 %v1805
        %v1872 = vpop.f32.mrb[0].mxu0
        %v1873 = vadd.f32 0.0, %v1872
        %v1874 = vpop.f32.mrb[0].mxu0
        %v1875 = vpop.f32.mrb[0].mxu0
        %v1876 = vadd.f32 0.0, %v1875
        %v1877 = vpop.f32.mrb[0].mxu0
        %1878 = vmatprep.mubr.bf16.mxu0 0
        %1879 = vmatmul.mubr.bf16.gmra.mrb[0].mxu0 %v1808
        %v1880 = vpop.f32.mrb[0].mxu0
        %v1881 = vadd.f32 0.0, %v1880
        %v1882 = vpop.f32.mrb[0].mxu0
        %v1883 = vpop.f32.mrb[0].mxu0
        %v1884 = vadd.f32 0.0, %v1883
        %v1885 = vpop.f32.mrb[0].mxu0
        %1886 = vmatprep.mubr.bf16.mxu0 0
        %1887 = vmatmul.mubr.bf16.gmra.mrb[0].mxu0 %v1811
        %v1888 = vpop.f32.mrb[0].mxu0
        %v1889 = vadd.f32 0.0, %v1888
        %v1890 = vpop.f32.mrb[0].mxu0
        %v1891 = vpop.f32.mrb[0].mxu0
        %v1892 = vadd.f32 0.0, %v1891
        %v1893 = vpop.f32.mrb[0].mxu0
        %1894 = vmatprep.mubr.bf16.mxu0 0
        %1895 = vmatmul.mubr.bf16.gmra.mrb[0].mxu0 %v1814
        %v1896 = vpop.f32.mrb[0].mxu0
        %v1897 = vadd.f32 0.0, %v1896
        %v1898 = vpop.f32.mrb[0].mxu0
        %v1899 = vpop.f32.mrb[0].mxu0
        %v1900 = vadd.f32 0.0, %v1899
        %v1901 = vpop.f32.mrb[0].mxu0
        %1902 = vmatprep.mubr.bf16.mxu0 0
        %1903 = vmatmul.mubr.bf16.gmra.mrb[0].mxu0 %v1817
        %v1904 = vpop.f32.mrb[0].mxu0
        %v1905 = vadd.f32 0.0, %v1904
        %v1906 = vpop.f32.mrb[0].mxu0
        %v1907 = vpop.f32.mrb[0].mxu0
        %v1908 = vadd.f32 0.0, %v1907
        %v1909 = vpop.f32.mrb[0].mxu0
        %1910 = vmatprep.mubr.bf16.mxu0 0
        %1911 = vmatmul.mubr.bf16.gmra.mrb[0].mxu0 %v1820
        %v1912 = vpop.f32.mrb[0].mxu0
        %v1913 = vadd.f32 0.0, %v1912
        %v1914 = vpop.f32.mrb[0].mxu0
        %v1915 = vpop.f32.mrb[0].mxu0
        %v1916 = vadd.f32 0.0, %v1915
        %v1917 = vpop.f32.mrb[0].mxu0
        %1918 = vdwg.mxu0
        %v1919 = vadd.f32 %v1725, %v1857
        %v1920 = vadd.f32 %v1726, %v1860
        %v1921 = vadd.f32 %v1727, %v1865
        %v1922 = vadd.f32 %v1728, %v1868
        %v1923 = vadd.f32 %v1729, %v1873
        %v1924 = vadd.f32 %v1730, %v1876
        %v1925 = vadd.f32 %v1731, %v1881
        %v1926 = vadd.f32 %v1732, %v1884
        %v1927 = vadd.f32 %v1733, %v1889
        %v1928 = vadd.f32 %v1734, %v1892
        %v1929 = vadd.f32 %v1735, %v1897
        %v1930 = vadd.f32 %v1736, %v1900
        %v1931 = vadd.f32 %v1737, %v1905
        %v1932 = vadd.f32 %v1738, %v1908
        %v1933 = vadd.f32 %v1739, %v1913
        %v1934 = vadd.f32 %v1740, %v1916
        %v1936 = vlaneseq
        %v1937 = vshrl.u32 %v1936, 7
        %v1938 = vsub.s32 0, %v1937
        %v1939 = vrot.slane %v199, %v1938
        %v1941 = vmul.f32 %v1919, %v1939
        %v1942 = vmul.f32 %v1920, %v1939
        %v1943 = vmul.f32 %v1921, %v1939
        %v1944 = vmul.f32 %v1922, %v1939
        %v1945 = vmul.f32 %v1923, %v1939
        %v1946 = vmul.f32 %v1924, %v1939
        %v1947 = vmul.f32 %v1925, %v1939
        %v1948 = vmul.f32 %v1926, %v1939
        %v1949 = vmul.f32 %v1927, %v1939
        %v1950 = vmul.f32 %v1928, %v1939
        %v1951 = vmul.f32 %v1929, %v1939
        %v1952 = vmul.f32 %v1930, %v1939
        %v1953 = vmul.f32 %v1931, %v1939
        %v1954 = vmul.f32 %v1932, %v1939
        %v1955 = vmul.f32 %v1933, %v1939
        %v1956 = vmul.f32 %v1934, %v1939
        %v1958 = vlaneseq
        %v1959 = vshrl.u32 %v1958, 7
        %v1960 = vsub.s32 0, %v1959
        %v1961 = vrot.slane %v200, %v1960
        %v1963 = vadd.f32 %v1941, %v1961
        %v1964 = vadd.f32 %v1942, %v1961
        %v1965 = vadd.f32 %v1943, %v1961
        %v1966 = vadd.f32 %v1944, %v1961
        %v1967 = vadd.f32 %v1945, %v1961
        %v1968 = vadd.f32 %v1946, %v1961
        %v1969 = vadd.f32 %v1947, %v1961
        %v1970 = vadd.f32 %v1948, %v1961
        %v1971 = vadd.f32 %v1949, %v1961
        %v1972 = vadd.f32 %v1950, %v1961
        %v1973 = vadd.f32 %v1951, %v1961
        %v1974 = vadd.f32 %v1952, %v1961
        %v1975 = vadd.f32 %v1953, %v1961
        %v1976 = vadd.f32 %v1954, %v1961
        %v1977 = vadd.f32 %v1955, %v1961
        %v1978 = vadd.f32 %v1956, %v1961
        %vm1979 = vcmp.gt.f32.partialorder %v1963, 0.0
        %vm1980 = vcmp.gt.f32.partialorder %v1964, 0.0
        %vm1981 = vcmp.gt.f32.partialorder %v1965, 0.0
        %vm1982 = vcmp.gt.f32.partialorder %v1966, 0.0
        %vm1983 = vcmp.gt.f32.partialorder %v1967, 0.0
        %vm1984 = vcmp.gt.f32.partialorder %v1968, 0.0
        %vm1985 = vcmp.gt.f32.partialorder %v1969, 0.0
        %vm1986 = vcmp.gt.f32.partialorder %v1970, 0.0
        %vm1987 = vcmp.gt.f32.partialorder %v1971, 0.0
        %vm1988 = vcmp.gt.f32.partialorder %v1972, 0.0
        %vm1989 = vcmp.gt.f32.partialorder %v1973, 0.0
        %vm1990 = vcmp.gt.f32.partialorder %v1974, 0.0
        %vm1991 = vcmp.gt.f32.partialorder %v1975, 0.0
        %vm1992 = vcmp.gt.f32.partialorder %v1976, 0.0
        %vm1993 = vcmp.gt.f32.partialorder %v1977, 0.0
        %vm1994 = vcmp.gt.f32.partialorder %v1978, 0.0
        %v1995 = vmul.f32 %v1963, 0.2
        %v1996 = vmul.f32 %v1964, 0.2
        %v1997 = vmul.f32 %v1965, 0.2
        %v1998 = vmul.f32 %v1966, 0.2
        %v1999 = vmul.f32 %v1967, 0.2
        %v2000 = vmul.f32 %v1968, 0.2
        %v2001 = vmul.f32 %v1969, 0.2
        %v2002 = vmul.f32 %v1970, 0.2
        %v2003 = vmul.f32 %v1971, 0.2
        %v2004 = vmul.f32 %v1972, 0.2
        %v2005 = vmul.f32 %v1973, 0.2
        %v2006 = vmul.f32 %v1974, 0.2
        %v2007 = vmul.f32 %v1975, 0.2
        %v2008 = vmul.f32 %v1976, 0.2
        %v2009 = vmul.f32 %v1977, 0.2
        %v2010 = vmul.f32 %v1978, 0.2
        %v2011 = vsel %vm1979, %v1963, %v1995
        %v2012 = vsel %vm1980, %v1964, %v1996
        %v2013 = vsel %vm1981, %v1965, %v1997
        %v2014 = vsel %vm1982, %v1966, %v1998
        %v2015 = vsel %vm1983, %v1967, %v1999
        %v2016 = vsel %vm1984, %v1968, %v2000
        %v2017 = vsel %vm1985, %v1969, %v2001
        %v2018 = vsel %vm1986, %v1970, %v2002
        %v2019 = vsel %vm1987, %v1971, %v2003
        %v2020 = vsel %vm1988, %v1972, %v2004
        %v2021 = vsel %vm1989, %v1973, %v2005
        %v2022 = vsel %vm1990, %v1974, %v2006
        %v2023 = vsel %vm1991, %v1975, %v2007
        %v2024 = vsel %vm1992, %v1976, %v2008
        %v2025 = vsel %vm1993, %v1977, %v2009
        %v2026 = vsel %vm1994, %v1978, %v2010
        %s2027 = smul.u32 %s202, 128
        %s2028 = scalar_lea.vmem %s197, %s2027
        %vm2029 = vcmask 785408
        %2030 = vst.msk [vmem:[%s2028] sm:$0xff] %vm2029, %v2011
        %2031 = vst.msk [vmem:[%s2028 + $0x8] sm:$0xff] %vm2029, %v2012
        %2032 = vst.msk [vmem:[%s2028 + $0x10] sm:$0xff] %vm2029, %v2013
        %2033 = vst.msk [vmem:[%s2028 + $0x18] sm:$0xff] %vm2029, %v2014
        %2034 = vst.msk [vmem:[%s2028 + $0x20] sm:$0xff] %vm2029, %v2015
        %2035 = vst.msk [vmem:[%s2028 + $0x28] sm:$0xff] %vm2029, %v2016
        %2036 = vst.msk [vmem:[%s2028 + $0x30] sm:$0xff] %vm2029, %v2017
        %2037 = vst.msk [vmem:[%s2028 + $0x38] sm:$0xff] %vm2029, %v2018
        %2038 = vst.msk [vmem:[%s2028 + $0x40] sm:$0xff] %vm2029, %v2019
        %2039 = vst.msk [vmem:[%s2028 + $0x48] sm:$0xff] %vm2029, %v2020
        %2040 = vst.msk [vmem:[%s2028 + $0x50] sm:$0xff] %vm2029, %v2021
        %2041 = vst.msk [vmem:[%s2028 + $0x58] sm:$0xff] %vm2029, %v2022
        %2042 = vst.msk [vmem:[%s2028 + $0x60] sm:$0xff] %vm2029, %v2023
        %2043 = vst.msk [vmem:[%s2028 + $0x68] sm:$0xff] %vm2029, %v2024
        %2044 = vst.msk [vmem:[%s2028 + $0x70] sm:$0xff] %vm2029, %v2025
        %2045 = vst.msk [vmem:[%s2028 + $0x78] sm:$0xff] %vm2029, %v2026
      $region41: #{discriminator_pallas.7} parent=35 // loop_footer
        %s206 = sadd.s32 1, %s202
      $region42: #{discriminator_pallas.7} parent=35 // loop_footer_branch
        %201 = sbr.rel target = $region38
      $region43: #{discriminator_pallas.7} parent=35 // loop_exit
        _
      %p2046 = scmp.lt.s32.totalorder %s15, 1
      %s2047 = scalar_select %p2046, %s15, 1
      %s2048 = smul.addr %s2047, 32
      %s2049 = smul.addr %s2048, 8
      %s2050 = scalar_lea.vmem %s4, %s2049
      // Predicated region
      $region44: #{discriminator_pallas.7} parent=35 // pred_check
        %p2051 = pneg %p122
      $region45: #{discriminator_pallas.7} parent=35 // pred_check_branch
        %2053 = sbr.rel (%p2051) target = $region47
      $region46: #{discriminator_pallas.7} parent=35 // pred_region
        _
      $region47: #{discriminator_pallas.7} parent=35 // pred_fallthru
        _
    $region36: #{discriminator_pallas.7} parent=5 // pred_fallthru
      _
    %p2054 = scmp.le.s32.totalorder 2, %s10
    // Predicated region
    $region48: #{discriminator_pallas.7} parent=5 // pred_check
      %p2055 = pneg %p2054
    $region49: #{discriminator_pallas.7} parent=5 // pred_check_branch
      %2057 = sbr.rel (%p2055) target = $region51
    $region50: #{discriminator_pallas.7} parent=5 // pred_region
      %s2058 = ssub.s32 %s10, 2
      // Predicated region
      $region52: #{discriminator_pallas.7} parent=50 // pred_check
        %p2059 = pneg %p128
      $region53: #{discriminator_pallas.7} parent=50 // pred_check_branch
        %2061 = sbr.rel (%p2059) target = $region55
      $region54: #{discriminator_pallas.7} parent=50 // pred_region
        %p2062 = scmp.lt.s32.totalorder %s16, 1
        %s2063 = scalar_select %p2062, %s16, 1
        %s2064 = smul.addr %s2063, 32
        %s2065 = smul.addr %s2064, 8
        %s2066 = scalar_lea.vmem %s4, %s2065
      $region55: #{discriminator_pallas.7} parent=50 // pred_fallthru
        _
    $region51: #{discriminator_pallas.7} parent=5 // pred_fallthru
      _
  $region6: #{discriminator_pallas.7} parent=0 // loop_footer
    %s14 = sadd.s32 1, %s10
  $region7: #{discriminator_pallas.7} parent=0 // loop_footer_branch
    %9 = sbr.rel target = $region3
  $region8: #{discriminator_pallas.7} parent=0 // loop_exit
    _

// kernel: discriminator_pallas.8
$region0: #{discriminator_pallas.8}
  #allocation0 [shape = 'u32[]', space=smem, size = 0x4, offset = 0x4, fixed_abs, tag = 'smem constant byte address 0x4 - core index']
  #allocation1 [shape = 'u32[144,128]{1,0:T(1,128)}', space=vmem, size = 0x12000, scoped, tag = 'internal scratch']
  %s0 = inlined_call_operand.vmem [shape: f32[2,2,2,9,9,96], index: 0, kind: input, shape index: {}]
  %s1 = inlined_call_operand.vmem [shape: bf16[9,96,128], index: 1, kind: input, shape index: {}]
  %s2 = inlined_call_operand.vmem [shape: f32[1,128], index: 2, kind: input, shape index: {}]
  %s3 = inlined_call_operand.vmem [shape: f32[1,128], index: 3, kind: input, shape index: {}]
  %s4 = inlined_call_operand.vmem [shape: f32[2,64,128], index: 4, kind: output, shape index: {}]
  %s5 = sld [smem:[#allocation0]]
  $region49: #{discriminator_pallas.8} parent=0
    _
  %s7 = ssub.s32 1, %s5
  %s8 = scalar_select 0, %s7, %s5
  loop: start=0, step=1, limit=4
  $region2: #{discriminator_pallas.8} parent=0 // loop_pre_header
    _
  $region3: #{discriminator_pallas.8} parent=0 // loop_header
    %s10 = sphi 0, %s14
    %p11 = scmp.ge.s32.totalorder %s10, 4
    %s20 = sphi 0, %s22
    %s23 = sphi 0, %s20
    %s24 = sphi 0, %s23
    %s40 = sphi 0, %s24
    %s44 = sphi 0, %s44
    %s46 = sphi 0, %s44
    %s47 = sphi 0, %s46
    %s61 = sphi 0, %s47
    %s65 = sphi 0, %s65
    %s67 = sphi 0, %s65
    %s68 = sphi 0, %s67
    %s82 = sphi 0, %s68
    %s86 = sphi 0, %s86
    %s88 = sphi 0, %s86
    %s89 = sphi 0, %s88
    %s103 = sphi 0, %s89
    %s109 = sphi 0, %s111
    %s112 = sphi 0, %s109
    %s113 = sphi 0, %s112
    %s129 = sphi 0, %s113
  $region4: #{discriminator_pallas.8} parent=0 // loop_header_branch
    %13 = sbr.rel (%p11) target = $region8
  $region5: #{discriminator_pallas.8} parent=0 // loop_body
    %s15 = ssub.s32 %s10, 1
    %s16 = ssub.s32 %s10, 2
    %s17 = sadd.s32 %s10, 1
    %s18 = ssub.s32 %s10, %s17
    %p19 = scmp.eq.s32.totalorder %s18, 0
    %s21 = sadd.s32 %s20, 1
    %s22 = scalar_select %p19, %s20, %s21
    %p25 = pneg %p19
    %p26 = scmp.eq.s32.totalorder %s10, 1
    %p27 = por %p25, %p26
    %p28 = scmp.ne.s32.totalorder %s20, %s23
    %p29 = scmp.eq.s32.totalorder %s10, 0
    %p30 = por %p28, %p29
    %p31 = scmp.ne.s32.totalorder %s20, %s23
    %p32 = scmp.eq.s32.totalorder %s15, 1
    %p33 = por %p31, %p32
    %p34 = scmp.ne.s32.totalorder %s23, %s24
    %p35 = scmp.eq.s32.totalorder %s15, 0
    %p36 = por %p34, %p35
    %p37 = scmp.ne.s32.totalorder %s23, %s24
    %p38 = scmp.eq.s32.totalorder %s16, 1
    %p39 = por %p37, %p38
    %p41 = scmp.ne.s32.totalorder %s24, %s40
    %p42 = scmp.eq.s32.totalorder %s16, 0
    %p43 = por %p41, %p42
    %s45 = sadd.s32 %s44, 1
    %p48 = scmp.eq.s32.totalorder %s10, 1
    %p49 = scmp.ne.s32.totalorder %s44, %s46
    %p50 = scmp.eq.s32.totalorder %s10, 0
    %p51 = por %p49, %p50
    %p52 = scmp.ne.s32.totalorder %s44, %s46
    %p53 = scmp.eq.s32.totalorder %s15, 1
    %p54 = por %p52, %p53
    %p55 = scmp.ne.s32.totalorder %s46, %s47
    %p56 = scmp.eq.s32.totalorder %s15, 0
    %p57 = por %p55, %p56
    %p58 = scmp.ne.s32.totalorder %s46, %s47
    %p59 = scmp.eq.s32.totalorder %s16, 1
    %p60 = por %p58, %p59
    %p62 = scmp.ne.s32.totalorder %s47, %s61
    %p63 = scmp.eq.s32.totalorder %s16, 0
    %p64 = por %p62, %p63
    %s66 = sadd.s32 %s65, 1
    %p69 = scmp.eq.s32.totalorder %s10, 1
    %p70 = scmp.ne.s32.totalorder %s65, %s67
    %p71 = scmp.eq.s32.totalorder %s10, 0
    %p72 = por %p70, %p71
    %p73 = scmp.ne.s32.totalorder %s65, %s67
    %p74 = scmp.eq.s32.totalorder %s15, 1
    %p75 = por %p73, %p74
    %p76 = scmp.ne.s32.totalorder %s67, %s68
    %p77 = scmp.eq.s32.totalorder %s15, 0
    %p78 = por %p76, %p77
    %p79 = scmp.ne.s32.totalorder %s67, %s68
    %p80 = scmp.eq.s32.totalorder %s16, 1
    %p81 = por %p79, %p80
    %p83 = scmp.ne.s32.totalorder %s68, %s82
    %p84 = scmp.eq.s32.totalorder %s16, 0
    %p85 = por %p83, %p84
    %s87 = sadd.s32 %s86, 1
    %p90 = scmp.eq.s32.totalorder %s10, 1
    %p91 = scmp.ne.s32.totalorder %s86, %s88
    %p92 = scmp.eq.s32.totalorder %s10, 0
    %p93 = por %p91, %p92
    %p94 = scmp.ne.s32.totalorder %s86, %s88
    %p95 = scmp.eq.s32.totalorder %s15, 1
    %p96 = por %p94, %p95
    %p97 = scmp.ne.s32.totalorder %s88, %s89
    %p98 = scmp.eq.s32.totalorder %s15, 0
    %p99 = por %p97, %p98
    %p100 = scmp.ne.s32.totalorder %s88, %s89
    %p101 = scmp.eq.s32.totalorder %s16, 1
    %p102 = por %p100, %p101
    %p104 = scmp.ne.s32.totalorder %s89, %s103
    %p105 = scmp.eq.s32.totalorder %s16, 0
    %p106 = por %p104, %p105
    %s107 = ssub.s32 %s10, %s17
    %p108 = scmp.eq.s32.totalorder %s107, 0
    %s110 = sadd.s32 %s109, 1
    %s111 = scalar_select %p108, %s109, %s110
    %p114 = pneg %p108
    %p115 = scmp.eq.s32.totalorder %s10, 1
    %p116 = por %p114, %p115
    %p117 = scmp.ne.s32.totalorder %s109, %s112
    %p118 = scmp.eq.s32.totalorder %s10, 0
    %p119 = por %p117, %p118
    %p120 = scmp.ne.s32.totalorder %s109, %s112
    %p121 = scmp.eq.s32.totalorder %s15, 1
    %p122 = por %p120, %p121
    %p123 = scmp.ne.s32.totalorder %s112, %s113
    %p124 = scmp.eq.s32.totalorder %s15, 0
    %p125 = por %p123, %p124
    %p126 = scmp.ne.s32.totalorder %s112, %s113
    %p127 = scmp.eq.s32.totalorder %s16, 1
    %p128 = por %p126, %p127
    %p130 = scmp.ne.s32.totalorder %s113, %s129
    %p131 = scmp.eq.s32.totalorder %s16, 0
    %p132 = por %p130, %p131
    %p133 = scmp.le.s32.totalorder 1, %s10
    %p134 = scmp.lt.s32.totalorder %s10, 3
    %p135 = pnand %p133, %p134
    %p136 = pneg %p135
    // Predicated region
    $region9: #{discriminator_pallas.8} parent=5 // pred_check
      _
    $region10: #{discriminator_pallas.8} parent=5 // pred_check_branch
      %138 = sbr.rel (%p135) target = $region12
    $region11: #{discriminator_pallas.8} parent=5 // pred_region
      %s139 = ssub.s32 %s10, 1
      // Predicated region
      $region13: #{discriminator_pallas.8} parent=11 // pred_check
        %p140 = pneg %p57
      $region14: #{discriminator_pallas.8} parent=11 // pred_check_branch
        %142 = sbr.rel (%p140) target = $region16
      $region15: #{discriminator_pallas.8} parent=11 // pred_region
        _
      $region16: #{discriminator_pallas.8} parent=11 // pred_fallthru
        _
      // Predicated region
      $region17: #{discriminator_pallas.8} parent=11 // pred_check
        %p143 = pneg %p78
      $region18: #{discriminator_pallas.8} parent=11 // pred_check_branch
        %145 = sbr.rel (%p143) target = $region20
      $region19: #{discriminator_pallas.8} parent=11 // pred_region
        _
      $region20: #{discriminator_pallas.8} parent=11 // pred_fallthru
        _
      // Predicated region
      $region21: #{discriminator_pallas.8} parent=11 // pred_check
        %p146 = pneg %p99
      $region22: #{discriminator_pallas.8} parent=11 // pred_check_branch
        %148 = sbr.rel (%p146) target = $region24
      $region23: #{discriminator_pallas.8} parent=11 // pred_region
        _
      $region24: #{discriminator_pallas.8} parent=11 // pred_fallthru
        _
    $region12: #{discriminator_pallas.8} parent=5 // pred_fallthru
      _
    %p149 = scmp.lt.s32.totalorder %s10, 2
    // Predicated region
    $region25: #{discriminator_pallas.8} parent=5 // pred_check
      %p150 = pneg %p149
    $region26: #{discriminator_pallas.8} parent=5 // pred_check_branch
      %152 = sbr.rel (%p150) target = $region28
    $region27: #{discriminator_pallas.8} parent=5 // pred_region
      // Predicated region
      $region29: #{discriminator_pallas.8} parent=27 // pred_check
        %p153 = pneg %p30
      $region30: #{discriminator_pallas.8} parent=27 // pred_check_branch
        %155 = sbr.rel (%p153) target = $region32
      $region31: #{discriminator_pallas.8} parent=27 // pred_region
        %p156 = scmp.lt.s32.totalorder %s10, 1
        %s157 = scalar_select %p156, %s10, 1
        %s158 = smul.addr %s157, 72
        %s159 = smul.addr %s158, 8
        %s160 = scalar_lea.vmem %s0, %s159
      $region32: #{discriminator_pallas.8} parent=27 // pred_fallthru
        _
    $region28: #{discriminator_pallas.8} parent=5 // pred_fallthru
      _
    %p161 = scmp.le.s32.totalorder 1, %s10
    %p162 = scmp.lt.s32.totalorder %s10, 3
    %p163 = pnand %p161, %p162
    %p164 = pneg %p163
    // Predicated region
    $region33: #{discriminator_pallas.8} parent=5 // pred_check
      _
    $region34: #{discriminator_pallas.8} parent=5 // pred_check_branch
      %166 = sbr.rel (%p163) target = $region36
    $region35: #{discriminator_pallas.8} parent=5 // pred_region
      %s167 = ssub.s32 %s10, 1
      %p168 = scmp.lt.s32.totalorder %s15, 1
      %s169 = scalar_select %p168, %s15, 1
      %s170 = smul.addr %s169, 72
      %s171 = smul.addr %s170, 8
      %s172 = scalar_lea.vmem %s0, %s171
      %p173 = pneg %p36
      %p174 = pneg %p33
      %p175 = pneg %p57
      %p176 = pneg %p54
      %p177 = pneg %p78
      %p178 = pneg %p75
      %p179 = pneg %p99
      %p180 = pneg %p96
      %p181 = pneg %p125
      %p182 = pneg %p122
      %p183 = scmp.lt.s32.totalorder %s15, 1
      %s184 = scalar_select %p183, %s15, 1
      %s185 = smul.addr %s184, 8
      %s186 = smul.addr %s185, 8
      %s187 = scalar_lea.vmem %s4, %s186
      %p188 = scmp.lt.s32.totalorder %s15, 1
      %s189 = scalar_select %p188, %s15, 1
      %s190 = smul.addr %s189, 72
      %s191 = smul.addr %s190, 8
      %s192 = scalar_lea.vmem %s0, %s191
      %p193 = scmp.lt.s32.totalorder %s15, 1
      %s194 = scalar_select %p193, %s15, 1
      %s195 = smul.addr %s194, 8
      %s196 = smul.addr %s195, 8
      %s197 = scalar_lea.vmem %s4, %s196
      %v199 = vld [vmem:[%s2] sm:$0x1]
      %v200 = vld [vmem:[%s3] sm:$0x1]
      %v201 = vld [vmem:[%s192] sm:$0xff]
      %v202 = vld [vmem:[%s192 + $0x10] sm:$0xff]
      %v203 = vld [vmem:[%s192 + $0x20] sm:$0xff]
      %v204 = vld [vmem:[%s192 + $0x30] sm:$0xff]
      %v205 = vld [vmem:[%s192 + $0x40] sm:$0xff]
      %v206 = vld [vmem:[%s192 + $0x50] sm:$0xff]
      %v207 = vld [vmem:[%s192 + $0x60] sm:$0xff]
      %v208 = vld [vmem:[%s192 + $0x70] sm:$0xff]
      %v209 = vpack.c.bf16 %v202, %v201
      %v210 = vpack.c.bf16 %v204, %v203
      %v211 = vpack.c.bf16 %v206, %v205
      %v212 = vpack.c.bf16 %v208, %v207
      %v213 = vld [vmem:[%s1] sm:$0xf]
      %v214 = vld [vmem:[%s1 + $0x4] sm:$0xf]
      %v215 = vld [vmem:[%s1 + $0x8] sm:$0xf]
      %v216 = vld [vmem:[%s1 + $0xc] sm:$0xf]
      %v217 = vld [vmem:[%s1 + $0x10] sm:$0xf]
      %v218 = vld [vmem:[%s1 + $0x14] sm:$0xf]
      %v219 = vld [vmem:[%s1 + $0x18] sm:$0xf]
      %v220 = vld [vmem:[%s1 + $0x1c] sm:$0xf]
      %v221 = vld [vmem:[%s1 + $0x20] sm:$0xf]
      %v222 = vld [vmem:[%s1 + $0x24] sm:$0xf]
      %v223 = vld [vmem:[%s1 + $0x28] sm:$0xf]
      %v224 = vld [vmem:[%s1 + $0x2c] sm:$0xf]
      %s225 = scalar_lea.vmem %s192, 144
      %v226 = vld [vmem:[%s225] sm:$0xff]
      %v227 = vld [vmem:[%s225 + $0x10] sm:$0xff]
      %v228 = vld [vmem:[%s225 + $0x20] sm:$0xff]
      %v229 = vld [vmem:[%s225 + $0x30] sm:$0xff]
      %v230 = vld [vmem:[%s225 + $0x40] sm:$0xff]
      %v231 = vld [vmem:[%s225 + $0x50] sm:$0xff]
      %v232 = vld [vmem:[%s225 + $0x60] sm:$0xff]
      %v233 = vld [vmem:[%s225 + $0x70] sm:$0xff]
      %v234 = vpack.c.bf16 %v227, %v226
      %v235 = vpack.c.bf16 %v229, %v228
      %v236 = vpack.c.bf16 %v231, %v230
      %v237 = vpack.c.bf16 %v233, %v232
      %s238 = scalar_lea.vmem %s1, 48
      %v239 = vld [vmem:[%s238] sm:$0xf]
      %v240 = vld [vmem:[%s238 + $0x4] sm:$0xf]
      %v241 = vld [vmem:[%s238 + $0x8] sm:$0xf]
      %v242 = vld [vmem:[%s238 + $0xc] sm:$0xf]
      %v243 = vld [vmem:[%s238 + $0x10] sm:$0xf]
      %v244 = vld [vmem:[%s238 + $0x14] sm:$0xf]
      %v245 = vld [vmem:[%s238 + $0x18] sm:$0xf]
      %v246 = vld [vmem:[%s238 + $0x1c] sm:$0xf]
      %v247 = vld [vmem:[%s238 + $0x20] sm:$0xf]
      %v248 = vld [vmem:[%s238 + $0x24] sm:$0xf]
      %v249 = vld [vmem:[%s238 + $0x28] sm:$0xf]
      %v250 = vld [vmem:[%s238 + $0x2c] sm:$0xf]
      %v263 = vunpack.c.l.b16 %v239
      %v264 = vunpack.c.l.b16 %v240
      %v265 = vunpack.c.l.b16 %v241
      %v266 = vunpack.c.l.b16 %v242
      %v267 = vunpack.c.l.b16 %v243
      %v268 = vunpack.c.l.b16 %v244
      %v269 = vunpack.c.l.b16 %v245
      %v270 = vunpack.c.l.b16 %v246
      %v271 = vunpack.c.l.b16 %v247
      %v272 = vunpack.c.l.b16 %v248
      %v273 = vunpack.c.l.b16 %v249
      %v274 = vunpack.c.l.b16 %v250
      %v275 = vpack.c.b16 %v264, %v263
      %v276 = vpack.c.b16 %v266, %v265
      %v277 = vpack.c.b16 %v268, %v267
      %v278 = vpack.c.b16 %v270, %v269
      %v279 = vpack.c.b16 %v272, %v271
      %v280 = vpack.c.b16 %v274, %v273
      %vm287 = vcmask 785408
      %v289 = vsel %vm287, %v234, 0
      %v292 = vsel %vm287, %v235, 0
      %v295 = vsel %vm287, %v236, 0
      %v298 = vsel %vm287, %v237, 0
      %300 = vmatprep.subr.bf16.mxu0 0
      %301 = vmatpush1.bf16.msra.mxu0 %v275
      %302 = vmatprep.subr.bf16.mxu0 0
      %303 = vmatpush1.bf16.msra.mxu0 %v276
      %304 = vmatprep.subr.bf16.mxu0 0
      %305 = vmatpush1.bf16.msra.mxu0 %v277
      %306 = vmatprep.subr.bf16.mxu0 0
      %307 = vmatpush1.bf16.msra.mxu0 %v278
      %308 = vmatprep.subr.bf16.mxu0 0
      %309 = vmatpush1.bf16.msra.mxu0 %v279
      %310 = vmatprep.subr.bf16.mxu0 0
      %311 = vmatpush1.bf16.msra.mxu0 %v280
      %312 = vmatprep.subr.bf16.mxu0 0
      %313 = vmatpush1.bf16.msra.mxu0 0
      %314 = vmatprep.subr.bf16.mxu0 0
      %315 = vmatpush1.bf16.msra.mxu0 0
      %316 = vmatprep.subr.bf16.mxu0 0
      %317 = vmatpush1.bf16.msra.mxu0 0
      %318 = vmatprep.subr.bf16.mxu0 0
      %319 = vmatpush1.bf16.msra.mxu0 0
      %320 = vmatprep.subr.bf16.mxu0 0
      %321 = vmatpush1.bf16.msra.mxu0 0
      %322 = vmatprep.subr.bf16.mxu0 0
      %323 = vmatpush1.bf16.msra.mxu0 0
      %324 = vmatprep.subr.bf16.mxu0 0
      %325 = vmatpush1.bf16.msra.mxu0 0
      %326 = vmatprep.subr.bf16.mxu0 0
      %327 = vmatpush1.bf16.msra.mxu0 0
      %328 = vmatprep.subr.bf16.mxu0 0
      %329 = vmatpush1.bf16.msra.mxu0 0
      %330 = vmatprep.subr.bf16.mxu0 0
      %331 = vmatpush1.bf16.msra.mxu0 0
      %332 = vmatprep.mubr.bf16.mxu0 0
      %333 = vmatmul.mubr.bf16.gmra.mrb[0].mxu0 %v289
      %v334 = vpop.f32.mrb[0].mxu0
      %v335 = vadd.f32 0.0, %v334
      %v336 = vpop.f32.mrb[0].mxu0
      %v337 = vpop.f32.mrb[0].mxu0
      %v338 = vadd.f32 0.0, %v337
      %v339 = vpop.f32.mrb[0].mxu0
      %340 = vmatprep.mubr.bf16.mxu0 0
      %341 = vmatmul.mubr.bf16.gmra.mrb[0].mxu0 %v292
      %v342 = vpop.f32.mrb[0].mxu0
      %v343 = vadd.f32 0.0, %v342
      %v344 = vpop.f32.mrb[0].mxu0
      %v345 = vpop.f32.mrb[0].mxu0
      %v346 = vadd.f32 0.0, %v345
      %v347 = vpop.f32.mrb[0].mxu0
      %348 = vmatprep.mubr.bf16.mxu0 0
      %349 = vmatmul.mubr.bf16.gmra.mrb[0].mxu0 %v295
      %v350 = vpop.f32.mrb[0].mxu0
      %v351 = vadd.f32 0.0, %v350
      %v352 = vpop.f32.mrb[0].mxu0
      %v353 = vpop.f32.mrb[0].mxu0
      %v354 = vadd.f32 0.0, %v353
      %v355 = vpop.f32.mrb[0].mxu0
      %356 = vmatprep.mubr.bf16.mxu0 0
      %357 = vmatmul.mubr.bf16.gmra.mrb[0].mxu0 %v298
      %v358 = vpop.f32.mrb[0].mxu0
      %v359 = vadd.f32 0.0, %v358
      %v360 = vpop.f32.mrb[0].mxu0
      %v361 = vpop.f32.mrb[0].mxu0
      %v362 = vadd.f32 0.0, %v361
      %v363 = vpop.f32.mrb[0].mxu0
      %364 = vdwg.mxu0
      %v377 = vunpack.c.l.b16 %v213
      %v378 = vunpack.c.l.b16 %v214
      %v379 = vunpack.c.l.b16 %v215
      %v380 = vunpack.c.l.b16 %v216
      %v381 = vunpack.c.l.b16 %v217
      %v382 = vunpack.c.l.b16 %v218
      %v383 = vunpack.c.l.b16 %v219
      %v384 = vunpack.c.l.b16 %v220
      %v385 = vunpack.c.l.b16 %v221
      %v386 = vunpack.c.l.b16 %v222
      %v387 = vunpack.c.l.b16 %v223
      %v388 = vunpack.c.l.b16 %v224
      %v389 = vpack.c.b16 %v378, %v377
      %v390 = vpack.c.b16 %v380, %v379
      %v391 = vpack.c.b16 %v382, %v381
      %v392 = vpack.c.b16 %v384, %v383
      %v393 = vpack.c.b16 %v386, %v385
      %v394 = vpack.c.b16 %v388, %v387
      %v402 = vsel %vm287, %v209, 0
      %v405 = vsel %vm287, %v210, 0
      %v408 = vsel %vm287, %v211, 0
      %v411 = vsel %vm287, %v212, 0
      %413 = vmatprep.subr.bf16.mxu0 0
      %414 = vmatpush1.bf16.msra.mxu0 %v389
      %415 = vmatprep.subr.bf16.mxu0 0
      %416 = vmatpush1.bf16.msra.mxu0 %v390
      %417 = vmatprep.subr.bf16.mxu0 0
      %418 = vmatpush1.bf16.msra.mxu0 %v391
      %419 = vmatprep.subr.bf16.mxu0 0
      %420 = vmatpush1.bf16.msra.mxu0 %v392
      %421 = vmatprep.subr.bf16.mxu0 0
      %422 = vmatpush1.bf16.msra.mxu0 %v393
      %423 = vmatprep.subr.bf16.mxu0 0
      %424 = vmatpush1.bf16.msra.mxu0 %v394
      %425 = vmatprep.subr.bf16.mxu0 0
      %426 = vmatpush1.bf16.msra.mxu0 0
      %427 = vmatprep.subr.bf16.mxu0 0
      %428 = vmatpush1.bf16.msra.mxu0 0
      %429 = vmatprep.subr.bf16.mxu0 0
      %430 = vmatpush1.bf16.msra.mxu0 0
      %431 = vmatprep.subr.bf16.mxu0 0
      %432 = vmatpush1.bf16.msra.mxu0 0
      %433 = vmatprep.subr.bf16.mxu0 0
      %434 = vmatpush1.bf16.msra.mxu0 0
      %435 = vmatprep.subr.bf16.mxu0 0
      %436 = vmatpush1.bf16.msra.mxu0 0
      %437 = vmatprep.subr.bf16.mxu0 0
      %438 = vmatpush1.bf16.msra.mxu0 0
      %439 = vmatprep.subr.bf16.mxu0 0
      %440 = vmatpush1.bf16.msra.mxu0 0
      %441 = vmatprep.subr.bf16.mxu0 0
      %442 = vmatpush1.bf16.msra.mxu0 0
      %443 = vmatprep.subr.bf16.mxu0 0
      %444 = vmatpush1.bf16.msra.mxu0 0
      %445 = vmatprep.mubr.bf16.mxu0 0
      %446 = vmatmul.mubr.bf16.gmra.mrb[0].mxu0 %v402
      %v447 = vpop.f32.mrb[0].mxu0
      %v448 = vadd.f32 %v335, %v447
      %v449 = vpop.f32.mrb[0].mxu0
      %v450 = vpop.f32.mrb[0].mxu0
      %v451 = vadd.f32 %v338, %v450
      %v452 = vpop.f32.mrb[0].mxu0
      %453 = vmatprep.mubr.bf16.mxu0 0
      %454 = vmatmul.mubr.bf16.gmra.mrb[0].mxu0 %v405
      %v455 = vpop.f32.mrb[0].mxu0
      %v456 = vadd.f32 %v343, %v455
      %v457 = vpop.f32.mrb[0].mxu0
      %v458 = vpop.f32.mrb[0].mxu0
      %v459 = vadd.f32 %v346, %v458
      %v460 = vpop.f32.mrb[0].mxu0
      %461 = vmatprep.mubr.bf16.mxu0 0
      %462 = vmatmul.mubr.bf16.gmra.mrb[0].mxu0 %v408
      %v463 = vpop.f32.mrb[0].mxu0
      %v464 = vadd.f32 %v351, %v463
      %v465 = vpop.f32.mrb[0].mxu0
      %v466 = vpop.f32.mrb[0].mxu0
      %v467 = vadd.f32 %v354, %v466
      %v468 = vpop.f32.mrb[0].mxu0
      %469 = vmatprep.mubr.bf16.mxu0 0
      %470 = vmatmul.mubr.bf16.gmra.mrb[0].mxu0 %v411
      %v471 = vpop.f32.mrb[0].mxu0
      %v472 = vadd.f32 %v359, %v471
      %v473 = vpop.f32.mrb[0].mxu0
      %v474 = vpop.f32.mrb[0].mxu0
      %v475 = vadd.f32 %v362, %v474
      %v476 = vpop.f32.mrb[0].mxu0
      %477 = vdwg.mxu0
      %v478 = vld [vmem:[%s192 + $0x1] sm:$0xff]
      %v479 = vld [vmem:[%s192 + $0x11] sm:$0xff]
      %v480 = vld [vmem:[%s192 + $0x21] sm:$0xff]
      %v481 = vld [vmem:[%s192 + $0x31] sm:$0xff]
      %v482 = vld [vmem:[%s192 + $0x41] sm:$0xff]
      %v483 = vld [vmem:[%s192 + $0x51] sm:$0xff]
      %v484 = vld [vmem:[%s192 + $0x61] sm:$0xff]
      %v485 = vld [vmem:[%s192 + $0x71] sm:$0xff]
      %v486 = vpack.c.bf16 %v479, %v478
      %v487 = vpack.c.bf16 %v481, %v480
      %v488 = vpack.c.bf16 %v483, %v482
      %v489 = vpack.c.bf16 %v485, %v484
      %s490 = scalar_lea.vmem %s1, 96
      %v491 = vld [vmem:[%s490] sm:$0xf]
      %v492 = vld [vmem:[%s490 + $0x4] sm:$0xf]
      %v493 = vld [vmem:[%s490 + $0x8] sm:$0xf]
      %v494 = vld [vmem:[%s490 + $0xc] sm:$0xf]
      %v495 = vld [vmem:[%s490 + $0x10] sm:$0xf]
      %v496 = vld [vmem:[%s490 + $0x14] sm:$0xf]
      %v497 = vld [vmem:[%s490 + $0x18] sm:$0xf]
      %v498 = vld [vmem:[%s490 + $0x1c] sm:$0xf]
      %v499 = vld [vmem:[%s490 + $0x20] sm:$0xf]
      %v500 = vld [vmem:[%s490 + $0x24] sm:$0xf]
      %v501 = vld [vmem:[%s490 + $0x28] sm:$0xf]
      %v502 = vld [vmem:[%s490 + $0x2c] sm:$0xf]
      %v515 = vunpack.c.l.b16 %v491
      %v516 = vunpack.c.l.b16 %v492
      %v517 = vunpack.c.l.b16 %v493
      %v518 = vunpack.c.l.b16 %v494
      %v519 = vunpack.c.l.b16 %v495
      %v520 = vunpack.c.l.b16 %v496
      %v521 = vunpack.c.l.b16 %v497
      %v522 = vunpack.c.l.b16 %v498
      %v523 = vunpack.c.l.b16 %v499
      %v524 = vunpack.c.l.b16 %v500
      %v525 = vunpack.c.l.b16 %v501
      %v526 = vunpack.c.l.b16 %v502
      %v527 = vpack.c.b16 %v516, %v515
      %v528 = vpack.c.b16 %v518, %v517
      %v529 = vpack.c.b16 %v520, %v519
      %v530 = vpack.c.b16 %v522, %v521
      %v531 = vpack.c.b16 %v524, %v523
      %v532 = vpack.c.b16 %v526, %v525
      %v540 = vsel %vm287, %v486, 0
      %v543 = vsel %vm287, %v487, 0
      %v546 = vsel %vm287, %v488, 0
      %v549 = vsel %vm287, %v489, 0
      %551 = vmatprep.subr.bf16.mxu0 0
      %552 = vmatpush1.bf16.msra.mxu0 %v527
      %553 = vmatprep.subr.bf16.mxu0 0
      %554 = vmatpush1.bf16.msra.mxu0 %v528
      %555 = vmatprep.subr.bf16.mxu0 0
      %556 = vmatpush1.bf16.msra.mxu0 %v529
      %557 = vmatprep.subr.bf16.mxu0 0
      %558 = vmatpush1.bf16.msra.mxu0 %v530
      %559 = vmatprep.subr.bf16.mxu0 0
      %560 = vmatpush1.bf16.msra.mxu0 %v531
      %561 = vmatprep.subr.bf16.mxu0 0
      %562 = vmatpush1.bf16.msra.mxu0 %v532
      %563 = vmatprep.subr.bf16.mxu0 0
      %564 = vmatpush1.bf16.msra.mxu0 0
      %565 = vmatprep.subr.bf16.mxu0 0
      %566 = vmatpush1.bf16.msra.mxu0 0
      %567 = vmatprep.subr.bf16.mxu0 0
      %568 = vmatpush1.bf16.msra.mxu0 0
      %569 = vmatprep.subr.bf16.mxu0 0
      %570 = vmatpush1.bf16.msra.mxu0 0
      %571 = vmatprep.subr.bf16.mxu0 0
      %572 = vmatpush1.bf16.msra.mxu0 0
      %573 = vmatprep.subr.bf16.mxu0 0
      %574 = vmatpush1.bf16.msra.mxu0 0
      %575 = vmatprep.subr.bf16.mxu0 0
      %576 = vmatpush1.bf16.msra.mxu0 0
      %577 = vmatprep.subr.bf16.mxu0 0
      %578 = vmatpush1.bf16.msra.mxu0 0
      %579 = vmatprep.subr.bf16.mxu0 0
      %580 = vmatpush1.bf16.msra.mxu0 0
      %581 = vmatprep.subr.bf16.mxu0 0
      %582 = vmatpush1.bf16.msra.mxu0 0
      %583 = vmatprep.mubr.bf16.mxu0 0
      %584 = vmatmul.mubr.bf16.gmra.mrb[0].mxu0 %v540
      %v585 = vpop.f32.mrb[0].mxu0
      %v586 = vadd.f32 0.0, %v585
      %v587 = vpop.f32.mrb[0].mxu0
      %v588 = vpop.f32.mrb[0].mxu0
      %v589 = vadd.f32 0.0, %v588
      %v590 = vpop.f32.mrb[0].mxu0
      %591 = vmatprep.mubr.bf16.mxu0 0
      %592 = vmatmul.mubr.bf16.gmra.mrb[0].mxu0 %v543
      %v593 = vpop.f32.mrb[0].mxu0
      %v594 = vadd.f32 0.0, %v593
      %v595 = vpop.f32.mrb[0].mxu0
      %v596 = vpop.f32.mrb[0].mxu0
      %v597 = vadd.f32 0.0, %v596
      %v598 = vpop.f32.mrb[0].mxu0
      %599 = vmatprep.mubr.bf16.mxu0 0
      %600 = vmatmul.mubr.bf16.gmra.mrb[0].mxu0 %v546
      %v601 = vpop.f32.mrb[0].mxu0
      %v602 = vadd.f32 0.0, %v601
      %v603 = vpop.f32.mrb[0].mxu0
      %v604 = vpop.f32.mrb[0].mxu0
      %v605 = vadd.f32 0.0, %v604
      %v606 = vpop.f32.mrb[0].mxu0
      %607 = vmatprep.mubr.bf16.mxu0 0
      %608 = vmatmul.mubr.bf16.gmra.mrb[0].mxu0 %v549
      %v609 = vpop.f32.mrb[0].mxu0
      %v610 = vadd.f32 0.0, %v609
      %v611 = vpop.f32.mrb[0].mxu0
      %v612 = vpop.f32.mrb[0].mxu0
      %v613 = vadd.f32 0.0, %v612
      %v614 = vpop.f32.mrb[0].mxu0
      %615 = vdwg.mxu0
      %v616 = vadd.f32 %v448, %v586
      %v617 = vadd.f32 %v451, %v589
      %v618 = vadd.f32 %v456, %v594
      %v619 = vadd.f32 %v459, %v597
      %v620 = vadd.f32 %v464, %v602
      %v621 = vadd.f32 %v467, %v605
      %v622 = vadd.f32 %v472, %v610
      %v623 = vadd.f32 %v475, %v613
      %s624 = scalar_lea.vmem %s192, 288
      %v625 = vld [vmem:[%s624] sm:$0xff]
      %v626 = vld [vmem:[%s624 + $0x10] sm:$0xff]
      %v627 = vld [vmem:[%s624 + $0x20] sm:$0xff]
      %v628 = vld [vmem:[%s624 + $0x30] sm:$0xff]
      %v629 = vld [vmem:[%s624 + $0x40] sm:$0xff]
      %v630 = vld [vmem:[%s624 + $0x50] sm:$0xff]
      %v631 = vld [vmem:[%s624 + $0x60] sm:$0xff]
      %v632 = vld [vmem:[%s624 + $0x70] sm:$0xff]
      %v633 = vpack.c.bf16 %v626, %v625
      %v634 = vpack.c.bf16 %v628, %v627
      %v635 = vpack.c.bf16 %v630, %v629
      %v636 = vpack.c.bf16 %v632, %v631
      %s637 = scalar_lea.vmem %s1, 144
      %v638 = vld [vmem:[%s637] sm:$0xf]
      %v639 = vld [vmem:[%s637 + $0x4] sm:$0xf]
      %v640 = vld [vmem:[%s637 + $0x8] sm:$0xf]
      %v641 = vld [vmem:[%s637 + $0xc] sm:$0xf]
      %v642 = vld [vmem:[%s637 + $0x10] sm:$0xf]
      %v643 = vld [vmem:[%s637 + $0x14] sm:$0xf]
      %v644 = vld [vmem:[%s637 + $0x18] sm:$0xf]
      %v645 = vld [vmem:[%s637 + $0x1c] sm:$0xf]
      %v646 = vld [vmem:[%s637 + $0x20] sm:$0xf]
      %v647 = vld [vmem:[%s637 + $0x24] sm:$0xf]
      %v648 = vld [vmem:[%s637 + $0x28] sm:$0xf]
      %v649 = vld [vmem:[%s637 + $0x2c] sm:$0xf]
      %v662 = vunpack.c.l.b16 %v638
      %v663 = vunpack.c.l.b16 %v639
      %v664 = vunpack.c.l.b16 %v640
      %v665 = vunpack.c.l.b16 %v641
      %v666 = vunpack.c.l.b16 %v642
      %v667 = vunpack.c.l.b16 %v643
      %v668 = vunpack.c.l.b16 %v644
      %v669 = vunpack.c.l.b16 %v645
      %v670 = vunpack.c.l.b16 %v646
      %v671 = vunpack.c.l.b16 %v647
      %v672 = vunpack.c.l.b16 %v648
      %v673 = vunpack.c.l.b16 %v649
      %v674 = vpack.c.b16 %v663, %v662
      %v675 = vpack.c.b16 %v665, %v664
      %v676 = vpack.c.b16 %v667, %v666
      %v677 = vpack.c.b16 %v669, %v668
      %v678 = vpack.c.b16 %v671, %v670
      %v679 = vpack.c.b16 %v673, %v672
      %v687 = vsel %vm287, %v633, 0
      %v690 = vsel %vm287, %v634, 0
      %v693 = vsel %vm287, %v635, 0
      %v696 = vsel %vm287, %v636, 0
      %698 = vmatprep.subr.bf16.mxu0 0
      %699 = vmatpush1.bf16.msra.mxu0 %v674
      %700 = vmatprep.subr.bf16.mxu0 0
      %701 = vmatpush1.bf16.msra.mxu0 %v675
      %702 = vmatprep.subr.bf16.mxu0 0
      %703 = vmatpush1.bf16.msra.mxu0 %v676
      %704 = vmatprep.subr.bf16.mxu0 0
      %705 = vmatpush1.bf16.msra.mxu0 %v677
      %706 = vmatprep.subr.bf16.mxu0 0
      %707 = vmatpush1.bf16.msra.mxu0 %v678
      %708 = vmatprep.subr.bf16.mxu0 0
      %709 = vmatpush1.bf16.msra.mxu0 %v679
      %710 = vmatprep.subr.bf16.mxu0 0
      %711 = vmatpush1.bf16.msra.mxu0 0
      %712 = vmatprep.subr.bf16.mxu0 0
      %713 = vmatpush1.bf16.msra.mxu0 0
      %714 = vmatprep.subr.bf16.mxu0 0
      %715 = vmatpush1.bf16.msra.mxu0 0
      %716 = vmatprep.subr.bf16.mxu0 0
      %717 = vmatpush1.bf16.msra.mxu0 0
      %718 = vmatprep.subr.bf16.mxu0 0
      %719 = vmatpush1.bf16.msra.mxu0 0
      %720 = vmatprep.subr.bf16.mxu0 0
      %721 = vmatpush1.bf16.msra.mxu0 0
      %722 = vmatprep.subr.bf16.mxu0 0
      %723 = vmatpush1.bf16.msra.mxu0 0
      %724 = vmatprep.subr.bf16.mxu0 0
      %725 = vmatpush1.bf16.msra.mxu0 0
      %726 = vmatprep.subr.bf16.mxu0 0
      %727 = vmatpush1.bf16.msra.mxu0 0
      %728 = vmatprep.subr.bf16.mxu0 0
      %729 = vmatpush1.bf16.msra.mxu0 0
      %730 = vmatprep.mubr.bf16.mxu0 0
      %731 = vmatmul.mubr.bf16.gmra.mrb[0].mxu0 %v687
      %v732 = vpop.f32.mrb[0].mxu0
      %v733 = vadd.f32 0.0, %v732
      %v734 = vpop.f32.mrb[0].mxu0
      %v735 = vpop.f32.mrb[0].mxu0
      %v736 = vadd.f32 0.0, %v735
      %v737 = vpop.f32.mrb[0].mxu0
      %738 = vmatprep.mubr.bf16.mxu0 0
      %739 = vmatmul.mubr.bf16.gmra.mrb[0].mxu0 %v690
      %v740 = vpop.f32.mrb[0].mxu0
      %v741 = vadd.f32 0.0, %v740
      %v742 = vpop.f32.mrb[0].mxu0
      %v743 = vpop.f32.mrb[0].mxu0
      %v744 = vadd.f32 0.0, %v743
      %v745 = vpop.f32.mrb[0].mxu0
      %746 = vmatprep.mubr.bf16.mxu0 0
      %747 = vmatmul.mubr.bf16.gmra.mrb[0].mxu0 %v693
      %v748 = vpop.f32.mrb[0].mxu0
      %v749 = vadd.f32 0.0, %v748
      %v750 = vpop.f32.mrb[0].mxu0
      %v751 = vpop.f32.mrb[0].mxu0
      %v752 = vadd.f32 0.0, %v751
      %v753 = vpop.f32.mrb[0].mxu0
      %754 = vmatprep.mubr.bf16.mxu0 0
      %755 = vmatmul.mubr.bf16.gmra.mrb[0].mxu0 %v696
      %v756 = vpop.f32.mrb[0].mxu0
      %v757 = vadd.f32 0.0, %v756
      %v758 = vpop.f32.mrb[0].mxu0
      %v759 = vpop.f32.mrb[0].mxu0
      %v760 = vadd.f32 0.0, %v759
      %v761 = vpop.f32.mrb[0].mxu0
      %762 = vdwg.mxu0
      %v763 = vadd.f32 %v616, %v733
      %v764 = vadd.f32 %v617, %v736
      %v765 = vadd.f32 %v618, %v741
      %v766 = vadd.f32 %v619, %v744
      %v767 = vadd.f32 %v620, %v749
      %v768 = vadd.f32 %v621, %v752
      %v769 = vadd.f32 %v622, %v757
      %v770 = vadd.f32 %v623, %v760
      %s771 = scalar_lea.vmem %s192, 432
      %v772 = vld [vmem:[%s771] sm:$0xff]
      %v773 = vld [vmem:[%s771 + $0x10] sm:$0xff]
      %v774 = vld [vmem:[%s771 + $0x20] sm:$0xff]
      %v775 = vld [vmem:[%s771 + $0x30] sm:$0xff]
      %v776 = vld [vmem:[%s771 + $0x40] sm:$0xff]
      %v777 = vld [vmem:[%s771 + $0x50] sm:$0xff]
      %v778 = vld [vmem:[%s771 + $0x60] sm:$0xff]
      %v779 = vld [vmem:[%s771 + $0x70] sm:$0xff]
      %v780 = vpack.c.bf16 %v773, %v772
      %v781 = vpack.c.bf16 %v775, %v774
      %v782 = vpack.c.bf16 %v777, %v776
      %v783 = vpack.c.bf16 %v779, %v778
      %s784 = scalar_lea.vmem %s1, 192
      %v785 = vld [vmem:[%s784] sm:$0xf]
      %v786 = vld [vmem:[%s784 + $0x4] sm:$0xf]
      %v787 = vld [vmem:[%s784 + $0x8] sm:$0xf]
      %v788 = vld [vmem:[%s784 + $0xc] sm:$0xf]
      %v789 = vld [vmem:[%s784 + $0x10] sm:$0xf]
      %v790 = vld [vmem:[%s784 + $0x14] sm:$0xf]
      %v791 = vld [vmem:[%s784 + $0x18] sm:$0xf]
      %v792 = vld [vmem:[%s784 + $0x1c] sm:$0xf]
      %v793 = vld [vmem:[%s784 + $0x20] sm:$0xf]
      %v794 = vld [vmem:[%s784 + $0x24] sm:$0xf]
      %v795 = vld [vmem:[%s784 + $0x28] sm:$0xf]
      %v796 = vld [vmem:[%s784 + $0x2c] sm:$0xf]
      %v809 = vunpack.c.l.b16 %v785
      %v810 = vunpack.c.l.b16 %v786
      %v811 = vunpack.c.l.b16 %v787
      %v812 = vunpack.c.l.b16 %v788
      %v813 = vunpack.c.l.b16 %v789
      %v814 = vunpack.c.l.b16 %v790
      %v815 = vunpack.c.l.b16 %v791
      %v816 = vunpack.c.l.b16 %v792
      %v817 = vunpack.c.l.b16 %v793
      %v818 = vunpack.c.l.b16 %v794
      %v819 = vunpack.c.l.b16 %v795
      %v820 = vunpack.c.l.b16 %v796
      %v821 = vpack.c.b16 %v810, %v809
      %v822 = vpack.c.b16 %v812, %v811
      %v823 = vpack.c.b16 %v814, %v813
      %v824 = vpack.c.b16 %v816, %v815
      %v825 = vpack.c.b16 %v818, %v817
      %v826 = vpack.c.b16 %v820, %v819
      %v834 = vsel %vm287, %v780, 0
      %v837 = vsel %vm287, %v781, 0
      %v840 = vsel %vm287, %v782, 0
      %v843 = vsel %vm287, %v783, 0
      %845 = vmatprep.subr.bf16.mxu0 0
      %846 = vmatpush1.bf16.msra.mxu0 %v821
      %847 = vmatprep.subr.bf16.mxu0 0
      %848 = vmatpush1.bf16.msra.mxu0 %v822
      %849 = vmatprep.subr.bf16.mxu0 0
      %850 = vmatpush1.bf16.msra.mxu0 %v823
      %851 = vmatprep.subr.bf16.mxu0 0
      %852 = vmatpush1.bf16.msra.mxu0 %v824
      %853 = vmatprep.subr.bf16.mxu0 0
      %854 = vmatpush1.bf16.msra.mxu0 %v825
      %855 = vmatprep.subr.bf16.mxu0 0
      %856 = vmatpush1.bf16.msra.mxu0 %v826
      %857 = vmatprep.subr.bf16.mxu0 0
      %858 = vmatpush1.bf16.msra.mxu0 0
      %859 = vmatprep.subr.bf16.mxu0 0
      %860 = vmatpush1.bf16.msra.mxu0 0
      %861 = vmatprep.subr.bf16.mxu0 0
      %862 = vmatpush1.bf16.msra.mxu0 0
      %863 = vmatprep.subr.bf16.mxu0 0
      %864 = vmatpush1.bf16.msra.mxu0 0
      %865 = vmatprep.subr.bf16.mxu0 0
      %866 = vmatpush1.bf16.msra.mxu0 0
      %867 = vmatprep.subr.bf16.mxu0 0
      %868 = vmatpush1.bf16.msra.mxu0 0
      %869 = vmatprep.subr.bf16.mxu0 0
      %870 = vmatpush1.bf16.msra.mxu0 0
      %871 = vmatprep.subr.bf16.mxu0 0
      %872 = vmatpush1.bf16.msra.mxu0 0
      %873 = vmatprep.subr.bf16.mxu0 0
      %874 = vmatpush1.bf16.msra.mxu0 0
      %875 = vmatprep.subr.bf16.mxu0 0
      %876 = vmatpush1.bf16.msra.mxu0 0
      %877 = vmatprep.mubr.bf16.mxu0 0
      %878 = vmatmul.mubr.bf16.gmra.mrb[0].mxu0 %v834
      %v879 = vpop.f32.mrb[0].mxu0
      %v880 = vadd.f32 0.0, %v879
      %v881 = vpop.f32.mrb[0].mxu0
      %v882 = vpop.f32.mrb[0].mxu0
      %v883 = vadd.f32 0.0, %v882
      %v884 = vpop.f32.mrb[0].mxu0
      %885 = vmatprep.mubr.bf16.mxu0 0
      %886 = vmatmul.mubr.bf16.gmra.mrb[0].mxu0 %v837
      %v887 = vpop.f32.mrb[0].mxu0
      %v888 = vadd.f32 0.0, %v887
      %v889 = vpop.f32.mrb[0].mxu0
      %v890 = vpop.f32.mrb[0].mxu0
      %v891 = vadd.f32 0.0, %v890
      %v892 = vpop.f32.mrb[0].mxu0
      %893 = vmatprep.mubr.bf16.mxu0 0
      %894 = vmatmul.mubr.bf16.gmra.mrb[0].mxu0 %v840
      %v895 = vpop.f32.mrb[0].mxu0
      %v896 = vadd.f32 0.0, %v895
      %v897 = vpop.f32.mrb[0].mxu0
      %v898 = vpop.f32.mrb[0].mxu0
      %v899 = vadd.f32 0.0, %v898
      %v900 = vpop.f32.mrb[0].mxu0
      %901 = vmatprep.mubr.bf16.mxu0 0
      %902 = vmatmul.mubr.bf16.gmra.mrb[0].mxu0 %v843
      %v903 = vpop.f32.mrb[0].mxu0
      %v904 = vadd.f32 0.0, %v903
      %v905 = vpop.f32.mrb[0].mxu0
      %v906 = vpop.f32.mrb[0].mxu0
      %v907 = vadd.f32 0.0, %v906
      %v908 = vpop.f32.mrb[0].mxu0
      %909 = vdwg.mxu0
      %v910 = vadd.f32 %v763, %v880
      %v911 = vadd.f32 %v764, %v883
      %v912 = vadd.f32 %v765, %v888
      %v913 = vadd.f32 %v766, %v891
      %v914 = vadd.f32 %v767, %v896
      %v915 = vadd.f32 %v768, %v899
      %v916 = vadd.f32 %v769, %v904
      %v917 = vadd.f32 %v770, %v907
      %v918 = vld [vmem:[%s624 + $0x1] sm:$0xff]
      %v919 = vld [vmem:[%s624 + $0x11] sm:$0xff]
      %v920 = vld [vmem:[%s624 + $0x21] sm:$0xff]
      %v921 = vld [vmem:[%s624 + $0x31] sm:$0xff]
      %v922 = vld [vmem:[%s624 + $0x41] sm:$0xff]
      %v923 = vld [vmem:[%s624 + $0x51] sm:$0xff]
      %v924 = vld [vmem:[%s624 + $0x61] sm:$0xff]
      %v925 = vld [vmem:[%s624 + $0x71] sm:$0xff]
      %v926 = vpack.c.bf16 %v919, %v918
      %v927 = vpack.c.bf16 %v921, %v920
      %v928 = vpack.c.bf16 %v923, %v922
      %v929 = vpack.c.bf16 %v925, %v924
      %s930 = scalar_lea.vmem %s1, 240
      %v931 = vld [vmem:[%s930] sm:$0xf]
      %v932 = vld [vmem:[%s930 + $0x4] sm:$0xf]
      %v933 = vld [vmem:[%s930 + $0x8] sm:$0xf]
      %v934 = vld [vmem:[%s930 + $0xc] sm:$0xf]
      %v935 = vld [vmem:[%s930 + $0x10] sm:$0xf]
      %v936 = vld [vmem:[%s930 + $0x14] sm:$0xf]
      %v937 = vld [vmem:[%s930 + $0x18] sm:$0xf]
      %v938 = vld [vmem:[%s930 + $0x1c] sm:$0xf]
      %v939 = vld [vmem:[%s930 + $0x20] sm:$0xf]
      %v940 = vld [vmem:[%s930 + $0x24] sm:$0xf]
      %v941 = vld [vmem:[%s930 + $0x28] sm:$0xf]
      %v942 = vld [vmem:[%s930 + $0x2c] sm:$0xf]
      %v955 = vunpack.c.l.b16 %v931
      %v956 = vunpack.c.l.b16 %v932
      %v957 = vunpack.c.l.b16 %v933
      %v958 = vunpack.c.l.b16 %v934
      %v959 = vunpack.c.l.b16 %v935
      %v960 = vunpack.c.l.b16 %v936
      %v961 = vunpack.c.l.b16 %v937
      %v962 = vunpack.c.l.b16 %v938
      %v963 = vunpack.c.l.b16 %v939
      %v964 = vunpack.c.l.b16 %v940
      %v965 = vunpack.c.l.b16 %v941
      %v966 = vunpack.c.l.b16 %v942
      %v967 = vpack.c.b16 %v956, %v955
      %v968 = vpack.c.b16 %v958, %v957
      %v969 = vpack.c.b16 %v960, %v959
      %v970 = vpack.c.b16 %v962, %v961
      %v971 = vpack.c.b16 %v964, %v963
      %v972 = vpack.c.b16 %v966, %v965
      %v980 = vsel %vm287, %v926, 0
      %v983 = vsel %vm287, %v927, 0
      %v986 = vsel %vm287, %v928, 0
      %v989 = vsel %vm287, %v929, 0
      %991 = vmatprep.subr.bf16.mxu0 0
      %992 = vmatpush1.bf16.msra.mxu0 %v967
      %993 = vmatprep.subr.bf16.mxu0 0
      %994 = vmatpush1.bf16.msra.mxu0 %v968
      %995 = vmatprep.subr.bf16.mxu0 0
      %996 = vmatpush1.bf16.msra.mxu0 %v969
      %997 = vmatprep.subr.bf16.mxu0 0
      %998 = vmatpush1.bf16.msra.mxu0 %v970
      %999 = vmatprep.subr.bf16.mxu0 0
      %1000 = vmatpush1.bf16.msra.mxu0 %v971
      %1001 = vmatprep.subr.bf16.mxu0 0
      %1002 = vmatpush1.bf16.msra.mxu0 %v972
      %1003 = vmatprep.subr.bf16.mxu0 0
      %1004 = vmatpush1.bf16.msra.mxu0 0
      %1005 = vmatprep.subr.bf16.mxu0 0
      %1006 = vmatpush1.bf16.msra.mxu0 0
      %1007 = vmatprep.subr.bf16.mxu0 0
      %1008 = vmatpush1.bf16.msra.mxu0 0
      %1009 = vmatprep.subr.bf16.mxu0 0
      %1010 = vmatpush1.bf16.msra.mxu0 0
      %1011 = vmatprep.subr.bf16.mxu0 0
      %1012 = vmatpush1.bf16.msra.mxu0 0
      %1013 = vmatprep.subr.bf16.mxu0 0
      %1014 = vmatpush1.bf16.msra.mxu0 0
      %1015 = vmatprep.subr.bf16.mxu0 0
      %1016 = vmatpush1.bf16.msra.mxu0 0
      %1017 = vmatprep.subr.bf16.mxu0 0
      %1018 = vmatpush1.bf16.msra.mxu0 0
      %1019 = vmatprep.subr.bf16.mxu0 0
      %1020 = vmatpush1.bf16.msra.mxu0 0
      %1021 = vmatprep.subr.bf16.mxu0 0
      %1022 = vmatpush1.bf16.msra.mxu0 0
      %1023 = vmatprep.mubr.bf16.mxu0 0
      %1024 = vmatmul.mubr.bf16.gmra.mrb[0].mxu0 %v980
      %v1025 = vpop.f32.mrb[0].mxu0
      %v1026 = vadd.f32 0.0, %v1025
      %v1027 = vpop.f32.mrb[0].mxu0
      %v1028 = vpop.f32.mrb[0].mxu0
      %v1029 = vadd.f32 0.0, %v1028
      %v1030 = vpop.f32.mrb[0].mxu0
      %1031 = vmatprep.mubr.bf16.mxu0 0
      %1032 = vmatmul.mubr.bf16.gmra.mrb[0].mxu0 %v983
      %v1033 = vpop.f32.mrb[0].mxu0
      %v1034 = vadd.f32 0.0, %v1033
      %v1035 = vpop.f32.mrb[0].mxu0
      %v1036 = vpop.f32.mrb[0].mxu0
      %v1037 = vadd.f32 0.0, %v1036
      %v1038 = vpop.f32.mrb[0].mxu0
      %1039 = vmatprep.mubr.bf16.mxu0 0
      %1040 = vmatmul.mubr.bf16.gmra.mrb[0].mxu0 %v986
      %v1041 = vpop.f32.mrb[0].mxu0
      %v1042 = vadd.f32 0.0, %v1041
      %v1043 = vpop.f32.mrb[0].mxu0
      %v1044 = vpop.f32.mrb[0].mxu0
      %v1045 = vadd.f32 0.0, %v1044
      %v1046 = vpop.f32.mrb[0].mxu0
      %1047 = vmatprep.mubr.bf16.mxu0 0
      %1048 = vmatmul.mubr.bf16.gmra.mrb[0].mxu0 %v989
      %v1049 = vpop.f32.mrb[0].mxu0
      %v1050 = vadd.f32 0.0, %v1049
      %v1051 = vpop.f32.mrb[0].mxu0
      %v1052 = vpop.f32.mrb[0].mxu0
      %v1053 = vadd.f32 0.0, %v1052
      %v1054 = vpop.f32.mrb[0].mxu0
      %1055 = vdwg.mxu0
      %v1056 = vadd.f32 %v910, %v1026
      %v1057 = vadd.f32 %v911, %v1029
      %v1058 = vadd.f32 %v912, %v1034
      %v1059 = vadd.f32 %v913, %v1037
      %v1060 = vadd.f32 %v914, %v1042
      %v1061 = vadd.f32 %v915, %v1045
      %v1062 = vadd.f32 %v916, %v1050
      %v1063 = vadd.f32 %v917, %v1053
      %s1064 = scalar_lea.vmem %s192, 16
      %v1065 = vld [vmem:[%s1064] sm:$0xff]
      %v1066 = vld [vmem:[%s1064 + $0x10] sm:$0xff]
      %v1067 = vld [vmem:[%s1064 + $0x20] sm:$0xff]
      %v1068 = vld [vmem:[%s1064 + $0x30] sm:$0xff]
      %v1069 = vld [vmem:[%s1064 + $0x40] sm:$0xff]
      %v1070 = vld [vmem:[%s1064 + $0x50] sm:$0xff]
      %v1071 = vld [vmem:[%s1064 + $0x60] sm:$0xff]
      %v1072 = vld [vmem:[%s1064 + $0x70] sm:$0xff]
      %v1073 = vpack.c.bf16 %v1066, %v1065
      %v1074 = vpack.c.bf16 %v1068, %v1067
      %v1075 = vpack.c.bf16 %v1070, %v1069
      %v1076 = vpack.c.bf16 %v1072, %v1071
      %s1077 = scalar_lea.vmem %s1, 288
      %v1078 = vld [vmem:[%s1077] sm:$0xf]
      %v1079 = vld [vmem:[%s1077 + $0x4] sm:$0xf]
      %v1080 = vld [vmem:[%s1077 + $0x8] sm:$0xf]
      %v1081 = vld [vmem:[%s1077 + $0xc] sm:$0xf]
      %v1082 = vld [vmem:[%s1077 + $0x10] sm:$0xf]
      %v1083 = vld [vmem:[%s1077 + $0x14] sm:$0xf]
      %v1084 = vld [vmem:[%s1077 + $0x18] sm:$0xf]
      %v1085 = vld [vmem:[%s1077 + $0x1c] sm:$0xf]
      %v1086 = vld [vmem:[%s1077 + $0x20] sm:$0xf]
      %v1087 = vld [vmem:[%s1077 + $0x24] sm:$0xf]
      %v1088 = vld [vmem:[%s1077 + $0x28] sm:$0xf]
      %v1089 = vld [vmem:[%s1077 + $0x2c] sm:$0xf]
      %v1102 = vunpack.c.l.b16 %v1078
      %v1103 = vunpack.c.l.b16 %v1079
      %v1104 = vunpack.c.l.b16 %v1080
      %v1105 = vunpack.c.l.b16 %v1081
      %v1106 = vunpack.c.l.b16 %v1082
      %v1107 = vunpack.c.l.b16 %v1083
      %v1108 = vunpack.c.l.b16 %v1084
      %v1109 = vunpack.c.l.b16 %v1085
      %v1110 = vunpack.c.l.b16 %v1086
      %v1111 = vunpack.c.l.b16 %v1087
      %v1112 = vunpack.c.l.b16 %v1088
      %v1113 = vunpack.c.l.b16 %v1089
      %v1114 = vpack.c.b16 %v1103, %v1102
      %v1115 = vpack.c.b16 %v1105, %v1104
      %v1116 = vpack.c.b16 %v1107, %v1106
      %v1117 = vpack.c.b16 %v1109, %v1108
      %v1118 = vpack.c.b16 %v1111, %v1110
      %v1119 = vpack.c.b16 %v1113, %v1112
      %v1127 = vsel %vm287, %v1073, 0
      %v1130 = vsel %vm287, %v1074, 0
      %v1133 = vsel %vm287, %v1075, 0
      %v1136 = vsel %vm287, %v1076, 0
      %1138 = vmatprep.subr.bf16.mxu0 0
      %1139 = vmatpush1.bf16.msra.mxu0 %v1114
      %1140 = vmatprep.subr.bf16.mxu0 0
      %1141 = vmatpush1.bf16.msra.mxu0 %v1115
      %1142 = vmatprep.subr.bf16.mxu0 0
      %1143 = vmatpush1.bf16.msra.mxu0 %v1116
      %1144 = vmatprep.subr.bf16.mxu0 0
      %1145 = vmatpush1.bf16.msra.mxu0 %v1117
      %1146 = vmatprep.subr.bf16.mxu0 0
      %1147 = vmatpush1.bf16.msra.mxu0 %v1118
      %1148 = vmatprep.subr.bf16.mxu0 0
      %1149 = vmatpush1.bf16.msra.mxu0 %v1119
      %1150 = vmatprep.subr.bf16.mxu0 0
      %1151 = vmatpush1.bf16.msra.mxu0 0
      %1152 = vmatprep.subr.bf16.mxu0 0
      %1153 = vmatpush1.bf16.msra.mxu0 0
      %1154 = vmatprep.subr.bf16.mxu0 0
      %1155 = vmatpush1.bf16.msra.mxu0 0
      %1156 = vmatprep.subr.bf16.mxu0 0
      %1157 = vmatpush1.bf16.msra.mxu0 0
      %1158 = vmatprep.subr.bf16.mxu0 0
      %1159 = vmatpush1.bf16.msra.mxu0 0
      %1160 = vmatprep.subr.bf16.mxu0 0
      %1161 = vmatpush1.bf16.msra.mxu0 0
      %1162 = vmatprep.subr.bf16.mxu0 0
      %1163 = vmatpush1.bf16.msra.mxu0 0
      %1164 = vmatprep.subr.bf16.mxu0 0
      %1165 = vmatpush1.bf16.msra.mxu0 0
      %1166 = vmatprep.subr.bf16.mxu0 0
      %1167 = vmatpush1.bf16.msra.mxu0 0
      %1168 = vmatprep.subr.bf16.mxu0 0
      %1169 = vmatpush1.bf16.msra.mxu0 0
      %1170 = vmatprep.mubr.bf16.mxu0 0
      %1171 = vmatmul.mubr.bf16.gmra.mrb[0].mxu0 %v1127
      %v1172 = vpop.f32.mrb[0].mxu0
      %v1173 = vadd.f32 0.0, %v1172
      %v1174 = vpop.f32.mrb[0].mxu0
      %v1175 = vpop.f32.mrb[0].mxu0
      %v1176 = vadd.f32 0.0, %v1175
      %v1177 = vpop.f32.mrb[0].mxu0
      %1178 = vmatprep.mubr.bf16.mxu0 0
      %1179 = vmatmul.mubr.bf16.gmra.mrb[0].mxu0 %v1130
      %v1180 = vpop.f32.mrb[0].mxu0
      %v1181 = vadd.f32 0.0, %v1180
      %v1182 = vpop.f32.mrb[0].mxu0
      %v1183 = vpop.f32.mrb[0].mxu0
      %v1184 = vadd.f32 0.0, %v1183
      %v1185 = vpop.f32.mrb[0].mxu0
      %1186 = vmatprep.mubr.bf16.mxu0 0
      %1187 = vmatmul.mubr.bf16.gmra.mrb[0].mxu0 %v1133
      %v1188 = vpop.f32.mrb[0].mxu0
      %v1189 = vadd.f32 0.0, %v1188
      %v1190 = vpop.f32.mrb[0].mxu0
      %v1191 = vpop.f32.mrb[0].mxu0
      %v1192 = vadd.f32 0.0, %v1191
      %v1193 = vpop.f32.mrb[0].mxu0
      %1194 = vmatprep.mubr.bf16.mxu0 0
      %1195 = vmatmul.mubr.bf16.gmra.mrb[0].mxu0 %v1136
      %v1196 = vpop.f32.mrb[0].mxu0
      %v1197 = vadd.f32 0.0, %v1196
      %v1198 = vpop.f32.mrb[0].mxu0
      %v1199 = vpop.f32.mrb[0].mxu0
      %v1200 = vadd.f32 0.0, %v1199
      %v1201 = vpop.f32.mrb[0].mxu0
      %1202 = vdwg.mxu0
      %v1203 = vadd.f32 %v1056, %v1173
      %v1204 = vadd.f32 %v1057, %v1176
      %v1205 = vadd.f32 %v1058, %v1181
      %v1206 = vadd.f32 %v1059, %v1184
      %v1207 = vadd.f32 %v1060, %v1189
      %v1208 = vadd.f32 %v1061, %v1192
      %v1209 = vadd.f32 %v1062, %v1197
      %v1210 = vadd.f32 %v1063, %v1200
      %s1211 = scalar_lea.vmem %s192, 160
      %v1212 = vld [vmem:[%s1211] sm:$0xff]
      %v1213 = vld [vmem:[%s1211 + $0x10] sm:$0xff]
      %v1214 = vld [vmem:[%s1211 + $0x20] sm:$0xff]
      %v1215 = vld [vmem:[%s1211 + $0x30] sm:$0xff]
      %v1216 = vld [vmem:[%s1211 + $0x40] sm:$0xff]
      %v1217 = vld [vmem:[%s1211 + $0x50] sm:$0xff]
      %v1218 = vld [vmem:[%s1211 + $0x60] sm:$0xff]
      %v1219 = vld [vmem:[%s1211 + $0x70] sm:$0xff]
      %v1220 = vpack.c.bf16 %v1213, %v1212
      %v1221 = vpack.c.bf16 %v1215, %v1214
      %v1222 = vpack.c.bf16 %v1217, %v1216
      %v1223 = vpack.c.bf16 %v1219, %v1218
      %s1224 = scalar_lea.vmem %s1, 336
      %v1225 = vld [vmem:[%s1224] sm:$0xf]
      %v1226 = vld [vmem:[%s1224 + $0x4] sm:$0xf]
      %v1227 = vld [vmem:[%s1224 + $0x8] sm:$0xf]
      %v1228 = vld [vmem:[%s1224 + $0xc] sm:$0xf]
      %v1229 = vld [vmem:[%s1224 + $0x10] sm:$0xf]
      %v1230 = vld [vmem:[%s1224 + $0x14] sm:$0xf]
      %v1231 = vld [vmem:[%s1224 + $0x18] sm:$0xf]
      %v1232 = vld [vmem:[%s1224 + $0x1c] sm:$0xf]
      %v1233 = vld [vmem:[%s1224 + $0x20] sm:$0xf]
      %v1234 = vld [vmem:[%s1224 + $0x24] sm:$0xf]
      %v1235 = vld [vmem:[%s1224 + $0x28] sm:$0xf]
      %v1236 = vld [vmem:[%s1224 + $0x2c] sm:$0xf]
      %v1249 = vunpack.c.l.b16 %v1225
      %v1250 = vunpack.c.l.b16 %v1226
      %v1251 = vunpack.c.l.b16 %v1227
      %v1252 = vunpack.c.l.b16 %v1228
      %v1253 = vunpack.c.l.b16 %v1229
      %v1254 = vunpack.c.l.b16 %v1230
      %v1255 = vunpack.c.l.b16 %v1231
      %v1256 = vunpack.c.l.b16 %v1232
      %v1257 = vunpack.c.l.b16 %v1233
      %v1258 = vunpack.c.l.b16 %v1234
      %v1259 = vunpack.c.l.b16 %v1235
      %v1260 = vunpack.c.l.b16 %v1236
      %v1261 = vpack.c.b16 %v1250, %v1249
      %v1262 = vpack.c.b16 %v1252, %v1251
      %v1263 = vpack.c.b16 %v1254, %v1253
      %v1264 = vpack.c.b16 %v1256, %v1255
      %v1265 = vpack.c.b16 %v1258, %v1257
      %v1266 = vpack.c.b16 %v1260, %v1259
      %v1274 = vsel %vm287, %v1220, 0
      %v1277 = vsel %vm287, %v1221, 0
      %v1280 = vsel %vm287, %v1222, 0
      %v1283 = vsel %vm287, %v1223, 0
      %1285 = vmatprep.subr.bf16.mxu0 0
      %1286 = vmatpush1.bf16.msra.mxu0 %v1261
      %1287 = vmatprep.subr.bf16.mxu0 0
      %1288 = vmatpush1.bf16.msra.mxu0 %v1262
      %1289 = vmatprep.subr.bf16.mxu0 0
      %1290 = vmatpush1.bf16.msra.mxu0 %v1263
      %1291 = vmatprep.subr.bf16.mxu0 0
      %1292 = vmatpush1.bf16.msra.mxu0 %v1264
      %1293 = vmatprep.subr.bf16.mxu0 0
      %1294 = vmatpush1.bf16.msra.mxu0 %v1265
      %1295 = vmatprep.subr.bf16.mxu0 0
      %1296 = vmatpush1.bf16.msra.mxu0 %v1266
      %1297 = vmatprep.subr.bf16.mxu0 0
      %1298 = vmatpush1.bf16.msra.mxu0 0
      %1299 = vmatprep.subr.bf16.mxu0 0
      %1300 = vmatpush1.bf16.msra.mxu0 0
      %1301 = vmatprep.subr.bf16.mxu0 0
      %1302 = vmatpush1.bf16.msra.mxu0 0
      %1303 = vmatprep.subr.bf16.mxu0 0
      %1304 = vmatpush1.bf16.msra.mxu0 0
      %1305 = vmatprep.subr.bf16.mxu0 0
      %1306 = vmatpush1.bf16.msra.mxu0 0
      %1307 = vmatprep.subr.bf16.mxu0 0
      %1308 = vmatpush1.bf16.msra.mxu0 0
      %1309 = vmatprep.subr.bf16.mxu0 0
      %1310 = vmatpush1.bf16.msra.mxu0 0
      %1311 = vmatprep.subr.bf16.mxu0 0
      %1312 = vmatpush1.bf16.msra.mxu0 0
      %1313 = vmatprep.subr.bf16.mxu0 0
      %1314 = vmatpush1.bf16.msra.mxu0 0
      %1315 = vmatprep.subr.bf16.mxu0 0
      %1316 = vmatpush1.bf16.msra.mxu0 0
      %1317 = vmatprep.mubr.bf16.mxu0 0
      %1318 = vmatmul.mubr.bf16.gmra.mrb[0].mxu0 %v1274
      %v1319 = vpop.f32.mrb[0].mxu0
      %v1320 = vadd.f32 0.0, %v1319
      %v1321 = vpop.f32.mrb[0].mxu0
      %v1322 = vpop.f32.mrb[0].mxu0
      %v1323 = vadd.f32 0.0, %v1322
      %v1324 = vpop.f32.mrb[0].mxu0
      %1325 = vmatprep.mubr.bf16.mxu0 0
      %1326 = vmatmul.mubr.bf16.gmra.mrb[0].mxu0 %v1277
      %v1327 = vpop.f32.mrb[0].mxu0
      %v1328 = vadd.f32 0.0, %v1327
      %v1329 = vpop.f32.mrb[0].mxu0
      %v1330 = vpop.f32.mrb[0].mxu0
      %v1331 = vadd.f32 0.0, %v1330
      %v1332 = vpop.f32.mrb[0].mxu0
      %1333 = vmatprep.mubr.bf16.mxu0 0
      %1334 = vmatmul.mubr.bf16.gmra.mrb[0].mxu0 %v1280
      %v1335 = vpop.f32.mrb[0].mxu0
      %v1336 = vadd.f32 0.0, %v1335
      %v1337 = vpop.f32.mrb[0].mxu0
      %v1338 = vpop.f32.mrb[0].mxu0
      %v1339 = vadd.f32 0.0, %v1338
      %v1340 = vpop.f32.mrb[0].mxu0
      %1341 = vmatprep.mubr.bf16.mxu0 0
      %1342 = vmatmul.mubr.bf16.gmra.mrb[0].mxu0 %v1283
      %v1343 = vpop.f32.mrb[0].mxu0
      %v1344 = vadd.f32 0.0, %v1343
      %v1345 = vpop.f32.mrb[0].mxu0
      %v1346 = vpop.f32.mrb[0].mxu0
      %v1347 = vadd.f32 0.0, %v1346
      %v1348 = vpop.f32.mrb[0].mxu0
      %1349 = vdwg.mxu0
      %v1350 = vadd.f32 %v1203, %v1320
      %v1351 = vadd.f32 %v1204, %v1323
      %v1352 = vadd.f32 %v1205, %v1328
      %v1353 = vadd.f32 %v1206, %v1331
      %v1354 = vadd.f32 %v1207, %v1336
      %v1355 = vadd.f32 %v1208, %v1339
      %v1356 = vadd.f32 %v1209, %v1344
      %v1357 = vadd.f32 %v1210, %v1347
      %v1358 = vld [vmem:[%s1064 + $0x1] sm:$0xff]
      %v1359 = vld [vmem:[%s1064 + $0x11] sm:$0xff]
      %v1360 = vld [vmem:[%s1064 + $0x21] sm:$0xff]
      %v1361 = vld [vmem:[%s1064 + $0x31] sm:$0xff]
      %v1362 = vld [vmem:[%s1064 + $0x41] sm:$0xff]
      %v1363 = vld [vmem:[%s1064 + $0x51] sm:$0xff]
      %v1364 = vld [vmem:[%s1064 + $0x61] sm:$0xff]
      %v1365 = vld [vmem:[%s1064 + $0x71] sm:$0xff]
      %v1366 = vpack.c.bf16 %v1359, %v1358
      %v1367 = vpack.c.bf16 %v1361, %v1360
      %v1368 = vpack.c.bf16 %v1363, %v1362
      %v1369 = vpack.c.bf16 %v1365, %v1364
      %s1370 = scalar_lea.vmem %s1, 384
      %v1371 = vld [vmem:[%s1370] sm:$0xf]
      %v1372 = vld [vmem:[%s1370 + $0x4] sm:$0xf]
      %v1373 = vld [vmem:[%s1370 + $0x8] sm:$0xf]
      %v1374 = vld [vmem:[%s1370 + $0xc] sm:$0xf]
      %v1375 = vld [vmem:[%s1370 + $0x10] sm:$0xf]
      %v1376 = vld [vmem:[%s1370 + $0x14] sm:$0xf]
      %v1377 = vld [vmem:[%s1370 + $0x18] sm:$0xf]
      %v1378 = vld [vmem:[%s1370 + $0x1c] sm:$0xf]
      %v1379 = vld [vmem:[%s1370 + $0x20] sm:$0xf]
      %v1380 = vld [vmem:[%s1370 + $0x24] sm:$0xf]
      %v1381 = vld [vmem:[%s1370 + $0x28] sm:$0xf]
      %v1382 = vld [vmem:[%s1370 + $0x2c] sm:$0xf]
      %v1395 = vunpack.c.l.b16 %v1371
      %v1396 = vunpack.c.l.b16 %v1372
      %v1397 = vunpack.c.l.b16 %v1373
      %v1398 = vunpack.c.l.b16 %v1374
      %v1399 = vunpack.c.l.b16 %v1375
      %v1400 = vunpack.c.l.b16 %v1376
      %v1401 = vunpack.c.l.b16 %v1377
      %v1402 = vunpack.c.l.b16 %v1378
      %v1403 = vunpack.c.l.b16 %v1379
      %v1404 = vunpack.c.l.b16 %v1380
      %v1405 = vunpack.c.l.b16 %v1381
      %v1406 = vunpack.c.l.b16 %v1382
      %v1407 = vpack.c.b16 %v1396, %v1395
      %v1408 = vpack.c.b16 %v1398, %v1397
      %v1409 = vpack.c.b16 %v1400, %v1399
      %v1410 = vpack.c.b16 %v1402, %v1401
      %v1411 = vpack.c.b16 %v1404, %v1403
      %v1412 = vpack.c.b16 %v1406, %v1405
      %v1420 = vsel %vm287, %v1366, 0
      %v1423 = vsel %vm287, %v1367, 0
      %v1426 = vsel %vm287, %v1368, 0
      %v1429 = vsel %vm287, %v1369, 0
      %1431 = vmatprep.subr.bf16.mxu0 0
      %1432 = vmatpush1.bf16.msra.mxu0 %v1407
      %1433 = vmatprep.subr.bf16.mxu0 0
      %1434 = vmatpush1.bf16.msra.mxu0 %v1408
      %1435 = vmatprep.subr.bf16.mxu0 0
      %1436 = vmatpush1.bf16.msra.mxu0 %v1409
      %1437 = vmatprep.subr.bf16.mxu0 0
      %1438 = vmatpush1.bf16.msra.mxu0 %v1410
      %1439 = vmatprep.subr.bf16.mxu0 0
      %1440 = vmatpush1.bf16.msra.mxu0 %v1411
      %1441 = vmatprep.subr.bf16.mxu0 0
      %1442 = vmatpush1.bf16.msra.mxu0 %v1412
      %1443 = vmatprep.subr.bf16.mxu0 0
      %1444 = vmatpush1.bf16.msra.mxu0 0
      %1445 = vmatprep.subr.bf16.mxu0 0
      %1446 = vmatpush1.bf16.msra.mxu0 0
      %1447 = vmatprep.subr.bf16.mxu0 0
      %1448 = vmatpush1.bf16.msra.mxu0 0
      %1449 = vmatprep.subr.bf16.mxu0 0
      %1450 = vmatpush1.bf16.msra.mxu0 0
      %1451 = vmatprep.subr.bf16.mxu0 0
      %1452 = vmatpush1.bf16.msra.mxu0 0
      %1453 = vmatprep.subr.bf16.mxu0 0
      %1454 = vmatpush1.bf16.msra.mxu0 0
      %1455 = vmatprep.subr.bf16.mxu0 0
      %1456 = vmatpush1.bf16.msra.mxu0 0
      %1457 = vmatprep.subr.bf16.mxu0 0
      %1458 = vmatpush1.bf16.msra.mxu0 0
      %1459 = vmatprep.subr.bf16.mxu0 0
      %1460 = vmatpush1.bf16.msra.mxu0 0
      %1461 = vmatprep.subr.bf16.mxu0 0
      %1462 = vmatpush1.bf16.msra.mxu0 0
      %1463 = vmatprep.mubr.bf16.mxu0 0
      %1464 = vmatmul.mubr.bf16.gmra.mrb[0].mxu0 %v1420
      %v1465 = vpop.f32.mrb[0].mxu0
      %v1466 = vadd.f32 0.0, %v1465
      %v1467 = vpop.f32.mrb[0].mxu0
      %v1468 = vpop.f32.mrb[0].mxu0
      %v1469 = vadd.f32 0.0, %v1468
      %v1470 = vpop.f32.mrb[0].mxu0
      %1471 = vmatprep.mubr.bf16.mxu0 0
      %1472 = vmatmul.mubr.bf16.gmra.mrb[0].mxu0 %v1423
      %v1473 = vpop.f32.mrb[0].mxu0
      %v1474 = vadd.f32 0.0, %v1473
      %v1475 = vpop.f32.mrb[0].mxu0
      %v1476 = vpop.f32.mrb[0].mxu0
      %v1477 = vadd.f32 0.0, %v1476
      %v1478 = vpop.f32.mrb[0].mxu0
      %1479 = vmatprep.mubr.bf16.mxu0 0
      %1480 = vmatmul.mubr.bf16.gmra.mrb[0].mxu0 %v1426
      %v1481 = vpop.f32.mrb[0].mxu0
      %v1482 = vadd.f32 0.0, %v1481
      %v1483 = vpop.f32.mrb[0].mxu0
      %v1484 = vpop.f32.mrb[0].mxu0
      %v1485 = vadd.f32 0.0, %v1484
      %v1486 = vpop.f32.mrb[0].mxu0
      %1487 = vmatprep.mubr.bf16.mxu0 0
      %1488 = vmatmul.mubr.bf16.gmra.mrb[0].mxu0 %v1429
      %v1489 = vpop.f32.mrb[0].mxu0
      %v1490 = vadd.f32 0.0, %v1489
      %v1491 = vpop.f32.mrb[0].mxu0
      %v1492 = vpop.f32.mrb[0].mxu0
      %v1493 = vadd.f32 0.0, %v1492
      %v1494 = vpop.f32.mrb[0].mxu0
      %1495 = vdwg.mxu0
      %v1496 = vadd.f32 %v1350, %v1466
      %v1497 = vadd.f32 %v1351, %v1469
      %v1498 = vadd.f32 %v1352, %v1474
      %v1499 = vadd.f32 %v1353, %v1477
      %v1500 = vadd.f32 %v1354, %v1482
      %v1501 = vadd.f32 %v1355, %v1485
      %v1502 = vadd.f32 %v1356, %v1490
      %v1503 = vadd.f32 %v1357, %v1493
      %v1505 = vlaneseq
      %v1506 = vshrl.u32 %v1505, 7
      %v1507 = vsub.s32 0, %v1506
      %v1508 = vrot.slane %v199, %v1507
      %v1510 = vmul.f32 %v1496, %v1508
      %v1511 = vmul.f32 %v1497, %v1508
      %v1512 = vmul.f32 %v1498, %v1508
      %v1513 = vmul.f32 %v1499, %v1508
      %v1514 = vmul.f32 %v1500, %v1508
      %v1515 = vmul.f32 %v1501, %v1508
      %v1516 = vmul.f32 %v1502, %v1508
      %v1517 = vmul.f32 %v1503, %v1508
      %v1519 = vlaneseq
      %v1520 = vshrl.u32 %v1519, 7
      %v1521 = vsub.s32 0, %v1520
      %v1522 = vrot.slane %v200, %v1521
      %v1524 = vadd.f32 %v1510, %v1522
      %v1525 = vadd.f32 %v1511, %v1522
      %v1526 = vadd.f32 %v1512, %v1522
      %v1527 = vadd.f32 %v1513, %v1522
      %v1528 = vadd.f32 %v1514, %v1522
      %v1529 = vadd.f32 %v1515, %v1522
      %v1530 = vadd.f32 %v1516, %v1522
      %v1531 = vadd.f32 %v1517, %v1522
      %vm1532 = vcmp.gt.f32.partialorder %v1524, 0.0
      %vm1533 = vcmp.gt.f32.partialorder %v1525, 0.0
      %vm1534 = vcmp.gt.f32.partialorder %v1526, 0.0
      %vm1535 = vcmp.gt.f32.partialorder %v1527, 0.0
      %vm1536 = vcmp.gt.f32.partialorder %v1528, 0.0
      %vm1537 = vcmp.gt.f32.partialorder %v1529, 0.0
      %vm1538 = vcmp.gt.f32.partialorder %v1530, 0.0
      %vm1539 = vcmp.gt.f32.partialorder %v1531, 0.0
      %v1540 = vmul.f32 %v1524, 0.2
      %v1541 = vmul.f32 %v1525, 0.2
      %v1542 = vmul.f32 %v1526, 0.2
      %v1543 = vmul.f32 %v1527, 0.2
      %v1544 = vmul.f32 %v1528, 0.2
      %v1545 = vmul.f32 %v1529, 0.2
      %v1546 = vmul.f32 %v1530, 0.2
      %v1547 = vmul.f32 %v1531, 0.2
      %v1548 = vsel %vm1532, %v1524, %v1540
      %v1549 = vsel %vm1533, %v1525, %v1541
      %v1550 = vsel %vm1534, %v1526, %v1542
      %v1551 = vsel %vm1535, %v1527, %v1543
      %v1552 = vsel %vm1536, %v1528, %v1544
      %v1553 = vsel %vm1537, %v1529, %v1545
      %v1554 = vsel %vm1538, %v1530, %v1546
      %v1555 = vsel %vm1539, %v1531, %v1547
      %1556 = vst [vmem:[%s197] sm:$0xff] %v1548
      %1557 = vst [vmem:[%s197 + $0x8] sm:$0xff] %v1549
      %1558 = vst [vmem:[%s197 + $0x10] sm:$0xff] %v1550
      %1559 = vst [vmem:[%s197 + $0x18] sm:$0xff] %v1551
      %1560 = vst [vmem:[%s197 + $0x20] sm:$0xff] %v1552
      %1561 = vst [vmem:[%s197 + $0x28] sm:$0xff] %v1553
      %1562 = vst [vmem:[%s197 + $0x30] sm:$0xff] %v1554
      %1563 = vst [vmem:[%s197 + $0x38] sm:$0xff] %v1555
      %p1564 = scmp.lt.s32.totalorder %s15, 1
      %s1565 = scalar_select %p1564, %s15, 1
      %s1566 = smul.addr %s1565, 8
      %s1567 = smul.addr %s1566, 8
      %s1568 = scalar_lea.vmem %s4, %s1567
      // Predicated region
      $region37: #{discriminator_pallas.8} parent=35 // pred_check
        %p1569 = pneg %p122
      $region38: #{discriminator_pallas.8} parent=35 // pred_check_branch
        %1571 = sbr.rel (%p1569) target = $region40
      $region39: #{discriminator_pallas.8} parent=35 // pred_region
        _
      $region40: #{discriminator_pallas.8} parent=35 // pred_fallthru
        _
    $region36: #{discriminator_pallas.8} parent=5 // pred_fallthru
      _
    %p1572 = scmp.le.s32.totalorder 2, %s10
    // Predicated region
    $region41: #{discriminator_pallas.8} parent=5 // pred_check
      %p1573 = pneg %p1572
    $region42: #{discriminator_pallas.8} parent=5 // pred_check_branch
      %1575 = sbr.rel (%p1573) target = $region44
    $region43: #{discriminator_pallas.8} parent=5 // pred_region
      %s1576 = ssub.s32 %s10, 2
      // Predicated region
      $region45: #{discriminator_pallas.8} parent=43 // pred_check
        %p1577 = pneg %p128
      $region46: #{discriminator_pallas.8} parent=43 // pred_check_branch
        %1579 = sbr.rel (%p1577) target = $region48
      $region47: #{discriminator_pallas.8} parent=43 // pred_region
        %p1580 = scmp.lt.s32.totalorder %s16, 1
        %s1581 = scalar_select %p1580, %s16, 1
        %s1582 = smul.addr %s1581, 8
        %s1583 = smul.addr %s1582, 8
        %s1584 = scalar_lea.vmem %s4, %s1583
      $region48: #{discriminator_pallas.8} parent=43 // pred_fallthru
        _
    $region44: #{discriminator_pallas.8} parent=5 // pred_fallthru
      _
  $region6: #{discriminator_pallas.8} parent=0 // loop_footer
    %s14 = sadd.s32 1, %s10
  $region7: #{discriminator_pallas.8} parent=0 // loop_footer_branch
    %9 = sbr.rel target = $region3
  $region8: #{discriminator_pallas.8} parent=0 // loop_exit
    _

// kernel: discriminator_pallas.9
$region0: #{discriminator_pallas.9}
  #allocation0 [shape = 'u32[]', space=smem, size = 0x4, offset = 0x4, fixed_abs, tag = 'smem constant byte address 0x4 - core index']
  #allocation1 [shape = 'u32[144,128]{1,0:T(1,128)}', space=vmem, size = 0x12000, scoped, tag = 'internal scratch']
  #allocation2 [shape = 'f32[1,1]{1,0:T(1,128)S(1)}', space=vmem, size = 0x200, scoped, tag = 'scoped memory for discriminator_pallas.9']
  %s0 = inlined_call_operand.vmem [shape: f32[2,8192], index: 0, kind: input, shape index: {}]
  %s1 = inlined_call_operand.vmem [shape: f32[1,8192], index: 1, kind: input, shape index: {}]
  %s2 = inlined_call_operand.<no memory space> [shape: f32[1,1], index: 2, kind: input, shape index: {}]
  %s3 = inlined_call_operand.vmem [shape: f32[2,1], index: 3, kind: output, shape index: {}]
  %s4 = sld [smem:[#allocation0]]
  $region29: #{discriminator_pallas.9} parent=0
    _
  %s6 = ssub.s32 1, %s4
  %s7 = scalar_select 0, %s6, %s4
  %v8 = vstv %s2
  %9 = vst [vmem:[#allocation2] sm:$0x1] %v8
  // Predicated region
  $region2: #{discriminator_pallas.9} parent=0 // pred_check
    _
  $region3: #{discriminator_pallas.9} parent=0 // pred_check_branch
    %11 = sbr.rel (0) target = $region5
  $region4: #{discriminator_pallas.9} parent=0 // pred_region
    _
  $region5: #{discriminator_pallas.9} parent=0 // pred_fallthru
    _
  // Predicated region
  $region6: #{discriminator_pallas.9} parent=0 // pred_check
    _
  $region7: #{discriminator_pallas.9} parent=0 // pred_check_branch
    %13 = sbr.rel (0) target = $region9
  $region8: #{discriminator_pallas.9} parent=0 // pred_region
    _
  $region9: #{discriminator_pallas.9} parent=0 // pred_fallthru
    _
  // Predicated region
  $region10: #{discriminator_pallas.9} parent=0 // pred_check
    _
  $region11: #{discriminator_pallas.9} parent=0 // pred_check_branch
    %15 = sbr.rel (0) target = $region13
  $region12: #{discriminator_pallas.9} parent=0 // pred_region
    _
  $region13: #{discriminator_pallas.9} parent=0 // pred_fallthru
    _
  loop: start=0, step=1, limit=4
  $region14: #{discriminator_pallas.9} parent=0 // loop_pre_header
    _
  $region15: #{discriminator_pallas.9} parent=0 // loop_header
    %s17 = sphi 0, %s21
    %p18 = scmp.ge.s32.totalorder %s17, 4
    %v22 = vphi 0.0, %v299
  $region16: #{discriminator_pallas.9} parent=0 // loop_header_branch
    %20 = sbr.rel (%p18) target = $region20
  $region17: #{discriminator_pallas.9} parent=0 // loop_body
    %s23 = smul.u32 %s17, 2048
    %s24 = sshra.s32 %s23, 7
    %s25 = sand.u32 %s23, 127
    %s26 = smul.addr %s24, 2
    %s27 = scalar_lea.vmem %s0, %s26
    %v28 = vld [vmem:[%s27] sm:$0xff]
    %v29 = vld [vmem:[%s27 + $0x8] sm:$0xff]
    %v30 = vld [vmem:[%s27 + $0x10] sm:$0xff]
    %v31 = vld [vmem:[%s27 + $0x18] sm:$0xff]
    %s32 = scalar_lea.vmem %s1, %s24
    %v33 = vld [vmem:[%s32] sm:$0xff]
    %v34 = vld [vmem:[%s32 + $0x8] sm:$0xff]
    %v37 = vlaneseq
    %v38 = vshrl.u32 %v37, 7
    %v39 = vsub.s32 0, %v38
    %v40 = vrot.slane %v33, %v39
    %v41 = vlaneseq
    %v42 = vshrl.u32 %v41, 7
    %v43 = vsub.s32 1, %v42
    %v44 = vrot.slane %v33, %v43
    %v45 = vlaneseq
    %v46 = vshrl.u32 %v45, 7
    %v47 = vsub.s32 2, %v46
    %v48 = vrot.slane %v33, %v47
    %v49 = vlaneseq
    %v50 = vshrl.u32 %v49, 7
    %v51 = vsub.s32 3, %v50
    %v52 = vrot.slane %v33, %v51
    %v53 = vlaneseq
    %v54 = vshrl.u32 %v53, 7
    %v55 = vsub.s32 4, %v54
    %v56 = vrot.slane %v33, %v55
    %v57 = vlaneseq
    %v58 = vshrl.u32 %v57, 7
    %v59 = vsub.s32 5, %v58
    %v60 = vrot.slane %v33, %v59
    %v61 = vlaneseq
    %v62 = vshrl.u32 %v61, 7
    %v63 = vsub.s32 6, %v62
    %v64 = vrot.slane %v33, %v63
    %v65 = vlaneseq
    %v66 = vshrl.u32 %v65, 7
    %v67 = vsub.s32 7, %v66
    %v68 = vrot.slane %v33, %v67
    %v69 = vlaneseq
    %v70 = vshrl.u32 %v69, 7
    %v71 = vsub.s32 0, %v70
    %v72 = vrot.slane %v34, %v71
    %v73 = vlaneseq
    %v74 = vshrl.u32 %v73, 7
    %v75 = vsub.s32 1, %v74
    %v76 = vrot.slane %v34, %v75
    %v77 = vlaneseq
    %v78 = vshrl.u32 %v77, 7
    %v79 = vsub.s32 2, %v78
    %v80 = vrot.slane %v34, %v79
    %v81 = vlaneseq
    %v82 = vshrl.u32 %v81, 7
    %v83 = vsub.s32 3, %v82
    %v84 = vrot.slane %v34, %v83
    %v85 = vlaneseq
    %v86 = vshrl.u32 %v85, 7
    %v87 = vsub.s32 4, %v86
    %v88 = vrot.slane %v34, %v87
    %v89 = vlaneseq
    %v90 = vshrl.u32 %v89, 7
    %v91 = vsub.s32 5, %v90
    %v92 = vrot.slane %v34, %v91
    %v93 = vlaneseq
    %v94 = vshrl.u32 %v93, 7
    %v95 = vsub.s32 6, %v94
    %v96 = vrot.slane %v34, %v95
    %v97 = vlaneseq
    %v98 = vshrl.u32 %v97, 7
    %v99 = vsub.s32 7, %v98
    %v100 = vrot.slane %v34, %v99
    %v101 = vcombine.low %v40, %v44
    %v102 = vcombine.low %v48, %v52
    %v104 = vunpack.c.l.s4 1983009808
    %v105 = vunpack.c.0.s8 %v104
    %v106 = vlaneseq
    %v107 = vshrl.u32 %v106, 7
    %v108 = vsub.s32 %v105, %v107
    %v109 = vrot.slane %v101, %v108
    %v111 = vunpack.c.l.s4 1983009808
    %v112 = vunpack.c.0.s8 %v111
    %v113 = vlaneseq
    %v114 = vshrl.u32 %v113, 7
    %v115 = vsub.s32 %v112, %v114
    %v116 = vrot.slane %v102, %v115
    %v117 = vcombine.low %v109, %v116
    %v118 = vcombine.low %v56, %v60
    %v119 = vcombine.low %v64, %v68
    %v121 = vunpack.c.l.s4 1983009808
    %v122 = vunpack.c.0.s8 %v121
    %v123 = vlaneseq
    %v124 = vshrl.u32 %v123, 7
    %v125 = vsub.s32 %v122, %v124
    %v126 = vrot.slane %v118, %v125
    %v128 = vunpack.c.l.s4 1983009808
    %v129 = vunpack.c.0.s8 %v128
    %v130 = vlaneseq
    %v131 = vshrl.u32 %v130, 7
    %v132 = vsub.s32 %v129, %v131
    %v133 = vrot.slane %v119, %v132
    %v134 = vcombine.low %v126, %v133
    %v135 = vcombine.low %v72, %v76
    %v136 = vcombine.low %v80, %v84
    %v138 = vunpack.c.l.s4 1983009808
    %v139 = vunpack.c.0.s8 %v138
    %v140 = vlaneseq
    %v141 = vshrl.u32 %v140, 7
    %v142 = vsub.s32 %v139, %v141
    %v143 = vrot.slane %v135, %v142
    %v145 = vunpack.c.l.s4 1983009808
    %v146 = vunpack.c.0.s8 %v145
    %v147 = vlaneseq
    %v148 = vshrl.u32 %v147, 7
    %v149 = vsub.s32 %v146, %v148
    %v150 = vrot.slane %v136, %v149
    %v151 = vcombine.low %v143, %v150
    %v152 = vcombine.low %v88, %v92
    %v153 = vcombine.low %v96, %v100
    %v155 = vunpack.c.l.s4 1983009808
    %v156 = vunpack.c.0.s8 %v155
    %v157 = vlaneseq
    %v158 = vshrl.u32 %v157, 7
    %v159 = vsub.s32 %v156, %v158
    %v160 = vrot.slane %v152, %v159
    %v162 = vunpack.c.l.s4 1983009808
    %v163 = vunpack.c.0.s8 %v162
    %v164 = vlaneseq
    %v165 = vshrl.u32 %v164, 7
    %v166 = vsub.s32 %v163, %v165
    %v167 = vrot.slane %v153, %v166
    %v168 = vcombine.low %v160, %v167
    %v173 = vmul.f32 %v28, %v117
    %v174 = vmul.f32 %v29, %v134
    %v175 = vmul.f32 %v30, %v151
    %v176 = vmul.f32 %v31, %v168
    %v181 = vcombine.high %v173, %v173
    %v183 = vunpack.c.l.s4 1983009808
    %v184 = vunpack.c.0.s8 %v183
    %v185 = vlaneseq
    %v186 = vshrl.u32 %v185, 7
    %v187 = vsub.s32 %v184, %v186
    %v188 = vrot.slane %v173, %v187
    %v190 = vunpack.c.l.s4 1983009808
    %v191 = vunpack.c.0.s8 %v190
    %v192 = vlaneseq
    %v193 = vshrl.u32 %v192, 7
    %v194 = vsub.s32 %v191, %v193
    %v195 = vrot.slane %v181, %v194
    %v196 = vcombine.high %v188, %v188
    %v197 = vcombine.high %v195, %v195
    %v198 = vcombine.high %v174, %v174
    %v200 = vunpack.c.l.s4 1983009808
    %v201 = vunpack.c.0.s8 %v200
    %v202 = vlaneseq
    %v203 = vshrl.u32 %v202, 7
    %v204 = vsub.s32 %v201, %v203
    %v205 = vrot.slane %v174, %v204
    %v207 = vunpack.c.l.s4 1983009808
    %v208 = vunpack.c.0.s8 %v207
    %v209 = vlaneseq
    %v210 = vshrl.u32 %v209, 7
    %v211 = vsub.s32 %v208, %v210
    %v212 = vrot.slane %v198, %v211
    %v213 = vcombine.high %v205, %v205
    %v214 = vcombine.high %v212, %v212
    %v215 = vcombine.high %v175, %v175
    %v217 = vunpack.c.l.s4 1983009808
    %v218 = vunpack.c.0.s8 %v217
    %v219 = vlaneseq
    %v220 = vshrl.u32 %v219, 7
    %v221 = vsub.s32 %v218, %v220
    %v222 = vrot.slane %v175, %v221
    %v224 = vunpack.c.l.s4 1983009808
    %v225 = vunpack.c.0.s8 %v224
    %v226 = vlaneseq
    %v227 = vshrl.u32 %v226, 7
    %v228 = vsub.s32 %v225, %v227
    %v229 = vrot.slane %v215, %v228
    %v230 = vcombine.high %v222, %v222
    %v231 = vcombine.high %v229, %v229
    %v232 = vcombine.high %v176, %v176
    %v234 = vunpack.c.l.s4 1983009808
    %v235 = vunpack.c.0.s8 %v234
    %v236 = vlaneseq
    %v237 = vshrl.u32 %v236, 7
    %v238 = vsub.s32 %v235, %v237
    %v239 = vrot.slane %v176, %v238
    %v241 = vunpack.c.l.s4 1983009808
    %v242 = vunpack.c.0.s8 %v241
    %v243 = vlaneseq
    %v244 = vshrl.u32 %v243, 7
    %v245 = vsub.s32 %v242, %v244
    %v246 = vrot.slane %v232, %v245
    %v247 = vcombine.high %v239, %v239
    %v248 = vcombine.high %v246, %v246
    %vm265 = vcmask 1041408
    %v266 = vsel %vm265, %v188, 0.0
    %v267 = vsel %vm265, %v196, 0.0
    %v268 = vadd.f32 %v266, %v267
    %v269 = vsel %vm265, %v195, 0.0
    %v270 = vadd.f32 %v268, %v269
    %v271 = vsel %vm265, %v197, 0.0
    %v272 = vadd.f32 %v270, %v271
    %v273 = vsel %vm265, %v205, 0.0
    %v274 = vadd.f32 %v272, %v273
    %v275 = vsel %vm265, %v213, 0.0
    %v276 = vadd.f32 %v274, %v275
    %v277 = vsel %vm265, %v212, 0.0
    %v278 = vadd.f32 %v276, %v277
    %v279 = vsel %vm265, %v214, 0.0
    %v280 = vadd.f32 %v278, %v279
    %v281 = vsel %vm265, %v222, 0.0
    %v282 = vadd.f32 %v280, %v281
    %v283 = vsel %vm265, %v230, 0.0
    %v284 = vadd.f32 %v282, %v283
    %v285 = vsel %vm265, %v229, 0.0
    %v286 = vadd.f32 %v284, %v285
    %v287 = vsel %vm265, %v231, 0.0
    %v288 = vadd.f32 %v286, %v287
    %v289 = vsel %vm265, %v239, 0.0
    %v290 = vadd.f32 %v288, %v289
    %v291 = vsel %vm265, %v247, 0.0
    %v292 = vadd.f32 %v290, %v291
    %v293 = vsel %vm265, %v246, 0.0
    %v294 = vadd.f32 %v292, %v293
    %v295 = vsel %vm265, %v248, 0.0
    %v296 = vadd.f32 %v294, %v295
    %297 = vadd.xlane.f32.xlu0 %v296
    %v298 = vpop.xlane.xlu0 %297
    %v299 = vadd.f32 %v22, %v298
  $region18: #{discriminator_pallas.9} parent=0 // loop_footer
    %s21 = sadd.s32 1, %s17
  $region19: #{discriminator_pallas.9} parent=0 // loop_footer_branch
    %16 = sbr.rel target = $region15
  $region20: #{discriminator_pallas.9} parent=0 // loop_exit
    _
  %v300 = vld [vmem:[#allocation2] sm:$0x1]
  %v302 = vlaneseq
  %v303 = vshrl.u32 %v302, 7
  %v304 = vsub.s32 0, %v303
  %v305 = vrot.slane %v300, %v304
  %v307 = vadd.f32 %v22, %v305
  %vm308 = vcmask 1024
  %309 = vst.msk [vmem:[%s3] sm:$0x3] %vm308, %v307
  // Predicated region
  $region21: #{discriminator_pallas.9} parent=0 // pred_check
    _
  $region22: #{discriminator_pallas.9} parent=0 // pred_check_branch
    %311 = sbr.rel (0) target = $region24
  $region23: #{discriminator_pallas.9} parent=0 // pred_region
    _
  $region24: #{discriminator_pallas.9} parent=0 // pred_fallthru
    _
  // Predicated region
  $region25: #{discriminator_pallas.9} parent=0 // pred_check
    _
  $region26: #{discriminator_pallas.9} parent=0 // pred_check_branch
    %313 = sbr.rel (0) target = $region28
  $region27: #{discriminator_pallas.9} parent=0 // pred_region
    _
  $region28: #{discriminator_pallas.9} parent=0 // pred_fallthru
    _

</llo_original>
